<compile_context>
chip_gen: v7x
topology: tpu7x:2x2x1
jax: 0.10.0
libtpu: 0.0.40
codegen_flags: <defaults>
</compile_context>

<pallas_src>
import math
import functools

import jax
import jax.numpy as jnp
from jax import lax
from jax.experimental import pallas as pl
from jax.experimental.pallas import tpu as pltpu


# ----------------------------- kernel helpers -------------------------------

def _layer_norm(t, gamma, beta, eps):
    mu = jnp.mean(t, axis=-1, keepdims=True)
    var = jnp.mean((t - mu) ** 2, axis=-1, keepdims=True)
    return (t - mu) * jax.lax.rsqrt(var + eps) * gamma + beta


def _gelu_tanh(x):
    # tanh-approx GELU (single EUP tanh; error vs exact erf GELU ~3e-4).
    c = math.sqrt(2.0 / math.pi)
    return 0.5 * x * (1.0 + jnp.tanh(c * (x + 0.044715 * x * x * x)))


# ----------------------------- Pallas kernel --------------------------------

def gpt2_layer_kernel(x_ref,
                      wqkv_ref, bqkv_ref, wo_ref, bo_ref,
                      g1_ref, be1_ref,
                      w1_ref, b1_ref, w2_ref, b2_ref,
                      g2_ref, be2_ref,
                      o_ref, ctx_ref, *, n_head, eps):
    bt, S, H = x_ref.shape
    M = bt * S
    hd = H // n_head
    scale = 1.0 / math.sqrt(hd)

    # Residual path in f32; batch folded into GEMM M dimension.
    x = x_ref[...].astype(jnp.float32).reshape(M, H)

    # ---- fused QKV projection: one lane-dense (M,H)x(H,3H) bf16 matmul -----
    xb = x.astype(jnp.bfloat16)
    qkv = jnp.dot(xb, wqkv_ref[...],
                  preferred_element_type=jnp.float32) + bqkv_ref[0]   # (M,3H) f32

    # ---- in-kernel causal mask (== generate_causal_mask(seq_len)) ----------
    # Full (S,S) iota is negligible at S=16; regenerate per (tq,tk) tile once
    # the flash restructure lands (see TODO at top).
    row = lax.broadcasted_iota(jnp.int32, (S, S), 0)
    col = lax.broadcasted_iota(jnp.int32, (S, S), 1)
    causal = col <= row

    # ---- attention: per-sequence, per-head; probs dropout = identity --------
    # Each head's context is stored straight into the (M,H) VMEM scratch at a
    # static lane offset (no ctx list / concatenate; intermediates retire per
    # head).
    for bi in range(bt):                                   # static batch loop
        r0 = bi * S
        for h in range(n_head):                            # static head loop
            c0 = h * hd
            qh = qkv[r0:r0 + S, c0:c0 + hd].astype(jnp.bfloat16)
            kh = qkv[r0:r0 + S, H + c0:H + c0 + hd].astype(jnp.bfloat16)
            vh = qkv[r0:r0 + S, 2 * H + c0:2 * H + c0 + hd].astype(jnp.bfloat16)
            # Contract on K's last dim directly (no kh.T / XLU transpose).
            s = lax.dot_general(qh, kh, (((1,), (1,)), ((), ())),
                                preferred_element_type=jnp.float32) * scale
            s = jnp.where(causal, s, -1e30)                # masked_fill(mask==0, -inf)
            s = s - jnp.max(s, axis=-1, keepdims=True)
            p = jnp.exp(s)                                 # f32 softmax
            p = p * pl.reciprocal(jnp.sum(p, axis=-1, keepdims=True), approx=True)
            ctx_ref[r0:r0 + S, c0:c0 + hd] = jnp.dot(
                p.astype(jnp.bfloat16), vh, preferred_element_type=jnp.float32)

    # ---- attention output projection + residual (add(): dropout = identity) -
    attn = jnp.dot(ctx_ref[...].astype(jnp.bfloat16), wo_ref[...],
                   preferred_element_type=jnp.float32) + bo_ref[0]
    y = _layer_norm(x + attn, g1_ref[0], be1_ref[0], eps)   # attention_layer_norm

    # ---- feed forward --------------------------------------------------------
    h1 = jnp.dot(y.astype(jnp.bfloat16), w1_ref[...],
                 preferred_element_type=jnp.float32) + b1_ref[0]
    h1 = _gelu_tanh(h1)
    ff = jnp.dot(h1.astype(jnp.bfloat16), w2_ref[...],
                 preferred_element_type=jnp.float32) + b2_ref[0]
    z = _layer_norm(y + ff, g2_ref[0], be2_ref[0], eps)     # out_layer_norm

    o_ref[...] = z.reshape(bt, S, H).astype(o_ref.dtype)


# ------------------------------- wrapper -------------------------------------

PARAM_ORDER = ['wqkv', 'bqkv', 'wo', 'bo', 'g1', 'be1',
               'w1', 'b1', 'w2', 'b2', 'g2', 'be2']


def prepare_gpt2_layer_params(params):
    """One-time parameter prep (do this ONCE, reuse across calls): fuse the
    Q/K/V projection weights and cast matmul weights to bf16 for HBM storage.
    Biases / LayerNorm scales stay f32."""
    wqkv = jnp.concatenate([params['wq'], params['wk'], params['wv']],
                           axis=1).astype(jnp.bfloat16)                  # (H, 3H)
    bqkv = jnp.concatenate([params['bq'], params['bk'], params['bv']],
                           axis=1).astype(jnp.float32)                   # (1, 3H)
    return {
        'wqkv': wqkv, 'bqkv': bqkv,
        'wo': params['wo'].astype(jnp.bfloat16), 'bo': params['bo'],
        'g1': params['g1'], 'be1': params['be1'],
        'w1': params['w1'].astype(jnp.bfloat16), 'b1': params['b1'],
        'w2': params['w2'].astype(jnp.bfloat16), 'b2': params['b2'],
        'g2': params['g2'], 'be2': params['be2'],
    }


def _pick_block_batch(B, S, target_rows=256):
    """Fold as many sequences per grid step as keeps the GEMM M around
    target_rows (MXU row occupancy) while dividing B evenly."""
    bt = max(1, min(B, max(1, target_rows // S)))
    while B % bt != 0:
        bt -= 1
    return bt


def gpt2_layer_pallas(x, prepped, *, n_head, eps=1e-5, out_dtype=None,
                      block_batch=None):
    """x: (B,S,H) f32.  prepped: output of prepare_gpt2_layer_params.
    Causal mask is generated in-kernel.  out_dtype=bf16 halves writeback DMA."""
    B, S, H = x.shape
    out_dtype = x.dtype if out_dtype is None else out_dtype
    bt = _pick_block_batch(B, S) if block_batch is None else block_batch
    assert B % bt == 0 and H % n_head == 0

    plist = [prepped[k] for k in PARAM_ORDER]
    kernel = functools.partial(gpt2_layer_kernel, n_head=n_head, eps=eps)

    def build(single_buffer_weights):
        in_specs = [pl.BlockSpec((bt, S, H), lambda b: (b, 0, 0))]
        for arr in plist:  # grid-invariant weights/biases (all 2-D)
            if single_buffer_weights:
                spec = pl.BlockSpec(arr.shape, lambda b: (0, 0),
                                    pipeline_mode=pl.Buffered(1))
            else:
                spec = pl.BlockSpec(arr.shape, lambda b: (0, 0))
            in_specs.append(spec)
        return pl.pallas_call(
            kernel,
            out_shape=jax.ShapeDtypeStruct((B, S, H), out_dtype),
            grid_spec=pltpu.PrefetchScalarGridSpec(
                num_scalar_prefetch=0,
                grid=(B // bt,),
                in_specs=in_specs,
                out_specs=pl.BlockSpec((bt, S, H), lambda b: (b, 0, 0)),
                scratch_shapes=[pltpu.VMEM((bt * S, H), jnp.float32)],
            ),
            compiler_params=pltpu.CompilerParams(
                dimension_semantics=("parallel",),
                vmem_limit_bytes=48 * 1024 * 1024,
            ),
        )

    try:
        return build(single_buffer_weights=True)(x, *plist)
    except Exception:
        # Fallback if this jax build rejects pipeline_mode=pl.Buffered(1) on
        # grid-invariant operands; identical semantics, default buffering.
        return build(single_buffer_weights=False)(x, *plist)


# ----------------------------- pure-JAX reference ----------------------------
# Faithful f32 reference of the PyTorch module (exact erf GELU).

def gpt2_layer_ref(x, p, *, n_head, eps=1e-5):
    B, S, H = x.shape
    hd = H // n_head
    mask = jnp.tril(jnp.ones((S, S), jnp.float32))            # generate_causal_mask

    def split(t):
        return t.reshape(B, S, n_head, hd).transpose(0, 2, 1, 3)

    q = split(x @ p['wq'] + p['bq'][0])
    k = split(x @ p['wk'] + p['bk'][0])
    v = split(x @ p['wv'] + p['bv'][0])
    s = jnp.einsum('bhqd,bhkd->bhqk', q, k) / math.sqrt(hd)
    s = jnp.where(mask[None, None] > 0.0, s, -1e30)
    a = jax.nn.softmax(s, axis=-1)
    ctx = jnp.einsum('bhqk,bhkd->bhqd', a, v).transpose(0, 2, 1, 3).reshape(B, S, H)

    def ln(t, g, b):
        mu = t.mean(-1, keepdims=True)
        var = ((t - mu) ** 2).mean(-1, keepdims=True)
        return (t - mu) * jax.lax.rsqrt(var + eps) * g[0] + b[0]

    y = ln(x + ctx @ p['wo'] + p['bo'][0], p['g1'], p['be1'])
    h1 = y @ p['w1'] + p['b1'][0]
    h1 = 0.5 * h1 * (1.0 + jax.scipy.special.erf(h1 / math.sqrt(2.0)))
    z = y + h1 @ p['w2'] + p['b2'][0]
    return ln(z, p['g2'], p['be2'])


# ---------------------------------- main --------------------------------------

def init_params(key, H, I):
    ks = jax.random.split(key, 12)
    std = 0.02
    nrm = lambda k, shape: (std * jax.random.normal(k, shape)).astype(jnp.float32)
    return {
        'wq': nrm(ks[0], (H, H)), 'bq': nrm(ks[1], (1, H)),
        'wk': nrm(ks[2], (H, H)), 'bk': nrm(ks[3], (1, H)),
        'wv': nrm(ks[4], (H, H)), 'bv': nrm(ks[5], (1, H)),
        'wo': nrm(ks[6], (H, H)), 'bo': nrm(ks[7], (1, H)),
        'g1': jnp.ones((1, H), jnp.float32), 'be1': jnp.zeros((1, H), jnp.float32),
        'w1': nrm(ks[8], (H, I)), 'b1': nrm(ks[9], (1, I)),
        'w2': nrm(ks[10], (I, H)), 'b2': nrm(ks[11], (1, H)),
        'g2': jnp.ones((1, H), jnp.float32), 'be2': jnp.zeros((1, H), jnp.float32),
    }


if __name__ == "__main__":
    # Small shapes consistent with the module: seq_len=16 (module constant),
    # hidden divisible by n_head, intermediate = 4 * hidden.  H=128 keeps the
    # output last dim lane-dense.
    B, S, H, N_HEAD = 2, 16, 128, 4
    I = 4 * H
    EPS = 1e-5

    key = jax.random.PRNGKey(0)
    k_x, k_p = jax.random.split(key)
    x = jax.random.normal(k_x, (B, S, H), dtype=jnp.float32)
    params = init_params(k_p, H, I)

    # One-time weight prep, reused across both calls below (hoisted out of the
    # per-call path per the perf review).
    prepped = jax.block_until_ready(prepare_gpt2_layer_params(params))

    ref = gpt2_layer_ref(x, params, n_head=N_HEAD, eps=EPS)

    # f32-output call (matches the module's dtype).
    out = gpt2_layer_pallas(x, prepped, n_head=N_HEAD, eps=EPS)
    out = jax.block_until_ready(out)
    assert out.shape == (B, S, H)
    # bf16 MXU operands (f32 accumulation) + tanh-approx GELU + approx
    # reciprocal introduce ~1e-3-level differences vs the exact f32 reference.
    assert jnp.allclose(out, ref, rtol=1e-2, atol=1e-2), "f32 mismatch vs reference"

    # bf16-output call (halves activation writeback DMA), reusing the same
    # prepped weights.  In-kernel math is still f32.
    out_bf16 = gpt2_layer_pallas(x, prepped, n_head=N_HEAD, eps=EPS,
                                 out_dtype=jnp.bfloat16)
    out_bf16 = jax.block_until_ready(out_bf16)
    assert out_bf16.dtype == jnp.bfloat16
    assert jnp.allclose(out_bf16.astype(jnp.float32), ref, rtol=3e-2, atol=3e-2), \
        "bf16 mismatch vs reference"

    print("KERNEL_OK")
</pallas_src>

<mosaic_0001>
module attributes {stable_mosaic.version = 11 : i64} {
  func.func @gpt2_layer_kernel(%arg0: i32, %arg1: memref<2x16x128xf32, #tpu.memory_space<vmem>>, %arg2: memref<128x384xbf16, #tpu.memory_space<vmem>>, %arg3: memref<1x384xf32, #tpu.memory_space<vmem>>, %arg4: memref<128x128xbf16, #tpu.memory_space<vmem>>, %arg5: memref<1x128xf32, #tpu.memory_space<vmem>>, %arg6: memref<1x128xf32, #tpu.memory_space<vmem>>, %arg7: memref<1x128xf32, #tpu.memory_space<vmem>>, %arg8: memref<128x512xbf16, #tpu.memory_space<vmem>>, %arg9: memref<1x512xf32, #tpu.memory_space<vmem>>, %arg10: memref<512x128xbf16, #tpu.memory_space<vmem>>, %arg11: memref<1x128xf32, #tpu.memory_space<vmem>>, %arg12: memref<1x128xf32, #tpu.memory_space<vmem>>, %arg13: memref<1x128xf32, #tpu.memory_space<vmem>>, %arg14: memref<2x16x128xf32, #tpu.memory_space<vmem>>, %arg15: memref<32x128xf32, #tpu.memory_space<vmem>>) attributes {dimension_semantics = [#tpu.dimension_semantics<parallel>], iteration_bounds = array<i64: 1>, scalar_prefetch = 0 : i64, scratch_operands = 1 : i64, tpu.core_type = #tpu.core_type<tc>, window_params = [{transform_indices = @transform_0, window_bounds = array<i64: 2, 16, 128>}, {pipeline_mode = #tpu.pipeline_mode<synchronous>, transform_indices = @transform_1, window_bounds = array<i64: 128, 384>}, {pipeline_mode = #tpu.pipeline_mode<synchronous>, transform_indices = @transform_2, window_bounds = array<i64: 1, 384>}, {pipeline_mode = #tpu.pipeline_mode<synchronous>, transform_indices = @transform_3, window_bounds = array<i64: 128, 128>}, {pipeline_mode = #tpu.pipeline_mode<synchronous>, transform_indices = @transform_4, window_bounds = array<i64: 1, 128>}, {pipeline_mode = #tpu.pipeline_mode<synchronous>, transform_indices = @transform_5, window_bounds = array<i64: 1, 128>}, {pipeline_mode = #tpu.pipeline_mode<synchronous>, transform_indices = @transform_6, window_bounds = array<i64: 1, 128>}, {pipeline_mode = #tpu.pipeline_mode<synchronous>, transform_indices = @transform_7, window_bounds = array<i64: 128, 512>}, {pipeline_mode = #tpu.pipeline_mode<synchronous>, transform_indices = @transform_8, window_bounds = array<i64: 1, 512>}, {pipeline_mode = #tpu.pipeline_mode<synchronous>, transform_indices = @transform_9, window_bounds = array<i64: 512, 128>}, {pipeline_mode = #tpu.pipeline_mode<synchronous>, transform_indices = @transform_10, window_bounds = array<i64: 1, 128>}, {pipeline_mode = #tpu.pipeline_mode<synchronous>, transform_indices = @transform_11, window_bounds = array<i64: 1, 128>}, {pipeline_mode = #tpu.pipeline_mode<synchronous>, transform_indices = @transform_12, window_bounds = array<i64: 1, 128>}, {transform_indices = @transform_13, window_bounds = array<i64: 2, 16, 128>}]} {
    %c0 = arith.constant 0 : index
    %c0_0 = arith.constant 0 : index
    %c0_1 = arith.constant 0 : index
    %0 = vector.load %arg1[%c0, %c0_0, %c0_1] : memref<2x16x128xf32, #tpu.memory_space<vmem>>, vector<2x16x128xf32>
    %1 = vector.shape_cast %0 : vector<2x16x128xf32> to vector<32x128xf32>
    %2 = arith.truncf %1 : vector<32x128xf32> to vector<32x128xbf16>
    %c0_2 = arith.constant 0 : index
    %c0_3 = arith.constant 0 : index
    %3 = vector.load %arg2[%c0_2, %c0_3] : memref<128x384xbf16, #tpu.memory_space<vmem>>, vector<128x384xbf16>
    %cst = arith.constant dense<0.000000e+00> : vector<32x384xf32>
    %4 = tpu.matmul %2, %3, %cst {dimension_numbers = #tpu.dot_dimension_numbers<[1], [0], [0], [1], [0, 0, 1, 1], [], []>} : vector<32x128xbf16>, vector<128x384xbf16>, vector<32x384xf32> -> vector<32x384xf32>
    %c0_4 = arith.constant 0 : index
    %c0_5 = arith.constant 0 : index
    %5 = vector.load %arg3[%c0_4, %c0_5] : memref<1x384xf32, #tpu.memory_space<vmem>>, vector<1x384xf32>
    %6 = vector.shape_cast %5 : vector<1x384xf32> to vector<384xf32>
    %7 = vector.shape_cast %6 : vector<384xf32> to vector<1x384xf32>
    %8 = vector.broadcast %7 : vector<1x384xf32> to vector<32x384xf32>
    %9 = arith.addf %4, %8 : vector<32x384xf32>
    %10 = tpu.iota {dimensions = array<i32: 0>} : vector<16x16xi32>
    %11 = tpu.iota {dimensions = array<i32: 1>} : vector<16x16xi32>
    %12 = arith.cmpi sle, %11, %10 : vector<16x16xi32>
    %13 = vector.extract_strided_slice %9 {offsets = [0, 0], sizes = [16, 32], strides = [1, 1]} : vector<32x384xf32> to vector<16x32xf32>
    %14 = arith.truncf %13 : vector<16x32xf32> to vector<16x32xbf16>
    %15 = vector.extract_strided_slice %9 {offsets = [0, 128], sizes = [16, 32], strides = [1, 1]} : vector<32x384xf32> to vector<16x32xf32>
    %16 = arith.truncf %15 : vector<16x32xf32> to vector<16x32xbf16>
    %17 = vector.extract_strided_slice %9 {offsets = [0, 256], sizes = [16, 32], strides = [1, 1]} : vector<32x384xf32> to vector<16x32xf32>
    %18 = arith.truncf %17 : vector<16x32xf32> to vector<16x32xbf16>
    %cst_6 = arith.constant dense<0.000000e+00> : vector<16x16xf32>
    %19 = tpu.matmul %14, %16, %cst_6 {dimension_numbers = #tpu.dot_dimension_numbers<[1], [1], [0], [0], [0, 0, 1, 0], [], []>} : vector<16x32xbf16>, vector<16x32xbf16>, vector<16x16xf32> -> vector<16x16xf32>
    %cst_7 = arith.constant 0.176776692 : f32
    %20 = vector.broadcast %cst_7 : f32 to vector<16x16xf32>
    %21 = arith.mulf %19, %20 : vector<16x16xf32>
    %cst_8 = arith.constant -1.000000e+30 : f32
    %22 = vector.broadcast %cst_8 : f32 to vector<16x16xf32>
    %23 = arith.select %12, %21, %22 : vector<16x16xi1>, vector<16x16xf32>
    %cst_9 = arith.constant dense<0xFF800000> : vector<16xf32>
    %24 = vector.multi_reduction <maximumf>, %23, %cst_9 [1] : vector<16x16xf32> to vector<16xf32>
    %25 = vector.shape_cast %24 : vector<16xf32> to vector<16x1xf32>
    %26 = vector.broadcast %25 : vector<16x1xf32> to vector<16x16xf32>
    %27 = arith.subf %23, %26 : vector<16x16xf32>
    %28 = math.exp %27 : vector<16x16xf32>
    %cst_10 = arith.constant dense<0.000000e+00> : vector<16xf32>
    %29 = vector.multi_reduction <add>, %28, %cst_10 [1] : vector<16x16xf32> to vector<16xf32>
    %30 = vector.shape_cast %29 : vector<16xf32> to vector<16x1xf32>
    %31 = tpu.reciprocal %30 {approx = true} : vector<16x1xf32> -> vector<16x1xf32>
    %32 = vector.broadcast %31 : vector<16x1xf32> to vector<16x16xf32>
    %33 = arith.mulf %28, %32 : vector<16x16xf32>
    %34 = arith.truncf %33 : vector<16x16xf32> to vector<16x16xbf16>
    %cst_11 = arith.constant dense<0.000000e+00> : vector<16x32xf32>
    %35 = tpu.matmul %34, %18, %cst_11 {dimension_numbers = #tpu.dot_dimension_numbers<[1], [0], [0], [1], [0, 0, 1, 1], [], []>} : vector<16x16xbf16>, vector<16x32xbf16>, vector<16x32xf32> -> vector<16x32xf32>
    %c0_12 = arith.constant 0 : index
    %c0_13 = arith.constant 0 : index
    %36 = vector.load %arg15[%c0_12, %c0_13] : memref<32x128xf32, #tpu.memory_space<vmem>>, vector<16x32xf32>
    tpu.vector_store %arg15[%c0_12, %c0_13], %35 {strides = array<i32>} : memref<32x128xf32, #tpu.memory_space<vmem>>, vector<16x32xf32>,
    %37 = vector.extract_strided_slice %9 {offsets = [0, 32], sizes = [16, 32], strides = [1, 1]} : vector<32x384xf32> to vector<16x32xf32>
    %38 = arith.truncf %37 : vector<16x32xf32> to vector<16x32xbf16>
    %39 = vector.extract_strided_slice %9 {offsets = [0, 160], sizes = [16, 32], strides = [1, 1]} : vector<32x384xf32> to vector<16x32xf32>
    %40 = arith.truncf %39 : vector<16x32xf32> to vector<16x32xbf16>
    %41 = vector.extract_strided_slice %9 {offsets = [0, 288], sizes = [16, 32], strides = [1, 1]} : vector<32x384xf32> to vector<16x32xf32>
    %42 = arith.truncf %41 : vector<16x32xf32> to vector<16x32xbf16>
    %cst_14 = arith.constant dense<0.000000e+00> : vector<16x16xf32>
    %43 = tpu.matmul %38, %40, %cst_14 {dimension_numbers = #tpu.dot_dimension_numbers<[1], [1], [0], [0], [0, 0, 1, 0], [], []>} : vector<16x32xbf16>, vector<16x32xbf16>, vector<16x16xf32> -> vector<16x16xf32>
    %cst_15 = arith.constant 0.176776692 : f32
    %44 = vector.broadcast %cst_15 : f32 to vector<16x16xf32>
    %45 = arith.mulf %43, %44 : vector<16x16xf32>
    %cst_16 = arith.constant -1.000000e+30 : f32
    %46 = vector.broadcast %cst_16 : f32 to vector<16x16xf32>
    %47 = arith.select %12, %45, %46 : vector<16x16xi1>, vector<16x16xf32>
    %cst_17 = arith.constant dense<0xFF800000> : vector<16xf32>
    %48 = vector.multi_reduction <maximumf>, %47, %cst_17 [1] : vector<16x16xf32> to vector<16xf32>
    %49 = vector.shape_cast %48 : vector<16xf32> to vector<16x1xf32>
    %50 = vector.broadcast %49 : vector<16x1xf32> to vector<16x16xf32>
    %51 = arith.subf %47, %50 : vector<16x16xf32>
    %52 = math.exp %51 : vector<16x16xf32>
    %cst_18 = arith.constant dense<0.000000e+00> : vector<16xf32>
    %53 = vector.multi_reduction <add>, %52, %cst_18 [1] : vector<16x16xf32> to vector<16xf32>
    %54 = vector.shape_cast %53 : vector<16xf32> to vector<16x1xf32>
    %55 = tpu.reciprocal %54 {approx = true} : vector<16x1xf32> -> vector<16x1xf32>
    %56 = vector.broadcast %55 : vector<16x1xf32> to vector<16x16xf32>
    %57 = arith.mulf %52, %56 : vector<16x16xf32>
    %58 = arith.truncf %57 : vector<16x16xf32> to vector<16x16xbf16>
    %cst_19 = arith.constant dense<0.000000e+00> : vector<16x32xf32>
    %59 = tpu.matmul %58, %42, %cst_19 {dimension_numbers = #tpu.dot_dimension_numbers<[1], [0], [0], [1], [0, 0, 1, 1], [], []>} : vector<16x16xbf16>, vector<16x32xbf16>, vector<16x32xf32> -> vector<16x32xf32>
    %c0_20 = arith.constant 0 : index
    %c32 = arith.constant 32 : index
    %60 = vector.load %arg15[%c0_20, %c32] : memref<32x128xf32, #tpu.memory_space<vmem>>, vector<16x32xf32>
    tpu.vector_store %arg15[%c0_20, %c32], %59 {strides = array<i32>} : memref<32x128xf32, #tpu.memory_space<vmem>>, vector<16x32xf32>,
    %61 = vector.extract_strided_slice %9 {offsets = [0, 64], sizes = [16, 32], strides = [1, 1]} : vector<32x384xf32> to vector<16x32xf32>
    %62 = arith.truncf %61 : vector<16x32xf32> to vector<16x32xbf16>
    %63 = vector.extract_strided_slice %9 {offsets = [0, 192], sizes = [16, 32], strides = [1, 1]} : vector<32x384xf32> to vector<16x32xf32>
    %64 = arith.truncf %63 : vector<16x32xf32> to vector<16x32xbf16>
    %65 = vector.extract_strided_slice %9 {offsets = [0, 320], sizes = [16, 32], strides = [1, 1]} : vector<32x384xf32> to vector<16x32xf32>
    %66 = arith.truncf %65 : vector<16x32xf32> to vector<16x32xbf16>
    %cst_21 = arith.constant dense<0.000000e+00> : vector<16x16xf32>
    %67 = tpu.matmul %62, %64, %cst_21 {dimension_numbers = #tpu.dot_dimension_numbers<[1], [1], [0], [0], [0, 0, 1, 0], [], []>} : vector<16x32xbf16>, vector<16x32xbf16>, vector<16x16xf32> -> vector<16x16xf32>
    %cst_22 = arith.constant 0.176776692 : f32
    %68 = vector.broadcast %cst_22 : f32 to vector<16x16xf32>
    %69 = arith.mulf %67, %68 : vector<16x16xf32>
    %cst_23 = arith.constant -1.000000e+30 : f32
    %70 = vector.broadcast %cst_23 : f32 to vector<16x16xf32>
    %71 = arith.select %12, %69, %70 : vector<16x16xi1>, vector<16x16xf32>
    %cst_24 = arith.constant dense<0xFF800000> : vector<16xf32>
    %72 = vector.multi_reduction <maximumf>, %71, %cst_24 [1] : vector<16x16xf32> to vector<16xf32>
    %73 = vector.shape_cast %72 : vector<16xf32> to vector<16x1xf32>
    %74 = vector.broadcast %73 : vector<16x1xf32> to vector<16x16xf32>
    %75 = arith.subf %71, %74 : vector<16x16xf32>
    %76 = math.exp %75 : vector<16x16xf32>
    %cst_25 = arith.constant dense<0.000000e+00> : vector<16xf32>
    %77 = vector.multi_reduction <add>, %76, %cst_25 [1] : vector<16x16xf32> to vector<16xf32>
    %78 = vector.shape_cast %77 : vector<16xf32> to vector<16x1xf32>
    %79 = tpu.reciprocal %78 {approx = true} : vector<16x1xf32> -> vector<16x1xf32>
    %80 = vector.broadcast %79 : vector<16x1xf32> to vector<16x16xf32>
    %81 = arith.mulf %76, %80 : vector<16x16xf32>
    %82 = arith.truncf %81 : vector<16x16xf32> to vector<16x16xbf16>
    %cst_26 = arith.constant dense<0.000000e+00> : vector<16x32xf32>
    %83 = tpu.matmul %82, %66, %cst_26 {dimension_numbers = #tpu.dot_dimension_numbers<[1], [0], [0], [1], [0, 0, 1, 1], [], []>} : vector<16x16xbf16>, vector<16x32xbf16>, vector<16x32xf32> -> vector<16x32xf32>
    %c0_27 = arith.constant 0 : index
    %c64 = arith.constant 64 : index
    %84 = vector.load %arg15[%c0_27, %c64] : memref<32x128xf32, #tpu.memory_space<vmem>>, vector<16x32xf32>
    tpu.vector_store %arg15[%c0_27, %c64], %83 {strides = array<i32>} : memref<32x128xf32, #tpu.memory_space<vmem>>, vector<16x32xf32>,
    %85 = vector.extract_strided_slice %9 {offsets = [0, 96], sizes = [16, 32], strides = [1, 1]} : vector<32x384xf32> to vector<16x32xf32>
    %86 = arith.truncf %85 : vector<16x32xf32> to vector<16x32xbf16>
    %87 = vector.extract_strided_slice %9 {offsets = [0, 224], sizes = [16, 32], strides = [1, 1]} : vector<32x384xf32> to vector<16x32xf32>
    %88 = arith.truncf %87 : vector<16x32xf32> to vector<16x32xbf16>
    %89 = vector.extract_strided_slice %9 {offsets = [0, 352], sizes = [16, 32], strides = [1, 1]} : vector<32x384xf32> to vector<16x32xf32>
    %90 = arith.truncf %89 : vector<16x32xf32> to vector<16x32xbf16>
    %cst_28 = arith.constant dense<0.000000e+00> : vector<16x16xf32>
    %91 = tpu.matmul %86, %88, %cst_28 {dimension_numbers = #tpu.dot_dimension_numbers<[1], [1], [0], [0], [0, 0, 1, 0], [], []>} : vector<16x32xbf16>, vector<16x32xbf16>, vector<16x16xf32> -> vector<16x16xf32>
    %cst_29 = arith.constant 0.176776692 : f32
    %92 = vector.broadcast %cst_29 : f32 to vector<16x16xf32>
    %93 = arith.mulf %91, %92 : vector<16x16xf32>
    %cst_30 = arith.constant -1.000000e+30 : f32
    %94 = vector.broadcast %cst_30 : f32 to vector<16x16xf32>
    %95 = arith.select %12, %93, %94 : vector<16x16xi1>, vector<16x16xf32>
    %cst_31 = arith.constant dense<0xFF800000> : vector<16xf32>
    %96 = vector.multi_reduction <maximumf>, %95, %cst_31 [1] : vector<16x16xf32> to vector<16xf32>
    %97 = vector.shape_cast %96 : vector<16xf32> to vector<16x1xf32>
    %98 = vector.broadcast %97 : vector<16x1xf32> to vector<16x16xf32>
    %99 = arith.subf %95, %98 : vector<16x16xf32>
    %100 = math.exp %99 : vector<16x16xf32>
    %cst_32 = arith.constant dense<0.000000e+00> : vector<16xf32>
    %101 = vector.multi_reduction <add>, %100, %cst_32 [1] : vector<16x16xf32> to vector<16xf32>
    %102 = vector.shape_cast %101 : vector<16xf32> to vector<16x1xf32>
    %103 = tpu.reciprocal %102 {approx = true} : vector<16x1xf32> -> vector<16x1xf32>
    %104 = vector.broadcast %103 : vector<16x1xf32> to vector<16x16xf32>
    %105 = arith.mulf %100, %104 : vector<16x16xf32>
    %106 = arith.truncf %105 : vector<16x16xf32> to vector<16x16xbf16>
    %cst_33 = arith.constant dense<0.000000e+00> : vector<16x32xf32>
    %107 = tpu.matmul %106, %90, %cst_33 {dimension_numbers = #tpu.dot_dimension_numbers<[1], [0], [0], [1], [0, 0, 1, 1], [], []>} : vector<16x16xbf16>, vector<16x32xbf16>, vector<16x32xf32> -> vector<16x32xf32>
    %c0_34 = arith.constant 0 : index
    %c96 = arith.constant 96 : index
    %108 = vector.load %arg15[%c0_34, %c96] : memref<32x128xf32, #tpu.memory_space<vmem>>, vector<16x32xf32>
    tpu.vector_store %arg15[%c0_34, %c96], %107 {strides = array<i32>} : memref<32x128xf32, #tpu.memory_space<vmem>>, vector<16x32xf32>,
    %109 = vector.extract_strided_slice %9 {offsets = [16, 0], sizes = [16, 32], strides = [1, 1]} : vector<32x384xf32> to vector<16x32xf32>
    %110 = arith.truncf %109 : vector<16x32xf32> to vector<16x32xbf16>
    %111 = vector.extract_strided_slice %9 {offsets = [16, 128], sizes = [16, 32], strides = [1, 1]} : vector<32x384xf32> to vector<16x32xf32>
    %112 = arith.truncf %111 : vector<16x32xf32> to vector<16x32xbf16>
    %113 = vector.extract_strided_slice %9 {offsets = [16, 256], sizes = [16, 32], strides = [1, 1]} : vector<32x384xf32> to vector<16x32xf32>
    %114 = arith.truncf %113 : vector<16x32xf32> to vector<16x32xbf16>
    %cst_35 = arith.constant dense<0.000000e+00> : vector<16x16xf32>
    %115 = tpu.matmul %110, %112, %cst_35 {dimension_numbers = #tpu.dot_dimension_numbers<[1], [1], [0], [0], [0, 0, 1, 0], [], []>} : vector<16x32xbf16>, vector<16x32xbf16>, vector<16x16xf32> -> vector<16x16xf32>
    %cst_36 = arith.constant 0.176776692 : f32
    %116 = vector.broadcast %cst_36 : f32 to vector<16x16xf32>
    %117 = arith.mulf %115, %116 : vector<16x16xf32>
    %cst_37 = arith.constant -1.000000e+30 : f32
    %118 = vector.broadcast %cst_37 : f32 to vector<16x16xf32>
    %119 = arith.select %12, %117, %118 : vector<16x16xi1>, vector<16x16xf32>
    %cst_38 = arith.constant dense<0xFF800000> : vector<16xf32>
    %120 = vector.multi_reduction <maximumf>, %119, %cst_38 [1] : vector<16x16xf32> to vector<16xf32>
    %121 = vector.shape_cast %120 : vector<16xf32> to vector<16x1xf32>
    %122 = vector.broadcast %121 : vector<16x1xf32> to vector<16x16xf32>
    %123 = arith.subf %119, %122 : vector<16x16xf32>
    %124 = math.exp %123 : vector<16x16xf32>
    %cst_39 = arith.constant dense<0.000000e+00> : vector<16xf32>
    %125 = vector.multi_reduction <add>, %124, %cst_39 [1] : vector<16x16xf32> to vector<16xf32>
    %126 = vector.shape_cast %125 : vector<16xf32> to vector<16x1xf32>
    %127 = tpu.reciprocal %126 {approx = true} : vector<16x1xf32> -> vector<16x1xf32>
    %128 = vector.broadcast %127 : vector<16x1xf32> to vector<16x16xf32>
    %129 = arith.mulf %124, %128 : vector<16x16xf32>
    %130 = arith.truncf %129 : vector<16x16xf32> to vector<16x16xbf16>
    %cst_40 = arith.constant dense<0.000000e+00> : vector<16x32xf32>
    %131 = tpu.matmul %130, %114, %cst_40 {dimension_numbers = #tpu.dot_dimension_numbers<[1], [0], [0], [1], [0, 0, 1, 1], [], []>} : vector<16x16xbf16>, vector<16x32xbf16>, vector<16x32xf32> -> vector<16x32xf32>
    %c16 = arith.constant 16 : index
    %c0_41 = arith.constant 0 : index
    %132 = vector.load %arg15[%c16, %c0_41] : memref<32x128xf32, #tpu.memory_space<vmem>>, vector<16x32xf32>
    tpu.vector_store %arg15[%c16, %c0_41], %131 {strides = array<i32>} : memref<32x128xf32, #tpu.memory_space<vmem>>, vector<16x32xf32>,
    %133 = vector.extract_strided_slice %9 {offsets = [16, 32], sizes = [16, 32], strides = [1, 1]} : vector<32x384xf32> to vector<16x32xf32>
    %134 = arith.truncf %133 : vector<16x32xf32> to vector<16x32xbf16>
    %135 = vector.extract_strided_slice %9 {offsets = [16, 160], sizes = [16, 32], strides = [1, 1]} : vector<32x384xf32> to vector<16x32xf32>
    %136 = arith.truncf %135 : vector<16x32xf32> to vector<16x32xbf16>
    %137 = vector.extract_strided_slice %9 {offsets = [16, 288], sizes = [16, 32], strides = [1, 1]} : vector<32x384xf32> to vector<16x32xf32>
    %138 = arith.truncf %137 : vector<16x32xf32> to vector<16x32xbf16>
    %cst_42 = arith.constant dense<0.000000e+00> : vector<16x16xf32>
    %139 = tpu.matmul %134, %136, %cst_42 {dimension_numbers = #tpu.dot_dimension_numbers<[1], [1], [0], [0], [0, 0, 1, 0], [], []>} : vector<16x32xbf16>, vector<16x32xbf16>, vector<16x16xf32> -> vector<16x16xf32>
    %cst_43 = arith.constant 0.176776692 : f32
    %140 = vector.broadcast %cst_43 : f32 to vector<16x16xf32>
    %141 = arith.mulf %139, %140 : vector<16x16xf32>
    %cst_44 = arith.constant -1.000000e+30 : f32
    %142 = vector.broadcast %cst_44 : f32 to vector<16x16xf32>
    %143 = arith.select %12, %141, %142 : vector<16x16xi1>, vector<16x16xf32>
    %cst_45 = arith.constant dense<0xFF800000> : vector<16xf32>
    %144 = vector.multi_reduction <maximumf>, %143, %cst_45 [1] : vector<16x16xf32> to vector<16xf32>
    %145 = vector.shape_cast %144 : vector<16xf32> to vector<16x1xf32>
    %146 = vector.broadcast %145 : vector<16x1xf32> to vector<16x16xf32>
    %147 = arith.subf %143, %146 : vector<16x16xf32>
    %148 = math.exp %147 : vector<16x16xf32>
    %cst_46 = arith.constant dense<0.000000e+00> : vector<16xf32>
    %149 = vector.multi_reduction <add>, %148, %cst_46 [1] : vector<16x16xf32> to vector<16xf32>
    %150 = vector.shape_cast %149 : vector<16xf32> to vector<16x1xf32>
    %151 = tpu.reciprocal %150 {approx = true} : vector<16x1xf32> -> vector<16x1xf32>
    %152 = vector.broadcast %151 : vector<16x1xf32> to vector<16x16xf32>
    %153 = arith.mulf %148, %152 : vector<16x16xf32>
    %154 = arith.truncf %153 : vector<16x16xf32> to vector<16x16xbf16>
    %cst_47 = arith.constant dense<0.000000e+00> : vector<16x32xf32>
    %155 = tpu.matmul %154, %138, %cst_47 {dimension_numbers = #tpu.dot_dimension_numbers<[1], [0], [0], [1], [0, 0, 1, 1], [], []>} : vector<16x16xbf16>, vector<16x32xbf16>, vector<16x32xf32> -> vector<16x32xf32>
    %c16_48 = arith.constant 16 : index
    %c32_49 = arith.constant 32 : index
    %156 = vector.load %arg15[%c16_48, %c32_49] : memref<32x128xf32, #tpu.memory_space<vmem>>, vector<16x32xf32>
    tpu.vector_store %arg15[%c16_48, %c32_49], %155 {strides = array<i32>} : memref<32x128xf32, #tpu.memory_space<vmem>>, vector<16x32xf32>,
    %157 = vector.extract_strided_slice %9 {offsets = [16, 64], sizes = [16, 32], strides = [1, 1]} : vector<32x384xf32> to vector<16x32xf32>
    %158 = arith.truncf %157 : vector<16x32xf32> to vector<16x32xbf16>
    %159 = vector.extract_strided_slice %9 {offsets = [16, 192], sizes = [16, 32], strides = [1, 1]} : vector<32x384xf32> to vector<16x32xf32>
    %160 = arith.truncf %159 : vector<16x32xf32> to vector<16x32xbf16>
    %161 = vector.extract_strided_slice %9 {offsets = [16, 320], sizes = [16, 32], strides = [1, 1]} : vector<32x384xf32> to vector<16x32xf32>
    %162 = arith.truncf %161 : vector<16x32xf32> to vector<16x32xbf16>
    %cst_50 = arith.constant dense<0.000000e+00> : vector<16x16xf32>
    %163 = tpu.matmul %158, %160, %cst_50 {dimension_numbers = #tpu.dot_dimension_numbers<[1], [1], [0], [0], [0, 0, 1, 0], [], []>} : vector<16x32xbf16>, vector<16x32xbf16>, vector<16x16xf32> -> vector<16x16xf32>
    %cst_51 = arith.constant 0.176776692 : f32
    %164 = vector.broadcast %cst_51 : f32 to vector<16x16xf32>
    %165 = arith.mulf %163, %164 : vector<16x16xf32>
    %cst_52 = arith.constant -1.000000e+30 : f32
    %166 = vector.broadcast %cst_52 : f32 to vector<16x16xf32>
    %167 = arith.select %12, %165, %166 : vector<16x16xi1>, vector<16x16xf32>
    %cst_53 = arith.constant dense<0xFF800000> : vector<16xf32>
    %168 = vector.multi_reduction <maximumf>, %167, %cst_53 [1] : vector<16x16xf32> to vector<16xf32>
    %169 = vector.shape_cast %168 : vector<16xf32> to vector<16x1xf32>
    %170 = vector.broadcast %169 : vector<16x1xf32> to vector<16x16xf32>
    %171 = arith.subf %167, %170 : vector<16x16xf32>
    %172 = math.exp %171 : vector<16x16xf32>
    %cst_54 = arith.constant dense<0.000000e+00> : vector<16xf32>
    %173 = vector.multi_reduction <add>, %172, %cst_54 [1] : vector<16x16xf32> to vector<16xf32>
    %174 = vector.shape_cast %173 : vector<16xf32> to vector<16x1xf32>
    %175 = tpu.reciprocal %174 {approx = true} : vector<16x1xf32> -> vector<16x1xf32>
    %176 = vector.broadcast %175 : vector<16x1xf32> to vector<16x16xf32>
    %177 = arith.mulf %172, %176 : vector<16x16xf32>
    %178 = arith.truncf %177 : vector<16x16xf32> to vector<16x16xbf16>
    %cst_55 = arith.constant dense<0.000000e+00> : vector<16x32xf32>
    %179 = tpu.matmul %178, %162, %cst_55 {dimension_numbers = #tpu.dot_dimension_numbers<[1], [0], [0], [1], [0, 0, 1, 1], [], []>} : vector<16x16xbf16>, vector<16x32xbf16>, vector<16x32xf32> -> vector<16x32xf32>
    %c16_56 = arith.constant 16 : index
    %c64_57 = arith.constant 64 : index
    %180 = vector.load %arg15[%c16_56, %c64_57] : memref<32x128xf32, #tpu.memory_space<vmem>>, vector<16x32xf32>
    tpu.vector_store %arg15[%c16_56, %c64_57], %179 {strides = array<i32>} : memref<32x128xf32, #tpu.memory_space<vmem>>, vector<16x32xf32>,
    %181 = vector.extract_strided_slice %9 {offsets = [16, 96], sizes = [16, 32], strides = [1, 1]} : vector<32x384xf32> to vector<16x32xf32>
    %182 = arith.truncf %181 : vector<16x32xf32> to vector<16x32xbf16>
    %183 = vector.extract_strided_slice %9 {offsets = [16, 224], sizes = [16, 32], strides = [1, 1]} : vector<32x384xf32> to vector<16x32xf32>
    %184 = arith.truncf %183 : vector<16x32xf32> to vector<16x32xbf16>
    %185 = vector.extract_strided_slice %9 {offsets = [16, 352], sizes = [16, 32], strides = [1, 1]} : vector<32x384xf32> to vector<16x32xf32>
    %186 = arith.truncf %185 : vector<16x32xf32> to vector<16x32xbf16>
    %cst_58 = arith.constant dense<0.000000e+00> : vector<16x16xf32>
    %187 = tpu.matmul %182, %184, %cst_58 {dimension_numbers = #tpu.dot_dimension_numbers<[1], [1], [0], [0], [0, 0, 1, 0], [], []>} : vector<16x32xbf16>, vector<16x32xbf16>, vector<16x16xf32> -> vector<16x16xf32>
    %cst_59 = arith.constant 0.176776692 : f32
    %188 = vector.broadcast %cst_59 : f32 to vector<16x16xf32>
    %189 = arith.mulf %187, %188 : vector<16x16xf32>
    %cst_60 = arith.constant -1.000000e+30 : f32
    %190 = vector.broadcast %cst_60 : f32 to vector<16x16xf32>
    %191 = arith.select %12, %189, %190 : vector<16x16xi1>, vector<16x16xf32>
    %cst_61 = arith.constant dense<0xFF800000> : vector<16xf32>
    %192 = vector.multi_reduction <maximumf>, %191, %cst_61 [1] : vector<16x16xf32> to vector<16xf32>
    %193 = vector.shape_cast %192 : vector<16xf32> to vector<16x1xf32>
    %194 = vector.broadcast %193 : vector<16x1xf32> to vector<16x16xf32>
    %195 = arith.subf %191, %194 : vector<16x16xf32>
    %196 = math.exp %195 : vector<16x16xf32>
    %cst_62 = arith.constant dense<0.000000e+00> : vector<16xf32>
    %197 = vector.multi_reduction <add>, %196, %cst_62 [1] : vector<16x16xf32> to vector<16xf32>
    %198 = vector.shape_cast %197 : vector<16xf32> to vector<16x1xf32>
    %199 = tpu.reciprocal %198 {approx = true} : vector<16x1xf32> -> vector<16x1xf32>
    %200 = vector.broadcast %199 : vector<16x1xf32> to vector<16x16xf32>
    %201 = arith.mulf %196, %200 : vector<16x16xf32>
    %202 = arith.truncf %201 : vector<16x16xf32> to vector<16x16xbf16>
    %cst_63 = arith.constant dense<0.000000e+00> : vector<16x32xf32>
    %203 = tpu.matmul %202, %186, %cst_63 {dimension_numbers = #tpu.dot_dimension_numbers<[1], [0], [0], [1], [0, 0, 1, 1], [], []>} : vector<16x16xbf16>, vector<16x32xbf16>, vector<16x32xf32> -> vector<16x32xf32>
    %c16_64 = arith.constant 16 : index
    %c96_65 = arith.constant 96 : index
    %204 = vector.load %arg15[%c16_64, %c96_65] : memref<32x128xf32, #tpu.memory_space<vmem>>, vector<16x32xf32>
    tpu.vector_store %arg15[%c16_64, %c96_65], %203 {strides = array<i32>} : memref<32x128xf32, #tpu.memory_space<vmem>>, vector<16x32xf32>,
    %c0_66 = arith.constant 0 : index
    %c0_67 = arith.constant 0 : index
    %205 = vector.load %arg15[%c0_66, %c0_67] : memref<32x128xf32, #tpu.memory_space<vmem>>, vector<32x128xf32>
    %206 = arith.truncf %205 : vector<32x128xf32> to vector<32x128xbf16>
    %c0_68 = arith.constant 0 : index
    %c0_69 = arith.constant 0 : index
    %207 = vector.load %arg4[%c0_68, %c0_69] : memref<128x128xbf16, #tpu.memory_space<vmem>>, vector<128x128xbf16>
    %cst_70 = arith.constant dense<0.000000e+00> : vector<32x128xf32>
    %208 = tpu.matmul %206, %207, %cst_70 {dimension_numbers = #tpu.dot_dimension_numbers<[1], [0], [0], [1], [0, 0, 1, 1], [], []>} : vector<32x128xbf16>, vector<128x128xbf16>, vector<32x128xf32> -> vector<32x128xf32>
    %c0_71 = arith.constant 0 : index
    %c0_72 = arith.constant 0 : index
    %209 = vector.load %arg5[%c0_71, %c0_72] : memref<1x128xf32, #tpu.memory_space<vmem>>, vector<1x128xf32>
    %210 = vector.shape_cast %209 : vector<1x128xf32> to vector<128xf32>
    %211 = vector.shape_cast %210 : vector<128xf32> to vector<1x128xf32>
    %212 = vector.broadcast %211 : vector<1x128xf32> to vector<32x128xf32>
    %213 = arith.addf %208, %212 : vector<32x128xf32>
    %214 = arith.addf %1, %213 : vector<32x128xf32>
    %c0_73 = arith.constant 0 : index
    %c0_74 = arith.constant 0 : index
    %215 = vector.load %arg6[%c0_73, %c0_74] : memref<1x128xf32, #tpu.memory_space<vmem>>, vector<1x128xf32>
    %216 = vector.shape_cast %215 : vector<1x128xf32> to vector<128xf32>
    %c0_75 = arith.constant 0 : index
    %c0_76 = arith.constant 0 : index
    %217 = vector.load %arg7[%c0_75, %c0_76] : memref<1x128xf32, #tpu.memory_space<vmem>>, vector<1x128xf32>
    %218 = vector.shape_cast %217 : vector<1x128xf32> to vector<128xf32>
    %cst_77 = arith.constant dense<0.000000e+00> : vector<32xf32>
    %219 = vector.multi_reduction <add>, %214, %cst_77 [1] : vector<32x128xf32> to vector<32xf32>
    %220 = vector.shape_cast %219 : vector<32xf32> to vector<32x1xf32>
    %cst_78 = arith.constant 1.280000e+02 : f32
    %221 = vector.broadcast %cst_78 : f32 to vector<32x1xf32>
    %222 = arith.divf %220, %221 : vector<32x1xf32>
    %223 = vector.broadcast %222 : vector<32x1xf32> to vector<32x128xf32>
    %224 = arith.subf %214, %223 : vector<32x128xf32>
    %225 = arith.mulf %224, %224 : vector<32x128xf32>
    %cst_79 = arith.constant dense<0.000000e+00> : vector<32xf32>
    %226 = vector.multi_reduction <add>, %225, %cst_79 [1] : vector<32x128xf32> to vector<32xf32>
    %227 = vector.shape_cast %226 : vector<32xf32> to vector<32x1xf32>
    %cst_80 = arith.constant 1.280000e+02 : f32
    %228 = vector.broadcast %cst_80 : f32 to vector<32x1xf32>
    %229 = arith.divf %227, %228 : vector<32x1xf32>
    %230 = vector.broadcast %222 : vector<32x1xf32> to vector<32x128xf32>
    %231 = arith.subf %214, %230 : vector<32x128xf32>
    %cst_81 = arith.constant 9.99999974E-6 : f32
    %232 = vector.broadcast %cst_81 : f32 to vector<32x1xf32>
    %233 = arith.addf %229, %232 : vector<32x1xf32>
    %234 = math.rsqrt %233 : vector<32x1xf32>
    %235 = vector.broadcast %234 : vector<32x1xf32> to vector<32x128xf32>
    %236 = arith.mulf %231, %235 : vector<32x128xf32>
    %237 = vector.shape_cast %216 : vector<128xf32> to vector<1x128xf32>
    %238 = vector.broadcast %237 : vector<1x128xf32> to vector<32x128xf32>
    %239 = arith.mulf %236, %238 : vector<32x128xf32>
    %240 = vector.shape_cast %218 : vector<128xf32> to vector<1x128xf32>
    %241 = vector.broadcast %240 : vector<1x128xf32> to vector<32x128xf32>
    %242 = arith.addf %239, %241 : vector<32x128xf32>
    %243 = arith.truncf %242 : vector<32x128xf32> to vector<32x128xbf16>
    %c0_82 = arith.constant 0 : index
    %c0_83 = arith.constant 0 : index
    %244 = vector.load %arg8[%c0_82, %c0_83] : memref<128x512xbf16, #tpu.memory_space<vmem>>, vector<128x512xbf16>
    %cst_84 = arith.constant dense<0.000000e+00> : vector<32x512xf32>
    %245 = tpu.matmul %243, %244, %cst_84 {dimension_numbers = #tpu.dot_dimension_numbers<[1], [0], [0], [1], [0, 0, 1, 1], [], []>} : vector<32x128xbf16>, vector<128x512xbf16>, vector<32x512xf32> -> vector<32x512xf32>
    %c0_85 = arith.constant 0 : index
    %c0_86 = arith.constant 0 : index
    %246 = vector.load %arg9[%c0_85, %c0_86] : memref<1x512xf32, #tpu.memory_space<vmem>>, vector<1x512xf32>
    %247 = vector.shape_cast %246 : vector<1x512xf32> to vector<512xf32>
    %248 = vector.shape_cast %247 : vector<512xf32> to vector<1x512xf32>
    %249 = vector.broadcast %248 : vector<1x512xf32> to vector<32x512xf32>
    %250 = arith.addf %245, %249 : vector<32x512xf32>
    %cst_87 = arith.constant 5.000000e-01 : f32
    %251 = vector.broadcast %cst_87 : f32 to vector<32x512xf32>
    %252 = arith.mulf %251, %250 : vector<32x512xf32>
    %cst_88 = arith.constant 4.471500e-02 : f32
    %253 = vector.broadcast %cst_88 : f32 to vector<32x512xf32>
    %254 = arith.mulf %253, %250 : vector<32x512xf32>
    %255 = arith.mulf %254, %250 : vector<32x512xf32>
    %256 = arith.mulf %255, %250 : vector<32x512xf32>
    %257 = arith.addf %250, %256 : vector<32x512xf32>
    %cst_89 = arith.constant 0.797884583 : f32
    %258 = vector.broadcast %cst_89 : f32 to vector<32x512xf32>
    %259 = arith.mulf %258, %257 : vector<32x512xf32>
    %260 = math.tanh %259 : vector<32x512xf32>
    %cst_90 = arith.constant 1.000000e+00 : f32
    %261 = vector.broadcast %cst_90 : f32 to vector<32x512xf32>
    %262 = arith.addf %261, %260 : vector<32x512xf32>
    %263 = arith.mulf %252, %262 : vector<32x512xf32>
    %264 = arith.truncf %263 : vector<32x512xf32> to vector<32x512xbf16>
    %c0_91 = arith.constant 0 : index
    %c0_92 = arith.constant 0 : index
    %265 = vector.load %arg10[%c0_91, %c0_92] : memref<512x128xbf16, #tpu.memory_space<vmem>>, vector<512x128xbf16>
    %cst_93 = arith.constant dense<0.000000e+00> : vector<32x128xf32>
    %266 = tpu.matmul %264, %265, %cst_93 {dimension_numbers = #tpu.dot_dimension_numbers<[1], [0], [0], [1], [0, 0, 1, 1], [], []>} : vector<32x512xbf16>, vector<512x128xbf16>, vector<32x128xf32> -> vector<32x128xf32>
    %c0_94 = arith.constant 0 : index
    %c0_95 = arith.constant 0 : index
    %267 = vector.load %arg11[%c0_94, %c0_95] : memref<1x128xf32, #tpu.memory_space<vmem>>, vector<1x128xf32>
    %268 = vector.shape_cast %267 : vector<1x128xf32> to vector<128xf32>
    %269 = vector.shape_cast %268 : vector<128xf32> to vector<1x128xf32>
    %270 = vector.broadcast %269 : vector<1x128xf32> to vector<32x128xf32>
    %271 = arith.addf %266, %270 : vector<32x128xf32>
    %272 = arith.addf %242, %271 : vector<32x128xf32>
    %c0_96 = arith.constant 0 : index
    %c0_97 = arith.constant 0 : index
    %273 = vector.load %arg12[%c0_96, %c0_97] : memref<1x128xf32, #tpu.memory_space<vmem>>, vector<1x128xf32>
    %274 = vector.shape_cast %273 : vector<1x128xf32> to vector<128xf32>
    %c0_98 = arith.constant 0 : index
    %c0_99 = arith.constant 0 : index
    %275 = vector.load %arg13[%c0_98, %c0_99] : memref<1x128xf32, #tpu.memory_space<vmem>>, vector<1x128xf32>
    %276 = vector.shape_cast %275 : vector<1x128xf32> to vector<128xf32>
    %cst_100 = arith.constant dense<0.000000e+00> : vector<32xf32>
    %277 = vector.multi_reduction <add>, %272, %cst_100 [1] : vector<32x128xf32> to vector<32xf32>
    %278 = vector.shape_cast %277 : vector<32xf32> to vector<32x1xf32>
    %cst_101 = arith.constant 1.280000e+02 : f32
    %279 = vector.broadcast %cst_101 : f32 to vector<32x1xf32>
    %280 = arith.divf %278, %279 : vector<32x1xf32>
    %281 = vector.broadcast %280 : vector<32x1xf32> to vector<32x128xf32>
    %282 = arith.subf %272, %281 : vector<32x128xf32>
    %283 = arith.mulf %282, %282 : vector<32x128xf32>
    %cst_102 = arith.constant dense<0.000000e+00> : vector<32xf32>
    %284 = vector.multi_reduction <add>, %283, %cst_102 [1] : vector<32x128xf32> to vector<32xf32>
    %285 = vector.shape_cast %284 : vector<32xf32> to vector<32x1xf32>
    %cst_103 = arith.constant 1.280000e+02 : f32
    %286 = vector.broadcast %cst_103 : f32 to vector<32x1xf32>
    %287 = arith.divf %285, %286 : vector<32x1xf32>
    %288 = vector.broadcast %280 : vector<32x1xf32> to vector<32x128xf32>
    %289 = arith.subf %272, %288 : vector<32x128xf32>
    %cst_104 = arith.constant 9.99999974E-6 : f32
    %290 = vector.broadcast %cst_104 : f32 to vector<32x1xf32>
    %291 = arith.addf %287, %290 : vector<32x1xf32>
    %292 = math.rsqrt %291 : vector<32x1xf32>
    %293 = vector.broadcast %292 : vector<32x1xf32> to vector<32x128xf32>
    %294 = arith.mulf %289, %293 : vector<32x128xf32>
    %295 = vector.shape_cast %274 : vector<128xf32> to vector<1x128xf32>
    %296 = vector.broadcast %295 : vector<1x128xf32> to vector<32x128xf32>
    %297 = arith.mulf %294, %296 : vector<32x128xf32>
    %298 = vector.shape_cast %276 : vector<128xf32> to vector<1x128xf32>
    %299 = vector.broadcast %298 : vector<1x128xf32> to vector<32x128xf32>
    %300 = arith.addf %297, %299 : vector<32x128xf32>
    %301 = vector.shape_cast %300 : vector<32x128xf32> to vector<2x16x128xf32>
    %c0_105 = arith.constant 0 : index
    %c0_106 = arith.constant 0 : index
    %c0_107 = arith.constant 0 : index
    %302 = vector.load %arg14[%c0_105, %c0_106, %c0_107] : memref<2x16x128xf32, #tpu.memory_space<vmem>>, vector<2x16x128xf32>
    tpu.vector_store %arg14[%c0_105, %c0_106, %c0_107], %301 {strides = array<i32>} : memref<2x16x128xf32, #tpu.memory_space<vmem>>, vector<2x16x128xf32>,
    return
  }
  func.func @transform_0(%arg0: i32) -> (i32, i32, i32) {
    %c0_i32 = arith.constant 0 : i32
    %c0_i32_0 = arith.constant 0 : i32
    %c0_i32_1 = arith.constant 0 : i32
    return %arg0, %c0_i32, %c0_i32_0 : i32, i32, i32
  }
  func.func @transform_1(%arg0: i32) -> (i32, i32) {
    %c0_i32 = arith.constant 0 : i32
    %c0_i32_0 = arith.constant 0 : i32
    %c0_i32_1 = arith.constant 0 : i32
    return %c0_i32, %c0_i32_0 : i32, i32
  }
  func.func @transform_2(%arg0: i32) -> (i32, i32) {
    %c0_i32 = arith.constant 0 : i32
    %c0_i32_0 = arith.constant 0 : i32
    %c0_i32_1 = arith.constant 0 : i32
    return %c0_i32, %c0_i32_0 : i32, i32
  }
  func.func @transform_3(%arg0: i32) -> (i32, i32) {
    %c0_i32 = arith.constant 0 : i32
    %c0_i32_0 = arith.constant 0 : i32
    %c0_i32_1 = arith.constant 0 : i32
    return %c0_i32, %c0_i32_0 : i32, i32
  }
  func.func @transform_4(%arg0: i32) -> (i32, i32) {
    %c0_i32 = arith.constant 0 : i32
    %c0_i32_0 = arith.constant 0 : i32
    %c0_i32_1 = arith.constant 0 : i32
    return %c0_i32, %c0_i32_0 : i32, i32
  }
  func.func @transform_5(%arg0: i32) -> (i32, i32) {
    %c0_i32 = arith.constant 0 : i32
    %c0_i32_0 = arith.constant 0 : i32
    %c0_i32_1 = arith.constant 0 : i32
    return %c0_i32, %c0_i32_0 : i32, i32
  }
  func.func @transform_6(%arg0: i32) -> (i32, i32) {
    %c0_i32 = arith.constant 0 : i32
    %c0_i32_0 = arith.constant 0 : i32
    %c0_i32_1 = arith.constant 0 : i32
    return %c0_i32, %c0_i32_0 : i32, i32
  }
  func.func @transform_7(%arg0: i32) -> (i32, i32) {
    %c0_i32 = arith.constant 0 : i32
    %c0_i32_0 = arith.constant 0 : i32
    %c0_i32_1 = arith.constant 0 : i32
    return %c0_i32, %c0_i32_0 : i32, i32
  }
  func.func @transform_8(%arg0: i32) -> (i32, i32) {
    %c0_i32 = arith.constant 0 : i32
    %c0_i32_0 = arith.constant 0 : i32
    %c0_i32_1 = arith.constant 0 : i32
    return %c0_i32, %c0_i32_0 : i32, i32
  }
  func.func @transform_9(%arg0: i32) -> (i32, i32) {
    %c0_i32 = arith.constant 0 : i32
    %c0_i32_0 = arith.constant 0 : i32
    %c0_i32_1 = arith.constant 0 : i32
    return %c0_i32, %c0_i32_0 : i32, i32
  }
  func.func @transform_10(%arg0: i32) -> (i32, i32) {
    %c0_i32 = arith.constant 0 : i32
    %c0_i32_0 = arith.constant 0 : i32
    %c0_i32_1 = arith.constant 0 : i32
    return %c0_i32, %c0_i32_0 : i32, i32
  }
  func.func @transform_11(%arg0: i32) -> (i32, i32) {
    %c0_i32 = arith.constant 0 : i32
    %c0_i32_0 = arith.constant 0 : i32
    %c0_i32_1 = arith.constant 0 : i32
    return %c0_i32, %c0_i32_0 : i32, i32
  }
  func.func @transform_12(%arg0: i32) -> (i32, i32) {
    %c0_i32 = arith.constant 0 : i32
    %c0_i32_0 = arith.constant 0 : i32
    %c0_i32_1 = arith.constant 0 : i32
    return %c0_i32, %c0_i32_0 : i32, i32
  }
  func.func @transform_13(%arg0: i32) -> (i32, i32, i32) {
    %c0_i32 = arith.constant 0 : i32
    %c0_i32_0 = arith.constant 0 : i32
    %c0_i32_1 = arith.constant 0 : i32
    return %arg0, %c0_i32, %c0_i32_0 : i32, i32, i32
  }
}

module attributes {stable_mosaic.version = 11 : i64} {
  func.func @gpt2_layer_kernel(%arg0: i32, %arg1: memref<2x16x128xf32, #tpu.memory_space<vmem>>, %arg2: memref<128x384xbf16, #tpu.memory_space<vmem>>, %arg3: memref<1x384xf32, #tpu.memory_space<vmem>>, %arg4: memref<128x128xbf16, #tpu.memory_space<vmem>>, %arg5: memref<1x128xf32, #tpu.memory_space<vmem>>, %arg6: memref<1x128xf32, #tpu.memory_space<vmem>>, %arg7: memref<1x128xf32, #tpu.memory_space<vmem>>, %arg8: memref<128x512xbf16, #tpu.memory_space<vmem>>, %arg9: memref<1x512xf32, #tpu.memory_space<vmem>>, %arg10: memref<512x128xbf16, #tpu.memory_space<vmem>>, %arg11: memref<1x128xf32, #tpu.memory_space<vmem>>, %arg12: memref<1x128xf32, #tpu.memory_space<vmem>>, %arg13: memref<1x128xf32, #tpu.memory_space<vmem>>, %arg14: memref<2x16x128xf32, #tpu.memory_space<vmem>>, %arg15: memref<32x128xf32, #tpu.memory_space<vmem>>) attributes {dimension_semantics = [#tpu.dimension_semantics<parallel>], iteration_bounds = array<i64: 1>, scalar_prefetch = 0 : i64, scratch_operands = 1 : i64, tpu.core_type = #tpu.core_type<tc>, window_params = [{transform_indices = @transform_0, window_bounds = array<i64: 2, 16, 128>}, {pipeline_mode = #tpu.pipeline_mode<synchronous>, transform_indices = @transform_1, window_bounds = array<i64: 128, 384>}, {pipeline_mode = #tpu.pipeline_mode<synchronous>, transform_indices = @transform_2, window_bounds = array<i64: 1, 384>}, {pipeline_mode = #tpu.pipeline_mode<synchronous>, transform_indices = @transform_3, window_bounds = array<i64: 128, 128>}, {pipeline_mode = #tpu.pipeline_mode<synchronous>, transform_indices = @transform_4, window_bounds = array<i64: 1, 128>}, {pipeline_mode = #tpu.pipeline_mode<synchronous>, transform_indices = @transform_5, window_bounds = array<i64: 1, 128>}, {pipeline_mode = #tpu.pipeline_mode<synchronous>, transform_indices = @transform_6, window_bounds = array<i64: 1, 128>}, {pipeline_mode = #tpu.pipeline_mode<synchronous>, transform_indices = @transform_7, window_bounds = array<i64: 128, 512>}, {pipeline_mode = #tpu.pipeline_mode<synchronous>, transform_indices = @transform_8, window_bounds = array<i64: 1, 512>}, {pipeline_mode = #tpu.pipeline_mode<synchronous>, transform_indices = @transform_9, window_bounds = array<i64: 512, 128>}, {pipeline_mode = #tpu.pipeline_mode<synchronous>, transform_indices = @transform_10, window_bounds = array<i64: 1, 128>}, {pipeline_mode = #tpu.pipeline_mode<synchronous>, transform_indices = @transform_11, window_bounds = array<i64: 1, 128>}, {pipeline_mode = #tpu.pipeline_mode<synchronous>, transform_indices = @transform_12, window_bounds = array<i64: 1, 128>}, {transform_indices = @transform_13, window_bounds = array<i64: 2, 16, 128>}]} {
    %c0 = arith.constant 0 : index
    %c0_0 = arith.constant 0 : index
    %c0_1 = arith.constant 0 : index
    %0 = vector.load %arg1[%c0, %c0_0, %c0_1] : memref<2x16x128xf32, #tpu.memory_space<vmem>>, vector<2x16x128xf32>
    %1 = vector.shape_cast %0 : vector<2x16x128xf32> to vector<32x128xf32>
    %2 = arith.truncf %1 : vector<32x128xf32> to vector<32x128xbf16>
    %c0_2 = arith.constant 0 : index
    %c0_3 = arith.constant 0 : index
    %3 = vector.load %arg2[%c0_2, %c0_3] : memref<128x384xbf16, #tpu.memory_space<vmem>>, vector<128x384xbf16>
    %cst = arith.constant dense<0.000000e+00> : vector<32x384xf32>
    %4 = tpu.matmul %2, %3, %cst {dimension_numbers = #tpu.dot_dimension_numbers<[1], [0], [0], [1], [0, 0, 1, 1], [], []>} : vector<32x128xbf16>, vector<128x384xbf16>, vector<32x384xf32> -> vector<32x384xf32>
    %c0_4 = arith.constant 0 : index
    %c0_5 = arith.constant 0 : index
    %5 = vector.load %arg3[%c0_4, %c0_5] : memref<1x384xf32, #tpu.memory_space<vmem>>, vector<1x384xf32>
    %6 = vector.shape_cast %5 : vector<1x384xf32> to vector<384xf32>
    %7 = vector.shape_cast %6 : vector<384xf32> to vector<1x384xf32>
    %8 = vector.broadcast %7 : vector<1x384xf32> to vector<32x384xf32>
    %9 = arith.addf %4, %8 : vector<32x384xf32>
    %10 = tpu.iota {dimensions = array<i32: 0>} : vector<16x16xi32>
    %11 = tpu.iota {dimensions = array<i32: 1>} : vector<16x16xi32>
    %12 = arith.cmpi sle, %11, %10 : vector<16x16xi32>
    %13 = vector.extract_strided_slice %9 {offsets = [0, 0], sizes = [16, 32], strides = [1, 1]} : vector<32x384xf32> to vector<16x32xf32>
    %14 = arith.truncf %13 : vector<16x32xf32> to vector<16x32xbf16>
    %15 = vector.extract_strided_slice %9 {offsets = [0, 128], sizes = [16, 32], strides = [1, 1]} : vector<32x384xf32> to vector<16x32xf32>
    %16 = arith.truncf %15 : vector<16x32xf32> to vector<16x32xbf16>
    %17 = vector.extract_strided_slice %9 {offsets = [0, 256], sizes = [16, 32], strides = [1, 1]} : vector<32x384xf32> to vector<16x32xf32>
    %18 = arith.truncf %17 : vector<16x32xf32> to vector<16x32xbf16>
    %cst_6 = arith.constant dense<0.000000e+00> : vector<16x16xf32>
    %19 = tpu.matmul %14, %16, %cst_6 {dimension_numbers = #tpu.dot_dimension_numbers<[1], [1], [0], [0], [0, 0, 1, 0], [], []>} : vector<16x32xbf16>, vector<16x32xbf16>, vector<16x16xf32> -> vector<16x16xf32>
    %cst_7 = arith.constant 0.176776692 : f32
    %20 = vector.broadcast %cst_7 : f32 to vector<16x16xf32>
    %21 = arith.mulf %19, %20 : vector<16x16xf32>
    %cst_8 = arith.constant -1.000000e+30 : f32
    %22 = vector.broadcast %cst_8 : f32 to vector<16x16xf32>
    %23 = arith.select %12, %21, %22 : vector<16x16xi1>, vector<16x16xf32>
    %cst_9 = arith.constant dense<0xFF800000> : vector<16xf32>
    %24 = vector.multi_reduction <maximumf>, %23, %cst_9 [1] : vector<16x16xf32> to vector<16xf32>
    %25 = vector.shape_cast %24 : vector<16xf32> to vector<16x1xf32>
    %26 = vector.broadcast %25 : vector<16x1xf32> to vector<16x16xf32>
    %27 = arith.subf %23, %26 : vector<16x16xf32>
    %28 = math.exp %27 : vector<16x16xf32>
    %cst_10 = arith.constant dense<0.000000e+00> : vector<16xf32>
    %29 = vector.multi_reduction <add>, %28, %cst_10 [1] : vector<16x16xf32> to vector<16xf32>
    %30 = vector.shape_cast %29 : vector<16xf32> to vector<16x1xf32>
    %31 = tpu.reciprocal %30 {approx = true} : vector<16x1xf32> -> vector<16x1xf32>
    %32 = vector.broadcast %31 : vector<16x1xf32> to vector<16x16xf32>
    %33 = arith.mulf %28, %32 : vector<16x16xf32>
    %34 = arith.truncf %33 : vector<16x16xf32> to vector<16x16xbf16>
    %cst_11 = arith.constant dense<0.000000e+00> : vector<16x32xf32>
    %35 = tpu.matmul %34, %18, %cst_11 {dimension_numbers = #tpu.dot_dimension_numbers<[1], [0], [0], [1], [0, 0, 1, 1], [], []>} : vector<16x16xbf16>, vector<16x32xbf16>, vector<16x32xf32> -> vector<16x32xf32>
    %c0_12 = arith.constant 0 : index
    %c0_13 = arith.constant 0 : index
    %36 = vector.load %arg15[%c0_12, %c0_13] : memref<32x128xf32, #tpu.memory_space<vmem>>, vector<16x32xf32>
    tpu.vector_store %arg15[%c0_12, %c0_13], %35 {strides = array<i32>} : memref<32x128xf32, #tpu.memory_space<vmem>>, vector<16x32xf32>,
    %37 = vector.extract_strided_slice %9 {offsets = [0, 32], sizes = [16, 32], strides = [1, 1]} : vector<32x384xf32> to vector<16x32xf32>
    %38 = arith.truncf %37 : vector<16x32xf32> to vector<16x32xbf16>
    %39 = vector.extract_strided_slice %9 {offsets = [0, 160], sizes = [16, 32], strides = [1, 1]} : vector<32x384xf32> to vector<16x32xf32>
    %40 = arith.truncf %39 : vector<16x32xf32> to vector<16x32xbf16>
    %41 = vector.extract_strided_slice %9 {offsets = [0, 288], sizes = [16, 32], strides = [1, 1]} : vector<32x384xf32> to vector<16x32xf32>
    %42 = arith.truncf %41 : vector<16x32xf32> to vector<16x32xbf16>
    %cst_14 = arith.constant dense<0.000000e+00> : vector<16x16xf32>
    %43 = tpu.matmul %38, %40, %cst_14 {dimension_numbers = #tpu.dot_dimension_numbers<[1], [1], [0], [0], [0, 0, 1, 0], [], []>} : vector<16x32xbf16>, vector<16x32xbf16>, vector<16x16xf32> -> vector<16x16xf32>
    %cst_15 = arith.constant 0.176776692 : f32
    %44 = vector.broadcast %cst_15 : f32 to vector<16x16xf32>
    %45 = arith.mulf %43, %44 : vector<16x16xf32>
    %cst_16 = arith.constant -1.000000e+30 : f32
    %46 = vector.broadcast %cst_16 : f32 to vector<16x16xf32>
    %47 = arith.select %12, %45, %46 : vector<16x16xi1>, vector<16x16xf32>
    %cst_17 = arith.constant dense<0xFF800000> : vector<16xf32>
    %48 = vector.multi_reduction <maximumf>, %47, %cst_17 [1] : vector<16x16xf32> to vector<16xf32>
    %49 = vector.shape_cast %48 : vector<16xf32> to vector<16x1xf32>
    %50 = vector.broadcast %49 : vector<16x1xf32> to vector<16x16xf32>
    %51 = arith.subf %47, %50 : vector<16x16xf32>
    %52 = math.exp %51 : vector<16x16xf32>
    %cst_18 = arith.constant dense<0.000000e+00> : vector<16xf32>
    %53 = vector.multi_reduction <add>, %52, %cst_18 [1] : vector<16x16xf32> to vector<16xf32>
    %54 = vector.shape_cast %53 : vector<16xf32> to vector<16x1xf32>
    %55 = tpu.reciprocal %54 {approx = true} : vector<16x1xf32> -> vector<16x1xf32>
    %56 = vector.broadcast %55 : vector<16x1xf32> to vector<16x16xf32>
    %57 = arith.mulf %52, %56 : vector<16x16xf32>
    %58 = arith.truncf %57 : vector<16x16xf32> to vector<16x16xbf16>
    %cst_19 = arith.constant dense<0.000000e+00> : vector<16x32xf32>
    %59 = tpu.matmul %58, %42, %cst_19 {dimension_numbers = #tpu.dot_dimension_numbers<[1], [0], [0], [1], [0, 0, 1, 1], [], []>} : vector<16x16xbf16>, vector<16x32xbf16>, vector<16x32xf32> -> vector<16x32xf32>
    %c0_20 = arith.constant 0 : index
    %c32 = arith.constant 32 : index
    %60 = vector.load %arg15[%c0_20, %c32] : memref<32x128xf32, #tpu.memory_space<vmem>>, vector<16x32xf32>
    tpu.vector_store %arg15[%c0_20, %c32], %59 {strides = array<i32>} : memref<32x128xf32, #tpu.memory_space<vmem>>, vector<16x32xf32>,
    %61 = vector.extract_strided_slice %9 {offsets = [0, 64], sizes = [16, 32], strides = [1, 1]} : vector<32x384xf32> to vector<16x32xf32>
    %62 = arith.truncf %61 : vector<16x32xf32> to vector<16x32xbf16>
    %63 = vector.extract_strided_slice %9 {offsets = [0, 192], sizes = [16, 32], strides = [1, 1]} : vector<32x384xf32> to vector<16x32xf32>
    %64 = arith.truncf %63 : vector<16x32xf32> to vector<16x32xbf16>
    %65 = vector.extract_strided_slice %9 {offsets = [0, 320], sizes = [16, 32], strides = [1, 1]} : vector<32x384xf32> to vector<16x32xf32>
    %66 = arith.truncf %65 : vector<16x32xf32> to vector<16x32xbf16>
    %cst_21 = arith.constant dense<0.000000e+00> : vector<16x16xf32>
    %67 = tpu.matmul %62, %64, %cst_21 {dimension_numbers = #tpu.dot_dimension_numbers<[1], [1], [0], [0], [0, 0, 1, 0], [], []>} : vector<16x32xbf16>, vector<16x32xbf16>, vector<16x16xf32> -> vector<16x16xf32>
    %cst_22 = arith.constant 0.176776692 : f32
    %68 = vector.broadcast %cst_22 : f32 to vector<16x16xf32>
    %69 = arith.mulf %67, %68 : vector<16x16xf32>
    %cst_23 = arith.constant -1.000000e+30 : f32
    %70 = vector.broadcast %cst_23 : f32 to vector<16x16xf32>
    %71 = arith.select %12, %69, %70 : vector<16x16xi1>, vector<16x16xf32>
    %cst_24 = arith.constant dense<0xFF800000> : vector<16xf32>
    %72 = vector.multi_reduction <maximumf>, %71, %cst_24 [1] : vector<16x16xf32> to vector<16xf32>
    %73 = vector.shape_cast %72 : vector<16xf32> to vector<16x1xf32>
    %74 = vector.broadcast %73 : vector<16x1xf32> to vector<16x16xf32>
    %75 = arith.subf %71, %74 : vector<16x16xf32>
    %76 = math.exp %75 : vector<16x16xf32>
    %cst_25 = arith.constant dense<0.000000e+00> : vector<16xf32>
    %77 = vector.multi_reduction <add>, %76, %cst_25 [1] : vector<16x16xf32> to vector<16xf32>
    %78 = vector.shape_cast %77 : vector<16xf32> to vector<16x1xf32>
    %79 = tpu.reciprocal %78 {approx = true} : vector<16x1xf32> -> vector<16x1xf32>
    %80 = vector.broadcast %79 : vector<16x1xf32> to vector<16x16xf32>
    %81 = arith.mulf %76, %80 : vector<16x16xf32>
    %82 = arith.truncf %81 : vector<16x16xf32> to vector<16x16xbf16>
    %cst_26 = arith.constant dense<0.000000e+00> : vector<16x32xf32>
    %83 = tpu.matmul %82, %66, %cst_26 {dimension_numbers = #tpu.dot_dimension_numbers<[1], [0], [0], [1], [0, 0, 1, 1], [], []>} : vector<16x16xbf16>, vector<16x32xbf16>, vector<16x32xf32> -> vector<16x32xf32>
    %c0_27 = arith.constant 0 : index
    %c64 = arith.constant 64 : index
    %84 = vector.load %arg15[%c0_27, %c64] : memref<32x128xf32, #tpu.memory_space<vmem>>, vector<16x32xf32>
    tpu.vector_store %arg15[%c0_27, %c64], %83 {strides = array<i32>} : memref<32x128xf32, #tpu.memory_space<vmem>>, vector<16x32xf32>,
    %85 = vector.extract_strided_slice %9 {offsets = [0, 96], sizes = [16, 32], strides = [1, 1]} : vector<32x384xf32> to vector<16x32xf32>
    %86 = arith.truncf %85 : vector<16x32xf32> to vector<16x32xbf16>
    %87 = vector.extract_strided_slice %9 {offsets = [0, 224], sizes = [16, 32], strides = [1, 1]} : vector<32x384xf32> to vector<16x32xf32>
    %88 = arith.truncf %87 : vector<16x32xf32> to vector<16x32xbf16>
    %89 = vector.extract_strided_slice %9 {offsets = [0, 352], sizes = [16, 32], strides = [1, 1]} : vector<32x384xf32> to vector<16x32xf32>
    %90 = arith.truncf %89 : vector<16x32xf32> to vector<16x32xbf16>
    %cst_28 = arith.constant dense<0.000000e+00> : vector<16x16xf32>
    %91 = tpu.matmul %86, %88, %cst_28 {dimension_numbers = #tpu.dot_dimension_numbers<[1], [1], [0], [0], [0, 0, 1, 0], [], []>} : vector<16x32xbf16>, vector<16x32xbf16>, vector<16x16xf32> -> vector<16x16xf32>
    %cst_29 = arith.constant 0.176776692 : f32
    %92 = vector.broadcast %cst_29 : f32 to vector<16x16xf32>
    %93 = arith.mulf %91, %92 : vector<16x16xf32>
    %cst_30 = arith.constant -1.000000e+30 : f32
    %94 = vector.broadcast %cst_30 : f32 to vector<16x16xf32>
    %95 = arith.select %12, %93, %94 : vector<16x16xi1>, vector<16x16xf32>
    %cst_31 = arith.constant dense<0xFF800000> : vector<16xf32>
    %96 = vector.multi_reduction <maximumf>, %95, %cst_31 [1] : vector<16x16xf32> to vector<16xf32>
    %97 = vector.shape_cast %96 : vector<16xf32> to vector<16x1xf32>
    %98 = vector.broadcast %97 : vector<16x1xf32> to vector<16x16xf32>
    %99 = arith.subf %95, %98 : vector<16x16xf32>
    %100 = math.exp %99 : vector<16x16xf32>
    %cst_32 = arith.constant dense<0.000000e+00> : vector<16xf32>
    %101 = vector.multi_reduction <add>, %100, %cst_32 [1] : vector<16x16xf32> to vector<16xf32>
    %102 = vector.shape_cast %101 : vector<16xf32> to vector<16x1xf32>
    %103 = tpu.reciprocal %102 {approx = true} : vector<16x1xf32> -> vector<16x1xf32>
    %104 = vector.broadcast %103 : vector<16x1xf32> to vector<16x16xf32>
    %105 = arith.mulf %100, %104 : vector<16x16xf32>
    %106 = arith.truncf %105 : vector<16x16xf32> to vector<16x16xbf16>
    %cst_33 = arith.constant dense<0.000000e+00> : vector<16x32xf32>
    %107 = tpu.matmul %106, %90, %cst_33 {dimension_numbers = #tpu.dot_dimension_numbers<[1], [0], [0], [1], [0, 0, 1, 1], [], []>} : vector<16x16xbf16>, vector<16x32xbf16>, vector<16x32xf32> -> vector<16x32xf32>
    %c0_34 = arith.constant 0 : index
    %c96 = arith.constant 96 : index
    %108 = vector.load %arg15[%c0_34, %c96] : memref<32x128xf32, #tpu.memory_space<vmem>>, vector<16x32xf32>
    tpu.vector_store %arg15[%c0_34, %c96], %107 {strides = array<i32>} : memref<32x128xf32, #tpu.memory_space<vmem>>, vector<16x32xf32>,
    %109 = vector.extract_strided_slice %9 {offsets = [16, 0], sizes = [16, 32], strides = [1, 1]} : vector<32x384xf32> to vector<16x32xf32>
    %110 = arith.truncf %109 : vector<16x32xf32> to vector<16x32xbf16>
    %111 = vector.extract_strided_slice %9 {offsets = [16, 128], sizes = [16, 32], strides = [1, 1]} : vector<32x384xf32> to vector<16x32xf32>
    %112 = arith.truncf %111 : vector<16x32xf32> to vector<16x32xbf16>
    %113 = vector.extract_strided_slice %9 {offsets = [16, 256], sizes = [16, 32], strides = [1, 1]} : vector<32x384xf32> to vector<16x32xf32>
    %114 = arith.truncf %113 : vector<16x32xf32> to vector<16x32xbf16>
    %cst_35 = arith.constant dense<0.000000e+00> : vector<16x16xf32>
    %115 = tpu.matmul %110, %112, %cst_35 {dimension_numbers = #tpu.dot_dimension_numbers<[1], [1], [0], [0], [0, 0, 1, 0], [], []>} : vector<16x32xbf16>, vector<16x32xbf16>, vector<16x16xf32> -> vector<16x16xf32>
    %cst_36 = arith.constant 0.176776692 : f32
    %116 = vector.broadcast %cst_36 : f32 to vector<16x16xf32>
    %117 = arith.mulf %115, %116 : vector<16x16xf32>
    %cst_37 = arith.constant -1.000000e+30 : f32
    %118 = vector.broadcast %cst_37 : f32 to vector<16x16xf32>
    %119 = arith.select %12, %117, %118 : vector<16x16xi1>, vector<16x16xf32>
    %cst_38 = arith.constant dense<0xFF800000> : vector<16xf32>
    %120 = vector.multi_reduction <maximumf>, %119, %cst_38 [1] : vector<16x16xf32> to vector<16xf32>
    %121 = vector.shape_cast %120 : vector<16xf32> to vector<16x1xf32>
    %122 = vector.broadcast %121 : vector<16x1xf32> to vector<16x16xf32>
    %123 = arith.subf %119, %122 : vector<16x16xf32>
    %124 = math.exp %123 : vector<16x16xf32>
    %cst_39 = arith.constant dense<0.000000e+00> : vector<16xf32>
    %125 = vector.multi_reduction <add>, %124, %cst_39 [1] : vector<16x16xf32> to vector<16xf32>
    %126 = vector.shape_cast %125 : vector<16xf32> to vector<16x1xf32>
    %127 = tpu.reciprocal %126 {approx = true} : vector<16x1xf32> -> vector<16x1xf32>
    %128 = vector.broadcast %127 : vector<16x1xf32> to vector<16x16xf32>
    %129 = arith.mulf %124, %128 : vector<16x16xf32>
    %130 = arith.truncf %129 : vector<16x16xf32> to vector<16x16xbf16>
    %cst_40 = arith.constant dense<0.000000e+00> : vector<16x32xf32>
    %131 = tpu.matmul %130, %114, %cst_40 {dimension_numbers = #tpu.dot_dimension_numbers<[1], [0], [0], [1], [0, 0, 1, 1], [], []>} : vector<16x16xbf16>, vector<16x32xbf16>, vector<16x32xf32> -> vector<16x32xf32>
    %c16 = arith.constant 16 : index
    %c0_41 = arith.constant 0 : index
    %132 = vector.load %arg15[%c16, %c0_41] : memref<32x128xf32, #tpu.memory_space<vmem>>, vector<16x32xf32>
    tpu.vector_store %arg15[%c16, %c0_41], %131 {strides = array<i32>} : memref<32x128xf32, #tpu.memory_space<vmem>>, vector<16x32xf32>,
    %133 = vector.extract_strided_slice %9 {offsets = [16, 32], sizes = [16, 32], strides = [1, 1]} : vector<32x384xf32> to vector<16x32xf32>
    %134 = arith.truncf %133 : vector<16x32xf32> to vector<16x32xbf16>
    %135 = vector.extract_strided_slice %9 {offsets = [16, 160], sizes = [16, 32], strides = [1, 1]} : vector<32x384xf32> to vector<16x32xf32>
    %136 = arith.truncf %135 : vector<16x32xf32> to vector<16x32xbf16>
    %137 = vector.extract_strided_slice %9 {offsets = [16, 288], sizes = [16, 32], strides = [1, 1]} : vector<32x384xf32> to vector<16x32xf32>
    %138 = arith.truncf %137 : vector<16x32xf32> to vector<16x32xbf16>
    %cst_42 = arith.constant dense<0.000000e+00> : vector<16x16xf32>
    %139 = tpu.matmul %134, %136, %cst_42 {dimension_numbers = #tpu.dot_dimension_numbers<[1], [1], [0], [0], [0, 0, 1, 0], [], []>} : vector<16x32xbf16>, vector<16x32xbf16>, vector<16x16xf32> -> vector<16x16xf32>
    %cst_43 = arith.constant 0.176776692 : f32
    %140 = vector.broadcast %cst_43 : f32 to vector<16x16xf32>
    %141 = arith.mulf %139, %140 : vector<16x16xf32>
    %cst_44 = arith.constant -1.000000e+30 : f32
    %142 = vector.broadcast %cst_44 : f32 to vector<16x16xf32>
    %143 = arith.select %12, %141, %142 : vector<16x16xi1>, vector<16x16xf32>
    %cst_45 = arith.constant dense<0xFF800000> : vector<16xf32>
    %144 = vector.multi_reduction <maximumf>, %143, %cst_45 [1] : vector<16x16xf32> to vector<16xf32>
    %145 = vector.shape_cast %144 : vector<16xf32> to vector<16x1xf32>
    %146 = vector.broadcast %145 : vector<16x1xf32> to vector<16x16xf32>
    %147 = arith.subf %143, %146 : vector<16x16xf32>
    %148 = math.exp %147 : vector<16x16xf32>
    %cst_46 = arith.constant dense<0.000000e+00> : vector<16xf32>
    %149 = vector.multi_reduction <add>, %148, %cst_46 [1] : vector<16x16xf32> to vector<16xf32>
    %150 = vector.shape_cast %149 : vector<16xf32> to vector<16x1xf32>
    %151 = tpu.reciprocal %150 {approx = true} : vector<16x1xf32> -> vector<16x1xf32>
    %152 = vector.broadcast %151 : vector<16x1xf32> to vector<16x16xf32>
    %153 = arith.mulf %148, %152 : vector<16x16xf32>
    %154 = arith.truncf %153 : vector<16x16xf32> to vector<16x16xbf16>
    %cst_47 = arith.constant dense<0.000000e+00> : vector<16x32xf32>
    %155 = tpu.matmul %154, %138, %cst_47 {dimension_numbers = #tpu.dot_dimension_numbers<[1], [0], [0], [1], [0, 0, 1, 1], [], []>} : vector<16x16xbf16>, vector<16x32xbf16>, vector<16x32xf32> -> vector<16x32xf32>
    %c16_48 = arith.constant 16 : index
    %c32_49 = arith.constant 32 : index
    %156 = vector.load %arg15[%c16_48, %c32_49] : memref<32x128xf32, #tpu.memory_space<vmem>>, vector<16x32xf32>
    tpu.vector_store %arg15[%c16_48, %c32_49], %155 {strides = array<i32>} : memref<32x128xf32, #tpu.memory_space<vmem>>, vector<16x32xf32>,
    %157 = vector.extract_strided_slice %9 {offsets = [16, 64], sizes = [16, 32], strides = [1, 1]} : vector<32x384xf32> to vector<16x32xf32>
    %158 = arith.truncf %157 : vector<16x32xf32> to vector<16x32xbf16>
    %159 = vector.extract_strided_slice %9 {offsets = [16, 192], sizes = [16, 32], strides = [1, 1]} : vector<32x384xf32> to vector<16x32xf32>
    %160 = arith.truncf %159 : vector<16x32xf32> to vector<16x32xbf16>
    %161 = vector.extract_strided_slice %9 {offsets = [16, 320], sizes = [16, 32], strides = [1, 1]} : vector<32x384xf32> to vector<16x32xf32>
    %162 = arith.truncf %161 : vector<16x32xf32> to vector<16x32xbf16>
    %cst_50 = arith.constant dense<0.000000e+00> : vector<16x16xf32>
    %163 = tpu.matmul %158, %160, %cst_50 {dimension_numbers = #tpu.dot_dimension_numbers<[1], [1], [0], [0], [0, 0, 1, 0], [], []>} : vector<16x32xbf16>, vector<16x32xbf16>, vector<16x16xf32> -> vector<16x16xf32>
    %cst_51 = arith.constant 0.176776692 : f32
    %164 = vector.broadcast %cst_51 : f32 to vector<16x16xf32>
    %165 = arith.mulf %163, %164 : vector<16x16xf32>
    %cst_52 = arith.constant -1.000000e+30 : f32
    %166 = vector.broadcast %cst_52 : f32 to vector<16x16xf32>
    %167 = arith.select %12, %165, %166 : vector<16x16xi1>, vector<16x16xf32>
    %cst_53 = arith.constant dense<0xFF800000> : vector<16xf32>
    %168 = vector.multi_reduction <maximumf>, %167, %cst_53 [1] : vector<16x16xf32> to vector<16xf32>
    %169 = vector.shape_cast %168 : vector<16xf32> to vector<16x1xf32>
    %170 = vector.broadcast %169 : vector<16x1xf32> to vector<16x16xf32>
    %171 = arith.subf %167, %170 : vector<16x16xf32>
    %172 = math.exp %171 : vector<16x16xf32>
    %cst_54 = arith.constant dense<0.000000e+00> : vector<16xf32>
    %173 = vector.multi_reduction <add>, %172, %cst_54 [1] : vector<16x16xf32> to vector<16xf32>
    %174 = vector.shape_cast %173 : vector<16xf32> to vector<16x1xf32>
    %175 = tpu.reciprocal %174 {approx = true} : vector<16x1xf32> -> vector<16x1xf32>
    %176 = vector.broadcast %175 : vector<16x1xf32> to vector<16x16xf32>
    %177 = arith.mulf %172, %176 : vector<16x16xf32>
    %178 = arith.truncf %177 : vector<16x16xf32> to vector<16x16xbf16>
    %cst_55 = arith.constant dense<0.000000e+00> : vector<16x32xf32>
    %179 = tpu.matmul %178, %162, %cst_55 {dimension_numbers = #tpu.dot_dimension_numbers<[1], [0], [0], [1], [0, 0, 1, 1], [], []>} : vector<16x16xbf16>, vector<16x32xbf16>, vector<16x32xf32> -> vector<16x32xf32>
    %c16_56 = arith.constant 16 : index
    %c64_57 = arith.constant 64 : index
    %180 = vector.load %arg15[%c16_56, %c64_57] : memref<32x128xf32, #tpu.memory_space<vmem>>, vector<16x32xf32>
    tpu.vector_store %arg15[%c16_56, %c64_57], %179 {strides = array<i32>} : memref<32x128xf32, #tpu.memory_space<vmem>>, vector<16x32xf32>,
    %181 = vector.extract_strided_slice %9 {offsets = [16, 96], sizes = [16, 32], strides = [1, 1]} : vector<32x384xf32> to vector<16x32xf32>
    %182 = arith.truncf %181 : vector<16x32xf32> to vector<16x32xbf16>
    %183 = vector.extract_strided_slice %9 {offsets = [16, 224], sizes = [16, 32], strides = [1, 1]} : vector<32x384xf32> to vector<16x32xf32>
    %184 = arith.truncf %183 : vector<16x32xf32> to vector<16x32xbf16>
    %185 = vector.extract_strided_slice %9 {offsets = [16, 352], sizes = [16, 32], strides = [1, 1]} : vector<32x384xf32> to vector<16x32xf32>
    %186 = arith.truncf %185 : vector<16x32xf32> to vector<16x32xbf16>
    %cst_58 = arith.constant dense<0.000000e+00> : vector<16x16xf32>
    %187 = tpu.matmul %182, %184, %cst_58 {dimension_numbers = #tpu.dot_dimension_numbers<[1], [1], [0], [0], [0, 0, 1, 0], [], []>} : vector<16x32xbf16>, vector<16x32xbf16>, vector<16x16xf32> -> vector<16x16xf32>
    %cst_59 = arith.constant 0.176776692 : f32
    %188 = vector.broadcast %cst_59 : f32 to vector<16x16xf32>
    %189 = arith.mulf %187, %188 : vector<16x16xf32>
    %cst_60 = arith.constant -1.000000e+30 : f32
    %190 = vector.broadcast %cst_60 : f32 to vector<16x16xf32>
    %191 = arith.select %12, %189, %190 : vector<16x16xi1>, vector<16x16xf32>
    %cst_61 = arith.constant dense<0xFF800000> : vector<16xf32>
    %192 = vector.multi_reduction <maximumf>, %191, %cst_61 [1] : vector<16x16xf32> to vector<16xf32>
    %193 = vector.shape_cast %192 : vector<16xf32> to vector<16x1xf32>
    %194 = vector.broadcast %193 : vector<16x1xf32> to vector<16x16xf32>
    %195 = arith.subf %191, %194 : vector<16x16xf32>
    %196 = math.exp %195 : vector<16x16xf32>
    %cst_62 = arith.constant dense<0.000000e+00> : vector<16xf32>
    %197 = vector.multi_reduction <add>, %196, %cst_62 [1] : vector<16x16xf32> to vector<16xf32>
    %198 = vector.shape_cast %197 : vector<16xf32> to vector<16x1xf32>
    %199 = tpu.reciprocal %198 {approx = true} : vector<16x1xf32> -> vector<16x1xf32>
    %200 = vector.broadcast %199 : vector<16x1xf32> to vector<16x16xf32>
    %201 = arith.mulf %196, %200 : vector<16x16xf32>
    %202 = arith.truncf %201 : vector<16x16xf32> to vector<16x16xbf16>
    %cst_63 = arith.constant dense<0.000000e+00> : vector<16x32xf32>
    %203 = tpu.matmul %202, %186, %cst_63 {dimension_numbers = #tpu.dot_dimension_numbers<[1], [0], [0], [1], [0, 0, 1, 1], [], []>} : vector<16x16xbf16>, vector<16x32xbf16>, vector<16x32xf32> -> vector<16x32xf32>
    %c16_64 = arith.constant 16 : index
    %c96_65 = arith.constant 96 : index
    %204 = vector.load %arg15[%c16_64, %c96_65] : memref<32x128xf32, #tpu.memory_space<vmem>>, vector<16x32xf32>
    tpu.vector_store %arg15[%c16_64, %c96_65], %203 {strides = array<i32>} : memref<32x128xf32, #tpu.memory_space<vmem>>, vector<16x32xf32>,
    %c0_66 = arith.constant 0 : index
    %c0_67 = arith.constant 0 : index
    %205 = vector.load %arg15[%c0_66, %c0_67] : memref<32x128xf32, #tpu.memory_space<vmem>>, vector<32x128xf32>
    %206 = arith.truncf %205 : vector<32x128xf32> to vector<32x128xbf16>
    %c0_68 = arith.constant 0 : index
    %c0_69 = arith.constant 0 : index
    %207 = vector.load %arg4[%c0_68, %c0_69] : memref<128x128xbf16, #tpu.memory_space<vmem>>, vector<128x128xbf16>
    %cst_70 = arith.constant dense<0.000000e+00> : vector<32x128xf32>
    %208 = tpu.matmul %206, %207, %cst_70 {dimension_numbers = #tpu.dot_dimension_numbers<[1], [0], [0], [1], [0, 0, 1, 1], [], []>} : vector<32x128xbf16>, vector<128x128xbf16>, vector<32x128xf32> -> vector<32x128xf32>
    %c0_71 = arith.constant 0 : index
    %c0_72 = arith.constant 0 : index
    %209 = vector.load %arg5[%c0_71, %c0_72] : memref<1x128xf32, #tpu.memory_space<vmem>>, vector<1x128xf32>
    %210 = vector.shape_cast %209 : vector<1x128xf32> to vector<128xf32>
    %211 = vector.shape_cast %210 : vector<128xf32> to vector<1x128xf32>
    %212 = vector.broadcast %211 : vector<1x128xf32> to vector<32x128xf32>
    %213 = arith.addf %208, %212 : vector<32x128xf32>
    %214 = arith.addf %1, %213 : vector<32x128xf32>
    %c0_73 = arith.constant 0 : index
    %c0_74 = arith.constant 0 : index
    %215 = vector.load %arg6[%c0_73, %c0_74] : memref<1x128xf32, #tpu.memory_space<vmem>>, vector<1x128xf32>
    %216 = vector.shape_cast %215 : vector<1x128xf32> to vector<128xf32>
    %c0_75 = arith.constant 0 : index
    %c0_76 = arith.constant 0 : index
    %217 = vector.load %arg7[%c0_75, %c0_76] : memref<1x128xf32, #tpu.memory_space<vmem>>, vector<1x128xf32>
    %218 = vector.shape_cast %217 : vector<1x128xf32> to vector<128xf32>
    %cst_77 = arith.constant dense<0.000000e+00> : vector<32xf32>
    %219 = vector.multi_reduction <add>, %214, %cst_77 [1] : vector<32x128xf32> to vector<32xf32>
    %220 = vector.shape_cast %219 : vector<32xf32> to vector<32x1xf32>
    %cst_78 = arith.constant 1.280000e+02 : f32
    %221 = vector.broadcast %cst_78 : f32 to vector<32x1xf32>
    %222 = arith.divf %220, %221 : vector<32x1xf32>
    %223 = vector.broadcast %222 : vector<32x1xf32> to vector<32x128xf32>
    %224 = arith.subf %214, %223 : vector<32x128xf32>
    %225 = arith.mulf %224, %224 : vector<32x128xf32>
    %cst_79 = arith.constant dense<0.000000e+00> : vector<32xf32>
    %226 = vector.multi_reduction <add>, %225, %cst_79 [1] : vector<32x128xf32> to vector<32xf32>
    %227 = vector.shape_cast %226 : vector<32xf32> to vector<32x1xf32>
    %cst_80 = arith.constant 1.280000e+02 : f32
    %228 = vector.broadcast %cst_80 : f32 to vector<32x1xf32>
    %229 = arith.divf %227, %228 : vector<32x1xf32>
    %230 = vector.broadcast %222 : vector<32x1xf32> to vector<32x128xf32>
    %231 = arith.subf %214, %230 : vector<32x128xf32>
    %cst_81 = arith.constant 9.99999974E-6 : f32
    %232 = vector.broadcast %cst_81 : f32 to vector<32x1xf32>
    %233 = arith.addf %229, %232 : vector<32x1xf32>
    %234 = math.rsqrt %233 : vector<32x1xf32>
    %235 = vector.broadcast %234 : vector<32x1xf32> to vector<32x128xf32>
    %236 = arith.mulf %231, %235 : vector<32x128xf32>
    %237 = vector.shape_cast %216 : vector<128xf32> to vector<1x128xf32>
    %238 = vector.broadcast %237 : vector<1x128xf32> to vector<32x128xf32>
    %239 = arith.mulf %236, %238 : vector<32x128xf32>
    %240 = vector.shape_cast %218 : vector<128xf32> to vector<1x128xf32>
    %241 = vector.broadcast %240 : vector<1x128xf32> to vector<32x128xf32>
    %242 = arith.addf %239, %241 : vector<32x128xf32>
    %243 = arith.truncf %242 : vector<32x128xf32> to vector<32x128xbf16>
    %c0_82 = arith.constant 0 : index
    %c0_83 = arith.constant 0 : index
    %244 = vector.load %arg8[%c0_82, %c0_83] : memref<128x512xbf16, #tpu.memory_space<vmem>>, vector<128x512xbf16>
    %cst_84 = arith.constant dense<0.000000e+00> : vector<32x512xf32>
    %245 = tpu.matmul %243, %244, %cst_84 {dimension_numbers = #tpu.dot_dimension_numbers<[1], [0], [0], [1], [0, 0, 1, 1], [], []>} : vector<32x128xbf16>, vector<128x512xbf16>, vector<32x512xf32> -> vector<32x512xf32>
    %c0_85 = arith.constant 0 : index
    %c0_86 = arith.constant 0 : index
    %246 = vector.load %arg9[%c0_85, %c0_86] : memref<1x512xf32, #tpu.memory_space<vmem>>, vector<1x512xf32>
    %247 = vector.shape_cast %246 : vector<1x512xf32> to vector<512xf32>
    %248 = vector.shape_cast %247 : vector<512xf32> to vector<1x512xf32>
    %249 = vector.broadcast %248 : vector<1x512xf32> to vector<32x512xf32>
    %250 = arith.addf %245, %249 : vector<32x512xf32>
    %cst_87 = arith.constant 5.000000e-01 : f32
    %251 = vector.broadcast %cst_87 : f32 to vector<32x512xf32>
    %252 = arith.mulf %251, %250 : vector<32x512xf32>
    %cst_88 = arith.constant 4.471500e-02 : f32
    %253 = vector.broadcast %cst_88 : f32 to vector<32x512xf32>
    %254 = arith.mulf %253, %250 : vector<32x512xf32>
    %255 = arith.mulf %254, %250 : vector<32x512xf32>
    %256 = arith.mulf %255, %250 : vector<32x512xf32>
    %257 = arith.addf %250, %256 : vector<32x512xf32>
    %cst_89 = arith.constant 0.797884583 : f32
    %258 = vector.broadcast %cst_89 : f32 to vector<32x512xf32>
    %259 = arith.mulf %258, %257 : vector<32x512xf32>
    %260 = math.tanh %259 : vector<32x512xf32>
    %cst_90 = arith.constant 1.000000e+00 : f32
    %261 = vector.broadcast %cst_90 : f32 to vector<32x512xf32>
    %262 = arith.addf %261, %260 : vector<32x512xf32>
    %263 = arith.mulf %252, %262 : vector<32x512xf32>
    %264 = arith.truncf %263 : vector<32x512xf32> to vector<32x512xbf16>
    %c0_91 = arith.constant 0 : index
    %c0_92 = arith.constant 0 : index
    %265 = vector.load %arg10[%c0_91, %c0_92] : memref<512x128xbf16, #tpu.memory_space<vmem>>, vector<512x128xbf16>
    %cst_93 = arith.constant dense<0.000000e+00> : vector<32x128xf32>
    %266 = tpu.matmul %264, %265, %cst_93 {dimension_numbers = #tpu.dot_dimension_numbers<[1], [0], [0], [1], [0, 0, 1, 1], [], []>} : vector<32x512xbf16>, vector<512x128xbf16>, vector<32x128xf32> -> vector<32x128xf32>
    %c0_94 = arith.constant 0 : index
    %c0_95 = arith.constant 0 : index
    %267 = vector.load %arg11[%c0_94, %c0_95] : memref<1x128xf32, #tpu.memory_space<vmem>>, vector<1x128xf32>
    %268 = vector.shape_cast %267 : vector<1x128xf32> to vector<128xf32>
    %269 = vector.shape_cast %268 : vector<128xf32> to vector<1x128xf32>
    %270 = vector.broadcast %269 : vector<1x128xf32> to vector<32x128xf32>
    %271 = arith.addf %266, %270 : vector<32x128xf32>
    %272 = arith.addf %242, %271 : vector<32x128xf32>
    %c0_96 = arith.constant 0 : index
    %c0_97 = arith.constant 0 : index
    %273 = vector.load %arg12[%c0_96, %c0_97] : memref<1x128xf32, #tpu.memory_space<vmem>>, vector<1x128xf32>
    %274 = vector.shape_cast %273 : vector<1x128xf32> to vector<128xf32>
    %c0_98 = arith.constant 0 : index
    %c0_99 = arith.constant 0 : index
    %275 = vector.load %arg13[%c0_98, %c0_99] : memref<1x128xf32, #tpu.memory_space<vmem>>, vector<1x128xf32>
    %276 = vector.shape_cast %275 : vector<1x128xf32> to vector<128xf32>
    %cst_100 = arith.constant dense<0.000000e+00> : vector<32xf32>
    %277 = vector.multi_reduction <add>, %272, %cst_100 [1] : vector<32x128xf32> to vector<32xf32>
    %278 = vector.shape_cast %277 : vector<32xf32> to vector<32x1xf32>
    %cst_101 = arith.constant 1.280000e+02 : f32
    %279 = vector.broadcast %cst_101 : f32 to vector<32x1xf32>
    %280 = arith.divf %278, %279 : vector<32x1xf32>
    %281 = vector.broadcast %280 : vector<32x1xf32> to vector<32x128xf32>
    %282 = arith.subf %272, %281 : vector<32x128xf32>
    %283 = arith.mulf %282, %282 : vector<32x128xf32>
    %cst_102 = arith.constant dense<0.000000e+00> : vector<32xf32>
    %284 = vector.multi_reduction <add>, %283, %cst_102 [1] : vector<32x128xf32> to vector<32xf32>
    %285 = vector.shape_cast %284 : vector<32xf32> to vector<32x1xf32>
    %cst_103 = arith.constant 1.280000e+02 : f32
    %286 = vector.broadcast %cst_103 : f32 to vector<32x1xf32>
    %287 = arith.divf %285, %286 : vector<32x1xf32>
    %288 = vector.broadcast %280 : vector<32x1xf32> to vector<32x128xf32>
    %289 = arith.subf %272, %288 : vector<32x128xf32>
    %cst_104 = arith.constant 9.99999974E-6 : f32
    %290 = vector.broadcast %cst_104 : f32 to vector<32x1xf32>
    %291 = arith.addf %287, %290 : vector<32x1xf32>
    %292 = math.rsqrt %291 : vector<32x1xf32>
    %293 = vector.broadcast %292 : vector<32x1xf32> to vector<32x128xf32>
    %294 = arith.mulf %289, %293 : vector<32x128xf32>
    %295 = vector.shape_cast %274 : vector<128xf32> to vector<1x128xf32>
    %296 = vector.broadcast %295 : vector<1x128xf32> to vector<32x128xf32>
    %297 = arith.mulf %294, %296 : vector<32x128xf32>
    %298 = vector.shape_cast %276 : vector<128xf32> to vector<1x128xf32>
    %299 = vector.broadcast %298 : vector<1x128xf32> to vector<32x128xf32>
    %300 = arith.addf %297, %299 : vector<32x128xf32>
    %301 = vector.shape_cast %300 : vector<32x128xf32> to vector<2x16x128xf32>
    %c0_105 = arith.constant 0 : index
    %c0_106 = arith.constant 0 : index
    %c0_107 = arith.constant 0 : index
    %302 = vector.load %arg14[%c0_105, %c0_106, %c0_107] : memref<2x16x128xf32, #tpu.memory_space<vmem>>, vector<2x16x128xf32>
    tpu.vector_store %arg14[%c0_105, %c0_106, %c0_107], %301 {strides = array<i32>} : memref<2x16x128xf32, #tpu.memory_space<vmem>>, vector<2x16x128xf32>,
    return
  }
  func.func @transform_0(%arg0: i32) -> (i32, i32, i32) {
    %c0_i32 = arith.constant 0 : i32
    %c0_i32_0 = arith.constant 0 : i32
    %c0_i32_1 = arith.constant 0 : i32
    return %arg0, %c0_i32, %c0_i32_0 : i32, i32, i32
  }
  func.func @transform_1(%arg0: i32) -> (i32, i32) {
    %c0_i32 = arith.constant 0 : i32
    %c0_i32_0 = arith.constant 0 : i32
    %c0_i32_1 = arith.constant 0 : i32
    return %c0_i32, %c0_i32_0 : i32, i32
  }
  func.func @transform_2(%arg0: i32) -> (i32, i32) {
    %c0_i32 = arith.constant 0 : i32
    %c0_i32_0 = arith.constant 0 : i32
    %c0_i32_1 = arith.constant 0 : i32
    return %c0_i32, %c0_i32_0 : i32, i32
  }
  func.func @transform_3(%arg0: i32) -> (i32, i32) {
    %c0_i32 = arith.constant 0 : i32
    %c0_i32_0 = arith.constant 0 : i32
    %c0_i32_1 = arith.constant 0 : i32
    return %c0_i32, %c0_i32_0 : i32, i32
  }
  func.func @transform_4(%arg0: i32) -> (i32, i32) {
    %c0_i32 = arith.constant 0 : i32
    %c0_i32_0 = arith.constant 0 : i32
    %c0_i32_1 = arith.constant 0 : i32
    return %c0_i32, %c0_i32_0 : i32, i32
  }
  func.func @transform_5(%arg0: i32) -> (i32, i32) {
    %c0_i32 = arith.constant 0 : i32
    %c0_i32_0 = arith.constant 0 : i32
    %c0_i32_1 = arith.constant 0 : i32
    return %c0_i32, %c0_i32_0 : i32, i32
  }
  func.func @transform_6(%arg0: i32) -> (i32, i32) {
    %c0_i32 = arith.constant 0 : i32
    %c0_i32_0 = arith.constant 0 : i32
    %c0_i32_1 = arith.constant 0 : i32
    return %c0_i32, %c0_i32_0 : i32, i32
  }
  func.func @transform_7(%arg0: i32) -> (i32, i32) {
    %c0_i32 = arith.constant 0 : i32
    %c0_i32_0 = arith.constant 0 : i32
    %c0_i32_1 = arith.constant 0 : i32
    return %c0_i32, %c0_i32_0 : i32, i32
  }
  func.func @transform_8(%arg0: i32) -> (i32, i32) {
    %c0_i32 = arith.constant 0 : i32
    %c0_i32_0 = arith.constant 0 : i32
    %c0_i32_1 = arith.constant 0 : i32
    return %c0_i32, %c0_i32_0 : i32, i32
  }
  func.func @transform_9(%arg0: i32) -> (i32, i32) {
    %c0_i32 = arith.constant 0 : i32
    %c0_i32_0 = arith.constant 0 : i32
    %c0_i32_1 = arith.constant 0 : i32
    return %c0_i32, %c0_i32_0 : i32, i32
  }
  func.func @transform_10(%arg0: i32) -> (i32, i32) {
    %c0_i32 = arith.constant 0 : i32
    %c0_i32_0 = arith.constant 0 : i32
    %c0_i32_1 = arith.constant 0 : i32
    return %c0_i32, %c0_i32_0 : i32, i32
  }
  func.func @transform_11(%arg0: i32) -> (i32, i32) {
    %c0_i32 = arith.constant 0 : i32
    %c0_i32_0 = arith.constant 0 : i32
    %c0_i32_1 = arith.constant 0 : i32
    return %c0_i32, %c0_i32_0 : i32, i32
  }
  func.func @transform_12(%arg0: i32) -> (i32, i32) {
    %c0_i32 = arith.constant 0 : i32
    %c0_i32_0 = arith.constant 0 : i32
    %c0_i32_1 = arith.constant 0 : i32
    return %c0_i32, %c0_i32_0 : i32, i32
  }
  func.func @transform_13(%arg0: i32) -> (i32, i32, i32) {
    %c0_i32 = arith.constant 0 : i32
    %c0_i32_0 = arith.constant 0 : i32
    %c0_i32_1 = arith.constant 0 : i32
    return %arg0, %c0_i32, %c0_i32_0 : i32, i32, i32
  }
}

</mosaic_0001>

<llo_original>
// kernel: tpu_custom_call.1
$region0: #{tpu_custom_call.1}
  #allocation0 [shape = 'u32[]', space=smem, size = 0x4, offset = 0x4, fixed_abs, tag = 'smem constant byte address 0x4 - core index']
  #allocation1 [shape = 'u32[144,128]{1,0:T(1,128)}', space=vmem, size = 0x12000, scoped, tag = 'internal scratch']
  #allocation2 [shape = 'f32[32,128]{1,0:T(8,128)}', space=vmem, size = 0x4000, scoped, tag = 'scratch operand']
  %s0 = inlined_call_operand.hbm [shape: f32[2,16,128], index: 0, kind: input, shape index: {}]
  %s1 = inlined_call_operand.hbm [shape: bf16[128,384], index: 1, kind: input, shape index: {}]
  %s2 = inlined_call_operand.vmem [shape: f32[1,384], index: 2, kind: input, shape index: {}]
  %s3 = inlined_call_operand.hbm [shape: bf16[128,128], index: 3, kind: input, shape index: {}]
  %s4 = inlined_call_operand.vmem [shape: f32[1,128], index: 4, kind: input, shape index: {}]
  %s5 = inlined_call_operand.vmem [shape: f32[1,128], index: 5, kind: input, shape index: {}]
  %s6 = inlined_call_operand.vmem [shape: f32[1,128], index: 6, kind: input, shape index: {}]
  %s7 = inlined_call_operand.hbm [shape: bf16[128,512], index: 7, kind: input, shape index: {}]
  %s8 = inlined_call_operand.vmem [shape: f32[1,512], index: 8, kind: input, shape index: {}]
  %s9 = inlined_call_operand.hbm [shape: bf16[512,128], index: 9, kind: input, shape index: {}]
  %s10 = inlined_call_operand.vmem [shape: f32[1,128], index: 10, kind: input, shape index: {}]
  %s11 = inlined_call_operand.vmem [shape: f32[1,128], index: 11, kind: input, shape index: {}]
  %s12 = inlined_call_operand.vmem [shape: f32[1,128], index: 12, kind: input, shape index: {}]
  %s13 = inlined_call_operand.hbm [shape: f32[2,16,128], index: 13, kind: output, shape index: {}]
  %s14 = sld [smem:[#allocation0]]
  $region82: #{tpu_custom_call.1} parent=0
    _
  %s16 = ssub.s32 1, %s14
  %s17 = scalar_select 0, %s16, %s14
  $region1: #{tpu_custom_call.1} parent=0
    #allocation3 [shape = 'u8[16384]{0}', space=vmem, size = 0x4000, scoped, tag = 'input window, operand 0, single buffered']
    #allocation4 [shape = 's32[1]{0}', space=sflag, size = 0x4, scoped, tag = 'scoped memory for tpu_custom_call.1']
    #allocation5 [shape = 's32[1]{0}', space=sflag, size = 0x4, scoped, tag = 'scoped memory for tpu_custom_call.1']
    #allocation6 [shape = 'u8[98304]{0}', space=vmem, size = 0x18000, scoped, tag = 'input window, operand 1, single buffered']
    #allocation7 [shape = 's32[1]{0}', space=sflag, size = 0x4, scoped, tag = 'scoped memory for tpu_custom_call.1']
    #allocation8 [shape = 'u8[32768]{0}', space=vmem, size = 0x8000, scoped, tag = 'input window, operand 3, single buffered']
    #allocation9 [shape = 'u8[131072]{0}', space=vmem, size = 0x20000, scoped, tag = 'input window, operand 7, single buffered']
    #allocation10 [shape = 's32[1]{0}', space=sflag, size = 0x4, scoped, tag = 'scoped memory for tpu_custom_call.1']
    #allocation11 [shape = 'u8[131072]{0}', space=vmem, size = 0x20000, scoped, tag = 'input window, operand 9, single buffered']
    #allocation12 [shape = 'u8[16384]{0}', space=vmem, size = 0x4000, scoped, tag = 'output window, operand 0, single buffered']
    %18 = vsyncpa [#allocation4], 0
    %19 = vsyncpa [#allocation7], 0
    %20 = vsyncpa [#allocation10], 0
    %21 = vsyncpa [#allocation5], 0
    // Predicated region
    $region2: #{tpu_custom_call.1} parent=1 // pred_check
      _
    $region3: #{tpu_custom_call.1} parent=1 // pred_check_branch
      %23 = sbr.rel (0) target = $region5
    $region4: #{tpu_custom_call.1} parent=1 // pred_region
      %s25 = ssub.s32 512, 512
      %26 = vsyncadd [#allocation4], %s25
      %s27 = sshll.u32 [#allocation3], 4
      %s28 = int_to_ptr.vmem [resolvable:$true] %s27
      %33 = dma.hbm_to_vmem [thread:$0]  %s0, 512, %s28, [#allocation4], 128, 128, 8
    $region5: #{tpu_custom_call.1} parent=1 // pred_fallthru
      _
    // Predicated region
    $region6: #{tpu_custom_call.1} parent=1 // pred_check
      _
    $region7: #{tpu_custom_call.1} parent=1 // pred_check_branch
      %35 = sbr.rel (0) target = $region9
    $region8: #{tpu_custom_call.1} parent=1 // pred_region
      %s37 = ssub.s32 3072, 3072
      %38 = vsyncadd [#allocation7], %s37
      %s39 = sshll.u32 [#allocation6], 4
      %s40 = int_to_ptr.vmem [resolvable:$true] %s39
      %45 = dma.hbm_to_vmem [thread:$0]  %s1, 3072, %s40, [#allocation7], 192, 192, 12
    $region9: #{tpu_custom_call.1} parent=1 // pred_fallthru
      _
    // Predicated region
    $region10: #{tpu_custom_call.1} parent=1 // pred_check
      _
    $region11: #{tpu_custom_call.1} parent=1 // pred_check_branch
      %47 = sbr.rel (0) target = $region13
    $region12: #{tpu_custom_call.1} parent=1 // pred_region
      _
    $region13: #{tpu_custom_call.1} parent=1 // pred_fallthru
      _
    // Predicated region
    $region14: #{tpu_custom_call.1} parent=1 // pred_check
      _
    $region15: #{tpu_custom_call.1} parent=1 // pred_check_branch
      %49 = sbr.rel (0) target = $region17
    $region16: #{tpu_custom_call.1} parent=1 // pred_region
      %s51 = ssub.s32 1024, 1024
      %52 = vsyncadd [#allocation7], %s51
      %s53 = sshll.u32 [#allocation8], 4
      %s54 = int_to_ptr.vmem [resolvable:$true] %s53
      %59 = dma.hbm_to_vmem [thread:$0]  %s3, 1024, %s54, [#allocation7], 64, 64, 4
    $region17: #{tpu_custom_call.1} parent=1 // pred_fallthru
      _
    // Predicated region
    $region18: #{tpu_custom_call.1} parent=1 // pred_check
      _
    $region19: #{tpu_custom_call.1} parent=1 // pred_check_branch
      %61 = sbr.rel (0) target = $region21
    $region20: #{tpu_custom_call.1} parent=1 // pred_region
      _
    $region21: #{tpu_custom_call.1} parent=1 // pred_fallthru
      _
    // Predicated region
    $region22: #{tpu_custom_call.1} parent=1 // pred_check
      _
    $region23: #{tpu_custom_call.1} parent=1 // pred_check_branch
      %63 = sbr.rel (0) target = $region25
    $region24: #{tpu_custom_call.1} parent=1 // pred_region
      _
    $region25: #{tpu_custom_call.1} parent=1 // pred_fallthru
      _
    // Predicated region
    $region26: #{tpu_custom_call.1} parent=1 // pred_check
      _
    $region27: #{tpu_custom_call.1} parent=1 // pred_check_branch
      %65 = sbr.rel (0) target = $region29
    $region28: #{tpu_custom_call.1} parent=1 // pred_region
      _
    $region29: #{tpu_custom_call.1} parent=1 // pred_fallthru
      _
    // Predicated region
    $region30: #{tpu_custom_call.1} parent=1 // pred_check
      _
    $region31: #{tpu_custom_call.1} parent=1 // pred_check_branch
      %67 = sbr.rel (0) target = $region33
    $region32: #{tpu_custom_call.1} parent=1 // pred_region
      %s69 = ssub.s32 4096, 4096
      %70 = vsyncadd [#allocation10], %s69
      %s71 = sshll.u32 [#allocation9], 4
      %s72 = int_to_ptr.vmem [resolvable:$true] %s71
      %77 = dma.hbm_to_vmem [thread:$0]  %s7, 4096, %s72, [#allocation10], 256, 256, 16
    $region33: #{tpu_custom_call.1} parent=1 // pred_fallthru
      _
    // Predicated region
    $region34: #{tpu_custom_call.1} parent=1 // pred_check
      _
    $region35: #{tpu_custom_call.1} parent=1 // pred_check_branch
      %79 = sbr.rel (0) target = $region37
    $region36: #{tpu_custom_call.1} parent=1 // pred_region
      _
    $region37: #{tpu_custom_call.1} parent=1 // pred_fallthru
      _
    // Predicated region
    $region38: #{tpu_custom_call.1} parent=1 // pred_check
      _
    $region39: #{tpu_custom_call.1} parent=1 // pred_check_branch
      %81 = sbr.rel (0) target = $region41
    $region40: #{tpu_custom_call.1} parent=1 // pred_region
      %s83 = ssub.s32 4096, 4096
      %84 = vsyncadd [#allocation10], %s83
      %s85 = sshll.u32 [#allocation11], 4
      %s86 = int_to_ptr.vmem [resolvable:$true] %s85
      %91 = dma.hbm_to_vmem [thread:$0]  %s9, 4096, %s86, [#allocation10], 64, 64, 4
    $region41: #{tpu_custom_call.1} parent=1 // pred_fallthru
      _
    // Predicated region
    $region42: #{tpu_custom_call.1} parent=1 // pred_check
      _
    $region43: #{tpu_custom_call.1} parent=1 // pred_check_branch
      %93 = sbr.rel (0) target = $region45
    $region44: #{tpu_custom_call.1} parent=1 // pred_region
      _
    $region45: #{tpu_custom_call.1} parent=1 // pred_fallthru
      _
    // Predicated region
    $region46: #{tpu_custom_call.1} parent=1 // pred_check
      _
    $region47: #{tpu_custom_call.1} parent=1 // pred_check_branch
      %95 = sbr.rel (0) target = $region49
    $region48: #{tpu_custom_call.1} parent=1 // pred_region
      _
    $region49: #{tpu_custom_call.1} parent=1 // pred_fallthru
      _
    // Predicated region
    $region50: #{tpu_custom_call.1} parent=1 // pred_check
      _
    $region51: #{tpu_custom_call.1} parent=1 // pred_check_branch
      %97 = sbr.rel (0) target = $region53
    $region52: #{tpu_custom_call.1} parent=1 // pred_region
      _
    $region53: #{tpu_custom_call.1} parent=1 // pred_fallthru
      _
    // Predicated region
    $region54: #{tpu_custom_call.1} parent=1 // pred_check
      _
    $region55: #{tpu_custom_call.1} parent=1 // pred_check_branch
      %99 = sbr.rel (0) target = $region57
    $region56: #{tpu_custom_call.1} parent=1 // pred_region
      %100 = dma.done [#allocation4], 512
    $region57: #{tpu_custom_call.1} parent=1 // pred_fallthru
      _
    // Predicated region
    $region58: #{tpu_custom_call.1} parent=1 // pred_check
      _
    $region59: #{tpu_custom_call.1} parent=1 // pred_check_branch
      %102 = sbr.rel (0) target = $region61
    $region60: #{tpu_custom_call.1} parent=1 // pred_region
      %103 = dma.done [#allocation7], 3072
    $region61: #{tpu_custom_call.1} parent=1 // pred_fallthru
      _
    // Predicated region
    $region62: #{tpu_custom_call.1} parent=1 // pred_check
      _
    $region63: #{tpu_custom_call.1} parent=1 // pred_check_branch
      %105 = sbr.rel (0) target = $region65
    $region64: #{tpu_custom_call.1} parent=1 // pred_region
      %106 = dma.done [#allocation7], 1024
    $region65: #{tpu_custom_call.1} parent=1 // pred_fallthru
      _
    // Predicated region
    $region66: #{tpu_custom_call.1} parent=1 // pred_check
      _
    $region67: #{tpu_custom_call.1} parent=1 // pred_check_branch
      %108 = sbr.rel (0) target = $region69
    $region68: #{tpu_custom_call.1} parent=1 // pred_region
      %109 = dma.done [#allocation10], 4096
    $region69: #{tpu_custom_call.1} parent=1 // pred_fallthru
      _
    // Predicated region
    $region70: #{tpu_custom_call.1} parent=1 // pred_check
      _
    $region71: #{tpu_custom_call.1} parent=1 // pred_check_branch
      %111 = sbr.rel (0) target = $region73
    $region72: #{tpu_custom_call.1} parent=1 // pred_region
      %112 = dma.done [#allocation10], 4096
    $region73: #{tpu_custom_call.1} parent=1 // pred_fallthru
      _
    %v114 = vld [vmem:[#allocation3] sm:$0xff]
    %v115 = vld [vmem:[#allocation3 + $0x8] sm:$0xff]
    %v116 = vld [vmem:[#allocation3 + $0x10] sm:$0xff]
    %v117 = vld [vmem:[#allocation3 + $0x18] sm:$0xff]
    %v118 = vpack.c.bf16 %v115, %v114
    %v119 = vpack.c.bf16 %v117, %v116
    %v120 = vld [vmem:[#allocation6] sm:$0xff]
    %v121 = vld [vmem:[#allocation6 + $0x8] sm:$0xf]
    %v122 = vld [vmem:[#allocation6 + $0xc] sm:$0xff]
    %v123 = vld [vmem:[#allocation6 + $0x14] sm:$0xf]
    %v124 = vld [vmem:[#allocation6 + $0x18] sm:$0xff]
    %v125 = vld [vmem:[#allocation6 + $0x20] sm:$0xf]
    %v126 = vld [vmem:[#allocation6 + $0x24] sm:$0xff]
    %v127 = vld [vmem:[#allocation6 + $0x2c] sm:$0xf]
    %v128 = vld [vmem:[#allocation6 + $0x30] sm:$0xff]
    %v129 = vld [vmem:[#allocation6 + $0x38] sm:$0xf]
    %v130 = vld [vmem:[#allocation6 + $0x3c] sm:$0xff]
    %v131 = vld [vmem:[#allocation6 + $0x44] sm:$0xf]
    %v132 = vld [vmem:[#allocation6 + $0x48] sm:$0xff]
    %v133 = vld [vmem:[#allocation6 + $0x50] sm:$0xf]
    %v134 = vld [vmem:[#allocation6 + $0x54] sm:$0xff]
    %v135 = vld [vmem:[#allocation6 + $0x5c] sm:$0xf]
    %v136 = vld [vmem:[#allocation6 + $0x60] sm:$0xff]
    %v137 = vld [vmem:[#allocation6 + $0x68] sm:$0xf]
    %v138 = vld [vmem:[#allocation6 + $0x6c] sm:$0xff]
    %v139 = vld [vmem:[#allocation6 + $0x74] sm:$0xf]
    %v140 = vld [vmem:[#allocation6 + $0x78] sm:$0xff]
    %v141 = vld [vmem:[#allocation6 + $0x80] sm:$0xf]
    %v142 = vld [vmem:[#allocation6 + $0x84] sm:$0xff]
    %v143 = vld [vmem:[#allocation6 + $0x8c] sm:$0xf]
    %v144 = vld [vmem:[#allocation6 + $0x90] sm:$0xff]
    %v145 = vld [vmem:[#allocation6 + $0x98] sm:$0xf]
    %v146 = vld [vmem:[#allocation6 + $0x9c] sm:$0xff]
    %v147 = vld [vmem:[#allocation6 + $0xa4] sm:$0xf]
    %v148 = vld [vmem:[#allocation6 + $0xa8] sm:$0xff]
    %v149 = vld [vmem:[#allocation6 + $0xb0] sm:$0xf]
    %v150 = vld [vmem:[#allocation6 + $0xb4] sm:$0xff]
    %v151 = vld [vmem:[#allocation6 + $0xbc] sm:$0xf]
    %v152 = vld [vmem:[%s2] sm:$0x7]
    %v154 = vlaneseq
    %v155 = vshrl.u32 %v154, 7
    %v156 = vsub.s32 0, %v155
    %v157 = vrot.slane %v152, %v156
    %v158 = vlaneseq
    %v159 = vshrl.u32 %v158, 7
    %v160 = vsub.s32 1, %v159
    %v161 = vrot.slane %v152, %v160
    %v162 = vlaneseq
    %v163 = vshrl.u32 %v162, 7
    %v164 = vsub.s32 2, %v163
    %v165 = vrot.slane %v152, %v164
    %v201 = vunpack.c.l.b16 %v120
    %v202 = vunpack.c.h.b16 %v120
    %v203 = vunpack.c.l.b16 %v121
    %v204 = vunpack.c.l.b16 %v122
    %v205 = vunpack.c.h.b16 %v122
    %v206 = vunpack.c.l.b16 %v123
    %v207 = vunpack.c.l.b16 %v124
    %v208 = vunpack.c.h.b16 %v124
    %v209 = vunpack.c.l.b16 %v125
    %v210 = vunpack.c.l.b16 %v126
    %v211 = vunpack.c.h.b16 %v126
    %v212 = vunpack.c.l.b16 %v127
    %v213 = vunpack.c.l.b16 %v128
    %v214 = vunpack.c.h.b16 %v128
    %v215 = vunpack.c.l.b16 %v129
    %v216 = vunpack.c.l.b16 %v130
    %v217 = vunpack.c.h.b16 %v130
    %v218 = vunpack.c.l.b16 %v131
    %v219 = vunpack.c.l.b16 %v132
    %v220 = vunpack.c.h.b16 %v132
    %v221 = vunpack.c.l.b16 %v133
    %v222 = vunpack.c.l.b16 %v134
    %v223 = vunpack.c.h.b16 %v134
    %v224 = vunpack.c.l.b16 %v135
    %v225 = vunpack.c.l.b16 %v136
    %v226 = vunpack.c.h.b16 %v136
    %v227 = vunpack.c.l.b16 %v137
    %v228 = vunpack.c.l.b16 %v138
    %v229 = vunpack.c.h.b16 %v138
    %v230 = vunpack.c.l.b16 %v139
    %v231 = vunpack.c.l.b16 %v140
    %v232 = vunpack.c.h.b16 %v140
    %v233 = vunpack.c.l.b16 %v141
    %v234 = vunpack.c.l.b16 %v142
    %v235 = vunpack.c.h.b16 %v142
    %v236 = vunpack.c.l.b16 %v143
    %v237 = vunpack.c.l.b16 %v144
    %v238 = vunpack.c.h.b16 %v144
    %v239 = vunpack.c.l.b16 %v145
    %v240 = vunpack.c.l.b16 %v146
    %v241 = vunpack.c.h.b16 %v146
    %v242 = vunpack.c.l.b16 %v147
    %v243 = vunpack.c.l.b16 %v148
    %v244 = vunpack.c.h.b16 %v148
    %v245 = vunpack.c.l.b16 %v149
    %v246 = vunpack.c.l.b16 %v150
    %v247 = vunpack.c.h.b16 %v150
    %v248 = vunpack.c.l.b16 %v151
    %v249 = vpack.c.b16 %v204, %v201
    %v250 = vpack.c.b16 %v205, %v202
    %v251 = vpack.c.b16 %v206, %v203
    %v252 = vpack.c.b16 %v210, %v207
    %v253 = vpack.c.b16 %v211, %v208
    %v254 = vpack.c.b16 %v212, %v209
    %v255 = vpack.c.b16 %v216, %v213
    %v256 = vpack.c.b16 %v217, %v214
    %v257 = vpack.c.b16 %v218, %v215
    %v258 = vpack.c.b16 %v222, %v219
    %v259 = vpack.c.b16 %v223, %v220
    %v260 = vpack.c.b16 %v224, %v221
    %v261 = vpack.c.b16 %v228, %v225
    %v262 = vpack.c.b16 %v229, %v226
    %v263 = vpack.c.b16 %v230, %v227
    %v264 = vpack.c.b16 %v234, %v231
    %v265 = vpack.c.b16 %v235, %v232
    %v266 = vpack.c.b16 %v236, %v233
    %v267 = vpack.c.b16 %v240, %v237
    %v268 = vpack.c.b16 %v241, %v238
    %v269 = vpack.c.b16 %v242, %v239
    %v270 = vpack.c.b16 %v246, %v243
    %v271 = vpack.c.b16 %v247, %v244
    %v272 = vpack.c.b16 %v248, %v245
    %297 = vmatprep.subr.bf16.mxu0 %v250
    %298 = vmatpush1.bf16.msra.mxu0 %v249
    %299 = vmatprep.subr.bf16.mxu0 %v253
    %300 = vmatpush1.bf16.msra.mxu0 %v252
    %301 = vmatprep.subr.bf16.mxu0 %v256
    %302 = vmatpush1.bf16.msra.mxu0 %v255
    %303 = vmatprep.subr.bf16.mxu0 %v259
    %304 = vmatpush1.bf16.msra.mxu0 %v258
    %305 = vmatprep.subr.bf16.mxu0 %v262
    %306 = vmatpush1.bf16.msra.mxu0 %v261
    %307 = vmatprep.subr.bf16.mxu0 %v265
    %308 = vmatpush1.bf16.msra.mxu0 %v264
    %309 = vmatprep.subr.bf16.mxu0 %v268
    %310 = vmatpush1.bf16.msra.mxu0 %v267
    %311 = vmatprep.subr.bf16.mxu0 %v271
    %312 = vmatpush1.bf16.msra.mxu0 %v270
    %313 = vmatprep.subr.bf16.mxu0 0
    %314 = vmatpush1.bf16.msra.mxu0 0
    %315 = vmatprep.subr.bf16.mxu0 0
    %316 = vmatpush1.bf16.msra.mxu0 0
    %317 = vmatprep.subr.bf16.mxu0 0
    %318 = vmatpush1.bf16.msra.mxu0 0
    %319 = vmatprep.subr.bf16.mxu0 0
    %320 = vmatpush1.bf16.msra.mxu0 0
    %321 = vmatprep.subr.bf16.mxu0 0
    %322 = vmatpush1.bf16.msra.mxu0 0
    %323 = vmatprep.subr.bf16.mxu0 0
    %324 = vmatpush1.bf16.msra.mxu0 0
    %325 = vmatprep.subr.bf16.mxu0 0
    %326 = vmatpush1.bf16.msra.mxu0 0
    %327 = vmatprep.subr.bf16.mxu0 0
    %328 = vmatpush1.bf16.msra.mxu0 0
    %329 = vmatprep.mubr.bf16.mxu0 0
    %330 = vmatmul.mubr.bf16.gmra.mrb[0].mxu0 %v118
    %v331 = vpop.f32.mrb[0].mxu0
    %v332 = vadd.f32 %v157, %v331
    %v333 = vpop.f32.mrb[0].mxu0
    %v334 = vadd.f32 %v161, %v333
    %v335 = vpop.f32.mrb[0].mxu0
    %v336 = vadd.f32 %v157, %v335
    %v337 = vpop.f32.mrb[0].mxu0
    %v338 = vadd.f32 %v161, %v337
    %339 = vmatprep.mubr.bf16.mxu0 0
    %340 = vmatmul.mubr.bf16.gmra.mrb[0].mxu0 %v119
    %v341 = vpop.f32.mrb[0].mxu0
    %v342 = vadd.f32 %v157, %v341
    %v343 = vpop.f32.mrb[0].mxu0
    %v344 = vadd.f32 %v161, %v343
    %v345 = vpop.f32.mrb[0].mxu0
    %v346 = vadd.f32 %v157, %v345
    %v347 = vpop.f32.mrb[0].mxu0
    %v348 = vadd.f32 %v161, %v347
    %349 = vdwg.mxu0
    %350 = vmatprep.subr.bf16.mxu0 0
    %351 = vmatpush1.bf16.msra.mxu0 %v251
    %352 = vmatprep.subr.bf16.mxu0 0
    %353 = vmatpush1.bf16.msra.mxu0 %v254
    %354 = vmatprep.subr.bf16.mxu0 0
    %355 = vmatpush1.bf16.msra.mxu0 %v257
    %356 = vmatprep.subr.bf16.mxu0 0
    %357 = vmatpush1.bf16.msra.mxu0 %v260
    %358 = vmatprep.subr.bf16.mxu0 0
    %359 = vmatpush1.bf16.msra.mxu0 %v263
    %360 = vmatprep.subr.bf16.mxu0 0
    %361 = vmatpush1.bf16.msra.mxu0 %v266
    %362 = vmatprep.subr.bf16.mxu0 0
    %363 = vmatpush1.bf16.msra.mxu0 %v269
    %364 = vmatprep.subr.bf16.mxu0 0
    %365 = vmatpush1.bf16.msra.mxu0 %v272
    %366 = vmatprep.subr.bf16.mxu0 0
    %367 = vmatpush1.bf16.msra.mxu0 0
    %368 = vmatprep.subr.bf16.mxu0 0
    %369 = vmatpush1.bf16.msra.mxu0 0
    %370 = vmatprep.subr.bf16.mxu0 0
    %371 = vmatpush1.bf16.msra.mxu0 0
    %372 = vmatprep.subr.bf16.mxu0 0
    %373 = vmatpush1.bf16.msra.mxu0 0
    %374 = vmatprep.subr.bf16.mxu0 0
    %375 = vmatpush1.bf16.msra.mxu0 0
    %376 = vmatprep.subr.bf16.mxu0 0
    %377 = vmatpush1.bf16.msra.mxu0 0
    %378 = vmatprep.subr.bf16.mxu0 0
    %379 = vmatpush1.bf16.msra.mxu0 0
    %380 = vmatprep.subr.bf16.mxu0 0
    %381 = vmatpush1.bf16.msra.mxu0 0
    %382 = vmatprep.mubr.bf16.mxu0 0
    %383 = vmatmul.mubr.bf16.gmra.mrb[0].mxu0 %v118
    %v384 = vpop.f32.mrb[0].mxu0
    %v385 = vadd.f32 %v165, %v384
    %v386 = vpop.f32.mrb[0].mxu0
    %v387 = vpop.f32.mrb[0].mxu0
    %v388 = vadd.f32 %v165, %v387
    %v389 = vpop.f32.mrb[0].mxu0
    %390 = vmatprep.mubr.bf16.mxu0 0
    %391 = vmatmul.mubr.bf16.gmra.mrb[0].mxu0 %v119
    %v392 = vpop.f32.mrb[0].mxu0
    %v393 = vadd.f32 %v165, %v392
    %v394 = vpop.f32.mrb[0].mxu0
    %v395 = vpop.f32.mrb[0].mxu0
    %v396 = vadd.f32 %v165, %v395
    %v397 = vpop.f32.mrb[0].mxu0
    %398 = vdwg.mxu0
    %v399 = vlaneseq
    %v400 = vshrl.u32 %v399, 7
    %v401 = vadd.s32 %v400, 8
    %v402 = vlaneseq
    %v403 = vand.u32 %v402, 127
    %vm404 = vcmp.le.s32.totalorder %v403, %v400
    %vm405 = vcmp.le.s32.totalorder %v403, %v401
    %v406 = vpack.c.bf16 %v336, %v332
    %v407 = vpack.c.bf16 %v338, %v334
    %v408 = vpack.c.bf16 %v388, %v385
    %vm409 = vcmask 261120
    %v411 = vsel %vm409, %v406, 0
    %v414 = vsel %vm409, %v407, 0
    %416 = vmatprep.subr.bf16.mxu0 0
    %417 = vmatpush1.bf16.xpose.msra.mxu0 %v414
    %418 = vmatprep.subr.bf16.mxu0 0
    %419 = vmatpush1.bf16.xpose.msra.mxu0 0
    %420 = vmatprep.subr.bf16.mxu0 0
    %421 = vmatpush1.bf16.xpose.msra.mxu0 0
    %422 = vmatprep.subr.bf16.mxu0 0
    %423 = vmatpush1.bf16.xpose.msra.mxu0 0
    %424 = vmatprep.subr.bf16.mxu0 0
    %425 = vmatpush1.bf16.xpose.msra.mxu0 0
    %426 = vmatprep.subr.bf16.mxu0 0
    %427 = vmatpush1.bf16.xpose.msra.mxu0 0
    %428 = vmatprep.subr.bf16.mxu0 0
    %429 = vmatpush1.bf16.xpose.msra.mxu0 0
    %430 = vmatprep.subr.bf16.mxu0 0
    %431 = vmatpush1.bf16.xpose.msra.mxu0 0
    %432 = vmatprep.subr.bf16.mxu0 0
    %433 = vmatpush1.bf16.xpose.msra.mxu0 0
    %434 = vmatprep.subr.bf16.mxu0 0
    %435 = vmatpush1.bf16.xpose.msra.mxu0 0
    %436 = vmatprep.subr.bf16.mxu0 0
    %437 = vmatpush1.bf16.xpose.msra.mxu0 0
    %438 = vmatprep.subr.bf16.mxu0 0
    %439 = vmatpush1.bf16.xpose.msra.mxu0 0
    %440 = vmatprep.subr.bf16.mxu0 0
    %441 = vmatpush1.bf16.xpose.msra.mxu0 0
    %442 = vmatprep.subr.bf16.mxu0 0
    %443 = vmatpush1.bf16.xpose.msra.mxu0 0
    %444 = vmatprep.subr.bf16.mxu0 0
    %445 = vmatpush1.bf16.xpose.msra.mxu0 0
    %446 = vmatprep.subr.bf16.mxu0 0
    %447 = vmatpush1.bf16.xpose.msra.mxu0 0
    %448 = vmatprep.mubr.bf16.mxu0 0
    %449 = vmatmul.mubr.bf16.gmra.mrb[0].mxu0 %v411
    %v450 = vpop.f32.mrb[0].mxu0
    %v451 = vadd.f32 0.0, %v450
    %v452 = vpop.f32.mrb[0].mxu0
    %v453 = vpop.f32.mrb[0].mxu0
    %v454 = vadd.f32 0.0, %v453
    %v455 = vpop.f32.mrb[0].mxu0
    %456 = vdwg.mxu0
    %v457 = vmul.f32 %v451, 0.17677669
    %v458 = vmul.f32 %v454, 0.17677669
    %v459 = vsel %vm404, %v457, -1e+30
    %v460 = vsel %vm405, %v458, -1e+30
    %vm461 = vcmask 130048
    %v462 = vsel %vm461, %v459, -inf
    %463 = vmax.xlane.f32.xlu0 %v462
    %v464 = vpop.xlane.xlu0 %463
    %v465 = vsel %vm461, %v460, -inf
    %466 = vmax.xlane.f32.xlu0 %v465
    %v467 = vpop.xlane.xlu0 %466
    %v468 = vsub.f32 %v459, %v464
    %v469 = vsub.f32 %v460, %v467
    %v470 = vmul.f32 %v468, 1.442695
    %v471 = vpow.pop %v470
    %v472 = vmul.f32 %v469, 1.442695
    %v473 = vpow.pop %v472
    %v474 = vsel %vm461, %v471, 0.0
    %475 = vadd.xlane.f32.xlu0 %v474
    %v476 = vpop.xlane.xlu0 %475
    %v477 = vsel %vm461, %v473, 0.0
    %478 = vadd.xlane.f32.xlu0 %v477
    %v479 = vpop.xlane.xlu0 %478
    %v480 = vrcp.pop %v476
    %v481 = vrcp.pop %v479
    %v482 = vmul.f32 %v471, %v480
    %v483 = vmul.f32 %v473, %v481
    %v484 = vpack.c.bf16 %v483, %v482
    %v486 = vsel %vm461, %v484, 0
    %488 = vmatprep.subr.bf16.mxu0 0
    %489 = vmatpush1.bf16.msra.mxu0 %v408
    %490 = vmatprep.subr.bf16.mxu0 0
    %491 = vmatpush1.bf16.msra.mxu0 0
    %492 = vmatprep.subr.bf16.mxu0 0
    %493 = vmatpush1.bf16.msra.mxu0 0
    %494 = vmatprep.subr.bf16.mxu0 0
    %495 = vmatpush1.bf16.msra.mxu0 0
    %496 = vmatprep.subr.bf16.mxu0 0
    %497 = vmatpush1.bf16.msra.mxu0 0
    %498 = vmatprep.subr.bf16.mxu0 0
    %499 = vmatpush1.bf16.msra.mxu0 0
    %500 = vmatprep.subr.bf16.mxu0 0
    %501 = vmatpush1.bf16.msra.mxu0 0
    %502 = vmatprep.subr.bf16.mxu0 0
    %503 = vmatpush1.bf16.msra.mxu0 0
    %504 = vmatprep.subr.bf16.mxu0 0
    %505 = vmatpush1.bf16.msra.mxu0 0
    %506 = vmatprep.subr.bf16.mxu0 0
    %507 = vmatpush1.bf16.msra.mxu0 0
    %508 = vmatprep.subr.bf16.mxu0 0
    %509 = vmatpush1.bf16.msra.mxu0 0
    %510 = vmatprep.subr.bf16.mxu0 0
    %511 = vmatpush1.bf16.msra.mxu0 0
    %512 = vmatprep.subr.bf16.mxu0 0
    %513 = vmatpush1.bf16.msra.mxu0 0
    %514 = vmatprep.subr.bf16.mxu0 0
    %515 = vmatpush1.bf16.msra.mxu0 0
    %516 = vmatprep.subr.bf16.mxu0 0
    %517 = vmatpush1.bf16.msra.mxu0 0
    %518 = vmatprep.subr.bf16.mxu0 0
    %519 = vmatpush1.bf16.msra.mxu0 0
    %520 = vmatprep.mubr.bf16.mxu0 0
    %521 = vmatmul.mubr.bf16.gmra.mrb[0].mxu0 %v486
    %v522 = vpop.f32.mrb[0].mxu0
    %v523 = vadd.f32 0.0, %v522
    %v524 = vpop.f32.mrb[0].mxu0
    %v525 = vpop.f32.mrb[0].mxu0
    %v526 = vadd.f32 0.0, %v525
    %v527 = vpop.f32.mrb[0].mxu0
    %528 = vdwg.mxu0
    %529 = vst.msk [vmem:[#allocation2] sm:$0xff] %vm409, %v523
    %530 = vst.msk [vmem:[#allocation2 + $0x8] sm:$0xff] %vm409, %v526
    %532 = vrot.lane.b32.xlu0 %v406, 96
    %v533 = vpop.permute.xlu0 %532
    %535 = vrot.lane.b32.xlu0 %v407, 96
    %v536 = vpop.permute.xlu0 %535
    %v538 = vsel %vm409, %v533, 0
    %v541 = vsel %vm409, %v536, 0
    %543 = vmatprep.subr.bf16.mxu0 0
    %544 = vmatpush1.bf16.xpose.msra.mxu0 %v541
    %545 = vmatprep.subr.bf16.mxu0 0
    %546 = vmatpush1.bf16.xpose.msra.mxu0 0
    %547 = vmatprep.subr.bf16.mxu0 0
    %548 = vmatpush1.bf16.xpose.msra.mxu0 0
    %549 = vmatprep.subr.bf16.mxu0 0
    %550 = vmatpush1.bf16.xpose.msra.mxu0 0
    %551 = vmatprep.subr.bf16.mxu0 0
    %552 = vmatpush1.bf16.xpose.msra.mxu0 0
    %553 = vmatprep.subr.bf16.mxu0 0
    %554 = vmatpush1.bf16.xpose.msra.mxu0 0
    %555 = vmatprep.subr.bf16.mxu0 0
    %556 = vmatpush1.bf16.xpose.msra.mxu0 0
    %557 = vmatprep.subr.bf16.mxu0 0
    %558 = vmatpush1.bf16.xpose.msra.mxu0 0
    %559 = vmatprep.subr.bf16.mxu0 0
    %560 = vmatpush1.bf16.xpose.msra.mxu0 0
    %561 = vmatprep.subr.bf16.mxu0 0
    %562 = vmatpush1.bf16.xpose.msra.mxu0 0
    %563 = vmatprep.subr.bf16.mxu0 0
    %564 = vmatpush1.bf16.xpose.msra.mxu0 0
    %565 = vmatprep.subr.bf16.mxu0 0
    %566 = vmatpush1.bf16.xpose.msra.mxu0 0
    %567 = vmatprep.subr.bf16.mxu0 0
    %568 = vmatpush1.bf16.xpose.msra.mxu0 0
    %569 = vmatprep.subr.bf16.mxu0 0
    %570 = vmatpush1.bf16.xpose.msra.mxu0 0
    %571 = vmatprep.subr.bf16.mxu0 0
    %572 = vmatpush1.bf16.xpose.msra.mxu0 0
    %573 = vmatprep.subr.bf16.mxu0 0
    %574 = vmatpush1.bf16.xpose.msra.mxu0 0
    %575 = vmatprep.mubr.bf16.mxu0 0
    %576 = vmatmul.mubr.bf16.gmra.mrb[0].mxu0 %v538
    %v577 = vpop.f32.mrb[0].mxu0
    %v578 = vadd.f32 0.0, %v577
    %v579 = vpop.f32.mrb[0].mxu0
    %v580 = vpop.f32.mrb[0].mxu0
    %v581 = vadd.f32 0.0, %v580
    %v582 = vpop.f32.mrb[0].mxu0
    %583 = vdwg.mxu0
    %v584 = vmul.f32 %v578, 0.17677669
    %v585 = vmul.f32 %v581, 0.17677669
    %v586 = vsel %vm404, %v584, -1e+30
    %v587 = vsel %vm405, %v585, -1e+30
    %v588 = vsel %vm461, %v586, -inf
    %589 = vmax.xlane.f32.xlu0 %v588
    %v590 = vpop.xlane.xlu0 %589
    %v591 = vsel %vm461, %v587, -inf
    %592 = vmax.xlane.f32.xlu0 %v591
    %v593 = vpop.xlane.xlu0 %592
    %v594 = vsub.f32 %v586, %v590
    %v595 = vsub.f32 %v587, %v593
    %v596 = vmul.f32 %v594, 1.442695
    %v597 = vpow.pop %v596
    %v598 = vmul.f32 %v595, 1.442695
    %v599 = vpow.pop %v598
    %v600 = vsel %vm461, %v597, 0.0
    %601 = vadd.xlane.f32.xlu0 %v600
    %v602 = vpop.xlane.xlu0 %601
    %v603 = vsel %vm461, %v599, 0.0
    %604 = vadd.xlane.f32.xlu0 %v603
    %v605 = vpop.xlane.xlu0 %604
    %v606 = vrcp.pop %v602
    %v607 = vrcp.pop %v605
    %v608 = vmul.f32 %v597, %v606
    %v609 = vmul.f32 %v599, %v607
    %v610 = vpack.c.bf16 %v609, %v608
    %612 = vrot.lane.b32.xlu0 %v408, 96
    %v613 = vpop.permute.xlu0 %612
    %v616 = vsel %vm461, %v610, 0
    %618 = vmatprep.subr.bf16.mxu0 0
    %619 = vmatpush1.bf16.msra.mxu0 %v613
    %620 = vmatprep.subr.bf16.mxu0 0
    %621 = vmatpush1.bf16.msra.mxu0 0
    %622 = vmatprep.subr.bf16.mxu0 0
    %623 = vmatpush1.bf16.msra.mxu0 0
    %624 = vmatprep.subr.bf16.mxu0 0
    %625 = vmatpush1.bf16.msra.mxu0 0
    %626 = vmatprep.subr.bf16.mxu0 0
    %627 = vmatpush1.bf16.msra.mxu0 0
    %628 = vmatprep.subr.bf16.mxu0 0
    %629 = vmatpush1.bf16.msra.mxu0 0
    %630 = vmatprep.subr.bf16.mxu0 0
    %631 = vmatpush1.bf16.msra.mxu0 0
    %632 = vmatprep.subr.bf16.mxu0 0
    %633 = vmatpush1.bf16.msra.mxu0 0
    %634 = vmatprep.subr.bf16.mxu0 0
    %635 = vmatpush1.bf16.msra.mxu0 0
    %636 = vmatprep.subr.bf16.mxu0 0
    %637 = vmatpush1.bf16.msra.mxu0 0
    %638 = vmatprep.subr.bf16.mxu0 0
    %639 = vmatpush1.bf16.msra.mxu0 0
    %640 = vmatprep.subr.bf16.mxu0 0
    %641 = vmatpush1.bf16.msra.mxu0 0
    %642 = vmatprep.subr.bf16.mxu0 0
    %643 = vmatpush1.bf16.msra.mxu0 0
    %644 = vmatprep.subr.bf16.mxu0 0
    %645 = vmatpush1.bf16.msra.mxu0 0
    %646 = vmatprep.subr.bf16.mxu0 0
    %647 = vmatpush1.bf16.msra.mxu0 0
    %648 = vmatprep.subr.bf16.mxu0 0
    %649 = vmatpush1.bf16.msra.mxu0 0
    %650 = vmatprep.mubr.bf16.mxu0 0
    %651 = vmatmul.mubr.bf16.gmra.mrb[0].mxu0 %v616
    %v652 = vpop.f32.mrb[0].mxu0
    %v653 = vadd.f32 0.0, %v652
    %v654 = vpop.f32.mrb[0].mxu0
    %v655 = vpop.f32.mrb[0].mxu0
    %v656 = vadd.f32 0.0, %v655
    %v657 = vpop.f32.mrb[0].mxu0
    %658 = vdwg.mxu0
    %661 = vrot.lane.b32.xlu0 %v653, 32
    %v662 = vpop.permute.xlu0 %661
    %663 = vrot.lane.b32.xlu0 %v656, 32
    %v664 = vpop.permute.xlu0 %663
    %vm667 = vcmask 523520
    %668 = vst.msk [vmem:[#allocation2] sm:$0xff] %vm667, %v662
    %669 = vst.msk [vmem:[#allocation2 + $0x8] sm:$0xff] %vm667, %v664
    %670 = vrot.lane.b32.xlu0 %v406, 64
    %v671 = vpop.permute.xlu0 %670
    %672 = vrot.lane.b32.xlu0 %v407, 64
    %v673 = vpop.permute.xlu0 %672
    %v675 = vsel %vm409, %v671, 0
    %v678 = vsel %vm409, %v673, 0
    %680 = vmatprep.subr.bf16.mxu0 0
    %681 = vmatpush1.bf16.xpose.msra.mxu0 %v678
    %682 = vmatprep.subr.bf16.mxu0 0
    %683 = vmatpush1.bf16.xpose.msra.mxu0 0
    %684 = vmatprep.subr.bf16.mxu0 0
    %685 = vmatpush1.bf16.xpose.msra.mxu0 0
    %686 = vmatprep.subr.bf16.mxu0 0
    %687 = vmatpush1.bf16.xpose.msra.mxu0 0
    %688 = vmatprep.subr.bf16.mxu0 0
    %689 = vmatpush1.bf16.xpose.msra.mxu0 0
    %690 = vmatprep.subr.bf16.mxu0 0
    %691 = vmatpush1.bf16.xpose.msra.mxu0 0
    %692 = vmatprep.subr.bf16.mxu0 0
    %693 = vmatpush1.bf16.xpose.msra.mxu0 0
    %694 = vmatprep.subr.bf16.mxu0 0
    %695 = vmatpush1.bf16.xpose.msra.mxu0 0
    %696 = vmatprep.subr.bf16.mxu0 0
    %697 = vmatpush1.bf16.xpose.msra.mxu0 0
    %698 = vmatprep.subr.bf16.mxu0 0
    %699 = vmatpush1.bf16.xpose.msra.mxu0 0
    %700 = vmatprep.subr.bf16.mxu0 0
    %701 = vmatpush1.bf16.xpose.msra.mxu0 0
    %702 = vmatprep.subr.bf16.mxu0 0
    %703 = vmatpush1.bf16.xpose.msra.mxu0 0
    %704 = vmatprep.subr.bf16.mxu0 0
    %705 = vmatpush1.bf16.xpose.msra.mxu0 0
    %706 = vmatprep.subr.bf16.mxu0 0
    %707 = vmatpush1.bf16.xpose.msra.mxu0 0
    %708 = vmatprep.subr.bf16.mxu0 0
    %709 = vmatpush1.bf16.xpose.msra.mxu0 0
    %710 = vmatprep.subr.bf16.mxu0 0
    %711 = vmatpush1.bf16.xpose.msra.mxu0 0
    %712 = vmatprep.mubr.bf16.mxu0 0
    %713 = vmatmul.mubr.bf16.gmra.mrb[0].mxu0 %v675
    %v714 = vpop.f32.mrb[0].mxu0
    %v715 = vadd.f32 0.0, %v714
    %v716 = vpop.f32.mrb[0].mxu0
    %v717 = vpop.f32.mrb[0].mxu0
    %v718 = vadd.f32 0.0, %v717
    %v719 = vpop.f32.mrb[0].mxu0
    %720 = vdwg.mxu0
    %v721 = vmul.f32 %v715, 0.17677669
    %v722 = vmul.f32 %v718, 0.17677669
    %v723 = vsel %vm404, %v721, -1e+30
    %v724 = vsel %vm405, %v722, -1e+30
    %v725 = vsel %vm461, %v723, -inf
    %726 = vmax.xlane.f32.xlu0 %v725
    %v727 = vpop.xlane.xlu0 %726
    %v728 = vsel %vm461, %v724, -inf
    %729 = vmax.xlane.f32.xlu0 %v728
    %v730 = vpop.xlane.xlu0 %729
    %v731 = vsub.f32 %v723, %v727
    %v732 = vsub.f32 %v724, %v730
    %v733 = vmul.f32 %v731, 1.442695
    %v734 = vpow.pop %v733
    %v735 = vmul.f32 %v732, 1.442695
    %v736 = vpow.pop %v735
    %v737 = vsel %vm461, %v734, 0.0
    %738 = vadd.xlane.f32.xlu0 %v737
    %v739 = vpop.xlane.xlu0 %738
    %v740 = vsel %vm461, %v736, 0.0
    %741 = vadd.xlane.f32.xlu0 %v740
    %v742 = vpop.xlane.xlu0 %741
    %v743 = vrcp.pop %v739
    %v744 = vrcp.pop %v742
    %v745 = vmul.f32 %v734, %v743
    %v746 = vmul.f32 %v736, %v744
    %v747 = vpack.c.bf16 %v746, %v745
    %748 = vrot.lane.b32.xlu0 %v408, 64
    %v749 = vpop.permute.xlu0 %748
    %v752 = vsel %vm461, %v747, 0
    %754 = vmatprep.subr.bf16.mxu0 0
    %755 = vmatpush1.bf16.msra.mxu0 %v749
    %756 = vmatprep.subr.bf16.mxu0 0
    %757 = vmatpush1.bf16.msra.mxu0 0
    %758 = vmatprep.subr.bf16.mxu0 0
    %759 = vmatpush1.bf16.msra.mxu0 0
    %760 = vmatprep.subr.bf16.mxu0 0
    %761 = vmatpush1.bf16.msra.mxu0 0
    %762 = vmatprep.subr.bf16.mxu0 0
    %763 = vmatpush1.bf16.msra.mxu0 0
    %764 = vmatprep.subr.bf16.mxu0 0
    %765 = vmatpush1.bf16.msra.mxu0 0
    %766 = vmatprep.subr.bf16.mxu0 0
    %767 = vmatpush1.bf16.msra.mxu0 0
    %768 = vmatprep.subr.bf16.mxu0 0
    %769 = vmatpush1.bf16.msra.mxu0 0
    %770 = vmatprep.subr.bf16.mxu0 0
    %771 = vmatpush1.bf16.msra.mxu0 0
    %772 = vmatprep.subr.bf16.mxu0 0
    %773 = vmatpush1.bf16.msra.mxu0 0
    %774 = vmatprep.subr.bf16.mxu0 0
    %775 = vmatpush1.bf16.msra.mxu0 0
    %776 = vmatprep.subr.bf16.mxu0 0
    %777 = vmatpush1.bf16.msra.mxu0 0
    %778 = vmatprep.subr.bf16.mxu0 0
    %779 = vmatpush1.bf16.msra.mxu0 0
    %780 = vmatprep.subr.bf16.mxu0 0
    %781 = vmatpush1.bf16.msra.mxu0 0
    %782 = vmatprep.subr.bf16.mxu0 0
    %783 = vmatpush1.bf16.msra.mxu0 0
    %784 = vmatprep.subr.bf16.mxu0 0
    %785 = vmatpush1.bf16.msra.mxu0 0
    %786 = vmatprep.mubr.bf16.mxu0 0
    %787 = vmatmul.mubr.bf16.gmra.mrb[0].mxu0 %v752
    %v788 = vpop.f32.mrb[0].mxu0
    %v789 = vadd.f32 0.0, %v788
    %v790 = vpop.f32.mrb[0].mxu0
    %v791 = vpop.f32.mrb[0].mxu0
    %v792 = vadd.f32 0.0, %v791
    %v793 = vpop.f32.mrb[0].mxu0
    %794 = vdwg.mxu0
    %797 = vrot.lane.b32.xlu0 %v789, 64
    %v798 = vpop.permute.xlu0 %797
    %799 = vrot.lane.b32.xlu0 %v792, 64
    %v800 = vpop.permute.xlu0 %799
    %vm803 = vcmask 785920
    %804 = vst.msk [vmem:[#allocation2] sm:$0xff] %vm803, %v798
    %805 = vst.msk [vmem:[#allocation2 + $0x8] sm:$0xff] %vm803, %v800
    %806 = vrot.lane.b32.xlu0 %v406, 32
    %v807 = vpop.permute.xlu0 %806
    %808 = vrot.lane.b32.xlu0 %v407, 32
    %v809 = vpop.permute.xlu0 %808
    %v811 = vsel %vm409, %v807, 0
    %v814 = vsel %vm409, %v809, 0
    %816 = vmatprep.subr.bf16.mxu0 0
    %817 = vmatpush1.bf16.xpose.msra.mxu0 %v814
    %818 = vmatprep.subr.bf16.mxu0 0
    %819 = vmatpush1.bf16.xpose.msra.mxu0 0
    %820 = vmatprep.subr.bf16.mxu0 0
    %821 = vmatpush1.bf16.xpose.msra.mxu0 0
    %822 = vmatprep.subr.bf16.mxu0 0
    %823 = vmatpush1.bf16.xpose.msra.mxu0 0
    %824 = vmatprep.subr.bf16.mxu0 0
    %825 = vmatpush1.bf16.xpose.msra.mxu0 0
    %826 = vmatprep.subr.bf16.mxu0 0
    %827 = vmatpush1.bf16.xpose.msra.mxu0 0
    %828 = vmatprep.subr.bf16.mxu0 0
    %829 = vmatpush1.bf16.xpose.msra.mxu0 0
    %830 = vmatprep.subr.bf16.mxu0 0
    %831 = vmatpush1.bf16.xpose.msra.mxu0 0
    %832 = vmatprep.subr.bf16.mxu0 0
    %833 = vmatpush1.bf16.xpose.msra.mxu0 0
    %834 = vmatprep.subr.bf16.mxu0 0
    %835 = vmatpush1.bf16.xpose.msra.mxu0 0
    %836 = vmatprep.subr.bf16.mxu0 0
    %837 = vmatpush1.bf16.xpose.msra.mxu0 0
    %838 = vmatprep.subr.bf16.mxu0 0
    %839 = vmatpush1.bf16.xpose.msra.mxu0 0
    %840 = vmatprep.subr.bf16.mxu0 0
    %841 = vmatpush1.bf16.xpose.msra.mxu0 0
    %842 = vmatprep.subr.bf16.mxu0 0
    %843 = vmatpush1.bf16.xpose.msra.mxu0 0
    %844 = vmatprep.subr.bf16.mxu0 0
    %845 = vmatpush1.bf16.xpose.msra.mxu0 0
    %846 = vmatprep.subr.bf16.mxu0 0
    %847 = vmatpush1.bf16.xpose.msra.mxu0 0
    %848 = vmatprep.mubr.bf16.mxu0 0
    %849 = vmatmul.mubr.bf16.gmra.mrb[0].mxu0 %v811
    %v850 = vpop.f32.mrb[0].mxu0
    %v851 = vadd.f32 0.0, %v850
    %v852 = vpop.f32.mrb[0].mxu0
    %v853 = vpop.f32.mrb[0].mxu0
    %v854 = vadd.f32 0.0, %v853
    %v855 = vpop.f32.mrb[0].mxu0
    %856 = vdwg.mxu0
    %v857 = vmul.f32 %v851, 0.17677669
    %v858 = vmul.f32 %v854, 0.17677669
    %v859 = vsel %vm404, %v857, -1e+30
    %v860 = vsel %vm405, %v858, -1e+30
    %v861 = vsel %vm461, %v859, -inf
    %862 = vmax.xlane.f32.xlu0 %v861
    %v863 = vpop.xlane.xlu0 %862
    %v864 = vsel %vm461, %v860, -inf
    %865 = vmax.xlane.f32.xlu0 %v864
    %v866 = vpop.xlane.xlu0 %865
    %v867 = vsub.f32 %v859, %v863
    %v868 = vsub.f32 %v860, %v866
    %v869 = vmul.f32 %v867, 1.442695
    %v870 = vpow.pop %v869
    %v871 = vmul.f32 %v868, 1.442695
    %v872 = vpow.pop %v871
    %v873 = vsel %vm461, %v870, 0.0
    %874 = vadd.xlane.f32.xlu0 %v873
    %v875 = vpop.xlane.xlu0 %874
    %v876 = vsel %vm461, %v872, 0.0
    %877 = vadd.xlane.f32.xlu0 %v876
    %v878 = vpop.xlane.xlu0 %877
    %v879 = vrcp.pop %v875
    %v880 = vrcp.pop %v878
    %v881 = vmul.f32 %v870, %v879
    %v882 = vmul.f32 %v872, %v880
    %v883 = vpack.c.bf16 %v882, %v881
    %884 = vrot.lane.b32.xlu0 %v408, 32
    %v885 = vpop.permute.xlu0 %884
    %v888 = vsel %vm461, %v883, 0
    %890 = vmatprep.subr.bf16.mxu0 0
    %891 = vmatpush1.bf16.msra.mxu0 %v885
    %892 = vmatprep.subr.bf16.mxu0 0
    %893 = vmatpush1.bf16.msra.mxu0 0
    %894 = vmatprep.subr.bf16.mxu0 0
    %895 = vmatpush1.bf16.msra.mxu0 0
    %896 = vmatprep.subr.bf16.mxu0 0
    %897 = vmatpush1.bf16.msra.mxu0 0
    %898 = vmatprep.subr.bf16.mxu0 0
    %899 = vmatpush1.bf16.msra.mxu0 0
    %900 = vmatprep.subr.bf16.mxu0 0
    %901 = vmatpush1.bf16.msra.mxu0 0
    %902 = vmatprep.subr.bf16.mxu0 0
    %903 = vmatpush1.bf16.msra.mxu0 0
    %904 = vmatprep.subr.bf16.mxu0 0
    %905 = vmatpush1.bf16.msra.mxu0 0
    %906 = vmatprep.subr.bf16.mxu0 0
    %907 = vmatpush1.bf16.msra.mxu0 0
    %908 = vmatprep.subr.bf16.mxu0 0
    %909 = vmatpush1.bf16.msra.mxu0 0
    %910 = vmatprep.subr.bf16.mxu0 0
    %911 = vmatpush1.bf16.msra.mxu0 0
    %912 = vmatprep.subr.bf16.mxu0 0
    %913 = vmatpush1.bf16.msra.mxu0 0
    %914 = vmatprep.subr.bf16.mxu0 0
    %915 = vmatpush1.bf16.msra.mxu0 0
    %916 = vmatprep.subr.bf16.mxu0 0
    %917 = vmatpush1.bf16.msra.mxu0 0
    %918 = vmatprep.subr.bf16.mxu0 0
    %919 = vmatpush1.bf16.msra.mxu0 0
    %920 = vmatprep.subr.bf16.mxu0 0
    %921 = vmatpush1.bf16.msra.mxu0 0
    %922 = vmatprep.mubr.bf16.mxu0 0
    %923 = vmatmul.mubr.bf16.gmra.mrb[0].mxu0 %v888
    %v924 = vpop.f32.mrb[0].mxu0
    %v925 = vadd.f32 0.0, %v924
    %v926 = vpop.f32.mrb[0].mxu0
    %v927 = vpop.f32.mrb[0].mxu0
    %v928 = vadd.f32 0.0, %v927
    %v929 = vpop.f32.mrb[0].mxu0
    %930 = vdwg.mxu0
    %933 = vrot.lane.b32.xlu0 %v925, 96
    %v934 = vpop.permute.xlu0 %933
    %935 = vrot.lane.b32.xlu0 %v928, 96
    %v936 = vpop.permute.xlu0 %935
    %vm939 = vcmask 1048320
    %940 = vst.msk [vmem:[#allocation2] sm:$0xff] %vm939, %v934
    %941 = vst.msk [vmem:[#allocation2 + $0x8] sm:$0xff] %vm939, %v936
    %v942 = vpack.c.bf16 %v346, %v342
    %v943 = vpack.c.bf16 %v348, %v344
    %v944 = vpack.c.bf16 %v396, %v393
    %v946 = vsel %vm409, %v942, 0
    %v949 = vsel %vm409, %v943, 0
    %951 = vmatprep.subr.bf16.mxu0 0
    %952 = vmatpush1.bf16.xpose.msra.mxu0 %v949
    %953 = vmatprep.subr.bf16.mxu0 0
    %954 = vmatpush1.bf16.xpose.msra.mxu0 0
    %955 = vmatprep.subr.bf16.mxu0 0
    %956 = vmatpush1.bf16.xpose.msra.mxu0 0
    %957 = vmatprep.subr.bf16.mxu0 0
    %958 = vmatpush1.bf16.xpose.msra.mxu0 0
    %959 = vmatprep.subr.bf16.mxu0 0
    %960 = vmatpush1.bf16.xpose.msra.mxu0 0
    %961 = vmatprep.subr.bf16.mxu0 0
    %962 = vmatpush1.bf16.xpose.msra.mxu0 0
    %963 = vmatprep.subr.bf16.mxu0 0
    %964 = vmatpush1.bf16.xpose.msra.mxu0 0
    %965 = vmatprep.subr.bf16.mxu0 0
    %966 = vmatpush1.bf16.xpose.msra.mxu0 0
    %967 = vmatprep.subr.bf16.mxu0 0
    %968 = vmatpush1.bf16.xpose.msra.mxu0 0
    %969 = vmatprep.subr.bf16.mxu0 0
    %970 = vmatpush1.bf16.xpose.msra.mxu0 0
    %971 = vmatprep.subr.bf16.mxu0 0
    %972 = vmatpush1.bf16.xpose.msra.mxu0 0
    %973 = vmatprep.subr.bf16.mxu0 0
    %974 = vmatpush1.bf16.xpose.msra.mxu0 0
    %975 = vmatprep.subr.bf16.mxu0 0
    %976 = vmatpush1.bf16.xpose.msra.mxu0 0
    %977 = vmatprep.subr.bf16.mxu0 0
    %978 = vmatpush1.bf16.xpose.msra.mxu0 0
    %979 = vmatprep.subr.bf16.mxu0 0
    %980 = vmatpush1.bf16.xpose.msra.mxu0 0
    %981 = vmatprep.subr.bf16.mxu0 0
    %982 = vmatpush1.bf16.xpose.msra.mxu0 0
    %983 = vmatprep.mubr.bf16.mxu0 0
    %984 = vmatmul.mubr.bf16.gmra.mrb[0].mxu0 %v946
    %v985 = vpop.f32.mrb[0].mxu0
    %v986 = vadd.f32 0.0, %v985
    %v987 = vpop.f32.mrb[0].mxu0
    %v988 = vpop.f32.mrb[0].mxu0
    %v989 = vadd.f32 0.0, %v988
    %v990 = vpop.f32.mrb[0].mxu0
    %991 = vdwg.mxu0
    %v992 = vmul.f32 %v986, 0.17677669
    %v993 = vmul.f32 %v989, 0.17677669
    %v994 = vsel %vm404, %v992, -1e+30
    %v995 = vsel %vm405, %v993, -1e+30
    %v996 = vsel %vm461, %v994, -inf
    %997 = vmax.xlane.f32.xlu0 %v996
    %v998 = vpop.xlane.xlu0 %997
    %v999 = vsel %vm461, %v995, -inf
    %1000 = vmax.xlane.f32.xlu0 %v999
    %v1001 = vpop.xlane.xlu0 %1000
    %v1002 = vsub.f32 %v994, %v998
    %v1003 = vsub.f32 %v995, %v1001
    %v1004 = vmul.f32 %v1002, 1.442695
    %v1005 = vpow.pop %v1004
    %v1006 = vmul.f32 %v1003, 1.442695
    %v1007 = vpow.pop %v1006
    %v1008 = vsel %vm461, %v1005, 0.0
    %1009 = vadd.xlane.f32.xlu0 %v1008
    %v1010 = vpop.xlane.xlu0 %1009
    %v1011 = vsel %vm461, %v1007, 0.0
    %1012 = vadd.xlane.f32.xlu0 %v1011
    %v1013 = vpop.xlane.xlu0 %1012
    %v1014 = vrcp.pop %v1010
    %v1015 = vrcp.pop %v1013
    %v1016 = vmul.f32 %v1005, %v1014
    %v1017 = vmul.f32 %v1007, %v1015
    %v1018 = vpack.c.bf16 %v1017, %v1016
    %v1020 = vsel %vm461, %v1018, 0
    %1022 = vmatprep.subr.bf16.mxu0 0
    %1023 = vmatpush1.bf16.msra.mxu0 %v944
    %1024 = vmatprep.subr.bf16.mxu0 0
    %1025 = vmatpush1.bf16.msra.mxu0 0
    %1026 = vmatprep.subr.bf16.mxu0 0
    %1027 = vmatpush1.bf16.msra.mxu0 0
    %1028 = vmatprep.subr.bf16.mxu0 0
    %1029 = vmatpush1.bf16.msra.mxu0 0
    %1030 = vmatprep.subr.bf16.mxu0 0
    %1031 = vmatpush1.bf16.msra.mxu0 0
    %1032 = vmatprep.subr.bf16.mxu0 0
    %1033 = vmatpush1.bf16.msra.mxu0 0
    %1034 = vmatprep.subr.bf16.mxu0 0
    %1035 = vmatpush1.bf16.msra.mxu0 0
    %1036 = vmatprep.subr.bf16.mxu0 0
    %1037 = vmatpush1.bf16.msra.mxu0 0
    %1038 = vmatprep.subr.bf16.mxu0 0
    %1039 = vmatpush1.bf16.msra.mxu0 0
    %1040 = vmatprep.subr.bf16.mxu0 0
    %1041 = vmatpush1.bf16.msra.mxu0 0
    %1042 = vmatprep.subr.bf16.mxu0 0
    %1043 = vmatpush1.bf16.msra.mxu0 0
    %1044 = vmatprep.subr.bf16.mxu0 0
    %1045 = vmatpush1.bf16.msra.mxu0 0
    %1046 = vmatprep.subr.bf16.mxu0 0
    %1047 = vmatpush1.bf16.msra.mxu0 0
    %1048 = vmatprep.subr.bf16.mxu0 0
    %1049 = vmatpush1.bf16.msra.mxu0 0
    %1050 = vmatprep.subr.bf16.mxu0 0
    %1051 = vmatpush1.bf16.msra.mxu0 0
    %1052 = vmatprep.subr.bf16.mxu0 0
    %1053 = vmatpush1.bf16.msra.mxu0 0
    %1054 = vmatprep.mubr.bf16.mxu0 0
    %1055 = vmatmul.mubr.bf16.gmra.mrb[0].mxu0 %v1020
    %v1056 = vpop.f32.mrb[0].mxu0
    %v1057 = vadd.f32 0.0, %v1056
    %v1058 = vpop.f32.mrb[0].mxu0
    %v1059 = vpop.f32.mrb[0].mxu0
    %v1060 = vadd.f32 0.0, %v1059
    %v1061 = vpop.f32.mrb[0].mxu0
    %1062 = vdwg.mxu0
    %1063 = vst.msk [vmem:[#allocation2 + $0x10] sm:$0xff] %vm409, %v1057
    %1064 = vst.msk [vmem:[#allocation2 + $0x18] sm:$0xff] %vm409, %v1060
    %1066 = vrot.lane.b32.xlu0 %v942, 96
    %v1067 = vpop.permute.xlu0 %1066
    %1069 = vrot.lane.b32.xlu0 %v943, 96
    %v1070 = vpop.permute.xlu0 %1069
    %v1072 = vsel %vm409, %v1067, 0
    %v1075 = vsel %vm409, %v1070, 0
    %1077 = vmatprep.subr.bf16.mxu0 0
    %1078 = vmatpush1.bf16.xpose.msra.mxu0 %v1075
    %1079 = vmatprep.subr.bf16.mxu0 0
    %1080 = vmatpush1.bf16.xpose.msra.mxu0 0
    %1081 = vmatprep.subr.bf16.mxu0 0
    %1082 = vmatpush1.bf16.xpose.msra.mxu0 0
    %1083 = vmatprep.subr.bf16.mxu0 0
    %1084 = vmatpush1.bf16.xpose.msra.mxu0 0
    %1085 = vmatprep.subr.bf16.mxu0 0
    %1086 = vmatpush1.bf16.xpose.msra.mxu0 0
    %1087 = vmatprep.subr.bf16.mxu0 0
    %1088 = vmatpush1.bf16.xpose.msra.mxu0 0
    %1089 = vmatprep.subr.bf16.mxu0 0
    %1090 = vmatpush1.bf16.xpose.msra.mxu0 0
    %1091 = vmatprep.subr.bf16.mxu0 0
    %1092 = vmatpush1.bf16.xpose.msra.mxu0 0
    %1093 = vmatprep.subr.bf16.mxu0 0
    %1094 = vmatpush1.bf16.xpose.msra.mxu0 0
    %1095 = vmatprep.subr.bf16.mxu0 0
    %1096 = vmatpush1.bf16.xpose.msra.mxu0 0
    %1097 = vmatprep.subr.bf16.mxu0 0
    %1098 = vmatpush1.bf16.xpose.msra.mxu0 0
    %1099 = vmatprep.subr.bf16.mxu0 0
    %1100 = vmatpush1.bf16.xpose.msra.mxu0 0
    %1101 = vmatprep.subr.bf16.mxu0 0
    %1102 = vmatpush1.bf16.xpose.msra.mxu0 0
    %1103 = vmatprep.subr.bf16.mxu0 0
    %1104 = vmatpush1.bf16.xpose.msra.mxu0 0
    %1105 = vmatprep.subr.bf16.mxu0 0
    %1106 = vmatpush1.bf16.xpose.msra.mxu0 0
    %1107 = vmatprep.subr.bf16.mxu0 0
    %1108 = vmatpush1.bf16.xpose.msra.mxu0 0
    %1109 = vmatprep.mubr.bf16.mxu0 0
    %1110 = vmatmul.mubr.bf16.gmra.mrb[0].mxu0 %v1072
    %v1111 = vpop.f32.mrb[0].mxu0
    %v1112 = vadd.f32 0.0, %v1111
    %v1113 = vpop.f32.mrb[0].mxu0
    %v1114 = vpop.f32.mrb[0].mxu0
    %v1115 = vadd.f32 0.0, %v1114
    %v1116 = vpop.f32.mrb[0].mxu0
    %1117 = vdwg.mxu0
    %v1118 = vmul.f32 %v1112, 0.17677669
    %v1119 = vmul.f32 %v1115, 0.17677669
    %v1120 = vsel %vm404, %v1118, -1e+30
    %v1121 = vsel %vm405, %v1119, -1e+30
    %v1122 = vsel %vm461, %v1120, -inf
    %1123 = vmax.xlane.f32.xlu0 %v1122
    %v1124 = vpop.xlane.xlu0 %1123
    %v1125 = vsel %vm461, %v1121, -inf
    %1126 = vmax.xlane.f32.xlu0 %v1125
    %v1127 = vpop.xlane.xlu0 %1126
    %v1128 = vsub.f32 %v1120, %v1124
    %v1129 = vsub.f32 %v1121, %v1127
    %v1130 = vmul.f32 %v1128, 1.442695
    %v1131 = vpow.pop %v1130
    %v1132 = vmul.f32 %v1129, 1.442695
    %v1133 = vpow.pop %v1132
    %v1134 = vsel %vm461, %v1131, 0.0
    %1135 = vadd.xlane.f32.xlu0 %v1134
    %v1136 = vpop.xlane.xlu0 %1135
    %v1137 = vsel %vm461, %v1133, 0.0
    %1138 = vadd.xlane.f32.xlu0 %v1137
    %v1139 = vpop.xlane.xlu0 %1138
    %v1140 = vrcp.pop %v1136
    %v1141 = vrcp.pop %v1139
    %v1142 = vmul.f32 %v1131, %v1140
    %v1143 = vmul.f32 %v1133, %v1141
    %v1144 = vpack.c.bf16 %v1143, %v1142
    %1146 = vrot.lane.b32.xlu0 %v944, 96
    %v1147 = vpop.permute.xlu0 %1146
    %v1150 = vsel %vm461, %v1144, 0
    %1152 = vmatprep.subr.bf16.mxu0 0
    %1153 = vmatpush1.bf16.msra.mxu0 %v1147
    %1154 = vmatprep.subr.bf16.mxu0 0
    %1155 = vmatpush1.bf16.msra.mxu0 0
    %1156 = vmatprep.subr.bf16.mxu0 0
    %1157 = vmatpush1.bf16.msra.mxu0 0
    %1158 = vmatprep.subr.bf16.mxu0 0
    %1159 = vmatpush1.bf16.msra.mxu0 0
    %1160 = vmatprep.subr.bf16.mxu0 0
    %1161 = vmatpush1.bf16.msra.mxu0 0
    %1162 = vmatprep.subr.bf16.mxu0 0
    %1163 = vmatpush1.bf16.msra.mxu0 0
    %1164 = vmatprep.subr.bf16.mxu0 0
    %1165 = vmatpush1.bf16.msra.mxu0 0
    %1166 = vmatprep.subr.bf16.mxu0 0
    %1167 = vmatpush1.bf16.msra.mxu0 0
    %1168 = vmatprep.subr.bf16.mxu0 0
    %1169 = vmatpush1.bf16.msra.mxu0 0
    %1170 = vmatprep.subr.bf16.mxu0 0
    %1171 = vmatpush1.bf16.msra.mxu0 0
    %1172 = vmatprep.subr.bf16.mxu0 0
    %1173 = vmatpush1.bf16.msra.mxu0 0
    %1174 = vmatprep.subr.bf16.mxu0 0
    %1175 = vmatpush1.bf16.msra.mxu0 0
    %1176 = vmatprep.subr.bf16.mxu0 0
    %1177 = vmatpush1.bf16.msra.mxu0 0
    %1178 = vmatprep.subr.bf16.mxu0 0
    %1179 = vmatpush1.bf16.msra.mxu0 0
    %1180 = vmatprep.subr.bf16.mxu0 0
    %1181 = vmatpush1.bf16.msra.mxu0 0
    %1182 = vmatprep.subr.bf16.mxu0 0
    %1183 = vmatpush1.bf16.msra.mxu0 0
    %1184 = vmatprep.mubr.bf16.mxu0 0
    %1185 = vmatmul.mubr.bf16.gmra.mrb[0].mxu0 %v1150
    %v1186 = vpop.f32.mrb[0].mxu0
    %v1187 = vadd.f32 0.0, %v1186
    %v1188 = vpop.f32.mrb[0].mxu0
    %v1189 = vpop.f32.mrb[0].mxu0
    %v1190 = vadd.f32 0.0, %v1189
    %v1191 = vpop.f32.mrb[0].mxu0
    %1192 = vdwg.mxu0
    %1195 = vrot.lane.b32.xlu0 %v1187, 32
    %v1196 = vpop.permute.xlu0 %1195
    %1197 = vrot.lane.b32.xlu0 %v1190, 32
    %v1198 = vpop.permute.xlu0 %1197
    %1201 = vst.msk [vmem:[#allocation2 + $0x10] sm:$0xff] %vm667, %v1196
    %1202 = vst.msk [vmem:[#allocation2 + $0x18] sm:$0xff] %vm667, %v1198
    %1203 = vrot.lane.b32.xlu0 %v942, 64
    %v1204 = vpop.permute.xlu0 %1203
    %1205 = vrot.lane.b32.xlu0 %v943, 64
    %v1206 = vpop.permute.xlu0 %1205
    %v1208 = vsel %vm409, %v1204, 0
    %v1211 = vsel %vm409, %v1206, 0
    %1213 = vmatprep.subr.bf16.mxu0 0
    %1214 = vmatpush1.bf16.xpose.msra.mxu0 %v1211
    %1215 = vmatprep.subr.bf16.mxu0 0
    %1216 = vmatpush1.bf16.xpose.msra.mxu0 0
    %1217 = vmatprep.subr.bf16.mxu0 0
    %1218 = vmatpush1.bf16.xpose.msra.mxu0 0
    %1219 = vmatprep.subr.bf16.mxu0 0
    %1220 = vmatpush1.bf16.xpose.msra.mxu0 0
    %1221 = vmatprep.subr.bf16.mxu0 0
    %1222 = vmatpush1.bf16.xpose.msra.mxu0 0
    %1223 = vmatprep.subr.bf16.mxu0 0
    %1224 = vmatpush1.bf16.xpose.msra.mxu0 0
    %1225 = vmatprep.subr.bf16.mxu0 0
    %1226 = vmatpush1.bf16.xpose.msra.mxu0 0
    %1227 = vmatprep.subr.bf16.mxu0 0
    %1228 = vmatpush1.bf16.xpose.msra.mxu0 0
    %1229 = vmatprep.subr.bf16.mxu0 0
    %1230 = vmatpush1.bf16.xpose.msra.mxu0 0
    %1231 = vmatprep.subr.bf16.mxu0 0
    %1232 = vmatpush1.bf16.xpose.msra.mxu0 0
    %1233 = vmatprep.subr.bf16.mxu0 0
    %1234 = vmatpush1.bf16.xpose.msra.mxu0 0
    %1235 = vmatprep.subr.bf16.mxu0 0
    %1236 = vmatpush1.bf16.xpose.msra.mxu0 0
    %1237 = vmatprep.subr.bf16.mxu0 0
    %1238 = vmatpush1.bf16.xpose.msra.mxu0 0
    %1239 = vmatprep.subr.bf16.mxu0 0
    %1240 = vmatpush1.bf16.xpose.msra.mxu0 0
    %1241 = vmatprep.subr.bf16.mxu0 0
    %1242 = vmatpush1.bf16.xpose.msra.mxu0 0
    %1243 = vmatprep.subr.bf16.mxu0 0
    %1244 = vmatpush1.bf16.xpose.msra.mxu0 0
    %1245 = vmatprep.mubr.bf16.mxu0 0
    %1246 = vmatmul.mubr.bf16.gmra.mrb[0].mxu0 %v1208
    %v1247 = vpop.f32.mrb[0].mxu0
    %v1248 = vadd.f32 0.0, %v1247
    %v1249 = vpop.f32.mrb[0].mxu0
    %v1250 = vpop.f32.mrb[0].mxu0
    %v1251 = vadd.f32 0.0, %v1250
    %v1252 = vpop.f32.mrb[0].mxu0
    %1253 = vdwg.mxu0
    %v1254 = vmul.f32 %v1248, 0.17677669
    %v1255 = vmul.f32 %v1251, 0.17677669
    %v1256 = vsel %vm404, %v1254, -1e+30
    %v1257 = vsel %vm405, %v1255, -1e+30
    %v1258 = vsel %vm461, %v1256, -inf
    %1259 = vmax.xlane.f32.xlu0 %v1258
    %v1260 = vpop.xlane.xlu0 %1259
    %v1261 = vsel %vm461, %v1257, -inf
    %1262 = vmax.xlane.f32.xlu0 %v1261
    %v1263 = vpop.xlane.xlu0 %1262
    %v1264 = vsub.f32 %v1256, %v1260
    %v1265 = vsub.f32 %v1257, %v1263
    %v1266 = vmul.f32 %v1264, 1.442695
    %v1267 = vpow.pop %v1266
    %v1268 = vmul.f32 %v1265, 1.442695
    %v1269 = vpow.pop %v1268
    %v1270 = vsel %vm461, %v1267, 0.0
    %1271 = vadd.xlane.f32.xlu0 %v1270
    %v1272 = vpop.xlane.xlu0 %1271
    %v1273 = vsel %vm461, %v1269, 0.0
    %1274 = vadd.xlane.f32.xlu0 %v1273
    %v1275 = vpop.xlane.xlu0 %1274
    %v1276 = vrcp.pop %v1272
    %v1277 = vrcp.pop %v1275
    %v1278 = vmul.f32 %v1267, %v1276
    %v1279 = vmul.f32 %v1269, %v1277
    %v1280 = vpack.c.bf16 %v1279, %v1278
    %1281 = vrot.lane.b32.xlu0 %v944, 64
    %v1282 = vpop.permute.xlu0 %1281
    %v1285 = vsel %vm461, %v1280, 0
    %1287 = vmatprep.subr.bf16.mxu0 0
    %1288 = vmatpush1.bf16.msra.mxu0 %v1282
    %1289 = vmatprep.subr.bf16.mxu0 0
    %1290 = vmatpush1.bf16.msra.mxu0 0
    %1291 = vmatprep.subr.bf16.mxu0 0
    %1292 = vmatpush1.bf16.msra.mxu0 0
    %1293 = vmatprep.subr.bf16.mxu0 0
    %1294 = vmatpush1.bf16.msra.mxu0 0
    %1295 = vmatprep.subr.bf16.mxu0 0
    %1296 = vmatpush1.bf16.msra.mxu0 0
    %1297 = vmatprep.subr.bf16.mxu0 0
    %1298 = vmatpush1.bf16.msra.mxu0 0
    %1299 = vmatprep.subr.bf16.mxu0 0
    %1300 = vmatpush1.bf16.msra.mxu0 0
    %1301 = vmatprep.subr.bf16.mxu0 0
    %1302 = vmatpush1.bf16.msra.mxu0 0
    %1303 = vmatprep.subr.bf16.mxu0 0
    %1304 = vmatpush1.bf16.msra.mxu0 0
    %1305 = vmatprep.subr.bf16.mxu0 0
    %1306 = vmatpush1.bf16.msra.mxu0 0
    %1307 = vmatprep.subr.bf16.mxu0 0
    %1308 = vmatpush1.bf16.msra.mxu0 0
    %1309 = vmatprep.subr.bf16.mxu0 0
    %1310 = vmatpush1.bf16.msra.mxu0 0
    %1311 = vmatprep.subr.bf16.mxu0 0
    %1312 = vmatpush1.bf16.msra.mxu0 0
    %1313 = vmatprep.subr.bf16.mxu0 0
    %1314 = vmatpush1.bf16.msra.mxu0 0
    %1315 = vmatprep.subr.bf16.mxu0 0
    %1316 = vmatpush1.bf16.msra.mxu0 0
    %1317 = vmatprep.subr.bf16.mxu0 0
    %1318 = vmatpush1.bf16.msra.mxu0 0
    %1319 = vmatprep.mubr.bf16.mxu0 0
    %1320 = vmatmul.mubr.bf16.gmra.mrb[0].mxu0 %v1285
    %v1321 = vpop.f32.mrb[0].mxu0
    %v1322 = vadd.f32 0.0, %v1321
    %v1323 = vpop.f32.mrb[0].mxu0
    %v1324 = vpop.f32.mrb[0].mxu0
    %v1325 = vadd.f32 0.0, %v1324
    %v1326 = vpop.f32.mrb[0].mxu0
    %1327 = vdwg.mxu0
    %1330 = vrot.lane.b32.xlu0 %v1322, 64
    %v1331 = vpop.permute.xlu0 %1330
    %1332 = vrot.lane.b32.xlu0 %v1325, 64
    %v1333 = vpop.permute.xlu0 %1332
    %1336 = vst.msk [vmem:[#allocation2 + $0x10] sm:$0xff] %vm803, %v1331
    %1337 = vst.msk [vmem:[#allocation2 + $0x18] sm:$0xff] %vm803, %v1333
    %1338 = vrot.lane.b32.xlu0 %v942, 32
    %v1339 = vpop.permute.xlu0 %1338
    %1340 = vrot.lane.b32.xlu0 %v943, 32
    %v1341 = vpop.permute.xlu0 %1340
    %v1343 = vsel %vm409, %v1339, 0
    %v1346 = vsel %vm409, %v1341, 0
    %1348 = vmatprep.subr.bf16.mxu0 0
    %1349 = vmatpush1.bf16.xpose.msra.mxu0 %v1346
    %1350 = vmatprep.subr.bf16.mxu0 0
    %1351 = vmatpush1.bf16.xpose.msra.mxu0 0
    %1352 = vmatprep.subr.bf16.mxu0 0
    %1353 = vmatpush1.bf16.xpose.msra.mxu0 0
    %1354 = vmatprep.subr.bf16.mxu0 0
    %1355 = vmatpush1.bf16.xpose.msra.mxu0 0
    %1356 = vmatprep.subr.bf16.mxu0 0
    %1357 = vmatpush1.bf16.xpose.msra.mxu0 0
    %1358 = vmatprep.subr.bf16.mxu0 0
    %1359 = vmatpush1.bf16.xpose.msra.mxu0 0
    %1360 = vmatprep.subr.bf16.mxu0 0
    %1361 = vmatpush1.bf16.xpose.msra.mxu0 0
    %1362 = vmatprep.subr.bf16.mxu0 0
    %1363 = vmatpush1.bf16.xpose.msra.mxu0 0
    %1364 = vmatprep.subr.bf16.mxu0 0
    %1365 = vmatpush1.bf16.xpose.msra.mxu0 0
    %1366 = vmatprep.subr.bf16.mxu0 0
    %1367 = vmatpush1.bf16.xpose.msra.mxu0 0
    %1368 = vmatprep.subr.bf16.mxu0 0
    %1369 = vmatpush1.bf16.xpose.msra.mxu0 0
    %1370 = vmatprep.subr.bf16.mxu0 0
    %1371 = vmatpush1.bf16.xpose.msra.mxu0 0
    %1372 = vmatprep.subr.bf16.mxu0 0
    %1373 = vmatpush1.bf16.xpose.msra.mxu0 0
    %1374 = vmatprep.subr.bf16.mxu0 0
    %1375 = vmatpush1.bf16.xpose.msra.mxu0 0
    %1376 = vmatprep.subr.bf16.mxu0 0
    %1377 = vmatpush1.bf16.xpose.msra.mxu0 0
    %1378 = vmatprep.subr.bf16.mxu0 0
    %1379 = vmatpush1.bf16.xpose.msra.mxu0 0
    %1380 = vmatprep.mubr.bf16.mxu0 0
    %1381 = vmatmul.mubr.bf16.gmra.mrb[0].mxu0 %v1343
    %v1382 = vpop.f32.mrb[0].mxu0
    %v1383 = vadd.f32 0.0, %v1382
    %v1384 = vpop.f32.mrb[0].mxu0
    %v1385 = vpop.f32.mrb[0].mxu0
    %v1386 = vadd.f32 0.0, %v1385
    %v1387 = vpop.f32.mrb[0].mxu0
    %1388 = vdwg.mxu0
    %v1389 = vmul.f32 %v1383, 0.17677669
    %v1390 = vmul.f32 %v1386, 0.17677669
    %v1391 = vsel %vm404, %v1389, -1e+30
    %v1392 = vsel %vm405, %v1390, -1e+30
    %v1393 = vsel %vm461, %v1391, -inf
    %1394 = vmax.xlane.f32.xlu0 %v1393
    %v1395 = vpop.xlane.xlu0 %1394
    %v1396 = vsel %vm461, %v1392, -inf
    %1397 = vmax.xlane.f32.xlu0 %v1396
    %v1398 = vpop.xlane.xlu0 %1397
    %v1399 = vsub.f32 %v1391, %v1395
    %v1400 = vsub.f32 %v1392, %v1398
    %v1401 = vmul.f32 %v1399, 1.442695
    %v1402 = vpow.pop %v1401
    %v1403 = vmul.f32 %v1400, 1.442695
    %v1404 = vpow.pop %v1403
    %v1405 = vsel %vm461, %v1402, 0.0
    %1406 = vadd.xlane.f32.xlu0 %v1405
    %v1407 = vpop.xlane.xlu0 %1406
    %v1408 = vsel %vm461, %v1404, 0.0
    %1409 = vadd.xlane.f32.xlu0 %v1408
    %v1410 = vpop.xlane.xlu0 %1409
    %v1411 = vrcp.pop %v1407
    %v1412 = vrcp.pop %v1410
    %v1413 = vmul.f32 %v1402, %v1411
    %v1414 = vmul.f32 %v1404, %v1412
    %v1415 = vpack.c.bf16 %v1414, %v1413
    %1416 = vrot.lane.b32.xlu0 %v944, 32
    %v1417 = vpop.permute.xlu0 %1416
    %v1420 = vsel %vm461, %v1415, 0
    %1422 = vmatprep.subr.bf16.mxu0 0
    %1423 = vmatpush1.bf16.msra.mxu0 %v1417
    %1424 = vmatprep.subr.bf16.mxu0 0
    %1425 = vmatpush1.bf16.msra.mxu0 0
    %1426 = vmatprep.subr.bf16.mxu0 0
    %1427 = vmatpush1.bf16.msra.mxu0 0
    %1428 = vmatprep.subr.bf16.mxu0 0
    %1429 = vmatpush1.bf16.msra.mxu0 0
    %1430 = vmatprep.subr.bf16.mxu0 0
    %1431 = vmatpush1.bf16.msra.mxu0 0
    %1432 = vmatprep.subr.bf16.mxu0 0
    %1433 = vmatpush1.bf16.msra.mxu0 0
    %1434 = vmatprep.subr.bf16.mxu0 0
    %1435 = vmatpush1.bf16.msra.mxu0 0
    %1436 = vmatprep.subr.bf16.mxu0 0
    %1437 = vmatpush1.bf16.msra.mxu0 0
    %1438 = vmatprep.subr.bf16.mxu0 0
    %1439 = vmatpush1.bf16.msra.mxu0 0
    %1440 = vmatprep.subr.bf16.mxu0 0
    %1441 = vmatpush1.bf16.msra.mxu0 0
    %1442 = vmatprep.subr.bf16.mxu0 0
    %1443 = vmatpush1.bf16.msra.mxu0 0
    %1444 = vmatprep.subr.bf16.mxu0 0
    %1445 = vmatpush1.bf16.msra.mxu0 0
    %1446 = vmatprep.subr.bf16.mxu0 0
    %1447 = vmatpush1.bf16.msra.mxu0 0
    %1448 = vmatprep.subr.bf16.mxu0 0
    %1449 = vmatpush1.bf16.msra.mxu0 0
    %1450 = vmatprep.subr.bf16.mxu0 0
    %1451 = vmatpush1.bf16.msra.mxu0 0
    %1452 = vmatprep.subr.bf16.mxu0 0
    %1453 = vmatpush1.bf16.msra.mxu0 0
    %1454 = vmatprep.mubr.bf16.mxu0 0
    %1455 = vmatmul.mubr.bf16.gmra.mrb[0].mxu0 %v1420
    %v1456 = vpop.f32.mrb[0].mxu0
    %v1457 = vadd.f32 0.0, %v1456
    %v1458 = vpop.f32.mrb[0].mxu0
    %v1459 = vpop.f32.mrb[0].mxu0
    %v1460 = vadd.f32 0.0, %v1459
    %v1461 = vpop.f32.mrb[0].mxu0
    %1462 = vdwg.mxu0
    %1465 = vrot.lane.b32.xlu0 %v1457, 96
    %v1466 = vpop.permute.xlu0 %1465
    %1467 = vrot.lane.b32.xlu0 %v1460, 96
    %v1468 = vpop.permute.xlu0 %1467
    %1471 = vst.msk [vmem:[#allocation2 + $0x10] sm:$0xff] %vm939, %v1466
    %1472 = vst.msk [vmem:[#allocation2 + $0x18] sm:$0xff] %vm939, %v1468
    %v1473 = vld [vmem:[#allocation2] sm:$0xff]
    %v1474 = vld [vmem:[#allocation2 + $0x8] sm:$0xff]
    %v1475 = vld [vmem:[#allocation2 + $0x10] sm:$0xff]
    %v1476 = vld [vmem:[#allocation2 + $0x18] sm:$0xff]
    %v1477 = vpack.c.bf16 %v1474, %v1473
    %v1478 = vpack.c.bf16 %v1476, %v1475
    %v1479 = vld [vmem:[#allocation8] sm:$0xf]
    %v1480 = vld [vmem:[#allocation8 + $0x4] sm:$0xf]
    %v1481 = vld [vmem:[#allocation8 + $0x8] sm:$0xf]
    %v1482 = vld [vmem:[#allocation8 + $0xc] sm:$0xf]
    %v1483 = vld [vmem:[#allocation8 + $0x10] sm:$0xf]
    %v1484 = vld [vmem:[#allocation8 + $0x14] sm:$0xf]
    %v1485 = vld [vmem:[#allocation8 + $0x18] sm:$0xf]
    %v1486 = vld [vmem:[#allocation8 + $0x1c] sm:$0xf]
    %v1487 = vld [vmem:[#allocation8 + $0x20] sm:$0xf]
    %v1488 = vld [vmem:[#allocation8 + $0x24] sm:$0xf]
    %v1489 = vld [vmem:[#allocation8 + $0x28] sm:$0xf]
    %v1490 = vld [vmem:[#allocation8 + $0x2c] sm:$0xf]
    %v1491 = vld [vmem:[#allocation8 + $0x30] sm:$0xf]
    %v1492 = vld [vmem:[#allocation8 + $0x34] sm:$0xf]
    %v1493 = vld [vmem:[#allocation8 + $0x38] sm:$0xf]
    %v1494 = vld [vmem:[#allocation8 + $0x3c] sm:$0xf]
    %v1495 = vld [vmem:[%s4] sm:$0x1]
    %v1497 = vlaneseq
    %v1498 = vshrl.u32 %v1497, 7
    %v1499 = vsub.s32 0, %v1498
    %v1500 = vrot.slane %v1495, %v1499
    %v1518 = vunpack.c.l.b16 %v1479
    %v1519 = vunpack.c.l.b16 %v1480
    %v1520 = vunpack.c.l.b16 %v1481
    %v1521 = vunpack.c.l.b16 %v1482
    %v1522 = vunpack.c.l.b16 %v1483
    %v1523 = vunpack.c.l.b16 %v1484
    %v1524 = vunpack.c.l.b16 %v1485
    %v1525 = vunpack.c.l.b16 %v1486
    %v1526 = vunpack.c.l.b16 %v1487
    %v1527 = vunpack.c.l.b16 %v1488
    %v1528 = vunpack.c.l.b16 %v1489
    %v1529 = vunpack.c.l.b16 %v1490
    %v1530 = vunpack.c.l.b16 %v1491
    %v1531 = vunpack.c.l.b16 %v1492
    %v1532 = vunpack.c.l.b16 %v1493
    %v1533 = vunpack.c.l.b16 %v1494
    %v1534 = vpack.c.b16 %v1519, %v1518
    %v1535 = vpack.c.b16 %v1521, %v1520
    %v1536 = vpack.c.b16 %v1523, %v1522
    %v1537 = vpack.c.b16 %v1525, %v1524
    %v1538 = vpack.c.b16 %v1527, %v1526
    %v1539 = vpack.c.b16 %v1529, %v1528
    %v1540 = vpack.c.b16 %v1531, %v1530
    %v1541 = vpack.c.b16 %v1533, %v1532
    %1550 = vmatprep.subr.bf16.mxu0 0
    %1551 = vmatpush1.bf16.msra.mxu0 %v1534
    %1552 = vmatprep.subr.bf16.mxu0 0
    %1553 = vmatpush1.bf16.msra.mxu0 %v1535
    %1554 = vmatprep.subr.bf16.mxu0 0
    %1555 = vmatpush1.bf16.msra.mxu0 %v1536
    %1556 = vmatprep.subr.bf16.mxu0 0
    %1557 = vmatpush1.bf16.msra.mxu0 %v1537
    %1558 = vmatprep.subr.bf16.mxu0 0
    %1559 = vmatpush1.bf16.msra.mxu0 %v1538
    %1560 = vmatprep.subr.bf16.mxu0 0
    %1561 = vmatpush1.bf16.msra.mxu0 %v1539
    %1562 = vmatprep.subr.bf16.mxu0 0
    %1563 = vmatpush1.bf16.msra.mxu0 %v1540
    %1564 = vmatprep.subr.bf16.mxu0 0
    %1565 = vmatpush1.bf16.msra.mxu0 %v1541
    %1566 = vmatprep.subr.bf16.mxu0 0
    %1567 = vmatpush1.bf16.msra.mxu0 0
    %1568 = vmatprep.subr.bf16.mxu0 0
    %1569 = vmatpush1.bf16.msra.mxu0 0
    %1570 = vmatprep.subr.bf16.mxu0 0
    %1571 = vmatpush1.bf16.msra.mxu0 0
    %1572 = vmatprep.subr.bf16.mxu0 0
    %1573 = vmatpush1.bf16.msra.mxu0 0
    %1574 = vmatprep.subr.bf16.mxu0 0
    %1575 = vmatpush1.bf16.msra.mxu0 0
    %1576 = vmatprep.subr.bf16.mxu0 0
    %1577 = vmatpush1.bf16.msra.mxu0 0
    %1578 = vmatprep.subr.bf16.mxu0 0
    %1579 = vmatpush1.bf16.msra.mxu0 0
    %1580 = vmatprep.subr.bf16.mxu0 0
    %1581 = vmatpush1.bf16.msra.mxu0 0
    %1582 = vmatprep.mubr.bf16.mxu0 0
    %1583 = vmatmul.mubr.bf16.gmra.mrb[0].mxu0 %v1477
    %v1584 = vpop.f32.mrb[0].mxu0
    %v1585 = vadd.f32 %v1500, %v1584
    %v1586 = vpop.f32.mrb[0].mxu0
    %v1587 = vpop.f32.mrb[0].mxu0
    %v1588 = vadd.f32 %v1500, %v1587
    %v1589 = vpop.f32.mrb[0].mxu0
    %1590 = vmatprep.mubr.bf16.mxu0 0
    %1591 = vmatmul.mubr.bf16.gmra.mrb[0].mxu0 %v1478
    %v1592 = vpop.f32.mrb[0].mxu0
    %v1593 = vadd.f32 %v1500, %v1592
    %v1594 = vpop.f32.mrb[0].mxu0
    %v1595 = vpop.f32.mrb[0].mxu0
    %v1596 = vadd.f32 %v1500, %v1595
    %v1597 = vpop.f32.mrb[0].mxu0
    %1598 = vdwg.mxu0
    %v1599 = vadd.f32 %v114, %v1585
    %v1600 = vadd.f32 %v115, %v1588
    %v1601 = vadd.f32 %v116, %v1593
    %v1602 = vadd.f32 %v117, %v1596
    %v1603 = vld [vmem:[%s5] sm:$0x1]
    %v1604 = vld [vmem:[%s6] sm:$0x1]
    %1605 = vadd.xlane.f32.xlu0 %v1599
    %v1606 = vpop.xlane.xlu0 %1605
    %1607 = vadd.xlane.f32.xlu0 %v1600
    %v1608 = vpop.xlane.xlu0 %1607
    %1609 = vadd.xlane.f32.xlu0 %v1601
    %v1610 = vpop.xlane.xlu0 %1609
    %1611 = vadd.xlane.f32.xlu0 %v1602
    %v1612 = vpop.xlane.xlu0 %1611
    %v1613 = vrcp.pop 128.0
    %v1614 = vmul.f32 %v1606, %v1613
    %v1615 = vmul.f32 %v1608, %v1613
    %v1616 = vmul.f32 %v1610, %v1613
    %v1617 = vmul.f32 %v1612, %v1613
    %v1618 = vsub.f32 %v1599, %v1614
    %v1619 = vsub.f32 %v1600, %v1615
    %v1620 = vsub.f32 %v1601, %v1616
    %v1621 = vsub.f32 %v1602, %v1617
    %v1622 = vmul.f32 %v1618, %v1618
    %v1623 = vmul.f32 %v1619, %v1619
    %v1624 = vmul.f32 %v1620, %v1620
    %v1625 = vmul.f32 %v1621, %v1621
    %1626 = vadd.xlane.f32.xlu0 %v1622
    %v1627 = vpop.xlane.xlu0 %1626
    %1628 = vadd.xlane.f32.xlu0 %v1623
    %v1629 = vpop.xlane.xlu0 %1628
    %1630 = vadd.xlane.f32.xlu0 %v1624
    %v1631 = vpop.xlane.xlu0 %1630
    %1632 = vadd.xlane.f32.xlu0 %v1625
    %v1633 = vpop.xlane.xlu0 %1632
    %v1634 = vmul.f32 %v1627, %v1613
    %v1635 = vmul.f32 %v1629, %v1613
    %v1636 = vmul.f32 %v1631, %v1613
    %v1637 = vmul.f32 %v1633, %v1613
    %v1638 = vadd.f32 %v1634, 1e-05
    %v1639 = vadd.f32 %v1635, 1e-05
    %v1640 = vadd.f32 %v1636, 1e-05
    %v1641 = vadd.f32 %v1637, 1e-05
    %v1642 = vrsqrt.pop %v1638
    %v1643 = vrsqrt.pop %v1639
    %v1644 = vrsqrt.pop %v1640
    %v1645 = vrsqrt.pop %v1641
    %v1646 = vmul.f32 %v1618, %v1642
    %v1647 = vmul.f32 %v1619, %v1643
    %v1648 = vmul.f32 %v1620, %v1644
    %v1649 = vmul.f32 %v1621, %v1645
    %v1651 = vlaneseq
    %v1652 = vshrl.u32 %v1651, 7
    %v1653 = vsub.s32 0, %v1652
    %v1654 = vrot.slane %v1603, %v1653
    %v1656 = vmul.f32 %v1646, %v1654
    %v1657 = vmul.f32 %v1647, %v1654
    %v1658 = vmul.f32 %v1648, %v1654
    %v1659 = vmul.f32 %v1649, %v1654
    %v1661 = vlaneseq
    %v1662 = vshrl.u32 %v1661, 7
    %v1663 = vsub.s32 0, %v1662
    %v1664 = vrot.slane %v1604, %v1663
    %v1666 = vadd.f32 %v1656, %v1664
    %v1667 = vadd.f32 %v1657, %v1664
    %v1668 = vadd.f32 %v1658, %v1664
    %v1669 = vadd.f32 %v1659, %v1664
    %v1670 = vpack.c.bf16 %v1667, %v1666
    %v1671 = vpack.c.bf16 %v1669, %v1668
    %v1672 = vld [vmem:[#allocation9] sm:$0xff]
    %v1673 = vld [vmem:[#allocation9 + $0x8] sm:$0xff]
    %v1674 = vld [vmem:[#allocation9 + $0x10] sm:$0xff]
    %v1675 = vld [vmem:[#allocation9 + $0x18] sm:$0xff]
    %v1676 = vld [vmem:[#allocation9 + $0x20] sm:$0xff]
    %v1677 = vld [vmem:[#allocation9 + $0x28] sm:$0xff]
    %v1678 = vld [vmem:[#allocation9 + $0x30] sm:$0xff]
    %v1679 = vld [vmem:[#allocation9 + $0x38] sm:$0xff]
    %v1680 = vld [vmem:[#allocation9 + $0x40] sm:$0xff]
    %v1681 = vld [vmem:[#allocation9 + $0x48] sm:$0xff]
    %v1682 = vld [vmem:[#allocation9 + $0x50] sm:$0xff]
    %v1683 = vld [vmem:[#allocation9 + $0x58] sm:$0xff]
    %v1684 = vld [vmem:[#allocation9 + $0x60] sm:$0xff]
    %v1685 = vld [vmem:[#allocation9 + $0x68] sm:$0xff]
    %v1686 = vld [vmem:[#allocation9 + $0x70] sm:$0xff]
    %v1687 = vld [vmem:[#allocation9 + $0x78] sm:$0xff]
    %v1688 = vld [vmem:[#allocation9 + $0x80] sm:$0xff]
    %v1689 = vld [vmem:[#allocation9 + $0x88] sm:$0xff]
    %v1690 = vld [vmem:[#allocation9 + $0x90] sm:$0xff]
    %v1691 = vld [vmem:[#allocation9 + $0x98] sm:$0xff]
    %v1692 = vld [vmem:[#allocation9 + $0xa0] sm:$0xff]
    %v1693 = vld [vmem:[#allocation9 + $0xa8] sm:$0xff]
    %v1694 = vld [vmem:[#allocation9 + $0xb0] sm:$0xff]
    %v1695 = vld [vmem:[#allocation9 + $0xb8] sm:$0xff]
    %v1696 = vld [vmem:[#allocation9 + $0xc0] sm:$0xff]
    %v1697 = vld [vmem:[#allocation9 + $0xc8] sm:$0xff]
    %v1698 = vld [vmem:[#allocation9 + $0xd0] sm:$0xff]
    %v1699 = vld [vmem:[#allocation9 + $0xd8] sm:$0xff]
    %v1700 = vld [vmem:[#allocation9 + $0xe0] sm:$0xff]
    %v1701 = vld [vmem:[#allocation9 + $0xe8] sm:$0xff]
    %v1702 = vld [vmem:[#allocation9 + $0xf0] sm:$0xff]
    %v1703 = vld [vmem:[#allocation9 + $0xf8] sm:$0xff]
    %v1704 = vld [vmem:[%s8] sm:$0xf]
    %v1706 = vlaneseq
    %v1707 = vshrl.u32 %v1706, 7
    %v1708 = vsub.s32 0, %v1707
    %v1709 = vrot.slane %v1704, %v1708
    %v1710 = vlaneseq
    %v1711 = vshrl.u32 %v1710, 7
    %v1712 = vsub.s32 1, %v1711
    %v1713 = vrot.slane %v1704, %v1712
    %v1714 = vlaneseq
    %v1715 = vshrl.u32 %v1714, 7
    %v1716 = vsub.s32 2, %v1715
    %v1717 = vrot.slane %v1704, %v1716
    %v1718 = vlaneseq
    %v1719 = vshrl.u32 %v1718, 7
    %v1720 = vsub.s32 3, %v1719
    %v1721 = vrot.slane %v1704, %v1720
    %v1758 = vunpack.c.l.b16 %v1672
    %v1759 = vunpack.c.h.b16 %v1672
    %v1760 = vunpack.c.l.b16 %v1673
    %v1761 = vunpack.c.h.b16 %v1673
    %v1762 = vunpack.c.l.b16 %v1674
    %v1763 = vunpack.c.h.b16 %v1674
    %v1764 = vunpack.c.l.b16 %v1675
    %v1765 = vunpack.c.h.b16 %v1675
    %v1766 = vunpack.c.l.b16 %v1676
    %v1767 = vunpack.c.h.b16 %v1676
    %v1768 = vunpack.c.l.b16 %v1677
    %v1769 = vunpack.c.h.b16 %v1677
    %v1770 = vunpack.c.l.b16 %v1678
    %v1771 = vunpack.c.h.b16 %v1678
    %v1772 = vunpack.c.l.b16 %v1679
    %v1773 = vunpack.c.h.b16 %v1679
    %v1774 = vunpack.c.l.b16 %v1680
    %v1775 = vunpack.c.h.b16 %v1680
    %v1776 = vunpack.c.l.b16 %v1681
    %v1777 = vunpack.c.h.b16 %v1681
    %v1778 = vunpack.c.l.b16 %v1682
    %v1779 = vunpack.c.h.b16 %v1682
    %v1780 = vunpack.c.l.b16 %v1683
    %v1781 = vunpack.c.h.b16 %v1683
    %v1782 = vunpack.c.l.b16 %v1684
    %v1783 = vunpack.c.h.b16 %v1684
    %v1784 = vunpack.c.l.b16 %v1685
    %v1785 = vunpack.c.h.b16 %v1685
    %v1786 = vunpack.c.l.b16 %v1686
    %v1787 = vunpack.c.h.b16 %v1686
    %v1788 = vunpack.c.l.b16 %v1687
    %v1789 = vunpack.c.h.b16 %v1687
    %v1790 = vunpack.c.l.b16 %v1688
    %v1791 = vunpack.c.h.b16 %v1688
    %v1792 = vunpack.c.l.b16 %v1689
    %v1793 = vunpack.c.h.b16 %v1689
    %v1794 = vunpack.c.l.b16 %v1690
    %v1795 = vunpack.c.h.b16 %v1690
    %v1796 = vunpack.c.l.b16 %v1691
    %v1797 = vunpack.c.h.b16 %v1691
    %v1798 = vunpack.c.l.b16 %v1692
    %v1799 = vunpack.c.h.b16 %v1692
    %v1800 = vunpack.c.l.b16 %v1693
    %v1801 = vunpack.c.h.b16 %v1693
    %v1802 = vunpack.c.l.b16 %v1694
    %v1803 = vunpack.c.h.b16 %v1694
    %v1804 = vunpack.c.l.b16 %v1695
    %v1805 = vunpack.c.h.b16 %v1695
    %v1806 = vunpack.c.l.b16 %v1696
    %v1807 = vunpack.c.h.b16 %v1696
    %v1808 = vunpack.c.l.b16 %v1697
    %v1809 = vunpack.c.h.b16 %v1697
    %v1810 = vunpack.c.l.b16 %v1698
    %v1811 = vunpack.c.h.b16 %v1698
    %v1812 = vunpack.c.l.b16 %v1699
    %v1813 = vunpack.c.h.b16 %v1699
    %v1814 = vunpack.c.l.b16 %v1700
    %v1815 = vunpack.c.h.b16 %v1700
    %v1816 = vunpack.c.l.b16 %v1701
    %v1817 = vunpack.c.h.b16 %v1701
    %v1818 = vunpack.c.l.b16 %v1702
    %v1819 = vunpack.c.h.b16 %v1702
    %v1820 = vunpack.c.l.b16 %v1703
    %v1821 = vunpack.c.h.b16 %v1703
    %v1822 = vpack.c.b16 %v1762, %v1758
    %v1823 = vpack.c.b16 %v1763, %v1759
    %v1824 = vpack.c.b16 %v1764, %v1760
    %v1825 = vpack.c.b16 %v1765, %v1761
    %v1826 = vpack.c.b16 %v1770, %v1766
    %v1827 = vpack.c.b16 %v1771, %v1767
    %v1828 = vpack.c.b16 %v1772, %v1768
    %v1829 = vpack.c.b16 %v1773, %v1769
    %v1830 = vpack.c.b16 %v1778, %v1774
    %v1831 = vpack.c.b16 %v1779, %v1775
    %v1832 = vpack.c.b16 %v1780, %v1776
    %v1833 = vpack.c.b16 %v1781, %v1777
    %v1834 = vpack.c.b16 %v1786, %v1782
    %v1835 = vpack.c.b16 %v1787, %v1783
    %v1836 = vpack.c.b16 %v1788, %v1784
    %v1837 = vpack.c.b16 %v1789, %v1785
    %v1838 = vpack.c.b16 %v1794, %v1790
    %v1839 = vpack.c.b16 %v1795, %v1791
    %v1840 = vpack.c.b16 %v1796, %v1792
    %v1841 = vpack.c.b16 %v1797, %v1793
    %v1842 = vpack.c.b16 %v1802, %v1798
    %v1843 = vpack.c.b16 %v1803, %v1799
    %v1844 = vpack.c.b16 %v1804, %v1800
    %v1845 = vpack.c.b16 %v1805, %v1801
    %v1846 = vpack.c.b16 %v1810, %v1806
    %v1847 = vpack.c.b16 %v1811, %v1807
    %v1848 = vpack.c.b16 %v1812, %v1808
    %v1849 = vpack.c.b16 %v1813, %v1809
    %v1850 = vpack.c.b16 %v1818, %v1814
    %v1851 = vpack.c.b16 %v1819, %v1815
    %v1852 = vpack.c.b16 %v1820, %v1816
    %v1853 = vpack.c.b16 %v1821, %v1817
    %1886 = vmatprep.subr.bf16.mxu0 %v1823
    %1887 = vmatpush1.bf16.msra.mxu0 %v1822
    %1888 = vmatprep.subr.bf16.mxu0 %v1827
    %1889 = vmatpush1.bf16.msra.mxu0 %v1826
    %1890 = vmatprep.subr.bf16.mxu0 %v1831
    %1891 = vmatpush1.bf16.msra.mxu0 %v1830
    %1892 = vmatprep.subr.bf16.mxu0 %v1835
    %1893 = vmatpush1.bf16.msra.mxu0 %v1834
    %1894 = vmatprep.subr.bf16.mxu0 %v1839
    %1895 = vmatpush1.bf16.msra.mxu0 %v1838
    %1896 = vmatprep.subr.bf16.mxu0 %v1843
    %1897 = vmatpush1.bf16.msra.mxu0 %v1842
    %1898 = vmatprep.subr.bf16.mxu0 %v1847
    %1899 = vmatpush1.bf16.msra.mxu0 %v1846
    %1900 = vmatprep.subr.bf16.mxu0 %v1851
    %1901 = vmatpush1.bf16.msra.mxu0 %v1850
    %1902 = vmatprep.subr.bf16.mxu0 0
    %1903 = vmatpush1.bf16.msra.mxu0 0
    %1904 = vmatprep.subr.bf16.mxu0 0
    %1905 = vmatpush1.bf16.msra.mxu0 0
    %1906 = vmatprep.subr.bf16.mxu0 0
    %1907 = vmatpush1.bf16.msra.mxu0 0
    %1908 = vmatprep.subr.bf16.mxu0 0
    %1909 = vmatpush1.bf16.msra.mxu0 0
    %1910 = vmatprep.subr.bf16.mxu0 0
    %1911 = vmatpush1.bf16.msra.mxu0 0
    %1912 = vmatprep.subr.bf16.mxu0 0
    %1913 = vmatpush1.bf16.msra.mxu0 0
    %1914 = vmatprep.subr.bf16.mxu0 0
    %1915 = vmatpush1.bf16.msra.mxu0 0
    %1916 = vmatprep.subr.bf16.mxu0 0
    %1917 = vmatpush1.bf16.msra.mxu0 0
    %1918 = vmatprep.mubr.bf16.mxu0 0
    %1919 = vmatmul.mubr.bf16.gmra.mrb[0].mxu0 %v1670
    %v1920 = vpop.f32.mrb[0].mxu0
    %v1921 = vadd.f32 %v1709, %v1920
    %v1922 = vpop.f32.mrb[0].mxu0
    %v1923 = vadd.f32 %v1713, %v1922
    %v1924 = vpop.f32.mrb[0].mxu0
    %v1925 = vadd.f32 %v1709, %v1924
    %v1926 = vpop.f32.mrb[0].mxu0
    %v1927 = vadd.f32 %v1713, %v1926
    %1928 = vmatprep.mubr.bf16.mxu0 0
    %1929 = vmatmul.mubr.bf16.gmra.mrb[0].mxu0 %v1671
    %v1930 = vpop.f32.mrb[0].mxu0
    %v1931 = vadd.f32 %v1709, %v1930
    %v1932 = vpop.f32.mrb[0].mxu0
    %v1933 = vadd.f32 %v1713, %v1932
    %v1934 = vpop.f32.mrb[0].mxu0
    %v1935 = vadd.f32 %v1709, %v1934
    %v1936 = vpop.f32.mrb[0].mxu0
    %v1937 = vadd.f32 %v1713, %v1936
    %1938 = vdwg.mxu0
    %1939 = vmatprep.subr.bf16.mxu0 %v1825
    %1940 = vmatpush1.bf16.msra.mxu0 %v1824
    %1941 = vmatprep.subr.bf16.mxu0 %v1829
    %1942 = vmatpush1.bf16.msra.mxu0 %v1828
    %1943 = vmatprep.subr.bf16.mxu0 %v1833
    %1944 = vmatpush1.bf16.msra.mxu0 %v1832
    %1945 = vmatprep.subr.bf16.mxu0 %v1837
    %1946 = vmatpush1.bf16.msra.mxu0 %v1836
    %1947 = vmatprep.subr.bf16.mxu0 %v1841
    %1948 = vmatpush1.bf16.msra.mxu0 %v1840
    %1949 = vmatprep.subr.bf16.mxu0 %v1845
    %1950 = vmatpush1.bf16.msra.mxu0 %v1844
    %1951 = vmatprep.subr.bf16.mxu0 %v1849
    %1952 = vmatpush1.bf16.msra.mxu0 %v1848
    %1953 = vmatprep.subr.bf16.mxu0 %v1853
    %1954 = vmatpush1.bf16.msra.mxu0 %v1852
    %1955 = vmatprep.subr.bf16.mxu0 0
    %1956 = vmatpush1.bf16.msra.mxu0 0
    %1957 = vmatprep.subr.bf16.mxu0 0
    %1958 = vmatpush1.bf16.msra.mxu0 0
    %1959 = vmatprep.subr.bf16.mxu0 0
    %1960 = vmatpush1.bf16.msra.mxu0 0
    %1961 = vmatprep.subr.bf16.mxu0 0
    %1962 = vmatpush1.bf16.msra.mxu0 0
    %1963 = vmatprep.subr.bf16.mxu0 0
    %1964 = vmatpush1.bf16.msra.mxu0 0
    %1965 = vmatprep.subr.bf16.mxu0 0
    %1966 = vmatpush1.bf16.msra.mxu0 0
    %1967 = vmatprep.subr.bf16.mxu0 0
    %1968 = vmatpush1.bf16.msra.mxu0 0
    %1969 = vmatprep.subr.bf16.mxu0 0
    %1970 = vmatpush1.bf16.msra.mxu0 0
    %1971 = vmatprep.mubr.bf16.mxu0 0
    %1972 = vmatmul.mubr.bf16.gmra.mrb[0].mxu0 %v1670
    %v1973 = vpop.f32.mrb[0].mxu0
    %v1974 = vadd.f32 %v1717, %v1973
    %v1975 = vpop.f32.mrb[0].mxu0
    %v1976 = vadd.f32 %v1721, %v1975
    %v1977 = vpop.f32.mrb[0].mxu0
    %v1978 = vadd.f32 %v1717, %v1977
    %v1979 = vpop.f32.mrb[0].mxu0
    %v1980 = vadd.f32 %v1721, %v1979
    %1981 = vmatprep.mubr.bf16.mxu0 0
    %1982 = vmatmul.mubr.bf16.gmra.mrb[0].mxu0 %v1671
    %v1983 = vpop.f32.mrb[0].mxu0
    %v1984 = vadd.f32 %v1717, %v1983
    %v1985 = vpop.f32.mrb[0].mxu0
    %v1986 = vadd.f32 %v1721, %v1985
    %v1987 = vpop.f32.mrb[0].mxu0
    %v1988 = vadd.f32 %v1717, %v1987
    %v1989 = vpop.f32.mrb[0].mxu0
    %v1990 = vadd.f32 %v1721, %v1989
    %1991 = vdwg.mxu0
    %v1992 = vmul.f32 %v1921, 0.5
    %v1993 = vmul.f32 %v1923, 0.5
    %v1994 = vmul.f32 %v1974, 0.5
    %v1995 = vmul.f32 %v1976, 0.5
    %v1996 = vmul.f32 %v1925, 0.5
    %v1997 = vmul.f32 %v1927, 0.5
    %v1998 = vmul.f32 %v1978, 0.5
    %v1999 = vmul.f32 %v1980, 0.5
    %v2000 = vmul.f32 %v1931, 0.5
    %v2001 = vmul.f32 %v1933, 0.5
    %v2002 = vmul.f32 %v1984, 0.5
    %v2003 = vmul.f32 %v1986, 0.5
    %v2004 = vmul.f32 %v1935, 0.5
    %v2005 = vmul.f32 %v1937, 0.5
    %v2006 = vmul.f32 %v1988, 0.5
    %v2007 = vmul.f32 %v1990, 0.5
    %v2008 = vmul.f32 %v1921, 0.044715
    %v2009 = vmul.f32 %v1923, 0.044715
    %v2010 = vmul.f32 %v1974, 0.044715
    %v2011 = vmul.f32 %v1976, 0.044715
    %v2012 = vmul.f32 %v1925, 0.044715
    %v2013 = vmul.f32 %v1927, 0.044715
    %v2014 = vmul.f32 %v1978, 0.044715
    %v2015 = vmul.f32 %v1980, 0.044715
    %v2016 = vmul.f32 %v1931, 0.044715
    %v2017 = vmul.f32 %v1933, 0.044715
    %v2018 = vmul.f32 %v1984, 0.044715
    %v2019 = vmul.f32 %v1986, 0.044715
    %v2020 = vmul.f32 %v1935, 0.044715
    %v2021 = vmul.f32 %v1937, 0.044715
    %v2022 = vmul.f32 %v1988, 0.044715
    %v2023 = vmul.f32 %v1990, 0.044715
    %v2024 = vmul.f32 %v2008, %v1921
    %v2025 = vmul.f32 %v2009, %v1923
    %v2026 = vmul.f32 %v2010, %v1974
    %v2027 = vmul.f32 %v2011, %v1976
    %v2028 = vmul.f32 %v2012, %v1925
    %v2029 = vmul.f32 %v2013, %v1927
    %v2030 = vmul.f32 %v2014, %v1978
    %v2031 = vmul.f32 %v2015, %v1980
    %v2032 = vmul.f32 %v2016, %v1931
    %v2033 = vmul.f32 %v2017, %v1933
    %v2034 = vmul.f32 %v2018, %v1984
    %v2035 = vmul.f32 %v2019, %v1986
    %v2036 = vmul.f32 %v2020, %v1935
    %v2037 = vmul.f32 %v2021, %v1937
    %v2038 = vmul.f32 %v2022, %v1988
    %v2039 = vmul.f32 %v2023, %v1990
    %v2040 = vmul.f32 %v2024, %v1921
    %v2041 = vmul.f32 %v2025, %v1923
    %v2042 = vmul.f32 %v2026, %v1974
    %v2043 = vmul.f32 %v2027, %v1976
    %v2044 = vmul.f32 %v2028, %v1925
    %v2045 = vmul.f32 %v2029, %v1927
    %v2046 = vmul.f32 %v2030, %v1978
    %v2047 = vmul.f32 %v2031, %v1980
    %v2048 = vmul.f32 %v2032, %v1931
    %v2049 = vmul.f32 %v2033, %v1933
    %v2050 = vmul.f32 %v2034, %v1984
    %v2051 = vmul.f32 %v2035, %v1986
    %v2052 = vmul.f32 %v2036, %v1935
    %v2053 = vmul.f32 %v2037, %v1937
    %v2054 = vmul.f32 %v2038, %v1988
    %v2055 = vmul.f32 %v2039, %v1990
    %v2056 = vadd.f32 %v1921, %v2040
    %v2057 = vadd.f32 %v1923, %v2041
    %v2058 = vadd.f32 %v1974, %v2042
    %v2059 = vadd.f32 %v1976, %v2043
    %v2060 = vadd.f32 %v1925, %v2044
    %v2061 = vadd.f32 %v1927, %v2045
    %v2062 = vadd.f32 %v1978, %v2046
    %v2063 = vadd.f32 %v1980, %v2047
    %v2064 = vadd.f32 %v1931, %v2048
    %v2065 = vadd.f32 %v1933, %v2049
    %v2066 = vadd.f32 %v1984, %v2050
    %v2067 = vadd.f32 %v1986, %v2051
    %v2068 = vadd.f32 %v1935, %v2052
    %v2069 = vadd.f32 %v1937, %v2053
    %v2070 = vadd.f32 %v1988, %v2054
    %v2071 = vadd.f32 %v1990, %v2055
    %v2072 = vmul.f32 %v2056, 0.7978846
    %v2073 = vmul.f32 %v2057, 0.7978846
    %v2074 = vmul.f32 %v2058, 0.7978846
    %v2075 = vmul.f32 %v2059, 0.7978846
    %v2076 = vmul.f32 %v2060, 0.7978846
    %v2077 = vmul.f32 %v2061, 0.7978846
    %v2078 = vmul.f32 %v2062, 0.7978846
    %v2079 = vmul.f32 %v2063, 0.7978846
    %v2080 = vmul.f32 %v2064, 0.7978846
    %v2081 = vmul.f32 %v2065, 0.7978846
    %v2082 = vmul.f32 %v2066, 0.7978846
    %v2083 = vmul.f32 %v2067, 0.7978846
    %v2084 = vmul.f32 %v2068, 0.7978846
    %v2085 = vmul.f32 %v2069, 0.7978846
    %v2086 = vmul.f32 %v2070, 0.7978846
    %v2087 = vmul.f32 %v2071, 0.7978846
    %v2088 = vtanh.pop %v2072
    %v2089 = vtanh.pop %v2073
    %v2090 = vtanh.pop %v2074
    %v2091 = vtanh.pop %v2075
    %v2092 = vtanh.pop %v2076
    %v2093 = vtanh.pop %v2077
    %v2094 = vtanh.pop %v2078
    %v2095 = vtanh.pop %v2079
    %v2096 = vtanh.pop %v2080
    %v2097 = vtanh.pop %v2081
    %v2098 = vtanh.pop %v2082
    %v2099 = vtanh.pop %v2083
    %v2100 = vtanh.pop %v2084
    %v2101 = vtanh.pop %v2085
    %v2102 = vtanh.pop %v2086
    %v2103 = vtanh.pop %v2087
    %v2104 = vadd.f32 %v2088, 1.0
    %v2105 = vadd.f32 %v2089, 1.0
    %v2106 = vadd.f32 %v2090, 1.0
    %v2107 = vadd.f32 %v2091, 1.0
    %v2108 = vadd.f32 %v2092, 1.0
    %v2109 = vadd.f32 %v2093, 1.0
    %v2110 = vadd.f32 %v2094, 1.0
    %v2111 = vadd.f32 %v2095, 1.0
    %v2112 = vadd.f32 %v2096, 1.0
    %v2113 = vadd.f32 %v2097, 1.0
    %v2114 = vadd.f32 %v2098, 1.0
    %v2115 = vadd.f32 %v2099, 1.0
    %v2116 = vadd.f32 %v2100, 1.0
    %v2117 = vadd.f32 %v2101, 1.0
    %v2118 = vadd.f32 %v2102, 1.0
    %v2119 = vadd.f32 %v2103, 1.0
    %v2120 = vmul.f32 %v1992, %v2104
    %v2121 = vmul.f32 %v1993, %v2105
    %v2122 = vmul.f32 %v1994, %v2106
    %v2123 = vmul.f32 %v1995, %v2107
    %v2124 = vmul.f32 %v1996, %v2108
    %v2125 = vmul.f32 %v1997, %v2109
    %v2126 = vmul.f32 %v1998, %v2110
    %v2127 = vmul.f32 %v1999, %v2111
    %v2128 = vmul.f32 %v2000, %v2112
    %v2129 = vmul.f32 %v2001, %v2113
    %v2130 = vmul.f32 %v2002, %v2114
    %v2131 = vmul.f32 %v2003, %v2115
    %v2132 = vmul.f32 %v2004, %v2116
    %v2133 = vmul.f32 %v2005, %v2117
    %v2134 = vmul.f32 %v2006, %v2118
    %v2135 = vmul.f32 %v2007, %v2119
    %v2136 = vpack.c.bf16 %v2124, %v2120
    %v2137 = vpack.c.bf16 %v2125, %v2121
    %v2138 = vpack.c.bf16 %v2126, %v2122
    %v2139 = vpack.c.bf16 %v2127, %v2123
    %v2140 = vpack.c.bf16 %v2132, %v2128
    %v2141 = vpack.c.bf16 %v2133, %v2129
    %v2142 = vpack.c.bf16 %v2134, %v2130
    %v2143 = vpack.c.bf16 %v2135, %v2131
    %v2144 = vld [vmem:[#allocation11] sm:$0xf]
    %v2145 = vld [vmem:[#allocation11 + $0x4] sm:$0xf]
    %v2146 = vld [vmem:[#allocation11 + $0x8] sm:$0xf]
    %v2147 = vld [vmem:[#allocation11 + $0xc] sm:$0xf]
    %v2148 = vld [vmem:[#allocation11 + $0x10] sm:$0xf]
    %v2149 = vld [vmem:[#allocation11 + $0x14] sm:$0xf]
    %v2150 = vld [vmem:[#allocation11 + $0x18] sm:$0xf]
    %v2151 = vld [vmem:[#allocation11 + $0x1c] sm:$0xf]
    %v2152 = vld [vmem:[#allocation11 + $0x20] sm:$0xf]
    %v2153 = vld [vmem:[#allocation11 + $0x24] sm:$0xf]
    %v2154 = vld [vmem:[#allocation11 + $0x28] sm:$0xf]
    %v2155 = vld [vmem:[#allocation11 + $0x2c] sm:$0xf]
    %v2156 = vld [vmem:[#allocation11 + $0x30] sm:$0xf]
    %v2157 = vld [vmem:[#allocation11 + $0x34] sm:$0xf]
    %v2158 = vld [vmem:[#allocation11 + $0x38] sm:$0xf]
    %v2159 = vld [vmem:[#allocation11 + $0x3c] sm:$0xf]
    %v2160 = vld [vmem:[#allocation11 + $0x40] sm:$0xf]
    %v2161 = vld [vmem:[#allocation11 + $0x44] sm:$0xf]
    %v2162 = vld [vmem:[#allocation11 + $0x48] sm:$0xf]
    %v2163 = vld [vmem:[#allocation11 + $0x4c] sm:$0xf]
    %v2164 = vld [vmem:[#allocation11 + $0x50] sm:$0xf]
    %v2165 = vld [vmem:[#allocation11 + $0x54] sm:$0xf]
    %v2166 = vld [vmem:[#allocation11 + $0x58] sm:$0xf]
    %v2167 = vld [vmem:[#allocation11 + $0x5c] sm:$0xf]
    %v2168 = vld [vmem:[#allocation11 + $0x60] sm:$0xf]
    %v2169 = vld [vmem:[#allocation11 + $0x64] sm:$0xf]
    %v2170 = vld [vmem:[#allocation11 + $0x68] sm:$0xf]
    %v2171 = vld [vmem:[#allocation11 + $0x6c] sm:$0xf]
    %v2172 = vld [vmem:[#allocation11 + $0x70] sm:$0xf]
    %v2173 = vld [vmem:[#allocation11 + $0x74] sm:$0xf]
    %v2174 = vld [vmem:[#allocation11 + $0x78] sm:$0xf]
    %v2175 = vld [vmem:[#allocation11 + $0x7c] sm:$0xf]
    %v2176 = vld [vmem:[#allocation11 + $0x80] sm:$0xf]
    %v2177 = vld [vmem:[#allocation11 + $0x84] sm:$0xf]
    %v2178 = vld [vmem:[#allocation11 + $0x88] sm:$0xf]
    %v2179 = vld [vmem:[#allocation11 + $0x8c] sm:$0xf]
    %v2180 = vld [vmem:[#allocation11 + $0x90] sm:$0xf]
    %v2181 = vld [vmem:[#allocation11 + $0x94] sm:$0xf]
    %v2182 = vld [vmem:[#allocation11 + $0x98] sm:$0xf]
    %v2183 = vld [vmem:[#allocation11 + $0x9c] sm:$0xf]
    %v2184 = vld [vmem:[#allocation11 + $0xa0] sm:$0xf]
    %v2185 = vld [vmem:[#allocation11 + $0xa4] sm:$0xf]
    %v2186 = vld [vmem:[#allocation11 + $0xa8] sm:$0xf]
    %v2187 = vld [vmem:[#allocation11 + $0xac] sm:$0xf]
    %v2188 = vld [vmem:[#allocation11 + $0xb0] sm:$0xf]
    %v2189 = vld [vmem:[#allocation11 + $0xb4] sm:$0xf]
    %v2190 = vld [vmem:[#allocation11 + $0xb8] sm:$0xf]
    %v2191 = vld [vmem:[#allocation11 + $0xbc] sm:$0xf]
    %v2192 = vld [vmem:[#allocation11 + $0xc0] sm:$0xf]
    %v2193 = vld [vmem:[#allocation11 + $0xc4] sm:$0xf]
    %v2194 = vld [vmem:[#allocation11 + $0xc8] sm:$0xf]
    %v2195 = vld [vmem:[#allocation11 + $0xcc] sm:$0xf]
    %v2196 = vld [vmem:[#allocation11 + $0xd0] sm:$0xf]
    %v2197 = vld [vmem:[#allocation11 + $0xd4] sm:$0xf]
    %v2198 = vld [vmem:[#allocation11 + $0xd8] sm:$0xf]
    %v2199 = vld [vmem:[#allocation11 + $0xdc] sm:$0xf]
    %v2200 = vld [vmem:[#allocation11 + $0xe0] sm:$0xf]
    %v2201 = vld [vmem:[#allocation11 + $0xe4] sm:$0xf]
    %v2202 = vld [vmem:[#allocation11 + $0xe8] sm:$0xf]
    %v2203 = vld [vmem:[#allocation11 + $0xec] sm:$0xf]
    %v2204 = vld [vmem:[#allocation11 + $0xf0] sm:$0xf]
    %v2205 = vld [vmem:[#allocation11 + $0xf4] sm:$0xf]
    %v2206 = vld [vmem:[#allocation11 + $0xf8] sm:$0xf]
    %v2207 = vld [vmem:[#allocation11 + $0xfc] sm:$0xf]
    %v2208 = vld [vmem:[%s10] sm:$0x1]
    %v2210 = vlaneseq
    %v2211 = vshrl.u32 %v2210, 7
    %v2212 = vsub.s32 0, %v2211
    %v2213 = vrot.slane %v2208, %v2212
    %v2279 = vunpack.c.l.b16 %v2144
    %v2280 = vunpack.c.l.b16 %v2145
    %v2281 = vunpack.c.l.b16 %v2146
    %v2282 = vunpack.c.l.b16 %v2147
    %v2283 = vunpack.c.l.b16 %v2148
    %v2284 = vunpack.c.l.b16 %v2149
    %v2285 = vunpack.c.l.b16 %v2150
    %v2286 = vunpack.c.l.b16 %v2151
    %v2287 = vunpack.c.l.b16 %v2152
    %v2288 = vunpack.c.l.b16 %v2153
    %v2289 = vunpack.c.l.b16 %v2154
    %v2290 = vunpack.c.l.b16 %v2155
    %v2291 = vunpack.c.l.b16 %v2156
    %v2292 = vunpack.c.l.b16 %v2157
    %v2293 = vunpack.c.l.b16 %v2158
    %v2294 = vunpack.c.l.b16 %v2159
    %v2295 = vunpack.c.l.b16 %v2160
    %v2296 = vunpack.c.l.b16 %v2161
    %v2297 = vunpack.c.l.b16 %v2162
    %v2298 = vunpack.c.l.b16 %v2163
    %v2299 = vunpack.c.l.b16 %v2164
    %v2300 = vunpack.c.l.b16 %v2165
    %v2301 = vunpack.c.l.b16 %v2166
    %v2302 = vunpack.c.l.b16 %v2167
    %v2303 = vunpack.c.l.b16 %v2168
    %v2304 = vunpack.c.l.b16 %v2169
    %v2305 = vunpack.c.l.b16 %v2170
    %v2306 = vunpack.c.l.b16 %v2171
    %v2307 = vunpack.c.l.b16 %v2172
    %v2308 = vunpack.c.l.b16 %v2173
    %v2309 = vunpack.c.l.b16 %v2174
    %v2310 = vunpack.c.l.b16 %v2175
    %v2311 = vunpack.c.l.b16 %v2176
    %v2312 = vunpack.c.l.b16 %v2177
    %v2313 = vunpack.c.l.b16 %v2178
    %v2314 = vunpack.c.l.b16 %v2179
    %v2315 = vunpack.c.l.b16 %v2180
    %v2316 = vunpack.c.l.b16 %v2181
    %v2317 = vunpack.c.l.b16 %v2182
    %v2318 = vunpack.c.l.b16 %v2183
    %v2319 = vunpack.c.l.b16 %v2184
    %v2320 = vunpack.c.l.b16 %v2185
    %v2321 = vunpack.c.l.b16 %v2186
    %v2322 = vunpack.c.l.b16 %v2187
    %v2323 = vunpack.c.l.b16 %v2188
    %v2324 = vunpack.c.l.b16 %v2189
    %v2325 = vunpack.c.l.b16 %v2190
    %v2326 = vunpack.c.l.b16 %v2191
    %v2327 = vunpack.c.l.b16 %v2192
    %v2328 = vunpack.c.l.b16 %v2193
    %v2329 = vunpack.c.l.b16 %v2194
    %v2330 = vunpack.c.l.b16 %v2195
    %v2331 = vunpack.c.l.b16 %v2196
    %v2332 = vunpack.c.l.b16 %v2197
    %v2333 = vunpack.c.l.b16 %v2198
    %v2334 = vunpack.c.l.b16 %v2199
    %v2335 = vunpack.c.l.b16 %v2200
    %v2336 = vunpack.c.l.b16 %v2201
    %v2337 = vunpack.c.l.b16 %v2202
    %v2338 = vunpack.c.l.b16 %v2203
    %v2339 = vunpack.c.l.b16 %v2204
    %v2340 = vunpack.c.l.b16 %v2205
    %v2341 = vunpack.c.l.b16 %v2206
    %v2342 = vunpack.c.l.b16 %v2207
    %v2343 = vpack.c.b16 %v2280, %v2279
    %v2344 = vpack.c.b16 %v2282, %v2281
    %v2345 = vpack.c.b16 %v2284, %v2283
    %v2346 = vpack.c.b16 %v2286, %v2285
    %v2347 = vpack.c.b16 %v2288, %v2287
    %v2348 = vpack.c.b16 %v2290, %v2289
    %v2349 = vpack.c.b16 %v2292, %v2291
    %v2350 = vpack.c.b16 %v2294, %v2293
    %v2351 = vpack.c.b16 %v2296, %v2295
    %v2352 = vpack.c.b16 %v2298, %v2297
    %v2353 = vpack.c.b16 %v2300, %v2299
    %v2354 = vpack.c.b16 %v2302, %v2301
    %v2355 = vpack.c.b16 %v2304, %v2303
    %v2356 = vpack.c.b16 %v2306, %v2305
    %v2357 = vpack.c.b16 %v2308, %v2307
    %v2358 = vpack.c.b16 %v2310, %v2309
    %v2359 = vpack.c.b16 %v2312, %v2311
    %v2360 = vpack.c.b16 %v2314, %v2313
    %v2361 = vpack.c.b16 %v2316, %v2315
    %v2362 = vpack.c.b16 %v2318, %v2317
    %v2363 = vpack.c.b16 %v2320, %v2319
    %v2364 = vpack.c.b16 %v2322, %v2321
    %v2365 = vpack.c.b16 %v2324, %v2323
    %v2366 = vpack.c.b16 %v2326, %v2325
    %v2367 = vpack.c.b16 %v2328, %v2327
    %v2368 = vpack.c.b16 %v2330, %v2329
    %v2369 = vpack.c.b16 %v2332, %v2331
    %v2370 = vpack.c.b16 %v2334, %v2333
    %v2371 = vpack.c.b16 %v2336, %v2335
    %v2372 = vpack.c.b16 %v2338, %v2337
    %v2373 = vpack.c.b16 %v2340, %v2339
    %v2374 = vpack.c.b16 %v2342, %v2341
    %2407 = vmatprep.subr.bf16.mxu0 0
    %2408 = vmatpush1.bf16.msra.mxu0 %v2343
    %2409 = vmatprep.subr.bf16.mxu0 0
    %2410 = vmatpush1.bf16.msra.mxu0 %v2344
    %2411 = vmatprep.subr.bf16.mxu0 0
    %2412 = vmatpush1.bf16.msra.mxu0 %v2345
    %2413 = vmatprep.subr.bf16.mxu0 0
    %2414 = vmatpush1.bf16.msra.mxu0 %v2346
    %2415 = vmatprep.subr.bf16.mxu0 0
    %2416 = vmatpush1.bf16.msra.mxu0 %v2347
    %2417 = vmatprep.subr.bf16.mxu0 0
    %2418 = vmatpush1.bf16.msra.mxu0 %v2348
    %2419 = vmatprep.subr.bf16.mxu0 0
    %2420 = vmatpush1.bf16.msra.mxu0 %v2349
    %2421 = vmatprep.subr.bf16.mxu0 0
    %2422 = vmatpush1.bf16.msra.mxu0 %v2350
    %2423 = vmatprep.subr.bf16.mxu0 0
    %2424 = vmatpush1.bf16.msra.mxu0 %v2351
    %2425 = vmatprep.subr.bf16.mxu0 0
    %2426 = vmatpush1.bf16.msra.mxu0 %v2352
    %2427 = vmatprep.subr.bf16.mxu0 0
    %2428 = vmatpush1.bf16.msra.mxu0 %v2353
    %2429 = vmatprep.subr.bf16.mxu0 0
    %2430 = vmatpush1.bf16.msra.mxu0 %v2354
    %2431 = vmatprep.subr.bf16.mxu0 0
    %2432 = vmatpush1.bf16.msra.mxu0 %v2355
    %2433 = vmatprep.subr.bf16.mxu0 0
    %2434 = vmatpush1.bf16.msra.mxu0 %v2356
    %2435 = vmatprep.subr.bf16.mxu0 0
    %2436 = vmatpush1.bf16.msra.mxu0 %v2357
    %2437 = vmatprep.subr.bf16.mxu0 0
    %2438 = vmatpush1.bf16.msra.mxu0 %v2358
    %2439 = vmatprep.mubr.bf16.mxu0 %v2137
    %2440 = vmatmul.mubr.bf16.gmra.mrb[0].mxu0 %v2136
    %v2441 = vpop.f32.mrb[0].mxu0
    %v2442 = vadd.f32 %v2213, %v2441
    %v2443 = vpop.f32.mrb[0].mxu0
    %v2444 = vpop.f32.mrb[0].mxu0
    %v2445 = vadd.f32 %v2213, %v2444
    %v2446 = vpop.f32.mrb[0].mxu0
    %2447 = vmatprep.mubr.bf16.mxu0 %v2141
    %2448 = vmatmul.mubr.bf16.gmra.mrb[0].mxu0 %v2140
    %v2449 = vpop.f32.mrb[0].mxu0
    %v2450 = vadd.f32 %v2213, %v2449
    %v2451 = vpop.f32.mrb[0].mxu0
    %v2452 = vpop.f32.mrb[0].mxu0
    %v2453 = vadd.f32 %v2213, %v2452
    %v2454 = vpop.f32.mrb[0].mxu0
    %2455 = vdwg.mxu0
    %2456 = vmatprep.subr.bf16.mxu0 0
    %2457 = vmatpush1.bf16.msra.mxu0 %v2359
    %2458 = vmatprep.subr.bf16.mxu0 0
    %2459 = vmatpush1.bf16.msra.mxu0 %v2360
    %2460 = vmatprep.subr.bf16.mxu0 0
    %2461 = vmatpush1.bf16.msra.mxu0 %v2361
    %2462 = vmatprep.subr.bf16.mxu0 0
    %2463 = vmatpush1.bf16.msra.mxu0 %v2362
    %2464 = vmatprep.subr.bf16.mxu0 0
    %2465 = vmatpush1.bf16.msra.mxu0 %v2363
    %2466 = vmatprep.subr.bf16.mxu0 0
    %2467 = vmatpush1.bf16.msra.mxu0 %v2364
    %2468 = vmatprep.subr.bf16.mxu0 0
    %2469 = vmatpush1.bf16.msra.mxu0 %v2365
    %2470 = vmatprep.subr.bf16.mxu0 0
    %2471 = vmatpush1.bf16.msra.mxu0 %v2366
    %2472 = vmatprep.subr.bf16.mxu0 0
    %2473 = vmatpush1.bf16.msra.mxu0 %v2367
    %2474 = vmatprep.subr.bf16.mxu0 0
    %2475 = vmatpush1.bf16.msra.mxu0 %v2368
    %2476 = vmatprep.subr.bf16.mxu0 0
    %2477 = vmatpush1.bf16.msra.mxu0 %v2369
    %2478 = vmatprep.subr.bf16.mxu0 0
    %2479 = vmatpush1.bf16.msra.mxu0 %v2370
    %2480 = vmatprep.subr.bf16.mxu0 0
    %2481 = vmatpush1.bf16.msra.mxu0 %v2371
    %2482 = vmatprep.subr.bf16.mxu0 0
    %2483 = vmatpush1.bf16.msra.mxu0 %v2372
    %2484 = vmatprep.subr.bf16.mxu0 0
    %2485 = vmatpush1.bf16.msra.mxu0 %v2373
    %2486 = vmatprep.subr.bf16.mxu0 0
    %2487 = vmatpush1.bf16.msra.mxu0 %v2374
    %2488 = vmatprep.mubr.bf16.mxu0 %v2139
    %2489 = vmatmul.mubr.bf16.gmra.mrb[0].mxu0 %v2138
    %v2490 = vpop.f32.mrb[0].mxu0
    %v2491 = vadd.f32 %v2442, %v2490
    %v2492 = vpop.f32.mrb[0].mxu0
    %v2493 = vpop.f32.mrb[0].mxu0
    %v2494 = vadd.f32 %v2445, %v2493
    %v2495 = vpop.f32.mrb[0].mxu0
    %2496 = vmatprep.mubr.bf16.mxu0 %v2143
    %2497 = vmatmul.mubr.bf16.gmra.mrb[0].mxu0 %v2142
    %v2498 = vpop.f32.mrb[0].mxu0
    %v2499 = vadd.f32 %v2450, %v2498
    %v2500 = vpop.f32.mrb[0].mxu0
    %v2501 = vpop.f32.mrb[0].mxu0
    %v2502 = vadd.f32 %v2453, %v2501
    %v2503 = vpop.f32.mrb[0].mxu0
    %2504 = vdwg.mxu0
    %v2505 = vadd.f32 %v1666, %v2491
    %v2506 = vadd.f32 %v1667, %v2494
    %v2507 = vadd.f32 %v1668, %v2499
    %v2508 = vadd.f32 %v1669, %v2502
    %v2509 = vld [vmem:[%s11] sm:$0x1]
    %v2510 = vld [vmem:[%s12] sm:$0x1]
    %2511 = vadd.xlane.f32.xlu0 %v2505
    %v2512 = vpop.xlane.xlu0 %2511
    %2513 = vadd.xlane.f32.xlu0 %v2506
    %v2514 = vpop.xlane.xlu0 %2513
    %2515 = vadd.xlane.f32.xlu0 %v2507
    %v2516 = vpop.xlane.xlu0 %2515
    %2517 = vadd.xlane.f32.xlu0 %v2508
    %v2518 = vpop.xlane.xlu0 %2517
    %v2519 = vmul.f32 %v2512, %v1613
    %v2520 = vmul.f32 %v2514, %v1613
    %v2521 = vmul.f32 %v2516, %v1613
    %v2522 = vmul.f32 %v2518, %v1613
    %v2523 = vsub.f32 %v2505, %v2519
    %v2524 = vsub.f32 %v2506, %v2520
    %v2525 = vsub.f32 %v2507, %v2521
    %v2526 = vsub.f32 %v2508, %v2522
    %v2527 = vmul.f32 %v2523, %v2523
    %v2528 = vmul.f32 %v2524, %v2524
    %v2529 = vmul.f32 %v2525, %v2525
    %v2530 = vmul.f32 %v2526, %v2526
    %2531 = vadd.xlane.f32.xlu0 %v2527
    %v2532 = vpop.xlane.xlu0 %2531
    %2533 = vadd.xlane.f32.xlu0 %v2528
    %v2534 = vpop.xlane.xlu0 %2533
    %2535 = vadd.xlane.f32.xlu0 %v2529
    %v2536 = vpop.xlane.xlu0 %2535
    %2537 = vadd.xlane.f32.xlu0 %v2530
    %v2538 = vpop.xlane.xlu0 %2537
    %v2539 = vmul.f32 %v2532, %v1613
    %v2540 = vmul.f32 %v2534, %v1613
    %v2541 = vmul.f32 %v2536, %v1613
    %v2542 = vmul.f32 %v2538, %v1613
    %v2543 = vadd.f32 %v2539, 1e-05
    %v2544 = vadd.f32 %v2540, 1e-05
    %v2545 = vadd.f32 %v2541, 1e-05
    %v2546 = vadd.f32 %v2542, 1e-05
    %v2547 = vrsqrt.pop %v2543
    %v2548 = vrsqrt.pop %v2544
    %v2549 = vrsqrt.pop %v2545
    %v2550 = vrsqrt.pop %v2546
    %v2551 = vmul.f32 %v2523, %v2547
    %v2552 = vmul.f32 %v2524, %v2548
    %v2553 = vmul.f32 %v2525, %v2549
    %v2554 = vmul.f32 %v2526, %v2550
    %v2556 = vlaneseq
    %v2557 = vshrl.u32 %v2556, 7
    %v2558 = vsub.s32 0, %v2557
    %v2559 = vrot.slane %v2509, %v2558
    %v2561 = vmul.f32 %v2551, %v2559
    %v2562 = vmul.f32 %v2552, %v2559
    %v2563 = vmul.f32 %v2553, %v2559
    %v2564 = vmul.f32 %v2554, %v2559
    %v2566 = vlaneseq
    %v2567 = vshrl.u32 %v2566, 7
    %v2568 = vsub.s32 0, %v2567
    %v2569 = vrot.slane %v2510, %v2568
    %v2571 = vadd.f32 %v2561, %v2569
    %v2572 = vadd.f32 %v2562, %v2569
    %v2573 = vadd.f32 %v2563, %v2569
    %v2574 = vadd.f32 %v2564, %v2569
    %2575 = vst [vmem:[#allocation12] sm:$0xff] %v2571
    %2576 = vst [vmem:[#allocation12 + $0x8] sm:$0xff] %v2572
    %2577 = vst [vmem:[#allocation12 + $0x10] sm:$0xff] %v2573
    %2578 = vst [vmem:[#allocation12 + $0x18] sm:$0xff] %v2574
    // Predicated region
    $region74: #{tpu_custom_call.1} parent=1 // pred_check
      _
    $region75: #{tpu_custom_call.1} parent=1 // pred_check_branch
      %2580 = sbr.rel (0) target = $region77
    $region76: #{tpu_custom_call.1} parent=1 // pred_region
      %s2582 = ssub.s32 512, 512
      %2583 = vsyncadd [#allocation5], %s2582
      %s2584 = sshll.u32 [#allocation12], 4
      %s2585 = int_to_ptr.vmem [resolvable:$true] %s2584
      %2590 = dma.vmem_to_hbm [thread:$0]  %s2585, 512, %s13, [#allocation5], 128, 128, 8
    $region77: #{tpu_custom_call.1} parent=1 // pred_fallthru
      _
    // Predicated region
    $region78: #{tpu_custom_call.1} parent=1 // pred_check
      _
    $region79: #{tpu_custom_call.1} parent=1 // pred_check_branch
      %2592 = sbr.rel (0) target = $region81
    $region80: #{tpu_custom_call.1} parent=1 // pred_region
      %2593 = dma.done [#allocation5], 512
    $region81: #{tpu_custom_call.1} parent=1 // pred_fallthru
      _
    %2594 = vsyncpa [#allocation4], 1
    %2595 = vsyncpa [#allocation7], 1
    %2596 = vsyncpa [#allocation10], 1
    %2597 = vsyncpa [#allocation5], 1

// kernel: tpu_custom_call.1
$region0: #{tpu_custom_call.1}
  #allocation0 [shape = 'u32[]', space=smem, size = 0x4, offset = 0x4, fixed_abs, tag = 'smem constant byte address 0x4 - core index']
  #allocation1 [shape = 'u32[144,128]{1,0:T(1,128)}', space=vmem, size = 0x12000, scoped, tag = 'internal scratch']
  #allocation2 [shape = 'f32[32,128]{1,0:T(8,128)}', space=vmem, size = 0x4000, scoped, tag = 'scratch operand']
  %s0 = inlined_call_operand.hbm [shape: f32[2,16,128], index: 0, kind: input, shape index: {}]
  %s1 = inlined_call_operand.hbm [shape: bf16[128,384], index: 1, kind: input, shape index: {}]
  %s2 = inlined_call_operand.vmem [shape: f32[1,384], index: 2, kind: input, shape index: {}]
  %s3 = inlined_call_operand.hbm [shape: bf16[128,128], index: 3, kind: input, shape index: {}]
  %s4 = inlined_call_operand.vmem [shape: f32[1,128], index: 4, kind: input, shape index: {}]
  %s5 = inlined_call_operand.vmem [shape: f32[1,128], index: 5, kind: input, shape index: {}]
  %s6 = inlined_call_operand.vmem [shape: f32[1,128], index: 6, kind: input, shape index: {}]
  %s7 = inlined_call_operand.hbm [shape: bf16[128,512], index: 7, kind: input, shape index: {}]
  %s8 = inlined_call_operand.vmem [shape: f32[1,512], index: 8, kind: input, shape index: {}]
  %s9 = inlined_call_operand.hbm [shape: bf16[512,128], index: 9, kind: input, shape index: {}]
  %s10 = inlined_call_operand.vmem [shape: f32[1,128], index: 10, kind: input, shape index: {}]
  %s11 = inlined_call_operand.vmem [shape: f32[1,128], index: 11, kind: input, shape index: {}]
  %s12 = inlined_call_operand.vmem [shape: f32[1,128], index: 12, kind: input, shape index: {}]
  %s13 = inlined_call_operand.hbm [shape: f32[2,16,128], index: 13, kind: output, shape index: {}]
  %s14 = sld [smem:[#allocation0]]
  $region82: #{tpu_custom_call.1} parent=0
    _
  %s16 = ssub.s32 1, %s14
  %s17 = scalar_select 0, %s16, %s14
  $region1: #{tpu_custom_call.1} parent=0
    #allocation3 [shape = 'u8[16384]{0}', space=vmem, size = 0x4000, scoped, tag = 'input window, operand 0, single buffered']
    #allocation4 [shape = 's32[1]{0}', space=sflag, size = 0x4, scoped, tag = 'scoped memory for tpu_custom_call.1']
    #allocation5 [shape = 's32[1]{0}', space=sflag, size = 0x4, scoped, tag = 'scoped memory for tpu_custom_call.1']
    #allocation6 [shape = 'u8[98304]{0}', space=vmem, size = 0x18000, scoped, tag = 'input window, operand 1, single buffered']
    #allocation7 [shape = 's32[1]{0}', space=sflag, size = 0x4, scoped, tag = 'scoped memory for tpu_custom_call.1']
    #allocation8 [shape = 'u8[32768]{0}', space=vmem, size = 0x8000, scoped, tag = 'input window, operand 3, single buffered']
    #allocation9 [shape = 'u8[131072]{0}', space=vmem, size = 0x20000, scoped, tag = 'input window, operand 7, single buffered']
    #allocation10 [shape = 's32[1]{0}', space=sflag, size = 0x4, scoped, tag = 'scoped memory for tpu_custom_call.1']
    #allocation11 [shape = 'u8[131072]{0}', space=vmem, size = 0x20000, scoped, tag = 'input window, operand 9, single buffered']
    #allocation12 [shape = 'u8[16384]{0}', space=vmem, size = 0x4000, scoped, tag = 'output window, operand 0, single buffered']
    %18 = vsyncpa [#allocation4], 0
    %19 = vsyncpa [#allocation7], 0
    %20 = vsyncpa [#allocation10], 0
    %21 = vsyncpa [#allocation5], 0
    // Predicated region
    $region2: #{tpu_custom_call.1} parent=1 // pred_check
      _
    $region3: #{tpu_custom_call.1} parent=1 // pred_check_branch
      %23 = sbr.rel (0) target = $region5
    $region4: #{tpu_custom_call.1} parent=1 // pred_region
      %s25 = ssub.s32 512, 512
      %26 = vsyncadd [#allocation4], %s25
      %s27 = sshll.u32 [#allocation3], 4
      %s28 = int_to_ptr.vmem [resolvable:$true] %s27
      %33 = dma.hbm_to_vmem [thread:$0]  %s0, 512, %s28, [#allocation4], 128, 128, 8
    $region5: #{tpu_custom_call.1} parent=1 // pred_fallthru
      _
    // Predicated region
    $region6: #{tpu_custom_call.1} parent=1 // pred_check
      _
    $region7: #{tpu_custom_call.1} parent=1 // pred_check_branch
      %35 = sbr.rel (0) target = $region9
    $region8: #{tpu_custom_call.1} parent=1 // pred_region
      %s37 = ssub.s32 3072, 3072
      %38 = vsyncadd [#allocation7], %s37
      %s39 = sshll.u32 [#allocation6], 4
      %s40 = int_to_ptr.vmem [resolvable:$true] %s39
      %45 = dma.hbm_to_vmem [thread:$0]  %s1, 3072, %s40, [#allocation7], 192, 192, 12
    $region9: #{tpu_custom_call.1} parent=1 // pred_fallthru
      _
    // Predicated region
    $region10: #{tpu_custom_call.1} parent=1 // pred_check
      _
    $region11: #{tpu_custom_call.1} parent=1 // pred_check_branch
      %47 = sbr.rel (0) target = $region13
    $region12: #{tpu_custom_call.1} parent=1 // pred_region
      _
    $region13: #{tpu_custom_call.1} parent=1 // pred_fallthru
      _
    // Predicated region
    $region14: #{tpu_custom_call.1} parent=1 // pred_check
      _
    $region15: #{tpu_custom_call.1} parent=1 // pred_check_branch
      %49 = sbr.rel (0) target = $region17
    $region16: #{tpu_custom_call.1} parent=1 // pred_region
      %s51 = ssub.s32 1024, 1024
      %52 = vsyncadd [#allocation7], %s51
      %s53 = sshll.u32 [#allocation8], 4
      %s54 = int_to_ptr.vmem [resolvable:$true] %s53
      %59 = dma.hbm_to_vmem [thread:$0]  %s3, 1024, %s54, [#allocation7], 64, 64, 4
    $region17: #{tpu_custom_call.1} parent=1 // pred_fallthru
      _
    // Predicated region
    $region18: #{tpu_custom_call.1} parent=1 // pred_check
      _
    $region19: #{tpu_custom_call.1} parent=1 // pred_check_branch
      %61 = sbr.rel (0) target = $region21
    $region20: #{tpu_custom_call.1} parent=1 // pred_region
      _
    $region21: #{tpu_custom_call.1} parent=1 // pred_fallthru
      _
    // Predicated region
    $region22: #{tpu_custom_call.1} parent=1 // pred_check
      _
    $region23: #{tpu_custom_call.1} parent=1 // pred_check_branch
      %63 = sbr.rel (0) target = $region25
    $region24: #{tpu_custom_call.1} parent=1 // pred_region
      _
    $region25: #{tpu_custom_call.1} parent=1 // pred_fallthru
      _
    // Predicated region
    $region26: #{tpu_custom_call.1} parent=1 // pred_check
      _
    $region27: #{tpu_custom_call.1} parent=1 // pred_check_branch
      %65 = sbr.rel (0) target = $region29
    $region28: #{tpu_custom_call.1} parent=1 // pred_region
      _
    $region29: #{tpu_custom_call.1} parent=1 // pred_fallthru
      _
    // Predicated region
    $region30: #{tpu_custom_call.1} parent=1 // pred_check
      _
    $region31: #{tpu_custom_call.1} parent=1 // pred_check_branch
      %67 = sbr.rel (0) target = $region33
    $region32: #{tpu_custom_call.1} parent=1 // pred_region
      %s69 = ssub.s32 4096, 4096
      %70 = vsyncadd [#allocation10], %s69
      %s71 = sshll.u32 [#allocation9], 4
      %s72 = int_to_ptr.vmem [resolvable:$true] %s71
      %77 = dma.hbm_to_vmem [thread:$0]  %s7, 4096, %s72, [#allocation10], 256, 256, 16
    $region33: #{tpu_custom_call.1} parent=1 // pred_fallthru
      _
    // Predicated region
    $region34: #{tpu_custom_call.1} parent=1 // pred_check
      _
    $region35: #{tpu_custom_call.1} parent=1 // pred_check_branch
      %79 = sbr.rel (0) target = $region37
    $region36: #{tpu_custom_call.1} parent=1 // pred_region
      _
    $region37: #{tpu_custom_call.1} parent=1 // pred_fallthru
      _
    // Predicated region
    $region38: #{tpu_custom_call.1} parent=1 // pred_check
      _
    $region39: #{tpu_custom_call.1} parent=1 // pred_check_branch
      %81 = sbr.rel (0) target = $region41
    $region40: #{tpu_custom_call.1} parent=1 // pred_region
      %s83 = ssub.s32 4096, 4096
      %84 = vsyncadd [#allocation10], %s83
      %s85 = sshll.u32 [#allocation11], 4
      %s86 = int_to_ptr.vmem [resolvable:$true] %s85
      %91 = dma.hbm_to_vmem [thread:$0]  %s9, 4096, %s86, [#allocation10], 64, 64, 4
    $region41: #{tpu_custom_call.1} parent=1 // pred_fallthru
      _
    // Predicated region
    $region42: #{tpu_custom_call.1} parent=1 // pred_check
      _
    $region43: #{tpu_custom_call.1} parent=1 // pred_check_branch
      %93 = sbr.rel (0) target = $region45
    $region44: #{tpu_custom_call.1} parent=1 // pred_region
      _
    $region45: #{tpu_custom_call.1} parent=1 // pred_fallthru
      _
    // Predicated region
    $region46: #{tpu_custom_call.1} parent=1 // pred_check
      _
    $region47: #{tpu_custom_call.1} parent=1 // pred_check_branch
      %95 = sbr.rel (0) target = $region49
    $region48: #{tpu_custom_call.1} parent=1 // pred_region
      _
    $region49: #{tpu_custom_call.1} parent=1 // pred_fallthru
      _
    // Predicated region
    $region50: #{tpu_custom_call.1} parent=1 // pred_check
      _
    $region51: #{tpu_custom_call.1} parent=1 // pred_check_branch
      %97 = sbr.rel (0) target = $region53
    $region52: #{tpu_custom_call.1} parent=1 // pred_region
      _
    $region53: #{tpu_custom_call.1} parent=1 // pred_fallthru
      _
    // Predicated region
    $region54: #{tpu_custom_call.1} parent=1 // pred_check
      _
    $region55: #{tpu_custom_call.1} parent=1 // pred_check_branch
      %99 = sbr.rel (0) target = $region57
    $region56: #{tpu_custom_call.1} parent=1 // pred_region
      %100 = dma.done [#allocation4], 512
    $region57: #{tpu_custom_call.1} parent=1 // pred_fallthru
      _
    // Predicated region
    $region58: #{tpu_custom_call.1} parent=1 // pred_check
      _
    $region59: #{tpu_custom_call.1} parent=1 // pred_check_branch
      %102 = sbr.rel (0) target = $region61
    $region60: #{tpu_custom_call.1} parent=1 // pred_region
      %103 = dma.done [#allocation7], 3072
    $region61: #{tpu_custom_call.1} parent=1 // pred_fallthru
      _
    // Predicated region
    $region62: #{tpu_custom_call.1} parent=1 // pred_check
      _
    $region63: #{tpu_custom_call.1} parent=1 // pred_check_branch
      %105 = sbr.rel (0) target = $region65
    $region64: #{tpu_custom_call.1} parent=1 // pred_region
      %106 = dma.done [#allocation7], 1024
    $region65: #{tpu_custom_call.1} parent=1 // pred_fallthru
      _
    // Predicated region
    $region66: #{tpu_custom_call.1} parent=1 // pred_check
      _
    $region67: #{tpu_custom_call.1} parent=1 // pred_check_branch
      %108 = sbr.rel (0) target = $region69
    $region68: #{tpu_custom_call.1} parent=1 // pred_region
      %109 = dma.done [#allocation10], 4096
    $region69: #{tpu_custom_call.1} parent=1 // pred_fallthru
      _
    // Predicated region
    $region70: #{tpu_custom_call.1} parent=1 // pred_check
      _
    $region71: #{tpu_custom_call.1} parent=1 // pred_check_branch
      %111 = sbr.rel (0) target = $region73
    $region72: #{tpu_custom_call.1} parent=1 // pred_region
      %112 = dma.done [#allocation10], 4096
    $region73: #{tpu_custom_call.1} parent=1 // pred_fallthru
      _
    %v114 = vld [vmem:[#allocation3] sm:$0xff]
    %v115 = vld [vmem:[#allocation3 + $0x8] sm:$0xff]
    %v116 = vld [vmem:[#allocation3 + $0x10] sm:$0xff]
    %v117 = vld [vmem:[#allocation3 + $0x18] sm:$0xff]
    %v118 = vpack.c.bf16 %v115, %v114
    %v119 = vpack.c.bf16 %v117, %v116
    %v120 = vld [vmem:[#allocation6] sm:$0xff]
    %v121 = vld [vmem:[#allocation6 + $0x8] sm:$0xf]
    %v122 = vld [vmem:[#allocation6 + $0xc] sm:$0xff]
    %v123 = vld [vmem:[#allocation6 + $0x14] sm:$0xf]
    %v124 = vld [vmem:[#allocation6 + $0x18] sm:$0xff]
    %v125 = vld [vmem:[#allocation6 + $0x20] sm:$0xf]
    %v126 = vld [vmem:[#allocation6 + $0x24] sm:$0xff]
    %v127 = vld [vmem:[#allocation6 + $0x2c] sm:$0xf]
    %v128 = vld [vmem:[#allocation6 + $0x30] sm:$0xff]
    %v129 = vld [vmem:[#allocation6 + $0x38] sm:$0xf]
    %v130 = vld [vmem:[#allocation6 + $0x3c] sm:$0xff]
    %v131 = vld [vmem:[#allocation6 + $0x44] sm:$0xf]
    %v132 = vld [vmem:[#allocation6 + $0x48] sm:$0xff]
    %v133 = vld [vmem:[#allocation6 + $0x50] sm:$0xf]
    %v134 = vld [vmem:[#allocation6 + $0x54] sm:$0xff]
    %v135 = vld [vmem:[#allocation6 + $0x5c] sm:$0xf]
    %v136 = vld [vmem:[#allocation6 + $0x60] sm:$0xff]
    %v137 = vld [vmem:[#allocation6 + $0x68] sm:$0xf]
    %v138 = vld [vmem:[#allocation6 + $0x6c] sm:$0xff]
    %v139 = vld [vmem:[#allocation6 + $0x74] sm:$0xf]
    %v140 = vld [vmem:[#allocation6 + $0x78] sm:$0xff]
    %v141 = vld [vmem:[#allocation6 + $0x80] sm:$0xf]
    %v142 = vld [vmem:[#allocation6 + $0x84] sm:$0xff]
    %v143 = vld [vmem:[#allocation6 + $0x8c] sm:$0xf]
    %v144 = vld [vmem:[#allocation6 + $0x90] sm:$0xff]
    %v145 = vld [vmem:[#allocation6 + $0x98] sm:$0xf]
    %v146 = vld [vmem:[#allocation6 + $0x9c] sm:$0xff]
    %v147 = vld [vmem:[#allocation6 + $0xa4] sm:$0xf]
    %v148 = vld [vmem:[#allocation6 + $0xa8] sm:$0xff]
    %v149 = vld [vmem:[#allocation6 + $0xb0] sm:$0xf]
    %v150 = vld [vmem:[#allocation6 + $0xb4] sm:$0xff]
    %v151 = vld [vmem:[#allocation6 + $0xbc] sm:$0xf]
    %v152 = vld [vmem:[%s2] sm:$0x7]
    %v154 = vlaneseq
    %v155 = vshrl.u32 %v154, 7
    %v156 = vsub.s32 0, %v155
    %v157 = vrot.slane %v152, %v156
    %v158 = vlaneseq
    %v159 = vshrl.u32 %v158, 7
    %v160 = vsub.s32 1, %v159
    %v161 = vrot.slane %v152, %v160
    %v162 = vlaneseq
    %v163 = vshrl.u32 %v162, 7
    %v164 = vsub.s32 2, %v163
    %v165 = vrot.slane %v152, %v164
    %v201 = vunpack.c.l.b16 %v120
    %v202 = vunpack.c.h.b16 %v120
    %v203 = vunpack.c.l.b16 %v121
    %v204 = vunpack.c.l.b16 %v122
    %v205 = vunpack.c.h.b16 %v122
    %v206 = vunpack.c.l.b16 %v123
    %v207 = vunpack.c.l.b16 %v124
    %v208 = vunpack.c.h.b16 %v124
    %v209 = vunpack.c.l.b16 %v125
    %v210 = vunpack.c.l.b16 %v126
    %v211 = vunpack.c.h.b16 %v126
    %v212 = vunpack.c.l.b16 %v127
    %v213 = vunpack.c.l.b16 %v128
    %v214 = vunpack.c.h.b16 %v128
    %v215 = vunpack.c.l.b16 %v129
    %v216 = vunpack.c.l.b16 %v130
    %v217 = vunpack.c.h.b16 %v130
    %v218 = vunpack.c.l.b16 %v131
    %v219 = vunpack.c.l.b16 %v132
    %v220 = vunpack.c.h.b16 %v132
    %v221 = vunpack.c.l.b16 %v133
    %v222 = vunpack.c.l.b16 %v134
    %v223 = vunpack.c.h.b16 %v134
    %v224 = vunpack.c.l.b16 %v135
    %v225 = vunpack.c.l.b16 %v136
    %v226 = vunpack.c.h.b16 %v136
    %v227 = vunpack.c.l.b16 %v137
    %v228 = vunpack.c.l.b16 %v138
    %v229 = vunpack.c.h.b16 %v138
    %v230 = vunpack.c.l.b16 %v139
    %v231 = vunpack.c.l.b16 %v140
    %v232 = vunpack.c.h.b16 %v140
    %v233 = vunpack.c.l.b16 %v141
    %v234 = vunpack.c.l.b16 %v142
    %v235 = vunpack.c.h.b16 %v142
    %v236 = vunpack.c.l.b16 %v143
    %v237 = vunpack.c.l.b16 %v144
    %v238 = vunpack.c.h.b16 %v144
    %v239 = vunpack.c.l.b16 %v145
    %v240 = vunpack.c.l.b16 %v146
    %v241 = vunpack.c.h.b16 %v146
    %v242 = vunpack.c.l.b16 %v147
    %v243 = vunpack.c.l.b16 %v148
    %v244 = vunpack.c.h.b16 %v148
    %v245 = vunpack.c.l.b16 %v149
    %v246 = vunpack.c.l.b16 %v150
    %v247 = vunpack.c.h.b16 %v150
    %v248 = vunpack.c.l.b16 %v151
    %v249 = vpack.c.b16 %v204, %v201
    %v250 = vpack.c.b16 %v205, %v202
    %v251 = vpack.c.b16 %v206, %v203
    %v252 = vpack.c.b16 %v210, %v207
    %v253 = vpack.c.b16 %v211, %v208
    %v254 = vpack.c.b16 %v212, %v209
    %v255 = vpack.c.b16 %v216, %v213
    %v256 = vpack.c.b16 %v217, %v214
    %v257 = vpack.c.b16 %v218, %v215
    %v258 = vpack.c.b16 %v222, %v219
    %v259 = vpack.c.b16 %v223, %v220
    %v260 = vpack.c.b16 %v224, %v221
    %v261 = vpack.c.b16 %v228, %v225
    %v262 = vpack.c.b16 %v229, %v226
    %v263 = vpack.c.b16 %v230, %v227
    %v264 = vpack.c.b16 %v234, %v231
    %v265 = vpack.c.b16 %v235, %v232
    %v266 = vpack.c.b16 %v236, %v233
    %v267 = vpack.c.b16 %v240, %v237
    %v268 = vpack.c.b16 %v241, %v238
    %v269 = vpack.c.b16 %v242, %v239
    %v270 = vpack.c.b16 %v246, %v243
    %v271 = vpack.c.b16 %v247, %v244
    %v272 = vpack.c.b16 %v248, %v245
    %297 = vmatprep.subr.bf16.mxu0 %v250
    %298 = vmatpush1.bf16.msra.mxu0 %v249
    %299 = vmatprep.subr.bf16.mxu0 %v253
    %300 = vmatpush1.bf16.msra.mxu0 %v252
    %301 = vmatprep.subr.bf16.mxu0 %v256
    %302 = vmatpush1.bf16.msra.mxu0 %v255
    %303 = vmatprep.subr.bf16.mxu0 %v259
    %304 = vmatpush1.bf16.msra.mxu0 %v258
    %305 = vmatprep.subr.bf16.mxu0 %v262
    %306 = vmatpush1.bf16.msra.mxu0 %v261
    %307 = vmatprep.subr.bf16.mxu0 %v265
    %308 = vmatpush1.bf16.msra.mxu0 %v264
    %309 = vmatprep.subr.bf16.mxu0 %v268
    %310 = vmatpush1.bf16.msra.mxu0 %v267
    %311 = vmatprep.subr.bf16.mxu0 %v271
    %312 = vmatpush1.bf16.msra.mxu0 %v270
    %313 = vmatprep.subr.bf16.mxu0 0
    %314 = vmatpush1.bf16.msra.mxu0 0
    %315 = vmatprep.subr.bf16.mxu0 0
    %316 = vmatpush1.bf16.msra.mxu0 0
    %317 = vmatprep.subr.bf16.mxu0 0
    %318 = vmatpush1.bf16.msra.mxu0 0
    %319 = vmatprep.subr.bf16.mxu0 0
    %320 = vmatpush1.bf16.msra.mxu0 0
    %321 = vmatprep.subr.bf16.mxu0 0
    %322 = vmatpush1.bf16.msra.mxu0 0
    %323 = vmatprep.subr.bf16.mxu0 0
    %324 = vmatpush1.bf16.msra.mxu0 0
    %325 = vmatprep.subr.bf16.mxu0 0
    %326 = vmatpush1.bf16.msra.mxu0 0
    %327 = vmatprep.subr.bf16.mxu0 0
    %328 = vmatpush1.bf16.msra.mxu0 0
    %329 = vmatprep.mubr.bf16.mxu0 0
    %330 = vmatmul.mubr.bf16.gmra.mrb[0].mxu0 %v118
    %v331 = vpop.f32.mrb[0].mxu0
    %v332 = vadd.f32 %v157, %v331
    %v333 = vpop.f32.mrb[0].mxu0
    %v334 = vadd.f32 %v161, %v333
    %v335 = vpop.f32.mrb[0].mxu0
    %v336 = vadd.f32 %v157, %v335
    %v337 = vpop.f32.mrb[0].mxu0
    %v338 = vadd.f32 %v161, %v337
    %339 = vmatprep.mubr.bf16.mxu0 0
    %340 = vmatmul.mubr.bf16.gmra.mrb[0].mxu0 %v119
    %v341 = vpop.f32.mrb[0].mxu0
    %v342 = vadd.f32 %v157, %v341
    %v343 = vpop.f32.mrb[0].mxu0
    %v344 = vadd.f32 %v161, %v343
    %v345 = vpop.f32.mrb[0].mxu0
    %v346 = vadd.f32 %v157, %v345
    %v347 = vpop.f32.mrb[0].mxu0
    %v348 = vadd.f32 %v161, %v347
    %349 = vdwg.mxu0
    %350 = vmatprep.subr.bf16.mxu0 0
    %351 = vmatpush1.bf16.msra.mxu0 %v251
    %352 = vmatprep.subr.bf16.mxu0 0
    %353 = vmatpush1.bf16.msra.mxu0 %v254
    %354 = vmatprep.subr.bf16.mxu0 0
    %355 = vmatpush1.bf16.msra.mxu0 %v257
    %356 = vmatprep.subr.bf16.mxu0 0
    %357 = vmatpush1.bf16.msra.mxu0 %v260
    %358 = vmatprep.subr.bf16.mxu0 0
    %359 = vmatpush1.bf16.msra.mxu0 %v263
    %360 = vmatprep.subr.bf16.mxu0 0
    %361 = vmatpush1.bf16.msra.mxu0 %v266
    %362 = vmatprep.subr.bf16.mxu0 0
    %363 = vmatpush1.bf16.msra.mxu0 %v269
    %364 = vmatprep.subr.bf16.mxu0 0
    %365 = vmatpush1.bf16.msra.mxu0 %v272
    %366 = vmatprep.subr.bf16.mxu0 0
    %367 = vmatpush1.bf16.msra.mxu0 0
    %368 = vmatprep.subr.bf16.mxu0 0
    %369 = vmatpush1.bf16.msra.mxu0 0
    %370 = vmatprep.subr.bf16.mxu0 0
    %371 = vmatpush1.bf16.msra.mxu0 0
    %372 = vmatprep.subr.bf16.mxu0 0
    %373 = vmatpush1.bf16.msra.mxu0 0
    %374 = vmatprep.subr.bf16.mxu0 0
    %375 = vmatpush1.bf16.msra.mxu0 0
    %376 = vmatprep.subr.bf16.mxu0 0
    %377 = vmatpush1.bf16.msra.mxu0 0
    %378 = vmatprep.subr.bf16.mxu0 0
    %379 = vmatpush1.bf16.msra.mxu0 0
    %380 = vmatprep.subr.bf16.mxu0 0
    %381 = vmatpush1.bf16.msra.mxu0 0
    %382 = vmatprep.mubr.bf16.mxu0 0
    %383 = vmatmul.mubr.bf16.gmra.mrb[0].mxu0 %v118
    %v384 = vpop.f32.mrb[0].mxu0
    %v385 = vadd.f32 %v165, %v384
    %v386 = vpop.f32.mrb[0].mxu0
    %v387 = vpop.f32.mrb[0].mxu0
    %v388 = vadd.f32 %v165, %v387
    %v389 = vpop.f32.mrb[0].mxu0
    %390 = vmatprep.mubr.bf16.mxu0 0
    %391 = vmatmul.mubr.bf16.gmra.mrb[0].mxu0 %v119
    %v392 = vpop.f32.mrb[0].mxu0
    %v393 = vadd.f32 %v165, %v392
    %v394 = vpop.f32.mrb[0].mxu0
    %v395 = vpop.f32.mrb[0].mxu0
    %v396 = vadd.f32 %v165, %v395
    %v397 = vpop.f32.mrb[0].mxu0
    %398 = vdwg.mxu0
    %v399 = vlaneseq
    %v400 = vshrl.u32 %v399, 7
    %v401 = vadd.s32 %v400, 8
    %v402 = vlaneseq
    %v403 = vand.u32 %v402, 127
    %vm404 = vcmp.le.s32.totalorder %v403, %v400
    %vm405 = vcmp.le.s32.totalorder %v403, %v401
    %v406 = vpack.c.bf16 %v336, %v332
    %v407 = vpack.c.bf16 %v338, %v334
    %v408 = vpack.c.bf16 %v388, %v385
    %vm409 = vcmask 261120
    %v411 = vsel %vm409, %v406, 0
    %v414 = vsel %vm409, %v407, 0
    %416 = vmatprep.subr.bf16.mxu0 0
    %417 = vmatpush1.bf16.xpose.msra.mxu0 %v414
    %418 = vmatprep.subr.bf16.mxu0 0
    %419 = vmatpush1.bf16.xpose.msra.mxu0 0
    %420 = vmatprep.subr.bf16.mxu0 0
    %421 = vmatpush1.bf16.xpose.msra.mxu0 0
    %422 = vmatprep.subr.bf16.mxu0 0
    %423 = vmatpush1.bf16.xpose.msra.mxu0 0
    %424 = vmatprep.subr.bf16.mxu0 0
    %425 = vmatpush1.bf16.xpose.msra.mxu0 0
    %426 = vmatprep.subr.bf16.mxu0 0
    %427 = vmatpush1.bf16.xpose.msra.mxu0 0
    %428 = vmatprep.subr.bf16.mxu0 0
    %429 = vmatpush1.bf16.xpose.msra.mxu0 0
    %430 = vmatprep.subr.bf16.mxu0 0
    %431 = vmatpush1.bf16.xpose.msra.mxu0 0
    %432 = vmatprep.subr.bf16.mxu0 0
    %433 = vmatpush1.bf16.xpose.msra.mxu0 0
    %434 = vmatprep.subr.bf16.mxu0 0
    %435 = vmatpush1.bf16.xpose.msra.mxu0 0
    %436 = vmatprep.subr.bf16.mxu0 0
    %437 = vmatpush1.bf16.xpose.msra.mxu0 0
    %438 = vmatprep.subr.bf16.mxu0 0
    %439 = vmatpush1.bf16.xpose.msra.mxu0 0
    %440 = vmatprep.subr.bf16.mxu0 0
    %441 = vmatpush1.bf16.xpose.msra.mxu0 0
    %442 = vmatprep.subr.bf16.mxu0 0
    %443 = vmatpush1.bf16.xpose.msra.mxu0 0
    %444 = vmatprep.subr.bf16.mxu0 0
    %445 = vmatpush1.bf16.xpose.msra.mxu0 0
    %446 = vmatprep.subr.bf16.mxu0 0
    %447 = vmatpush1.bf16.xpose.msra.mxu0 0
    %448 = vmatprep.mubr.bf16.mxu0 0
    %449 = vmatmul.mubr.bf16.gmra.mrb[0].mxu0 %v411
    %v450 = vpop.f32.mrb[0].mxu0
    %v451 = vadd.f32 0.0, %v450
    %v452 = vpop.f32.mrb[0].mxu0
    %v453 = vpop.f32.mrb[0].mxu0
    %v454 = vadd.f32 0.0, %v453
    %v455 = vpop.f32.mrb[0].mxu0
    %456 = vdwg.mxu0
    %v457 = vmul.f32 %v451, 0.17677669
    %v458 = vmul.f32 %v454, 0.17677669
    %v459 = vsel %vm404, %v457, -1e+30
    %v460 = vsel %vm405, %v458, -1e+30
    %vm461 = vcmask 130048
    %v462 = vsel %vm461, %v459, -inf
    %463 = vmax.xlane.f32.xlu0 %v462
    %v464 = vpop.xlane.xlu0 %463
    %v465 = vsel %vm461, %v460, -inf
    %466 = vmax.xlane.f32.xlu0 %v465
    %v467 = vpop.xlane.xlu0 %466
    %v468 = vsub.f32 %v459, %v464
    %v469 = vsub.f32 %v460, %v467
    %v470 = vmul.f32 %v468, 1.442695
    %v471 = vpow.pop %v470
    %v472 = vmul.f32 %v469, 1.442695
    %v473 = vpow.pop %v472
    %v474 = vsel %vm461, %v471, 0.0
    %475 = vadd.xlane.f32.xlu0 %v474
    %v476 = vpop.xlane.xlu0 %475
    %v477 = vsel %vm461, %v473, 0.0
    %478 = vadd.xlane.f32.xlu0 %v477
    %v479 = vpop.xlane.xlu0 %478
    %v480 = vrcp.pop %v476
    %v481 = vrcp.pop %v479
    %v482 = vmul.f32 %v471, %v480
    %v483 = vmul.f32 %v473, %v481
    %v484 = vpack.c.bf16 %v483, %v482
    %v486 = vsel %vm461, %v484, 0
    %488 = vmatprep.subr.bf16.mxu0 0
    %489 = vmatpush1.bf16.msra.mxu0 %v408
    %490 = vmatprep.subr.bf16.mxu0 0
    %491 = vmatpush1.bf16.msra.mxu0 0
    %492 = vmatprep.subr.bf16.mxu0 0
    %493 = vmatpush1.bf16.msra.mxu0 0
    %494 = vmatprep.subr.bf16.mxu0 0
    %495 = vmatpush1.bf16.msra.mxu0 0
    %496 = vmatprep.subr.bf16.mxu0 0
    %497 = vmatpush1.bf16.msra.mxu0 0
    %498 = vmatprep.subr.bf16.mxu0 0
    %499 = vmatpush1.bf16.msra.mxu0 0
    %500 = vmatprep.subr.bf16.mxu0 0
    %501 = vmatpush1.bf16.msra.mxu0 0
    %502 = vmatprep.subr.bf16.mxu0 0
    %503 = vmatpush1.bf16.msra.mxu0 0
    %504 = vmatprep.subr.bf16.mxu0 0
    %505 = vmatpush1.bf16.msra.mxu0 0
    %506 = vmatprep.subr.bf16.mxu0 0
    %507 = vmatpush1.bf16.msra.mxu0 0
    %508 = vmatprep.subr.bf16.mxu0 0
    %509 = vmatpush1.bf16.msra.mxu0 0
    %510 = vmatprep.subr.bf16.mxu0 0
    %511 = vmatpush1.bf16.msra.mxu0 0
    %512 = vmatprep.subr.bf16.mxu0 0
    %513 = vmatpush1.bf16.msra.mxu0 0
    %514 = vmatprep.subr.bf16.mxu0 0
    %515 = vmatpush1.bf16.msra.mxu0 0
    %516 = vmatprep.subr.bf16.mxu0 0
    %517 = vmatpush1.bf16.msra.mxu0 0
    %518 = vmatprep.subr.bf16.mxu0 0
    %519 = vmatpush1.bf16.msra.mxu0 0
    %520 = vmatprep.mubr.bf16.mxu0 0
    %521 = vmatmul.mubr.bf16.gmra.mrb[0].mxu0 %v486
    %v522 = vpop.f32.mrb[0].mxu0
    %v523 = vadd.f32 0.0, %v522
    %v524 = vpop.f32.mrb[0].mxu0
    %v525 = vpop.f32.mrb[0].mxu0
    %v526 = vadd.f32 0.0, %v525
    %v527 = vpop.f32.mrb[0].mxu0
    %528 = vdwg.mxu0
    %529 = vst.msk [vmem:[#allocation2] sm:$0xff] %vm409, %v523
    %530 = vst.msk [vmem:[#allocation2 + $0x8] sm:$0xff] %vm409, %v526
    %532 = vrot.lane.b32.xlu0 %v406, 96
    %v533 = vpop.permute.xlu0 %532
    %535 = vrot.lane.b32.xlu0 %v407, 96
    %v536 = vpop.permute.xlu0 %535
    %v538 = vsel %vm409, %v533, 0
    %v541 = vsel %vm409, %v536, 0
    %543 = vmatprep.subr.bf16.mxu0 0
    %544 = vmatpush1.bf16.xpose.msra.mxu0 %v541
    %545 = vmatprep.subr.bf16.mxu0 0
    %546 = vmatpush1.bf16.xpose.msra.mxu0 0
    %547 = vmatprep.subr.bf16.mxu0 0
    %548 = vmatpush1.bf16.xpose.msra.mxu0 0
    %549 = vmatprep.subr.bf16.mxu0 0
    %550 = vmatpush1.bf16.xpose.msra.mxu0 0
    %551 = vmatprep.subr.bf16.mxu0 0
    %552 = vmatpush1.bf16.xpose.msra.mxu0 0
    %553 = vmatprep.subr.bf16.mxu0 0
    %554 = vmatpush1.bf16.xpose.msra.mxu0 0
    %555 = vmatprep.subr.bf16.mxu0 0
    %556 = vmatpush1.bf16.xpose.msra.mxu0 0
    %557 = vmatprep.subr.bf16.mxu0 0
    %558 = vmatpush1.bf16.xpose.msra.mxu0 0
    %559 = vmatprep.subr.bf16.mxu0 0
    %560 = vmatpush1.bf16.xpose.msra.mxu0 0
    %561 = vmatprep.subr.bf16.mxu0 0
    %562 = vmatpush1.bf16.xpose.msra.mxu0 0
    %563 = vmatprep.subr.bf16.mxu0 0
    %564 = vmatpush1.bf16.xpose.msra.mxu0 0
    %565 = vmatprep.subr.bf16.mxu0 0
    %566 = vmatpush1.bf16.xpose.msra.mxu0 0
    %567 = vmatprep.subr.bf16.mxu0 0
    %568 = vmatpush1.bf16.xpose.msra.mxu0 0
    %569 = vmatprep.subr.bf16.mxu0 0
    %570 = vmatpush1.bf16.xpose.msra.mxu0 0
    %571 = vmatprep.subr.bf16.mxu0 0
    %572 = vmatpush1.bf16.xpose.msra.mxu0 0
    %573 = vmatprep.subr.bf16.mxu0 0
    %574 = vmatpush1.bf16.xpose.msra.mxu0 0
    %575 = vmatprep.mubr.bf16.mxu0 0
    %576 = vmatmul.mubr.bf16.gmra.mrb[0].mxu0 %v538
    %v577 = vpop.f32.mrb[0].mxu0
    %v578 = vadd.f32 0.0, %v577
    %v579 = vpop.f32.mrb[0].mxu0
    %v580 = vpop.f32.mrb[0].mxu0
    %v581 = vadd.f32 0.0, %v580
    %v582 = vpop.f32.mrb[0].mxu0
    %583 = vdwg.mxu0
    %v584 = vmul.f32 %v578, 0.17677669
    %v585 = vmul.f32 %v581, 0.17677669
    %v586 = vsel %vm404, %v584, -1e+30
    %v587 = vsel %vm405, %v585, -1e+30
    %v588 = vsel %vm461, %v586, -inf
    %589 = vmax.xlane.f32.xlu0 %v588
    %v590 = vpop.xlane.xlu0 %589
    %v591 = vsel %vm461, %v587, -inf
    %592 = vmax.xlane.f32.xlu0 %v591
    %v593 = vpop.xlane.xlu0 %592
    %v594 = vsub.f32 %v586, %v590
    %v595 = vsub.f32 %v587, %v593
    %v596 = vmul.f32 %v594, 1.442695
    %v597 = vpow.pop %v596
    %v598 = vmul.f32 %v595, 1.442695
    %v599 = vpow.pop %v598
    %v600 = vsel %vm461, %v597, 0.0
    %601 = vadd.xlane.f32.xlu0 %v600
    %v602 = vpop.xlane.xlu0 %601
    %v603 = vsel %vm461, %v599, 0.0
    %604 = vadd.xlane.f32.xlu0 %v603
    %v605 = vpop.xlane.xlu0 %604
    %v606 = vrcp.pop %v602
    %v607 = vrcp.pop %v605
    %v608 = vmul.f32 %v597, %v606
    %v609 = vmul.f32 %v599, %v607
    %v610 = vpack.c.bf16 %v609, %v608
    %612 = vrot.lane.b32.xlu0 %v408, 96
    %v613 = vpop.permute.xlu0 %612
    %v616 = vsel %vm461, %v610, 0
    %618 = vmatprep.subr.bf16.mxu0 0
    %619 = vmatpush1.bf16.msra.mxu0 %v613
    %620 = vmatprep.subr.bf16.mxu0 0
    %621 = vmatpush1.bf16.msra.mxu0 0
    %622 = vmatprep.subr.bf16.mxu0 0
    %623 = vmatpush1.bf16.msra.mxu0 0
    %624 = vmatprep.subr.bf16.mxu0 0
    %625 = vmatpush1.bf16.msra.mxu0 0
    %626 = vmatprep.subr.bf16.mxu0 0
    %627 = vmatpush1.bf16.msra.mxu0 0
    %628 = vmatprep.subr.bf16.mxu0 0
    %629 = vmatpush1.bf16.msra.mxu0 0
    %630 = vmatprep.subr.bf16.mxu0 0
    %631 = vmatpush1.bf16.msra.mxu0 0
    %632 = vmatprep.subr.bf16.mxu0 0
    %633 = vmatpush1.bf16.msra.mxu0 0
    %634 = vmatprep.subr.bf16.mxu0 0
    %635 = vmatpush1.bf16.msra.mxu0 0
    %636 = vmatprep.subr.bf16.mxu0 0
    %637 = vmatpush1.bf16.msra.mxu0 0
    %638 = vmatprep.subr.bf16.mxu0 0
    %639 = vmatpush1.bf16.msra.mxu0 0
    %640 = vmatprep.subr.bf16.mxu0 0
    %641 = vmatpush1.bf16.msra.mxu0 0
    %642 = vmatprep.subr.bf16.mxu0 0
    %643 = vmatpush1.bf16.msra.mxu0 0
    %644 = vmatprep.subr.bf16.mxu0 0
    %645 = vmatpush1.bf16.msra.mxu0 0
    %646 = vmatprep.subr.bf16.mxu0 0
    %647 = vmatpush1.bf16.msra.mxu0 0
    %648 = vmatprep.subr.bf16.mxu0 0
    %649 = vmatpush1.bf16.msra.mxu0 0
    %650 = vmatprep.mubr.bf16.mxu0 0
    %651 = vmatmul.mubr.bf16.gmra.mrb[0].mxu0 %v616
    %v652 = vpop.f32.mrb[0].mxu0
    %v653 = vadd.f32 0.0, %v652
    %v654 = vpop.f32.mrb[0].mxu0
    %v655 = vpop.f32.mrb[0].mxu0
    %v656 = vadd.f32 0.0, %v655
    %v657 = vpop.f32.mrb[0].mxu0
    %658 = vdwg.mxu0
    %661 = vrot.lane.b32.xlu0 %v653, 32
    %v662 = vpop.permute.xlu0 %661
    %663 = vrot.lane.b32.xlu0 %v656, 32
    %v664 = vpop.permute.xlu0 %663
    %vm667 = vcmask 523520
    %668 = vst.msk [vmem:[#allocation2] sm:$0xff] %vm667, %v662
    %669 = vst.msk [vmem:[#allocation2 + $0x8] sm:$0xff] %vm667, %v664
    %670 = vrot.lane.b32.xlu0 %v406, 64
    %v671 = vpop.permute.xlu0 %670
    %672 = vrot.lane.b32.xlu0 %v407, 64
    %v673 = vpop.permute.xlu0 %672
    %v675 = vsel %vm409, %v671, 0
    %v678 = vsel %vm409, %v673, 0
    %680 = vmatprep.subr.bf16.mxu0 0
    %681 = vmatpush1.bf16.xpose.msra.mxu0 %v678
    %682 = vmatprep.subr.bf16.mxu0 0
    %683 = vmatpush1.bf16.xpose.msra.mxu0 0
    %684 = vmatprep.subr.bf16.mxu0 0
    %685 = vmatpush1.bf16.xpose.msra.mxu0 0
    %686 = vmatprep.subr.bf16.mxu0 0
    %687 = vmatpush1.bf16.xpose.msra.mxu0 0
    %688 = vmatprep.subr.bf16.mxu0 0
    %689 = vmatpush1.bf16.xpose.msra.mxu0 0
    %690 = vmatprep.subr.bf16.mxu0 0
    %691 = vmatpush1.bf16.xpose.msra.mxu0 0
    %692 = vmatprep.subr.bf16.mxu0 0
    %693 = vmatpush1.bf16.xpose.msra.mxu0 0
    %694 = vmatprep.subr.bf16.mxu0 0
    %695 = vmatpush1.bf16.xpose.msra.mxu0 0
    %696 = vmatprep.subr.bf16.mxu0 0
    %697 = vmatpush1.bf16.xpose.msra.mxu0 0
    %698 = vmatprep.subr.bf16.mxu0 0
    %699 = vmatpush1.bf16.xpose.msra.mxu0 0
    %700 = vmatprep.subr.bf16.mxu0 0
    %701 = vmatpush1.bf16.xpose.msra.mxu0 0
    %702 = vmatprep.subr.bf16.mxu0 0
    %703 = vmatpush1.bf16.xpose.msra.mxu0 0
    %704 = vmatprep.subr.bf16.mxu0 0
    %705 = vmatpush1.bf16.xpose.msra.mxu0 0
    %706 = vmatprep.subr.bf16.mxu0 0
    %707 = vmatpush1.bf16.xpose.msra.mxu0 0
    %708 = vmatprep.subr.bf16.mxu0 0
    %709 = vmatpush1.bf16.xpose.msra.mxu0 0
    %710 = vmatprep.subr.bf16.mxu0 0
    %711 = vmatpush1.bf16.xpose.msra.mxu0 0
    %712 = vmatprep.mubr.bf16.mxu0 0
    %713 = vmatmul.mubr.bf16.gmra.mrb[0].mxu0 %v675
    %v714 = vpop.f32.mrb[0].mxu0
    %v715 = vadd.f32 0.0, %v714
    %v716 = vpop.f32.mrb[0].mxu0
    %v717 = vpop.f32.mrb[0].mxu0
    %v718 = vadd.f32 0.0, %v717
    %v719 = vpop.f32.mrb[0].mxu0
    %720 = vdwg.mxu0
    %v721 = vmul.f32 %v715, 0.17677669
    %v722 = vmul.f32 %v718, 0.17677669
    %v723 = vsel %vm404, %v721, -1e+30
    %v724 = vsel %vm405, %v722, -1e+30
    %v725 = vsel %vm461, %v723, -inf
    %726 = vmax.xlane.f32.xlu0 %v725
    %v727 = vpop.xlane.xlu0 %726
    %v728 = vsel %vm461, %v724, -inf
    %729 = vmax.xlane.f32.xlu0 %v728
    %v730 = vpop.xlane.xlu0 %729
    %v731 = vsub.f32 %v723, %v727
    %v732 = vsub.f32 %v724, %v730
    %v733 = vmul.f32 %v731, 1.442695
    %v734 = vpow.pop %v733
    %v735 = vmul.f32 %v732, 1.442695
    %v736 = vpow.pop %v735
    %v737 = vsel %vm461, %v734, 0.0
    %738 = vadd.xlane.f32.xlu0 %v737
    %v739 = vpop.xlane.xlu0 %738
    %v740 = vsel %vm461, %v736, 0.0
    %741 = vadd.xlane.f32.xlu0 %v740
    %v742 = vpop.xlane.xlu0 %741
    %v743 = vrcp.pop %v739
    %v744 = vrcp.pop %v742
    %v745 = vmul.f32 %v734, %v743
    %v746 = vmul.f32 %v736, %v744
    %v747 = vpack.c.bf16 %v746, %v745
    %748 = vrot.lane.b32.xlu0 %v408, 64
    %v749 = vpop.permute.xlu0 %748
    %v752 = vsel %vm461, %v747, 0
    %754 = vmatprep.subr.bf16.mxu0 0
    %755 = vmatpush1.bf16.msra.mxu0 %v749
    %756 = vmatprep.subr.bf16.mxu0 0
    %757 = vmatpush1.bf16.msra.mxu0 0
    %758 = vmatprep.subr.bf16.mxu0 0
    %759 = vmatpush1.bf16.msra.mxu0 0
    %760 = vmatprep.subr.bf16.mxu0 0
    %761 = vmatpush1.bf16.msra.mxu0 0
    %762 = vmatprep.subr.bf16.mxu0 0
    %763 = vmatpush1.bf16.msra.mxu0 0
    %764 = vmatprep.subr.bf16.mxu0 0
    %765 = vmatpush1.bf16.msra.mxu0 0
    %766 = vmatprep.subr.bf16.mxu0 0
    %767 = vmatpush1.bf16.msra.mxu0 0
    %768 = vmatprep.subr.bf16.mxu0 0
    %769 = vmatpush1.bf16.msra.mxu0 0
    %770 = vmatprep.subr.bf16.mxu0 0
    %771 = vmatpush1.bf16.msra.mxu0 0
    %772 = vmatprep.subr.bf16.mxu0 0
    %773 = vmatpush1.bf16.msra.mxu0 0
    %774 = vmatprep.subr.bf16.mxu0 0
    %775 = vmatpush1.bf16.msra.mxu0 0
    %776 = vmatprep.subr.bf16.mxu0 0
    %777 = vmatpush1.bf16.msra.mxu0 0
    %778 = vmatprep.subr.bf16.mxu0 0
    %779 = vmatpush1.bf16.msra.mxu0 0
    %780 = vmatprep.subr.bf16.mxu0 0
    %781 = vmatpush1.bf16.msra.mxu0 0
    %782 = vmatprep.subr.bf16.mxu0 0
    %783 = vmatpush1.bf16.msra.mxu0 0
    %784 = vmatprep.subr.bf16.mxu0 0
    %785 = vmatpush1.bf16.msra.mxu0 0
    %786 = vmatprep.mubr.bf16.mxu0 0
    %787 = vmatmul.mubr.bf16.gmra.mrb[0].mxu0 %v752
    %v788 = vpop.f32.mrb[0].mxu0
    %v789 = vadd.f32 0.0, %v788
    %v790 = vpop.f32.mrb[0].mxu0
    %v791 = vpop.f32.mrb[0].mxu0
    %v792 = vadd.f32 0.0, %v791
    %v793 = vpop.f32.mrb[0].mxu0
    %794 = vdwg.mxu0
    %797 = vrot.lane.b32.xlu0 %v789, 64
    %v798 = vpop.permute.xlu0 %797
    %799 = vrot.lane.b32.xlu0 %v792, 64
    %v800 = vpop.permute.xlu0 %799
    %vm803 = vcmask 785920
    %804 = vst.msk [vmem:[#allocation2] sm:$0xff] %vm803, %v798
    %805 = vst.msk [vmem:[#allocation2 + $0x8] sm:$0xff] %vm803, %v800
    %806 = vrot.lane.b32.xlu0 %v406, 32
    %v807 = vpop.permute.xlu0 %806
    %808 = vrot.lane.b32.xlu0 %v407, 32
    %v809 = vpop.permute.xlu0 %808
    %v811 = vsel %vm409, %v807, 0
    %v814 = vsel %vm409, %v809, 0
    %816 = vmatprep.subr.bf16.mxu0 0
    %817 = vmatpush1.bf16.xpose.msra.mxu0 %v814
    %818 = vmatprep.subr.bf16.mxu0 0
    %819 = vmatpush1.bf16.xpose.msra.mxu0 0
    %820 = vmatprep.subr.bf16.mxu0 0
    %821 = vmatpush1.bf16.xpose.msra.mxu0 0
    %822 = vmatprep.subr.bf16.mxu0 0
    %823 = vmatpush1.bf16.xpose.msra.mxu0 0
    %824 = vmatprep.subr.bf16.mxu0 0
    %825 = vmatpush1.bf16.xpose.msra.mxu0 0
    %826 = vmatprep.subr.bf16.mxu0 0
    %827 = vmatpush1.bf16.xpose.msra.mxu0 0
    %828 = vmatprep.subr.bf16.mxu0 0
    %829 = vmatpush1.bf16.xpose.msra.mxu0 0
    %830 = vmatprep.subr.bf16.mxu0 0
    %831 = vmatpush1.bf16.xpose.msra.mxu0 0
    %832 = vmatprep.subr.bf16.mxu0 0
    %833 = vmatpush1.bf16.xpose.msra.mxu0 0
    %834 = vmatprep.subr.bf16.mxu0 0
    %835 = vmatpush1.bf16.xpose.msra.mxu0 0
    %836 = vmatprep.subr.bf16.mxu0 0
    %837 = vmatpush1.bf16.xpose.msra.mxu0 0
    %838 = vmatprep.subr.bf16.mxu0 0
    %839 = vmatpush1.bf16.xpose.msra.mxu0 0
    %840 = vmatprep.subr.bf16.mxu0 0
    %841 = vmatpush1.bf16.xpose.msra.mxu0 0
    %842 = vmatprep.subr.bf16.mxu0 0
    %843 = vmatpush1.bf16.xpose.msra.mxu0 0
    %844 = vmatprep.subr.bf16.mxu0 0
    %845 = vmatpush1.bf16.xpose.msra.mxu0 0
    %846 = vmatprep.subr.bf16.mxu0 0
    %847 = vmatpush1.bf16.xpose.msra.mxu0 0
    %848 = vmatprep.mubr.bf16.mxu0 0
    %849 = vmatmul.mubr.bf16.gmra.mrb[0].mxu0 %v811
    %v850 = vpop.f32.mrb[0].mxu0
    %v851 = vadd.f32 0.0, %v850
    %v852 = vpop.f32.mrb[0].mxu0
    %v853 = vpop.f32.mrb[0].mxu0
    %v854 = vadd.f32 0.0, %v853
    %v855 = vpop.f32.mrb[0].mxu0
    %856 = vdwg.mxu0
    %v857 = vmul.f32 %v851, 0.17677669
    %v858 = vmul.f32 %v854, 0.17677669
    %v859 = vsel %vm404, %v857, -1e+30
    %v860 = vsel %vm405, %v858, -1e+30
    %v861 = vsel %vm461, %v859, -inf
    %862 = vmax.xlane.f32.xlu0 %v861
    %v863 = vpop.xlane.xlu0 %862
    %v864 = vsel %vm461, %v860, -inf
    %865 = vmax.xlane.f32.xlu0 %v864
    %v866 = vpop.xlane.xlu0 %865
    %v867 = vsub.f32 %v859, %v863
    %v868 = vsub.f32 %v860, %v866
    %v869 = vmul.f32 %v867, 1.442695
    %v870 = vpow.pop %v869
    %v871 = vmul.f32 %v868, 1.442695
    %v872 = vpow.pop %v871
    %v873 = vsel %vm461, %v870, 0.0
    %874 = vadd.xlane.f32.xlu0 %v873
    %v875 = vpop.xlane.xlu0 %874
    %v876 = vsel %vm461, %v872, 0.0
    %877 = vadd.xlane.f32.xlu0 %v876
    %v878 = vpop.xlane.xlu0 %877
    %v879 = vrcp.pop %v875
    %v880 = vrcp.pop %v878
    %v881 = vmul.f32 %v870, %v879
    %v882 = vmul.f32 %v872, %v880
    %v883 = vpack.c.bf16 %v882, %v881
    %884 = vrot.lane.b32.xlu0 %v408, 32
    %v885 = vpop.permute.xlu0 %884
    %v888 = vsel %vm461, %v883, 0
    %890 = vmatprep.subr.bf16.mxu0 0
    %891 = vmatpush1.bf16.msra.mxu0 %v885
    %892 = vmatprep.subr.bf16.mxu0 0
    %893 = vmatpush1.bf16.msra.mxu0 0
    %894 = vmatprep.subr.bf16.mxu0 0
    %895 = vmatpush1.bf16.msra.mxu0 0
    %896 = vmatprep.subr.bf16.mxu0 0
    %897 = vmatpush1.bf16.msra.mxu0 0
    %898 = vmatprep.subr.bf16.mxu0 0
    %899 = vmatpush1.bf16.msra.mxu0 0
    %900 = vmatprep.subr.bf16.mxu0 0
    %901 = vmatpush1.bf16.msra.mxu0 0
    %902 = vmatprep.subr.bf16.mxu0 0
    %903 = vmatpush1.bf16.msra.mxu0 0
    %904 = vmatprep.subr.bf16.mxu0 0
    %905 = vmatpush1.bf16.msra.mxu0 0
    %906 = vmatprep.subr.bf16.mxu0 0
    %907 = vmatpush1.bf16.msra.mxu0 0
    %908 = vmatprep.subr.bf16.mxu0 0
    %909 = vmatpush1.bf16.msra.mxu0 0
    %910 = vmatprep.subr.bf16.mxu0 0
    %911 = vmatpush1.bf16.msra.mxu0 0
    %912 = vmatprep.subr.bf16.mxu0 0
    %913 = vmatpush1.bf16.msra.mxu0 0
    %914 = vmatprep.subr.bf16.mxu0 0
    %915 = vmatpush1.bf16.msra.mxu0 0
    %916 = vmatprep.subr.bf16.mxu0 0
    %917 = vmatpush1.bf16.msra.mxu0 0
    %918 = vmatprep.subr.bf16.mxu0 0
    %919 = vmatpush1.bf16.msra.mxu0 0
    %920 = vmatprep.subr.bf16.mxu0 0
    %921 = vmatpush1.bf16.msra.mxu0 0
    %922 = vmatprep.mubr.bf16.mxu0 0
    %923 = vmatmul.mubr.bf16.gmra.mrb[0].mxu0 %v888
    %v924 = vpop.f32.mrb[0].mxu0
    %v925 = vadd.f32 0.0, %v924
    %v926 = vpop.f32.mrb[0].mxu0
    %v927 = vpop.f32.mrb[0].mxu0
    %v928 = vadd.f32 0.0, %v927
    %v929 = vpop.f32.mrb[0].mxu0
    %930 = vdwg.mxu0
    %933 = vrot.lane.b32.xlu0 %v925, 96
    %v934 = vpop.permute.xlu0 %933
    %935 = vrot.lane.b32.xlu0 %v928, 96
    %v936 = vpop.permute.xlu0 %935
    %vm939 = vcmask 1048320
    %940 = vst.msk [vmem:[#allocation2] sm:$0xff] %vm939, %v934
    %941 = vst.msk [vmem:[#allocation2 + $0x8] sm:$0xff] %vm939, %v936
    %v942 = vpack.c.bf16 %v346, %v342
    %v943 = vpack.c.bf16 %v348, %v344
    %v944 = vpack.c.bf16 %v396, %v393
    %v946 = vsel %vm409, %v942, 0
    %v949 = vsel %vm409, %v943, 0
    %951 = vmatprep.subr.bf16.mxu0 0
    %952 = vmatpush1.bf16.xpose.msra.mxu0 %v949
    %953 = vmatprep.subr.bf16.mxu0 0
    %954 = vmatpush1.bf16.xpose.msra.mxu0 0
    %955 = vmatprep.subr.bf16.mxu0 0
    %956 = vmatpush1.bf16.xpose.msra.mxu0 0
    %957 = vmatprep.subr.bf16.mxu0 0
    %958 = vmatpush1.bf16.xpose.msra.mxu0 0
    %959 = vmatprep.subr.bf16.mxu0 0
    %960 = vmatpush1.bf16.xpose.msra.mxu0 0
    %961 = vmatprep.subr.bf16.mxu0 0
    %962 = vmatpush1.bf16.xpose.msra.mxu0 0
    %963 = vmatprep.subr.bf16.mxu0 0
    %964 = vmatpush1.bf16.xpose.msra.mxu0 0
    %965 = vmatprep.subr.bf16.mxu0 0
    %966 = vmatpush1.bf16.xpose.msra.mxu0 0
    %967 = vmatprep.subr.bf16.mxu0 0
    %968 = vmatpush1.bf16.xpose.msra.mxu0 0
    %969 = vmatprep.subr.bf16.mxu0 0
    %970 = vmatpush1.bf16.xpose.msra.mxu0 0
    %971 = vmatprep.subr.bf16.mxu0 0
    %972 = vmatpush1.bf16.xpose.msra.mxu0 0
    %973 = vmatprep.subr.bf16.mxu0 0
    %974 = vmatpush1.bf16.xpose.msra.mxu0 0
    %975 = vmatprep.subr.bf16.mxu0 0
    %976 = vmatpush1.bf16.xpose.msra.mxu0 0
    %977 = vmatprep.subr.bf16.mxu0 0
    %978 = vmatpush1.bf16.xpose.msra.mxu0 0
    %979 = vmatprep.subr.bf16.mxu0 0
    %980 = vmatpush1.bf16.xpose.msra.mxu0 0
    %981 = vmatprep.subr.bf16.mxu0 0
    %982 = vmatpush1.bf16.xpose.msra.mxu0 0
    %983 = vmatprep.mubr.bf16.mxu0 0
    %984 = vmatmul.mubr.bf16.gmra.mrb[0].mxu0 %v946
    %v985 = vpop.f32.mrb[0].mxu0
    %v986 = vadd.f32 0.0, %v985
    %v987 = vpop.f32.mrb[0].mxu0
    %v988 = vpop.f32.mrb[0].mxu0
    %v989 = vadd.f32 0.0, %v988
    %v990 = vpop.f32.mrb[0].mxu0
    %991 = vdwg.mxu0
    %v992 = vmul.f32 %v986, 0.17677669
    %v993 = vmul.f32 %v989, 0.17677669
    %v994 = vsel %vm404, %v992, -1e+30
    %v995 = vsel %vm405, %v993, -1e+30
    %v996 = vsel %vm461, %v994, -inf
    %997 = vmax.xlane.f32.xlu0 %v996
    %v998 = vpop.xlane.xlu0 %997
    %v999 = vsel %vm461, %v995, -inf
    %1000 = vmax.xlane.f32.xlu0 %v999
    %v1001 = vpop.xlane.xlu0 %1000
    %v1002 = vsub.f32 %v994, %v998
    %v1003 = vsub.f32 %v995, %v1001
    %v1004 = vmul.f32 %v1002, 1.442695
    %v1005 = vpow.pop %v1004
    %v1006 = vmul.f32 %v1003, 1.442695
    %v1007 = vpow.pop %v1006
    %v1008 = vsel %vm461, %v1005, 0.0
    %1009 = vadd.xlane.f32.xlu0 %v1008
    %v1010 = vpop.xlane.xlu0 %1009
    %v1011 = vsel %vm461, %v1007, 0.0
    %1012 = vadd.xlane.f32.xlu0 %v1011
    %v1013 = vpop.xlane.xlu0 %1012
    %v1014 = vrcp.pop %v1010
    %v1015 = vrcp.pop %v1013
    %v1016 = vmul.f32 %v1005, %v1014
    %v1017 = vmul.f32 %v1007, %v1015
    %v1018 = vpack.c.bf16 %v1017, %v1016
    %v1020 = vsel %vm461, %v1018, 0
    %1022 = vmatprep.subr.bf16.mxu0 0
    %1023 = vmatpush1.bf16.msra.mxu0 %v944
    %1024 = vmatprep.subr.bf16.mxu0 0
    %1025 = vmatpush1.bf16.msra.mxu0 0
    %1026 = vmatprep.subr.bf16.mxu0 0
    %1027 = vmatpush1.bf16.msra.mxu0 0
    %1028 = vmatprep.subr.bf16.mxu0 0
    %1029 = vmatpush1.bf16.msra.mxu0 0
    %1030 = vmatprep.subr.bf16.mxu0 0
    %1031 = vmatpush1.bf16.msra.mxu0 0
    %1032 = vmatprep.subr.bf16.mxu0 0
    %1033 = vmatpush1.bf16.msra.mxu0 0
    %1034 = vmatprep.subr.bf16.mxu0 0
    %1035 = vmatpush1.bf16.msra.mxu0 0
    %1036 = vmatprep.subr.bf16.mxu0 0
    %1037 = vmatpush1.bf16.msra.mxu0 0
    %1038 = vmatprep.subr.bf16.mxu0 0
    %1039 = vmatpush1.bf16.msra.mxu0 0
    %1040 = vmatprep.subr.bf16.mxu0 0
    %1041 = vmatpush1.bf16.msra.mxu0 0
    %1042 = vmatprep.subr.bf16.mxu0 0
    %1043 = vmatpush1.bf16.msra.mxu0 0
    %1044 = vmatprep.subr.bf16.mxu0 0
    %1045 = vmatpush1.bf16.msra.mxu0 0
    %1046 = vmatprep.subr.bf16.mxu0 0
    %1047 = vmatpush1.bf16.msra.mxu0 0
    %1048 = vmatprep.subr.bf16.mxu0 0
    %1049 = vmatpush1.bf16.msra.mxu0 0
    %1050 = vmatprep.subr.bf16.mxu0 0
    %1051 = vmatpush1.bf16.msra.mxu0 0
    %1052 = vmatprep.subr.bf16.mxu0 0
    %1053 = vmatpush1.bf16.msra.mxu0 0
    %1054 = vmatprep.mubr.bf16.mxu0 0
    %1055 = vmatmul.mubr.bf16.gmra.mrb[0].mxu0 %v1020
    %v1056 = vpop.f32.mrb[0].mxu0
    %v1057 = vadd.f32 0.0, %v1056
    %v1058 = vpop.f32.mrb[0].mxu0
    %v1059 = vpop.f32.mrb[0].mxu0
    %v1060 = vadd.f32 0.0, %v1059
    %v1061 = vpop.f32.mrb[0].mxu0
    %1062 = vdwg.mxu0
    %1063 = vst.msk [vmem:[#allocation2 + $0x10] sm:$0xff] %vm409, %v1057
    %1064 = vst.msk [vmem:[#allocation2 + $0x18] sm:$0xff] %vm409, %v1060
    %1066 = vrot.lane.b32.xlu0 %v942, 96
    %v1067 = vpop.permute.xlu0 %1066
    %1069 = vrot.lane.b32.xlu0 %v943, 96
    %v1070 = vpop.permute.xlu0 %1069
    %v1072 = vsel %vm409, %v1067, 0
    %v1075 = vsel %vm409, %v1070, 0
    %1077 = vmatprep.subr.bf16.mxu0 0
    %1078 = vmatpush1.bf16.xpose.msra.mxu0 %v1075
    %1079 = vmatprep.subr.bf16.mxu0 0
    %1080 = vmatpush1.bf16.xpose.msra.mxu0 0
    %1081 = vmatprep.subr.bf16.mxu0 0
    %1082 = vmatpush1.bf16.xpose.msra.mxu0 0
    %1083 = vmatprep.subr.bf16.mxu0 0
    %1084 = vmatpush1.bf16.xpose.msra.mxu0 0
    %1085 = vmatprep.subr.bf16.mxu0 0
    %1086 = vmatpush1.bf16.xpose.msra.mxu0 0
    %1087 = vmatprep.subr.bf16.mxu0 0
    %1088 = vmatpush1.bf16.xpose.msra.mxu0 0
    %1089 = vmatprep.subr.bf16.mxu0 0
    %1090 = vmatpush1.bf16.xpose.msra.mxu0 0
    %1091 = vmatprep.subr.bf16.mxu0 0
    %1092 = vmatpush1.bf16.xpose.msra.mxu0 0
    %1093 = vmatprep.subr.bf16.mxu0 0
    %1094 = vmatpush1.bf16.xpose.msra.mxu0 0
    %1095 = vmatprep.subr.bf16.mxu0 0
    %1096 = vmatpush1.bf16.xpose.msra.mxu0 0
    %1097 = vmatprep.subr.bf16.mxu0 0
    %1098 = vmatpush1.bf16.xpose.msra.mxu0 0
    %1099 = vmatprep.subr.bf16.mxu0 0
    %1100 = vmatpush1.bf16.xpose.msra.mxu0 0
    %1101 = vmatprep.subr.bf16.mxu0 0
    %1102 = vmatpush1.bf16.xpose.msra.mxu0 0
    %1103 = vmatprep.subr.bf16.mxu0 0
    %1104 = vmatpush1.bf16.xpose.msra.mxu0 0
    %1105 = vmatprep.subr.bf16.mxu0 0
    %1106 = vmatpush1.bf16.xpose.msra.mxu0 0
    %1107 = vmatprep.subr.bf16.mxu0 0
    %1108 = vmatpush1.bf16.xpose.msra.mxu0 0
    %1109 = vmatprep.mubr.bf16.mxu0 0
    %1110 = vmatmul.mubr.bf16.gmra.mrb[0].mxu0 %v1072
    %v1111 = vpop.f32.mrb[0].mxu0
    %v1112 = vadd.f32 0.0, %v1111
    %v1113 = vpop.f32.mrb[0].mxu0
    %v1114 = vpop.f32.mrb[0].mxu0
    %v1115 = vadd.f32 0.0, %v1114
    %v1116 = vpop.f32.mrb[0].mxu0
    %1117 = vdwg.mxu0
    %v1118 = vmul.f32 %v1112, 0.17677669
    %v1119 = vmul.f32 %v1115, 0.17677669
    %v1120 = vsel %vm404, %v1118, -1e+30
    %v1121 = vsel %vm405, %v1119, -1e+30
    %v1122 = vsel %vm461, %v1120, -inf
    %1123 = vmax.xlane.f32.xlu0 %v1122
    %v1124 = vpop.xlane.xlu0 %1123
    %v1125 = vsel %vm461, %v1121, -inf
    %1126 = vmax.xlane.f32.xlu0 %v1125
    %v1127 = vpop.xlane.xlu0 %1126
    %v1128 = vsub.f32 %v1120, %v1124
    %v1129 = vsub.f32 %v1121, %v1127
    %v1130 = vmul.f32 %v1128, 1.442695
    %v1131 = vpow.pop %v1130
    %v1132 = vmul.f32 %v1129, 1.442695
    %v1133 = vpow.pop %v1132
    %v1134 = vsel %vm461, %v1131, 0.0
    %1135 = vadd.xlane.f32.xlu0 %v1134
    %v1136 = vpop.xlane.xlu0 %1135
    %v1137 = vsel %vm461, %v1133, 0.0
    %1138 = vadd.xlane.f32.xlu0 %v1137
    %v1139 = vpop.xlane.xlu0 %1138
    %v1140 = vrcp.pop %v1136
    %v1141 = vrcp.pop %v1139
    %v1142 = vmul.f32 %v1131, %v1140
    %v1143 = vmul.f32 %v1133, %v1141
    %v1144 = vpack.c.bf16 %v1143, %v1142
    %1146 = vrot.lane.b32.xlu0 %v944, 96
    %v1147 = vpop.permute.xlu0 %1146
    %v1150 = vsel %vm461, %v1144, 0
    %1152 = vmatprep.subr.bf16.mxu0 0
    %1153 = vmatpush1.bf16.msra.mxu0 %v1147
    %1154 = vmatprep.subr.bf16.mxu0 0
    %1155 = vmatpush1.bf16.msra.mxu0 0
    %1156 = vmatprep.subr.bf16.mxu0 0
    %1157 = vmatpush1.bf16.msra.mxu0 0
    %1158 = vmatprep.subr.bf16.mxu0 0
    %1159 = vmatpush1.bf16.msra.mxu0 0
    %1160 = vmatprep.subr.bf16.mxu0 0
    %1161 = vmatpush1.bf16.msra.mxu0 0
    %1162 = vmatprep.subr.bf16.mxu0 0
    %1163 = vmatpush1.bf16.msra.mxu0 0
    %1164 = vmatprep.subr.bf16.mxu0 0
    %1165 = vmatpush1.bf16.msra.mxu0 0
    %1166 = vmatprep.subr.bf16.mxu0 0
    %1167 = vmatpush1.bf16.msra.mxu0 0
    %1168 = vmatprep.subr.bf16.mxu0 0
    %1169 = vmatpush1.bf16.msra.mxu0 0
    %1170 = vmatprep.subr.bf16.mxu0 0
    %1171 = vmatpush1.bf16.msra.mxu0 0
    %1172 = vmatprep.subr.bf16.mxu0 0
    %1173 = vmatpush1.bf16.msra.mxu0 0
    %1174 = vmatprep.subr.bf16.mxu0 0
    %1175 = vmatpush1.bf16.msra.mxu0 0
    %1176 = vmatprep.subr.bf16.mxu0 0
    %1177 = vmatpush1.bf16.msra.mxu0 0
    %1178 = vmatprep.subr.bf16.mxu0 0
    %1179 = vmatpush1.bf16.msra.mxu0 0
    %1180 = vmatprep.subr.bf16.mxu0 0
    %1181 = vmatpush1.bf16.msra.mxu0 0
    %1182 = vmatprep.subr.bf16.mxu0 0
    %1183 = vmatpush1.bf16.msra.mxu0 0
    %1184 = vmatprep.mubr.bf16.mxu0 0
    %1185 = vmatmul.mubr.bf16.gmra.mrb[0].mxu0 %v1150
    %v1186 = vpop.f32.mrb[0].mxu0
    %v1187 = vadd.f32 0.0, %v1186
    %v1188 = vpop.f32.mrb[0].mxu0
    %v1189 = vpop.f32.mrb[0].mxu0
    %v1190 = vadd.f32 0.0, %v1189
    %v1191 = vpop.f32.mrb[0].mxu0
    %1192 = vdwg.mxu0
    %1195 = vrot.lane.b32.xlu0 %v1187, 32
    %v1196 = vpop.permute.xlu0 %1195
    %1197 = vrot.lane.b32.xlu0 %v1190, 32
    %v1198 = vpop.permute.xlu0 %1197
    %1201 = vst.msk [vmem:[#allocation2 + $0x10] sm:$0xff] %vm667, %v1196
    %1202 = vst.msk [vmem:[#allocation2 + $0x18] sm:$0xff] %vm667, %v1198
    %1203 = vrot.lane.b32.xlu0 %v942, 64
    %v1204 = vpop.permute.xlu0 %1203
    %1205 = vrot.lane.b32.xlu0 %v943, 64
    %v1206 = vpop.permute.xlu0 %1205
    %v1208 = vsel %vm409, %v1204, 0
    %v1211 = vsel %vm409, %v1206, 0
    %1213 = vmatprep.subr.bf16.mxu0 0
    %1214 = vmatpush1.bf16.xpose.msra.mxu0 %v1211
    %1215 = vmatprep.subr.bf16.mxu0 0
    %1216 = vmatpush1.bf16.xpose.msra.mxu0 0
    %1217 = vmatprep.subr.bf16.mxu0 0
    %1218 = vmatpush1.bf16.xpose.msra.mxu0 0
    %1219 = vmatprep.subr.bf16.mxu0 0
    %1220 = vmatpush1.bf16.xpose.msra.mxu0 0
    %1221 = vmatprep.subr.bf16.mxu0 0
    %1222 = vmatpush1.bf16.xpose.msra.mxu0 0
    %1223 = vmatprep.subr.bf16.mxu0 0
    %1224 = vmatpush1.bf16.xpose.msra.mxu0 0
    %1225 = vmatprep.subr.bf16.mxu0 0
    %1226 = vmatpush1.bf16.xpose.msra.mxu0 0
    %1227 = vmatprep.subr.bf16.mxu0 0
    %1228 = vmatpush1.bf16.xpose.msra.mxu0 0
    %1229 = vmatprep.subr.bf16.mxu0 0
    %1230 = vmatpush1.bf16.xpose.msra.mxu0 0
    %1231 = vmatprep.subr.bf16.mxu0 0
    %1232 = vmatpush1.bf16.xpose.msra.mxu0 0
    %1233 = vmatprep.subr.bf16.mxu0 0
    %1234 = vmatpush1.bf16.xpose.msra.mxu0 0
    %1235 = vmatprep.subr.bf16.mxu0 0
    %1236 = vmatpush1.bf16.xpose.msra.mxu0 0
    %1237 = vmatprep.subr.bf16.mxu0 0
    %1238 = vmatpush1.bf16.xpose.msra.mxu0 0
    %1239 = vmatprep.subr.bf16.mxu0 0
    %1240 = vmatpush1.bf16.xpose.msra.mxu0 0
    %1241 = vmatprep.subr.bf16.mxu0 0
    %1242 = vmatpush1.bf16.xpose.msra.mxu0 0
    %1243 = vmatprep.subr.bf16.mxu0 0
    %1244 = vmatpush1.bf16.xpose.msra.mxu0 0
    %1245 = vmatprep.mubr.bf16.mxu0 0
    %1246 = vmatmul.mubr.bf16.gmra.mrb[0].mxu0 %v1208
    %v1247 = vpop.f32.mrb[0].mxu0
    %v1248 = vadd.f32 0.0, %v1247
    %v1249 = vpop.f32.mrb[0].mxu0
    %v1250 = vpop.f32.mrb[0].mxu0
    %v1251 = vadd.f32 0.0, %v1250
    %v1252 = vpop.f32.mrb[0].mxu0
    %1253 = vdwg.mxu0
    %v1254 = vmul.f32 %v1248, 0.17677669
    %v1255 = vmul.f32 %v1251, 0.17677669
    %v1256 = vsel %vm404, %v1254, -1e+30
    %v1257 = vsel %vm405, %v1255, -1e+30
    %v1258 = vsel %vm461, %v1256, -inf
    %1259 = vmax.xlane.f32.xlu0 %v1258
    %v1260 = vpop.xlane.xlu0 %1259
    %v1261 = vsel %vm461, %v1257, -inf
    %1262 = vmax.xlane.f32.xlu0 %v1261
    %v1263 = vpop.xlane.xlu0 %1262
    %v1264 = vsub.f32 %v1256, %v1260
    %v1265 = vsub.f32 %v1257, %v1263
    %v1266 = vmul.f32 %v1264, 1.442695
    %v1267 = vpow.pop %v1266
    %v1268 = vmul.f32 %v1265, 1.442695
    %v1269 = vpow.pop %v1268
    %v1270 = vsel %vm461, %v1267, 0.0
    %1271 = vadd.xlane.f32.xlu0 %v1270
    %v1272 = vpop.xlane.xlu0 %1271
    %v1273 = vsel %vm461, %v1269, 0.0
    %1274 = vadd.xlane.f32.xlu0 %v1273
    %v1275 = vpop.xlane.xlu0 %1274
    %v1276 = vrcp.pop %v1272
    %v1277 = vrcp.pop %v1275
    %v1278 = vmul.f32 %v1267, %v1276
    %v1279 = vmul.f32 %v1269, %v1277
    %v1280 = vpack.c.bf16 %v1279, %v1278
    %1281 = vrot.lane.b32.xlu0 %v944, 64
    %v1282 = vpop.permute.xlu0 %1281
    %v1285 = vsel %vm461, %v1280, 0
    %1287 = vmatprep.subr.bf16.mxu0 0
    %1288 = vmatpush1.bf16.msra.mxu0 %v1282
    %1289 = vmatprep.subr.bf16.mxu0 0
    %1290 = vmatpush1.bf16.msra.mxu0 0
    %1291 = vmatprep.subr.bf16.mxu0 0
    %1292 = vmatpush1.bf16.msra.mxu0 0
    %1293 = vmatprep.subr.bf16.mxu0 0
    %1294 = vmatpush1.bf16.msra.mxu0 0
    %1295 = vmatprep.subr.bf16.mxu0 0
    %1296 = vmatpush1.bf16.msra.mxu0 0
    %1297 = vmatprep.subr.bf16.mxu0 0
    %1298 = vmatpush1.bf16.msra.mxu0 0
    %1299 = vmatprep.subr.bf16.mxu0 0
    %1300 = vmatpush1.bf16.msra.mxu0 0
    %1301 = vmatprep.subr.bf16.mxu0 0
    %1302 = vmatpush1.bf16.msra.mxu0 0
    %1303 = vmatprep.subr.bf16.mxu0 0
    %1304 = vmatpush1.bf16.msra.mxu0 0
    %1305 = vmatprep.subr.bf16.mxu0 0
    %1306 = vmatpush1.bf16.msra.mxu0 0
    %1307 = vmatprep.subr.bf16.mxu0 0
    %1308 = vmatpush1.bf16.msra.mxu0 0
    %1309 = vmatprep.subr.bf16.mxu0 0
    %1310 = vmatpush1.bf16.msra.mxu0 0
    %1311 = vmatprep.subr.bf16.mxu0 0
    %1312 = vmatpush1.bf16.msra.mxu0 0
    %1313 = vmatprep.subr.bf16.mxu0 0
    %1314 = vmatpush1.bf16.msra.mxu0 0
    %1315 = vmatprep.subr.bf16.mxu0 0
    %1316 = vmatpush1.bf16.msra.mxu0 0
    %1317 = vmatprep.subr.bf16.mxu0 0
    %1318 = vmatpush1.bf16.msra.mxu0 0
    %1319 = vmatprep.mubr.bf16.mxu0 0
    %1320 = vmatmul.mubr.bf16.gmra.mrb[0].mxu0 %v1285
    %v1321 = vpop.f32.mrb[0].mxu0
    %v1322 = vadd.f32 0.0, %v1321
    %v1323 = vpop.f32.mrb[0].mxu0
    %v1324 = vpop.f32.mrb[0].mxu0
    %v1325 = vadd.f32 0.0, %v1324
    %v1326 = vpop.f32.mrb[0].mxu0
    %1327 = vdwg.mxu0
    %1330 = vrot.lane.b32.xlu0 %v1322, 64
    %v1331 = vpop.permute.xlu0 %1330
    %1332 = vrot.lane.b32.xlu0 %v1325, 64
    %v1333 = vpop.permute.xlu0 %1332
    %1336 = vst.msk [vmem:[#allocation2 + $0x10] sm:$0xff] %vm803, %v1331
    %1337 = vst.msk [vmem:[#allocation2 + $0x18] sm:$0xff] %vm803, %v1333
    %1338 = vrot.lane.b32.xlu0 %v942, 32
    %v1339 = vpop.permute.xlu0 %1338
    %1340 = vrot.lane.b32.xlu0 %v943, 32
    %v1341 = vpop.permute.xlu0 %1340
    %v1343 = vsel %vm409, %v1339, 0
    %v1346 = vsel %vm409, %v1341, 0
    %1348 = vmatprep.subr.bf16.mxu0 0
    %1349 = vmatpush1.bf16.xpose.msra.mxu0 %v1346
    %1350 = vmatprep.subr.bf16.mxu0 0
    %1351 = vmatpush1.bf16.xpose.msra.mxu0 0
    %1352 = vmatprep.subr.bf16.mxu0 0
    %1353 = vmatpush1.bf16.xpose.msra.mxu0 0
    %1354 = vmatprep.subr.bf16.mxu0 0
    %1355 = vmatpush1.bf16.xpose.msra.mxu0 0
    %1356 = vmatprep.subr.bf16.mxu0 0
    %1357 = vmatpush1.bf16.xpose.msra.mxu0 0
    %1358 = vmatprep.subr.bf16.mxu0 0
    %1359 = vmatpush1.bf16.xpose.msra.mxu0 0
    %1360 = vmatprep.subr.bf16.mxu0 0
    %1361 = vmatpush1.bf16.xpose.msra.mxu0 0
    %1362 = vmatprep.subr.bf16.mxu0 0
    %1363 = vmatpush1.bf16.xpose.msra.mxu0 0
    %1364 = vmatprep.subr.bf16.mxu0 0
    %1365 = vmatpush1.bf16.xpose.msra.mxu0 0
    %1366 = vmatprep.subr.bf16.mxu0 0
    %1367 = vmatpush1.bf16.xpose.msra.mxu0 0
    %1368 = vmatprep.subr.bf16.mxu0 0
    %1369 = vmatpush1.bf16.xpose.msra.mxu0 0
    %1370 = vmatprep.subr.bf16.mxu0 0
    %1371 = vmatpush1.bf16.xpose.msra.mxu0 0
    %1372 = vmatprep.subr.bf16.mxu0 0
    %1373 = vmatpush1.bf16.xpose.msra.mxu0 0
    %1374 = vmatprep.subr.bf16.mxu0 0
    %1375 = vmatpush1.bf16.xpose.msra.mxu0 0
    %1376 = vmatprep.subr.bf16.mxu0 0
    %1377 = vmatpush1.bf16.xpose.msra.mxu0 0
    %1378 = vmatprep.subr.bf16.mxu0 0
    %1379 = vmatpush1.bf16.xpose.msra.mxu0 0
    %1380 = vmatprep.mubr.bf16.mxu0 0
    %1381 = vmatmul.mubr.bf16.gmra.mrb[0].mxu0 %v1343
    %v1382 = vpop.f32.mrb[0].mxu0
    %v1383 = vadd.f32 0.0, %v1382
    %v1384 = vpop.f32.mrb[0].mxu0
    %v1385 = vpop.f32.mrb[0].mxu0
    %v1386 = vadd.f32 0.0, %v1385
    %v1387 = vpop.f32.mrb[0].mxu0
    %1388 = vdwg.mxu0
    %v1389 = vmul.f32 %v1383, 0.17677669
    %v1390 = vmul.f32 %v1386, 0.17677669
    %v1391 = vsel %vm404, %v1389, -1e+30
    %v1392 = vsel %vm405, %v1390, -1e+30
    %v1393 = vsel %vm461, %v1391, -inf
    %1394 = vmax.xlane.f32.xlu0 %v1393
    %v1395 = vpop.xlane.xlu0 %1394
    %v1396 = vsel %vm461, %v1392, -inf
    %1397 = vmax.xlane.f32.xlu0 %v1396
    %v1398 = vpop.xlane.xlu0 %1397
    %v1399 = vsub.f32 %v1391, %v1395
    %v1400 = vsub.f32 %v1392, %v1398
    %v1401 = vmul.f32 %v1399, 1.442695
    %v1402 = vpow.pop %v1401
    %v1403 = vmul.f32 %v1400, 1.442695
    %v1404 = vpow.pop %v1403
    %v1405 = vsel %vm461, %v1402, 0.0
    %1406 = vadd.xlane.f32.xlu0 %v1405
    %v1407 = vpop.xlane.xlu0 %1406
    %v1408 = vsel %vm461, %v1404, 0.0
    %1409 = vadd.xlane.f32.xlu0 %v1408
    %v1410 = vpop.xlane.xlu0 %1409
    %v1411 = vrcp.pop %v1407
    %v1412 = vrcp.pop %v1410
    %v1413 = vmul.f32 %v1402, %v1411
    %v1414 = vmul.f32 %v1404, %v1412
    %v1415 = vpack.c.bf16 %v1414, %v1413
    %1416 = vrot.lane.b32.xlu0 %v944, 32
    %v1417 = vpop.permute.xlu0 %1416
    %v1420 = vsel %vm461, %v1415, 0
    %1422 = vmatprep.subr.bf16.mxu0 0
    %1423 = vmatpush1.bf16.msra.mxu0 %v1417
    %1424 = vmatprep.subr.bf16.mxu0 0
    %1425 = vmatpush1.bf16.msra.mxu0 0
    %1426 = vmatprep.subr.bf16.mxu0 0
    %1427 = vmatpush1.bf16.msra.mxu0 0
    %1428 = vmatprep.subr.bf16.mxu0 0
    %1429 = vmatpush1.bf16.msra.mxu0 0
    %1430 = vmatprep.subr.bf16.mxu0 0
    %1431 = vmatpush1.bf16.msra.mxu0 0
    %1432 = vmatprep.subr.bf16.mxu0 0
    %1433 = vmatpush1.bf16.msra.mxu0 0
    %1434 = vmatprep.subr.bf16.mxu0 0
    %1435 = vmatpush1.bf16.msra.mxu0 0
    %1436 = vmatprep.subr.bf16.mxu0 0
    %1437 = vmatpush1.bf16.msra.mxu0 0
    %1438 = vmatprep.subr.bf16.mxu0 0
    %1439 = vmatpush1.bf16.msra.mxu0 0
    %1440 = vmatprep.subr.bf16.mxu0 0
    %1441 = vmatpush1.bf16.msra.mxu0 0
    %1442 = vmatprep.subr.bf16.mxu0 0
    %1443 = vmatpush1.bf16.msra.mxu0 0
    %1444 = vmatprep.subr.bf16.mxu0 0
    %1445 = vmatpush1.bf16.msra.mxu0 0
    %1446 = vmatprep.subr.bf16.mxu0 0
    %1447 = vmatpush1.bf16.msra.mxu0 0
    %1448 = vmatprep.subr.bf16.mxu0 0
    %1449 = vmatpush1.bf16.msra.mxu0 0
    %1450 = vmatprep.subr.bf16.mxu0 0
    %1451 = vmatpush1.bf16.msra.mxu0 0
    %1452 = vmatprep.subr.bf16.mxu0 0
    %1453 = vmatpush1.bf16.msra.mxu0 0
    %1454 = vmatprep.mubr.bf16.mxu0 0
    %1455 = vmatmul.mubr.bf16.gmra.mrb[0].mxu0 %v1420
    %v1456 = vpop.f32.mrb[0].mxu0
    %v1457 = vadd.f32 0.0, %v1456
    %v1458 = vpop.f32.mrb[0].mxu0
    %v1459 = vpop.f32.mrb[0].mxu0
    %v1460 = vadd.f32 0.0, %v1459
    %v1461 = vpop.f32.mrb[0].mxu0
    %1462 = vdwg.mxu0
    %1465 = vrot.lane.b32.xlu0 %v1457, 96
    %v1466 = vpop.permute.xlu0 %1465
    %1467 = vrot.lane.b32.xlu0 %v1460, 96
    %v1468 = vpop.permute.xlu0 %1467
    %1471 = vst.msk [vmem:[#allocation2 + $0x10] sm:$0xff] %vm939, %v1466
    %1472 = vst.msk [vmem:[#allocation2 + $0x18] sm:$0xff] %vm939, %v1468
    %v1473 = vld [vmem:[#allocation2] sm:$0xff]
    %v1474 = vld [vmem:[#allocation2 + $0x8] sm:$0xff]
    %v1475 = vld [vmem:[#allocation2 + $0x10] sm:$0xff]
    %v1476 = vld [vmem:[#allocation2 + $0x18] sm:$0xff]
    %v1477 = vpack.c.bf16 %v1474, %v1473
    %v1478 = vpack.c.bf16 %v1476, %v1475
    %v1479 = vld [vmem:[#allocation8] sm:$0xf]
    %v1480 = vld [vmem:[#allocation8 + $0x4] sm:$0xf]
    %v1481 = vld [vmem:[#allocation8 + $0x8] sm:$0xf]
    %v1482 = vld [vmem:[#allocation8 + $0xc] sm:$0xf]
    %v1483 = vld [vmem:[#allocation8 + $0x10] sm:$0xf]
    %v1484 = vld [vmem:[#allocation8 + $0x14] sm:$0xf]
    %v1485 = vld [vmem:[#allocation8 + $0x18] sm:$0xf]
    %v1486 = vld [vmem:[#allocation8 + $0x1c] sm:$0xf]
    %v1487 = vld [vmem:[#allocation8 + $0x20] sm:$0xf]
    %v1488 = vld [vmem:[#allocation8 + $0x24] sm:$0xf]
    %v1489 = vld [vmem:[#allocation8 + $0x28] sm:$0xf]
    %v1490 = vld [vmem:[#allocation8 + $0x2c] sm:$0xf]
    %v1491 = vld [vmem:[#allocation8 + $0x30] sm:$0xf]
    %v1492 = vld [vmem:[#allocation8 + $0x34] sm:$0xf]
    %v1493 = vld [vmem:[#allocation8 + $0x38] sm:$0xf]
    %v1494 = vld [vmem:[#allocation8 + $0x3c] sm:$0xf]
    %v1495 = vld [vmem:[%s4] sm:$0x1]
    %v1497 = vlaneseq
    %v1498 = vshrl.u32 %v1497, 7
    %v1499 = vsub.s32 0, %v1498
    %v1500 = vrot.slane %v1495, %v1499
    %v1518 = vunpack.c.l.b16 %v1479
    %v1519 = vunpack.c.l.b16 %v1480
    %v1520 = vunpack.c.l.b16 %v1481
    %v1521 = vunpack.c.l.b16 %v1482
    %v1522 = vunpack.c.l.b16 %v1483
    %v1523 = vunpack.c.l.b16 %v1484
    %v1524 = vunpack.c.l.b16 %v1485
    %v1525 = vunpack.c.l.b16 %v1486
    %v1526 = vunpack.c.l.b16 %v1487
    %v1527 = vunpack.c.l.b16 %v1488
    %v1528 = vunpack.c.l.b16 %v1489
    %v1529 = vunpack.c.l.b16 %v1490
    %v1530 = vunpack.c.l.b16 %v1491
    %v1531 = vunpack.c.l.b16 %v1492
    %v1532 = vunpack.c.l.b16 %v1493
    %v1533 = vunpack.c.l.b16 %v1494
    %v1534 = vpack.c.b16 %v1519, %v1518
    %v1535 = vpack.c.b16 %v1521, %v1520
    %v1536 = vpack.c.b16 %v1523, %v1522
    %v1537 = vpack.c.b16 %v1525, %v1524
    %v1538 = vpack.c.b16 %v1527, %v1526
    %v1539 = vpack.c.b16 %v1529, %v1528
    %v1540 = vpack.c.b16 %v1531, %v1530
    %v1541 = vpack.c.b16 %v1533, %v1532
    %1550 = vmatprep.subr.bf16.mxu0 0
    %1551 = vmatpush1.bf16.msra.mxu0 %v1534
    %1552 = vmatprep.subr.bf16.mxu0 0
    %1553 = vmatpush1.bf16.msra.mxu0 %v1535
    %1554 = vmatprep.subr.bf16.mxu0 0
    %1555 = vmatpush1.bf16.msra.mxu0 %v1536
    %1556 = vmatprep.subr.bf16.mxu0 0
    %1557 = vmatpush1.bf16.msra.mxu0 %v1537
    %1558 = vmatprep.subr.bf16.mxu0 0
    %1559 = vmatpush1.bf16.msra.mxu0 %v1538
    %1560 = vmatprep.subr.bf16.mxu0 0
    %1561 = vmatpush1.bf16.msra.mxu0 %v1539
    %1562 = vmatprep.subr.bf16.mxu0 0
    %1563 = vmatpush1.bf16.msra.mxu0 %v1540
    %1564 = vmatprep.subr.bf16.mxu0 0
    %1565 = vmatpush1.bf16.msra.mxu0 %v1541
    %1566 = vmatprep.subr.bf16.mxu0 0
    %1567 = vmatpush1.bf16.msra.mxu0 0
    %1568 = vmatprep.subr.bf16.mxu0 0
    %1569 = vmatpush1.bf16.msra.mxu0 0
    %1570 = vmatprep.subr.bf16.mxu0 0
    %1571 = vmatpush1.bf16.msra.mxu0 0
    %1572 = vmatprep.subr.bf16.mxu0 0
    %1573 = vmatpush1.bf16.msra.mxu0 0
    %1574 = vmatprep.subr.bf16.mxu0 0
    %1575 = vmatpush1.bf16.msra.mxu0 0
    %1576 = vmatprep.subr.bf16.mxu0 0
    %1577 = vmatpush1.bf16.msra.mxu0 0
    %1578 = vmatprep.subr.bf16.mxu0 0
    %1579 = vmatpush1.bf16.msra.mxu0 0
    %1580 = vmatprep.subr.bf16.mxu0 0
    %1581 = vmatpush1.bf16.msra.mxu0 0
    %1582 = vmatprep.mubr.bf16.mxu0 0
    %1583 = vmatmul.mubr.bf16.gmra.mrb[0].mxu0 %v1477
    %v1584 = vpop.f32.mrb[0].mxu0
    %v1585 = vadd.f32 %v1500, %v1584
    %v1586 = vpop.f32.mrb[0].mxu0
    %v1587 = vpop.f32.mrb[0].mxu0
    %v1588 = vadd.f32 %v1500, %v1587
    %v1589 = vpop.f32.mrb[0].mxu0
    %1590 = vmatprep.mubr.bf16.mxu0 0
    %1591 = vmatmul.mubr.bf16.gmra.mrb[0].mxu0 %v1478
    %v1592 = vpop.f32.mrb[0].mxu0
    %v1593 = vadd.f32 %v1500, %v1592
    %v1594 = vpop.f32.mrb[0].mxu0
    %v1595 = vpop.f32.mrb[0].mxu0
    %v1596 = vadd.f32 %v1500, %v1595
    %v1597 = vpop.f32.mrb[0].mxu0
    %1598 = vdwg.mxu0
    %v1599 = vadd.f32 %v114, %v1585
    %v1600 = vadd.f32 %v115, %v1588
    %v1601 = vadd.f32 %v116, %v1593
    %v1602 = vadd.f32 %v117, %v1596
    %v1603 = vld [vmem:[%s5] sm:$0x1]
    %v1604 = vld [vmem:[%s6] sm:$0x1]
    %1605 = vadd.xlane.f32.xlu0 %v1599
    %v1606 = vpop.xlane.xlu0 %1605
    %1607 = vadd.xlane.f32.xlu0 %v1600
    %v1608 = vpop.xlane.xlu0 %1607
    %1609 = vadd.xlane.f32.xlu0 %v1601
    %v1610 = vpop.xlane.xlu0 %1609
    %1611 = vadd.xlane.f32.xlu0 %v1602
    %v1612 = vpop.xlane.xlu0 %1611
    %v1613 = vrcp.pop 128.0
    %v1614 = vmul.f32 %v1606, %v1613
    %v1615 = vmul.f32 %v1608, %v1613
    %v1616 = vmul.f32 %v1610, %v1613
    %v1617 = vmul.f32 %v1612, %v1613
    %v1618 = vsub.f32 %v1599, %v1614
    %v1619 = vsub.f32 %v1600, %v1615
    %v1620 = vsub.f32 %v1601, %v1616
    %v1621 = vsub.f32 %v1602, %v1617
    %v1622 = vmul.f32 %v1618, %v1618
    %v1623 = vmul.f32 %v1619, %v1619
    %v1624 = vmul.f32 %v1620, %v1620
    %v1625 = vmul.f32 %v1621, %v1621
    %1626 = vadd.xlane.f32.xlu0 %v1622
    %v1627 = vpop.xlane.xlu0 %1626
    %1628 = vadd.xlane.f32.xlu0 %v1623
    %v1629 = vpop.xlane.xlu0 %1628
    %1630 = vadd.xlane.f32.xlu0 %v1624
    %v1631 = vpop.xlane.xlu0 %1630
    %1632 = vadd.xlane.f32.xlu0 %v1625
    %v1633 = vpop.xlane.xlu0 %1632
    %v1634 = vmul.f32 %v1627, %v1613
    %v1635 = vmul.f32 %v1629, %v1613
    %v1636 = vmul.f32 %v1631, %v1613
    %v1637 = vmul.f32 %v1633, %v1613
    %v1638 = vadd.f32 %v1634, 1e-05
    %v1639 = vadd.f32 %v1635, 1e-05
    %v1640 = vadd.f32 %v1636, 1e-05
    %v1641 = vadd.f32 %v1637, 1e-05
    %v1642 = vrsqrt.pop %v1638
    %v1643 = vrsqrt.pop %v1639
    %v1644 = vrsqrt.pop %v1640
    %v1645 = vrsqrt.pop %v1641
    %v1646 = vmul.f32 %v1618, %v1642
    %v1647 = vmul.f32 %v1619, %v1643
    %v1648 = vmul.f32 %v1620, %v1644
    %v1649 = vmul.f32 %v1621, %v1645
    %v1651 = vlaneseq
    %v1652 = vshrl.u32 %v1651, 7
    %v1653 = vsub.s32 0, %v1652
    %v1654 = vrot.slane %v1603, %v1653
    %v1656 = vmul.f32 %v1646, %v1654
    %v1657 = vmul.f32 %v1647, %v1654
    %v1658 = vmul.f32 %v1648, %v1654
    %v1659 = vmul.f32 %v1649, %v1654
    %v1661 = vlaneseq
    %v1662 = vshrl.u32 %v1661, 7
    %v1663 = vsub.s32 0, %v1662
    %v1664 = vrot.slane %v1604, %v1663
    %v1666 = vadd.f32 %v1656, %v1664
    %v1667 = vadd.f32 %v1657, %v1664
    %v1668 = vadd.f32 %v1658, %v1664
    %v1669 = vadd.f32 %v1659, %v1664
    %v1670 = vpack.c.bf16 %v1667, %v1666
    %v1671 = vpack.c.bf16 %v1669, %v1668
    %v1672 = vld [vmem:[#allocation9] sm:$0xff]
    %v1673 = vld [vmem:[#allocation9 + $0x8] sm:$0xff]
    %v1674 = vld [vmem:[#allocation9 + $0x10] sm:$0xff]
    %v1675 = vld [vmem:[#allocation9 + $0x18] sm:$0xff]
    %v1676 = vld [vmem:[#allocation9 + $0x20] sm:$0xff]
    %v1677 = vld [vmem:[#allocation9 + $0x28] sm:$0xff]
    %v1678 = vld [vmem:[#allocation9 + $0x30] sm:$0xff]
    %v1679 = vld [vmem:[#allocation9 + $0x38] sm:$0xff]
    %v1680 = vld [vmem:[#allocation9 + $0x40] sm:$0xff]
    %v1681 = vld [vmem:[#allocation9 + $0x48] sm:$0xff]
    %v1682 = vld [vmem:[#allocation9 + $0x50] sm:$0xff]
    %v1683 = vld [vmem:[#allocation9 + $0x58] sm:$0xff]
    %v1684 = vld [vmem:[#allocation9 + $0x60] sm:$0xff]
    %v1685 = vld [vmem:[#allocation9 + $0x68] sm:$0xff]
    %v1686 = vld [vmem:[#allocation9 + $0x70] sm:$0xff]
    %v1687 = vld [vmem:[#allocation9 + $0x78] sm:$0xff]
    %v1688 = vld [vmem:[#allocation9 + $0x80] sm:$0xff]
    %v1689 = vld [vmem:[#allocation9 + $0x88] sm:$0xff]
    %v1690 = vld [vmem:[#allocation9 + $0x90] sm:$0xff]
    %v1691 = vld [vmem:[#allocation9 + $0x98] sm:$0xff]
    %v1692 = vld [vmem:[#allocation9 + $0xa0] sm:$0xff]
    %v1693 = vld [vmem:[#allocation9 + $0xa8] sm:$0xff]
    %v1694 = vld [vmem:[#allocation9 + $0xb0] sm:$0xff]
    %v1695 = vld [vmem:[#allocation9 + $0xb8] sm:$0xff]
    %v1696 = vld [vmem:[#allocation9 + $0xc0] sm:$0xff]
    %v1697 = vld [vmem:[#allocation9 + $0xc8] sm:$0xff]
    %v1698 = vld [vmem:[#allocation9 + $0xd0] sm:$0xff]
    %v1699 = vld [vmem:[#allocation9 + $0xd8] sm:$0xff]
    %v1700 = vld [vmem:[#allocation9 + $0xe0] sm:$0xff]
    %v1701 = vld [vmem:[#allocation9 + $0xe8] sm:$0xff]
    %v1702 = vld [vmem:[#allocation9 + $0xf0] sm:$0xff]
    %v1703 = vld [vmem:[#allocation9 + $0xf8] sm:$0xff]
    %v1704 = vld [vmem:[%s8] sm:$0xf]
    %v1706 = vlaneseq
    %v1707 = vshrl.u32 %v1706, 7
    %v1708 = vsub.s32 0, %v1707
    %v1709 = vrot.slane %v1704, %v1708
    %v1710 = vlaneseq
    %v1711 = vshrl.u32 %v1710, 7
    %v1712 = vsub.s32 1, %v1711
    %v1713 = vrot.slane %v1704, %v1712
    %v1714 = vlaneseq
    %v1715 = vshrl.u32 %v1714, 7
    %v1716 = vsub.s32 2, %v1715
    %v1717 = vrot.slane %v1704, %v1716
    %v1718 = vlaneseq
    %v1719 = vshrl.u32 %v1718, 7
    %v1720 = vsub.s32 3, %v1719
    %v1721 = vrot.slane %v1704, %v1720
    %v1758 = vunpack.c.l.b16 %v1672
    %v1759 = vunpack.c.h.b16 %v1672
    %v1760 = vunpack.c.l.b16 %v1673
    %v1761 = vunpack.c.h.b16 %v1673
    %v1762 = vunpack.c.l.b16 %v1674
    %v1763 = vunpack.c.h.b16 %v1674
    %v1764 = vunpack.c.l.b16 %v1675
    %v1765 = vunpack.c.h.b16 %v1675
    %v1766 = vunpack.c.l.b16 %v1676
    %v1767 = vunpack.c.h.b16 %v1676
    %v1768 = vunpack.c.l.b16 %v1677
    %v1769 = vunpack.c.h.b16 %v1677
    %v1770 = vunpack.c.l.b16 %v1678
    %v1771 = vunpack.c.h.b16 %v1678
    %v1772 = vunpack.c.l.b16 %v1679
    %v1773 = vunpack.c.h.b16 %v1679
    %v1774 = vunpack.c.l.b16 %v1680
    %v1775 = vunpack.c.h.b16 %v1680
    %v1776 = vunpack.c.l.b16 %v1681
    %v1777 = vunpack.c.h.b16 %v1681
    %v1778 = vunpack.c.l.b16 %v1682
    %v1779 = vunpack.c.h.b16 %v1682
    %v1780 = vunpack.c.l.b16 %v1683
    %v1781 = vunpack.c.h.b16 %v1683
    %v1782 = vunpack.c.l.b16 %v1684
    %v1783 = vunpack.c.h.b16 %v1684
    %v1784 = vunpack.c.l.b16 %v1685
    %v1785 = vunpack.c.h.b16 %v1685
    %v1786 = vunpack.c.l.b16 %v1686
    %v1787 = vunpack.c.h.b16 %v1686
    %v1788 = vunpack.c.l.b16 %v1687
    %v1789 = vunpack.c.h.b16 %v1687
    %v1790 = vunpack.c.l.b16 %v1688
    %v1791 = vunpack.c.h.b16 %v1688
    %v1792 = vunpack.c.l.b16 %v1689
    %v1793 = vunpack.c.h.b16 %v1689
    %v1794 = vunpack.c.l.b16 %v1690
    %v1795 = vunpack.c.h.b16 %v1690
    %v1796 = vunpack.c.l.b16 %v1691
    %v1797 = vunpack.c.h.b16 %v1691
    %v1798 = vunpack.c.l.b16 %v1692
    %v1799 = vunpack.c.h.b16 %v1692
    %v1800 = vunpack.c.l.b16 %v1693
    %v1801 = vunpack.c.h.b16 %v1693
    %v1802 = vunpack.c.l.b16 %v1694
    %v1803 = vunpack.c.h.b16 %v1694
    %v1804 = vunpack.c.l.b16 %v1695
    %v1805 = vunpack.c.h.b16 %v1695
    %v1806 = vunpack.c.l.b16 %v1696
    %v1807 = vunpack.c.h.b16 %v1696
    %v1808 = vunpack.c.l.b16 %v1697
    %v1809 = vunpack.c.h.b16 %v1697
    %v1810 = vunpack.c.l.b16 %v1698
    %v1811 = vunpack.c.h.b16 %v1698
    %v1812 = vunpack.c.l.b16 %v1699
    %v1813 = vunpack.c.h.b16 %v1699
    %v1814 = vunpack.c.l.b16 %v1700
    %v1815 = vunpack.c.h.b16 %v1700
    %v1816 = vunpack.c.l.b16 %v1701
    %v1817 = vunpack.c.h.b16 %v1701
    %v1818 = vunpack.c.l.b16 %v1702
    %v1819 = vunpack.c.h.b16 %v1702
    %v1820 = vunpack.c.l.b16 %v1703
    %v1821 = vunpack.c.h.b16 %v1703
    %v1822 = vpack.c.b16 %v1762, %v1758
    %v1823 = vpack.c.b16 %v1763, %v1759
    %v1824 = vpack.c.b16 %v1764, %v1760
    %v1825 = vpack.c.b16 %v1765, %v1761
    %v1826 = vpack.c.b16 %v1770, %v1766
    %v1827 = vpack.c.b16 %v1771, %v1767
    %v1828 = vpack.c.b16 %v1772, %v1768
    %v1829 = vpack.c.b16 %v1773, %v1769
    %v1830 = vpack.c.b16 %v1778, %v1774
    %v1831 = vpack.c.b16 %v1779, %v1775
    %v1832 = vpack.c.b16 %v1780, %v1776
    %v1833 = vpack.c.b16 %v1781, %v1777
    %v1834 = vpack.c.b16 %v1786, %v1782
    %v1835 = vpack.c.b16 %v1787, %v1783
    %v1836 = vpack.c.b16 %v1788, %v1784
    %v1837 = vpack.c.b16 %v1789, %v1785
    %v1838 = vpack.c.b16 %v1794, %v1790
    %v1839 = vpack.c.b16 %v1795, %v1791
    %v1840 = vpack.c.b16 %v1796, %v1792
    %v1841 = vpack.c.b16 %v1797, %v1793
    %v1842 = vpack.c.b16 %v1802, %v1798
    %v1843 = vpack.c.b16 %v1803, %v1799
    %v1844 = vpack.c.b16 %v1804, %v1800
    %v1845 = vpack.c.b16 %v1805, %v1801
    %v1846 = vpack.c.b16 %v1810, %v1806
    %v1847 = vpack.c.b16 %v1811, %v1807
    %v1848 = vpack.c.b16 %v1812, %v1808
    %v1849 = vpack.c.b16 %v1813, %v1809
    %v1850 = vpack.c.b16 %v1818, %v1814
    %v1851 = vpack.c.b16 %v1819, %v1815
    %v1852 = vpack.c.b16 %v1820, %v1816
    %v1853 = vpack.c.b16 %v1821, %v1817
    %1886 = vmatprep.subr.bf16.mxu0 %v1823
    %1887 = vmatpush1.bf16.msra.mxu0 %v1822
    %1888 = vmatprep.subr.bf16.mxu0 %v1827
    %1889 = vmatpush1.bf16.msra.mxu0 %v1826
    %1890 = vmatprep.subr.bf16.mxu0 %v1831
    %1891 = vmatpush1.bf16.msra.mxu0 %v1830
    %1892 = vmatprep.subr.bf16.mxu0 %v1835
    %1893 = vmatpush1.bf16.msra.mxu0 %v1834
    %1894 = vmatprep.subr.bf16.mxu0 %v1839
    %1895 = vmatpush1.bf16.msra.mxu0 %v1838
    %1896 = vmatprep.subr.bf16.mxu0 %v1843
    %1897 = vmatpush1.bf16.msra.mxu0 %v1842
    %1898 = vmatprep.subr.bf16.mxu0 %v1847
    %1899 = vmatpush1.bf16.msra.mxu0 %v1846
    %1900 = vmatprep.subr.bf16.mxu0 %v1851
    %1901 = vmatpush1.bf16.msra.mxu0 %v1850
    %1902 = vmatprep.subr.bf16.mxu0 0
    %1903 = vmatpush1.bf16.msra.mxu0 0
    %1904 = vmatprep.subr.bf16.mxu0 0
    %1905 = vmatpush1.bf16.msra.mxu0 0
    %1906 = vmatprep.subr.bf16.mxu0 0
    %1907 = vmatpush1.bf16.msra.mxu0 0
    %1908 = vmatprep.subr.bf16.mxu0 0
    %1909 = vmatpush1.bf16.msra.mxu0 0
    %1910 = vmatprep.subr.bf16.mxu0 0
    %1911 = vmatpush1.bf16.msra.mxu0 0
    %1912 = vmatprep.subr.bf16.mxu0 0
    %1913 = vmatpush1.bf16.msra.mxu0 0
    %1914 = vmatprep.subr.bf16.mxu0 0
    %1915 = vmatpush1.bf16.msra.mxu0 0
    %1916 = vmatprep.subr.bf16.mxu0 0
    %1917 = vmatpush1.bf16.msra.mxu0 0
    %1918 = vmatprep.mubr.bf16.mxu0 0
    %1919 = vmatmul.mubr.bf16.gmra.mrb[0].mxu0 %v1670
    %v1920 = vpop.f32.mrb[0].mxu0
    %v1921 = vadd.f32 %v1709, %v1920
    %v1922 = vpop.f32.mrb[0].mxu0
    %v1923 = vadd.f32 %v1713, %v1922
    %v1924 = vpop.f32.mrb[0].mxu0
    %v1925 = vadd.f32 %v1709, %v1924
    %v1926 = vpop.f32.mrb[0].mxu0
    %v1927 = vadd.f32 %v1713, %v1926
    %1928 = vmatprep.mubr.bf16.mxu0 0
    %1929 = vmatmul.mubr.bf16.gmra.mrb[0].mxu0 %v1671
    %v1930 = vpop.f32.mrb[0].mxu0
    %v1931 = vadd.f32 %v1709, %v1930
    %v1932 = vpop.f32.mrb[0].mxu0
    %v1933 = vadd.f32 %v1713, %v1932
    %v1934 = vpop.f32.mrb[0].mxu0
    %v1935 = vadd.f32 %v1709, %v1934
    %v1936 = vpop.f32.mrb[0].mxu0
    %v1937 = vadd.f32 %v1713, %v1936
    %1938 = vdwg.mxu0
    %1939 = vmatprep.subr.bf16.mxu0 %v1825
    %1940 = vmatpush1.bf16.msra.mxu0 %v1824
    %1941 = vmatprep.subr.bf16.mxu0 %v1829
    %1942 = vmatpush1.bf16.msra.mxu0 %v1828
    %1943 = vmatprep.subr.bf16.mxu0 %v1833
    %1944 = vmatpush1.bf16.msra.mxu0 %v1832
    %1945 = vmatprep.subr.bf16.mxu0 %v1837
    %1946 = vmatpush1.bf16.msra.mxu0 %v1836
    %1947 = vmatprep.subr.bf16.mxu0 %v1841
    %1948 = vmatpush1.bf16.msra.mxu0 %v1840
    %1949 = vmatprep.subr.bf16.mxu0 %v1845
    %1950 = vmatpush1.bf16.msra.mxu0 %v1844
    %1951 = vmatprep.subr.bf16.mxu0 %v1849
    %1952 = vmatpush1.bf16.msra.mxu0 %v1848
    %1953 = vmatprep.subr.bf16.mxu0 %v1853
    %1954 = vmatpush1.bf16.msra.mxu0 %v1852
    %1955 = vmatprep.subr.bf16.mxu0 0
    %1956 = vmatpush1.bf16.msra.mxu0 0
    %1957 = vmatprep.subr.bf16.mxu0 0
    %1958 = vmatpush1.bf16.msra.mxu0 0
    %1959 = vmatprep.subr.bf16.mxu0 0
    %1960 = vmatpush1.bf16.msra.mxu0 0
    %1961 = vmatprep.subr.bf16.mxu0 0
    %1962 = vmatpush1.bf16.msra.mxu0 0
    %1963 = vmatprep.subr.bf16.mxu0 0
    %1964 = vmatpush1.bf16.msra.mxu0 0
    %1965 = vmatprep.subr.bf16.mxu0 0
    %1966 = vmatpush1.bf16.msra.mxu0 0
    %1967 = vmatprep.subr.bf16.mxu0 0
    %1968 = vmatpush1.bf16.msra.mxu0 0
    %1969 = vmatprep.subr.bf16.mxu0 0
    %1970 = vmatpush1.bf16.msra.mxu0 0
    %1971 = vmatprep.mubr.bf16.mxu0 0
    %1972 = vmatmul.mubr.bf16.gmra.mrb[0].mxu0 %v1670
    %v1973 = vpop.f32.mrb[0].mxu0
    %v1974 = vadd.f32 %v1717, %v1973
    %v1975 = vpop.f32.mrb[0].mxu0
    %v1976 = vadd.f32 %v1721, %v1975
    %v1977 = vpop.f32.mrb[0].mxu0
    %v1978 = vadd.f32 %v1717, %v1977
    %v1979 = vpop.f32.mrb[0].mxu0
    %v1980 = vadd.f32 %v1721, %v1979
    %1981 = vmatprep.mubr.bf16.mxu0 0
    %1982 = vmatmul.mubr.bf16.gmra.mrb[0].mxu0 %v1671
    %v1983 = vpop.f32.mrb[0].mxu0
    %v1984 = vadd.f32 %v1717, %v1983
    %v1985 = vpop.f32.mrb[0].mxu0
    %v1986 = vadd.f32 %v1721, %v1985
    %v1987 = vpop.f32.mrb[0].mxu0
    %v1988 = vadd.f32 %v1717, %v1987
    %v1989 = vpop.f32.mrb[0].mxu0
    %v1990 = vadd.f32 %v1721, %v1989
    %1991 = vdwg.mxu0
    %v1992 = vmul.f32 %v1921, 0.5
    %v1993 = vmul.f32 %v1923, 0.5
    %v1994 = vmul.f32 %v1974, 0.5
    %v1995 = vmul.f32 %v1976, 0.5
    %v1996 = vmul.f32 %v1925, 0.5
    %v1997 = vmul.f32 %v1927, 0.5
    %v1998 = vmul.f32 %v1978, 0.5
    %v1999 = vmul.f32 %v1980, 0.5
    %v2000 = vmul.f32 %v1931, 0.5
    %v2001 = vmul.f32 %v1933, 0.5
    %v2002 = vmul.f32 %v1984, 0.5
    %v2003 = vmul.f32 %v1986, 0.5
    %v2004 = vmul.f32 %v1935, 0.5
    %v2005 = vmul.f32 %v1937, 0.5
    %v2006 = vmul.f32 %v1988, 0.5
    %v2007 = vmul.f32 %v1990, 0.5
    %v2008 = vmul.f32 %v1921, 0.044715
    %v2009 = vmul.f32 %v1923, 0.044715
    %v2010 = vmul.f32 %v1974, 0.044715
    %v2011 = vmul.f32 %v1976, 0.044715
    %v2012 = vmul.f32 %v1925, 0.044715
    %v2013 = vmul.f32 %v1927, 0.044715
    %v2014 = vmul.f32 %v1978, 0.044715
    %v2015 = vmul.f32 %v1980, 0.044715
    %v2016 = vmul.f32 %v1931, 0.044715
    %v2017 = vmul.f32 %v1933, 0.044715
    %v2018 = vmul.f32 %v1984, 0.044715
    %v2019 = vmul.f32 %v1986, 0.044715
    %v2020 = vmul.f32 %v1935, 0.044715
    %v2021 = vmul.f32 %v1937, 0.044715
    %v2022 = vmul.f32 %v1988, 0.044715
    %v2023 = vmul.f32 %v1990, 0.044715
    %v2024 = vmul.f32 %v2008, %v1921
    %v2025 = vmul.f32 %v2009, %v1923
    %v2026 = vmul.f32 %v2010, %v1974
    %v2027 = vmul.f32 %v2011, %v1976
    %v2028 = vmul.f32 %v2012, %v1925
    %v2029 = vmul.f32 %v2013, %v1927
    %v2030 = vmul.f32 %v2014, %v1978
    %v2031 = vmul.f32 %v2015, %v1980
    %v2032 = vmul.f32 %v2016, %v1931
    %v2033 = vmul.f32 %v2017, %v1933
    %v2034 = vmul.f32 %v2018, %v1984
    %v2035 = vmul.f32 %v2019, %v1986
    %v2036 = vmul.f32 %v2020, %v1935
    %v2037 = vmul.f32 %v2021, %v1937
    %v2038 = vmul.f32 %v2022, %v1988
    %v2039 = vmul.f32 %v2023, %v1990
    %v2040 = vmul.f32 %v2024, %v1921
    %v2041 = vmul.f32 %v2025, %v1923
    %v2042 = vmul.f32 %v2026, %v1974
    %v2043 = vmul.f32 %v2027, %v1976
    %v2044 = vmul.f32 %v2028, %v1925
    %v2045 = vmul.f32 %v2029, %v1927
    %v2046 = vmul.f32 %v2030, %v1978
    %v2047 = vmul.f32 %v2031, %v1980
    %v2048 = vmul.f32 %v2032, %v1931
    %v2049 = vmul.f32 %v2033, %v1933
    %v2050 = vmul.f32 %v2034, %v1984
    %v2051 = vmul.f32 %v2035, %v1986
    %v2052 = vmul.f32 %v2036, %v1935
    %v2053 = vmul.f32 %v2037, %v1937
    %v2054 = vmul.f32 %v2038, %v1988
    %v2055 = vmul.f32 %v2039, %v1990
    %v2056 = vadd.f32 %v1921, %v2040
    %v2057 = vadd.f32 %v1923, %v2041
    %v2058 = vadd.f32 %v1974, %v2042
    %v2059 = vadd.f32 %v1976, %v2043
    %v2060 = vadd.f32 %v1925, %v2044
    %v2061 = vadd.f32 %v1927, %v2045
    %v2062 = vadd.f32 %v1978, %v2046
    %v2063 = vadd.f32 %v1980, %v2047
    %v2064 = vadd.f32 %v1931, %v2048
    %v2065 = vadd.f32 %v1933, %v2049
    %v2066 = vadd.f32 %v1984, %v2050
    %v2067 = vadd.f32 %v1986, %v2051
    %v2068 = vadd.f32 %v1935, %v2052
    %v2069 = vadd.f32 %v1937, %v2053
    %v2070 = vadd.f32 %v1988, %v2054
    %v2071 = vadd.f32 %v1990, %v2055
    %v2072 = vmul.f32 %v2056, 0.7978846
    %v2073 = vmul.f32 %v2057, 0.7978846
    %v2074 = vmul.f32 %v2058, 0.7978846
    %v2075 = vmul.f32 %v2059, 0.7978846
    %v2076 = vmul.f32 %v2060, 0.7978846
    %v2077 = vmul.f32 %v2061, 0.7978846
    %v2078 = vmul.f32 %v2062, 0.7978846
    %v2079 = vmul.f32 %v2063, 0.7978846
    %v2080 = vmul.f32 %v2064, 0.7978846
    %v2081 = vmul.f32 %v2065, 0.7978846
    %v2082 = vmul.f32 %v2066, 0.7978846
    %v2083 = vmul.f32 %v2067, 0.7978846
    %v2084 = vmul.f32 %v2068, 0.7978846
    %v2085 = vmul.f32 %v2069, 0.7978846
    %v2086 = vmul.f32 %v2070, 0.7978846
    %v2087 = vmul.f32 %v2071, 0.7978846
    %v2088 = vtanh.pop %v2072
    %v2089 = vtanh.pop %v2073
    %v2090 = vtanh.pop %v2074
    %v2091 = vtanh.pop %v2075
    %v2092 = vtanh.pop %v2076
    %v2093 = vtanh.pop %v2077
    %v2094 = vtanh.pop %v2078
    %v2095 = vtanh.pop %v2079
    %v2096 = vtanh.pop %v2080
    %v2097 = vtanh.pop %v2081
    %v2098 = vtanh.pop %v2082
    %v2099 = vtanh.pop %v2083
    %v2100 = vtanh.pop %v2084
    %v2101 = vtanh.pop %v2085
    %v2102 = vtanh.pop %v2086
    %v2103 = vtanh.pop %v2087
    %v2104 = vadd.f32 %v2088, 1.0
    %v2105 = vadd.f32 %v2089, 1.0
    %v2106 = vadd.f32 %v2090, 1.0
    %v2107 = vadd.f32 %v2091, 1.0
    %v2108 = vadd.f32 %v2092, 1.0
    %v2109 = vadd.f32 %v2093, 1.0
    %v2110 = vadd.f32 %v2094, 1.0
    %v2111 = vadd.f32 %v2095, 1.0
    %v2112 = vadd.f32 %v2096, 1.0
    %v2113 = vadd.f32 %v2097, 1.0
    %v2114 = vadd.f32 %v2098, 1.0
    %v2115 = vadd.f32 %v2099, 1.0
    %v2116 = vadd.f32 %v2100, 1.0
    %v2117 = vadd.f32 %v2101, 1.0
    %v2118 = vadd.f32 %v2102, 1.0
    %v2119 = vadd.f32 %v2103, 1.0
    %v2120 = vmul.f32 %v1992, %v2104
    %v2121 = vmul.f32 %v1993, %v2105
    %v2122 = vmul.f32 %v1994, %v2106
    %v2123 = vmul.f32 %v1995, %v2107
    %v2124 = vmul.f32 %v1996, %v2108
    %v2125 = vmul.f32 %v1997, %v2109
    %v2126 = vmul.f32 %v1998, %v2110
    %v2127 = vmul.f32 %v1999, %v2111
    %v2128 = vmul.f32 %v2000, %v2112
    %v2129 = vmul.f32 %v2001, %v2113
    %v2130 = vmul.f32 %v2002, %v2114
    %v2131 = vmul.f32 %v2003, %v2115
    %v2132 = vmul.f32 %v2004, %v2116
    %v2133 = vmul.f32 %v2005, %v2117
    %v2134 = vmul.f32 %v2006, %v2118
    %v2135 = vmul.f32 %v2007, %v2119
    %v2136 = vpack.c.bf16 %v2124, %v2120
    %v2137 = vpack.c.bf16 %v2125, %v2121
    %v2138 = vpack.c.bf16 %v2126, %v2122
    %v2139 = vpack.c.bf16 %v2127, %v2123
    %v2140 = vpack.c.bf16 %v2132, %v2128
    %v2141 = vpack.c.bf16 %v2133, %v2129
    %v2142 = vpack.c.bf16 %v2134, %v2130
    %v2143 = vpack.c.bf16 %v2135, %v2131
    %v2144 = vld [vmem:[#allocation11] sm:$0xf]
    %v2145 = vld [vmem:[#allocation11 + $0x4] sm:$0xf]
    %v2146 = vld [vmem:[#allocation11 + $0x8] sm:$0xf]
    %v2147 = vld [vmem:[#allocation11 + $0xc] sm:$0xf]
    %v2148 = vld [vmem:[#allocation11 + $0x10] sm:$0xf]
    %v2149 = vld [vmem:[#allocation11 + $0x14] sm:$0xf]
    %v2150 = vld [vmem:[#allocation11 + $0x18] sm:$0xf]
    %v2151 = vld [vmem:[#allocation11 + $0x1c] sm:$0xf]
    %v2152 = vld [vmem:[#allocation11 + $0x20] sm:$0xf]
    %v2153 = vld [vmem:[#allocation11 + $0x24] sm:$0xf]
    %v2154 = vld [vmem:[#allocation11 + $0x28] sm:$0xf]
    %v2155 = vld [vmem:[#allocation11 + $0x2c] sm:$0xf]
    %v2156 = vld [vmem:[#allocation11 + $0x30] sm:$0xf]
    %v2157 = vld [vmem:[#allocation11 + $0x34] sm:$0xf]
    %v2158 = vld [vmem:[#allocation11 + $0x38] sm:$0xf]
    %v2159 = vld [vmem:[#allocation11 + $0x3c] sm:$0xf]
    %v2160 = vld [vmem:[#allocation11 + $0x40] sm:$0xf]
    %v2161 = vld [vmem:[#allocation11 + $0x44] sm:$0xf]
    %v2162 = vld [vmem:[#allocation11 + $0x48] sm:$0xf]
    %v2163 = vld [vmem:[#allocation11 + $0x4c] sm:$0xf]
    %v2164 = vld [vmem:[#allocation11 + $0x50] sm:$0xf]
    %v2165 = vld [vmem:[#allocation11 + $0x54] sm:$0xf]
    %v2166 = vld [vmem:[#allocation11 + $0x58] sm:$0xf]
    %v2167 = vld [vmem:[#allocation11 + $0x5c] sm:$0xf]
    %v2168 = vld [vmem:[#allocation11 + $0x60] sm:$0xf]
    %v2169 = vld [vmem:[#allocation11 + $0x64] sm:$0xf]
    %v2170 = vld [vmem:[#allocation11 + $0x68] sm:$0xf]
    %v2171 = vld [vmem:[#allocation11 + $0x6c] sm:$0xf]
    %v2172 = vld [vmem:[#allocation11 + $0x70] sm:$0xf]
    %v2173 = vld [vmem:[#allocation11 + $0x74] sm:$0xf]
    %v2174 = vld [vmem:[#allocation11 + $0x78] sm:$0xf]
    %v2175 = vld [vmem:[#allocation11 + $0x7c] sm:$0xf]
    %v2176 = vld [vmem:[#allocation11 + $0x80] sm:$0xf]
    %v2177 = vld [vmem:[#allocation11 + $0x84] sm:$0xf]
    %v2178 = vld [vmem:[#allocation11 + $0x88] sm:$0xf]
    %v2179 = vld [vmem:[#allocation11 + $0x8c] sm:$0xf]
    %v2180 = vld [vmem:[#allocation11 + $0x90] sm:$0xf]
    %v2181 = vld [vmem:[#allocation11 + $0x94] sm:$0xf]
    %v2182 = vld [vmem:[#allocation11 + $0x98] sm:$0xf]
    %v2183 = vld [vmem:[#allocation11 + $0x9c] sm:$0xf]
    %v2184 = vld [vmem:[#allocation11 + $0xa0] sm:$0xf]
    %v2185 = vld [vmem:[#allocation11 + $0xa4] sm:$0xf]
    %v2186 = vld [vmem:[#allocation11 + $0xa8] sm:$0xf]
    %v2187 = vld [vmem:[#allocation11 + $0xac] sm:$0xf]
    %v2188 = vld [vmem:[#allocation11 + $0xb0] sm:$0xf]
    %v2189 = vld [vmem:[#allocation11 + $0xb4] sm:$0xf]
    %v2190 = vld [vmem:[#allocation11 + $0xb8] sm:$0xf]
    %v2191 = vld [vmem:[#allocation11 + $0xbc] sm:$0xf]
    %v2192 = vld [vmem:[#allocation11 + $0xc0] sm:$0xf]
    %v2193 = vld [vmem:[#allocation11 + $0xc4] sm:$0xf]
    %v2194 = vld [vmem:[#allocation11 + $0xc8] sm:$0xf]
    %v2195 = vld [vmem:[#allocation11 + $0xcc] sm:$0xf]
    %v2196 = vld [vmem:[#allocation11 + $0xd0] sm:$0xf]
    %v2197 = vld [vmem:[#allocation11 + $0xd4] sm:$0xf]
    %v2198 = vld [vmem:[#allocation11 + $0xd8] sm:$0xf]
    %v2199 = vld [vmem:[#allocation11 + $0xdc] sm:$0xf]
    %v2200 = vld [vmem:[#allocation11 + $0xe0] sm:$0xf]
    %v2201 = vld [vmem:[#allocation11 + $0xe4] sm:$0xf]
    %v2202 = vld [vmem:[#allocation11 + $0xe8] sm:$0xf]
    %v2203 = vld [vmem:[#allocation11 + $0xec] sm:$0xf]
    %v2204 = vld [vmem:[#allocation11 + $0xf0] sm:$0xf]
    %v2205 = vld [vmem:[#allocation11 + $0xf4] sm:$0xf]
    %v2206 = vld [vmem:[#allocation11 + $0xf8] sm:$0xf]
    %v2207 = vld [vmem:[#allocation11 + $0xfc] sm:$0xf]
    %v2208 = vld [vmem:[%s10] sm:$0x1]
    %v2210 = vlaneseq
    %v2211 = vshrl.u32 %v2210, 7
    %v2212 = vsub.s32 0, %v2211
    %v2213 = vrot.slane %v2208, %v2212
    %v2279 = vunpack.c.l.b16 %v2144
    %v2280 = vunpack.c.l.b16 %v2145
    %v2281 = vunpack.c.l.b16 %v2146
    %v2282 = vunpack.c.l.b16 %v2147
    %v2283 = vunpack.c.l.b16 %v2148
    %v2284 = vunpack.c.l.b16 %v2149
    %v2285 = vunpack.c.l.b16 %v2150
    %v2286 = vunpack.c.l.b16 %v2151
    %v2287 = vunpack.c.l.b16 %v2152
    %v2288 = vunpack.c.l.b16 %v2153
    %v2289 = vunpack.c.l.b16 %v2154
    %v2290 = vunpack.c.l.b16 %v2155
    %v2291 = vunpack.c.l.b16 %v2156
    %v2292 = vunpack.c.l.b16 %v2157
    %v2293 = vunpack.c.l.b16 %v2158
    %v2294 = vunpack.c.l.b16 %v2159
    %v2295 = vunpack.c.l.b16 %v2160
    %v2296 = vunpack.c.l.b16 %v2161
    %v2297 = vunpack.c.l.b16 %v2162
    %v2298 = vunpack.c.l.b16 %v2163
    %v2299 = vunpack.c.l.b16 %v2164
    %v2300 = vunpack.c.l.b16 %v2165
    %v2301 = vunpack.c.l.b16 %v2166
    %v2302 = vunpack.c.l.b16 %v2167
    %v2303 = vunpack.c.l.b16 %v2168
    %v2304 = vunpack.c.l.b16 %v2169
    %v2305 = vunpack.c.l.b16 %v2170
    %v2306 = vunpack.c.l.b16 %v2171
    %v2307 = vunpack.c.l.b16 %v2172
    %v2308 = vunpack.c.l.b16 %v2173
    %v2309 = vunpack.c.l.b16 %v2174
    %v2310 = vunpack.c.l.b16 %v2175
    %v2311 = vunpack.c.l.b16 %v2176
    %v2312 = vunpack.c.l.b16 %v2177
    %v2313 = vunpack.c.l.b16 %v2178
    %v2314 = vunpack.c.l.b16 %v2179
    %v2315 = vunpack.c.l.b16 %v2180
    %v2316 = vunpack.c.l.b16 %v2181
    %v2317 = vunpack.c.l.b16 %v2182
    %v2318 = vunpack.c.l.b16 %v2183
    %v2319 = vunpack.c.l.b16 %v2184
    %v2320 = vunpack.c.l.b16 %v2185
    %v2321 = vunpack.c.l.b16 %v2186
    %v2322 = vunpack.c.l.b16 %v2187
    %v2323 = vunpack.c.l.b16 %v2188
    %v2324 = vunpack.c.l.b16 %v2189
    %v2325 = vunpack.c.l.b16 %v2190
    %v2326 = vunpack.c.l.b16 %v2191
    %v2327 = vunpack.c.l.b16 %v2192
    %v2328 = vunpack.c.l.b16 %v2193
    %v2329 = vunpack.c.l.b16 %v2194
    %v2330 = vunpack.c.l.b16 %v2195
    %v2331 = vunpack.c.l.b16 %v2196
    %v2332 = vunpack.c.l.b16 %v2197
    %v2333 = vunpack.c.l.b16 %v2198
    %v2334 = vunpack.c.l.b16 %v2199
    %v2335 = vunpack.c.l.b16 %v2200
    %v2336 = vunpack.c.l.b16 %v2201
    %v2337 = vunpack.c.l.b16 %v2202
    %v2338 = vunpack.c.l.b16 %v2203
    %v2339 = vunpack.c.l.b16 %v2204
    %v2340 = vunpack.c.l.b16 %v2205
    %v2341 = vunpack.c.l.b16 %v2206
    %v2342 = vunpack.c.l.b16 %v2207
    %v2343 = vpack.c.b16 %v2280, %v2279
    %v2344 = vpack.c.b16 %v2282, %v2281
    %v2345 = vpack.c.b16 %v2284, %v2283
    %v2346 = vpack.c.b16 %v2286, %v2285
    %v2347 = vpack.c.b16 %v2288, %v2287
    %v2348 = vpack.c.b16 %v2290, %v2289
    %v2349 = vpack.c.b16 %v2292, %v2291
    %v2350 = vpack.c.b16 %v2294, %v2293
    %v2351 = vpack.c.b16 %v2296, %v2295
    %v2352 = vpack.c.b16 %v2298, %v2297
    %v2353 = vpack.c.b16 %v2300, %v2299
    %v2354 = vpack.c.b16 %v2302, %v2301
    %v2355 = vpack.c.b16 %v2304, %v2303
    %v2356 = vpack.c.b16 %v2306, %v2305
    %v2357 = vpack.c.b16 %v2308, %v2307
    %v2358 = vpack.c.b16 %v2310, %v2309
    %v2359 = vpack.c.b16 %v2312, %v2311
    %v2360 = vpack.c.b16 %v2314, %v2313
    %v2361 = vpack.c.b16 %v2316, %v2315
    %v2362 = vpack.c.b16 %v2318, %v2317
    %v2363 = vpack.c.b16 %v2320, %v2319
    %v2364 = vpack.c.b16 %v2322, %v2321
    %v2365 = vpack.c.b16 %v2324, %v2323
    %v2366 = vpack.c.b16 %v2326, %v2325
    %v2367 = vpack.c.b16 %v2328, %v2327
    %v2368 = vpack.c.b16 %v2330, %v2329
    %v2369 = vpack.c.b16 %v2332, %v2331
    %v2370 = vpack.c.b16 %v2334, %v2333
    %v2371 = vpack.c.b16 %v2336, %v2335
    %v2372 = vpack.c.b16 %v2338, %v2337
    %v2373 = vpack.c.b16 %v2340, %v2339
    %v2374 = vpack.c.b16 %v2342, %v2341
    %2407 = vmatprep.subr.bf16.mxu0 0
    %2408 = vmatpush1.bf16.msra.mxu0 %v2343
    %2409 = vmatprep.subr.bf16.mxu0 0
    %2410 = vmatpush1.bf16.msra.mxu0 %v2344
    %2411 = vmatprep.subr.bf16.mxu0 0
    %2412 = vmatpush1.bf16.msra.mxu0 %v2345
    %2413 = vmatprep.subr.bf16.mxu0 0
    %2414 = vmatpush1.bf16.msra.mxu0 %v2346
    %2415 = vmatprep.subr.bf16.mxu0 0
    %2416 = vmatpush1.bf16.msra.mxu0 %v2347
    %2417 = vmatprep.subr.bf16.mxu0 0
    %2418 = vmatpush1.bf16.msra.mxu0 %v2348
    %2419 = vmatprep.subr.bf16.mxu0 0
    %2420 = vmatpush1.bf16.msra.mxu0 %v2349
    %2421 = vmatprep.subr.bf16.mxu0 0
    %2422 = vmatpush1.bf16.msra.mxu0 %v2350
    %2423 = vmatprep.subr.bf16.mxu0 0
    %2424 = vmatpush1.bf16.msra.mxu0 %v2351
    %2425 = vmatprep.subr.bf16.mxu0 0
    %2426 = vmatpush1.bf16.msra.mxu0 %v2352
    %2427 = vmatprep.subr.bf16.mxu0 0
    %2428 = vmatpush1.bf16.msra.mxu0 %v2353
    %2429 = vmatprep.subr.bf16.mxu0 0
    %2430 = vmatpush1.bf16.msra.mxu0 %v2354
    %2431 = vmatprep.subr.bf16.mxu0 0
    %2432 = vmatpush1.bf16.msra.mxu0 %v2355
    %2433 = vmatprep.subr.bf16.mxu0 0
    %2434 = vmatpush1.bf16.msra.mxu0 %v2356
    %2435 = vmatprep.subr.bf16.mxu0 0
    %2436 = vmatpush1.bf16.msra.mxu0 %v2357
    %2437 = vmatprep.subr.bf16.mxu0 0
    %2438 = vmatpush1.bf16.msra.mxu0 %v2358
    %2439 = vmatprep.mubr.bf16.mxu0 %v2137
    %2440 = vmatmul.mubr.bf16.gmra.mrb[0].mxu0 %v2136
    %v2441 = vpop.f32.mrb[0].mxu0
    %v2442 = vadd.f32 %v2213, %v2441
    %v2443 = vpop.f32.mrb[0].mxu0
    %v2444 = vpop.f32.mrb[0].mxu0
    %v2445 = vadd.f32 %v2213, %v2444
    %v2446 = vpop.f32.mrb[0].mxu0
    %2447 = vmatprep.mubr.bf16.mxu0 %v2141
    %2448 = vmatmul.mubr.bf16.gmra.mrb[0].mxu0 %v2140
    %v2449 = vpop.f32.mrb[0].mxu0
    %v2450 = vadd.f32 %v2213, %v2449
    %v2451 = vpop.f32.mrb[0].mxu0
    %v2452 = vpop.f32.mrb[0].mxu0
    %v2453 = vadd.f32 %v2213, %v2452
    %v2454 = vpop.f32.mrb[0].mxu0
    %2455 = vdwg.mxu0
    %2456 = vmatprep.subr.bf16.mxu0 0
    %2457 = vmatpush1.bf16.msra.mxu0 %v2359
    %2458 = vmatprep.subr.bf16.mxu0 0
    %2459 = vmatpush1.bf16.msra.mxu0 %v2360
    %2460 = vmatprep.subr.bf16.mxu0 0
    %2461 = vmatpush1.bf16.msra.mxu0 %v2361
    %2462 = vmatprep.subr.bf16.mxu0 0
    %2463 = vmatpush1.bf16.msra.mxu0 %v2362
    %2464 = vmatprep.subr.bf16.mxu0 0
    %2465 = vmatpush1.bf16.msra.mxu0 %v2363
    %2466 = vmatprep.subr.bf16.mxu0 0
    %2467 = vmatpush1.bf16.msra.mxu0 %v2364
    %2468 = vmatprep.subr.bf16.mxu0 0
    %2469 = vmatpush1.bf16.msra.mxu0 %v2365
    %2470 = vmatprep.subr.bf16.mxu0 0
    %2471 = vmatpush1.bf16.msra.mxu0 %v2366
    %2472 = vmatprep.subr.bf16.mxu0 0
    %2473 = vmatpush1.bf16.msra.mxu0 %v2367
    %2474 = vmatprep.subr.bf16.mxu0 0
    %2475 = vmatpush1.bf16.msra.mxu0 %v2368
    %2476 = vmatprep.subr.bf16.mxu0 0
    %2477 = vmatpush1.bf16.msra.mxu0 %v2369
    %2478 = vmatprep.subr.bf16.mxu0 0
    %2479 = vmatpush1.bf16.msra.mxu0 %v2370
    %2480 = vmatprep.subr.bf16.mxu0 0
    %2481 = vmatpush1.bf16.msra.mxu0 %v2371
    %2482 = vmatprep.subr.bf16.mxu0 0
    %2483 = vmatpush1.bf16.msra.mxu0 %v2372
    %2484 = vmatprep.subr.bf16.mxu0 0
    %2485 = vmatpush1.bf16.msra.mxu0 %v2373
    %2486 = vmatprep.subr.bf16.mxu0 0
    %2487 = vmatpush1.bf16.msra.mxu0 %v2374
    %2488 = vmatprep.mubr.bf16.mxu0 %v2139
    %2489 = vmatmul.mubr.bf16.gmra.mrb[0].mxu0 %v2138
    %v2490 = vpop.f32.mrb[0].mxu0
    %v2491 = vadd.f32 %v2442, %v2490
    %v2492 = vpop.f32.mrb[0].mxu0
    %v2493 = vpop.f32.mrb[0].mxu0
    %v2494 = vadd.f32 %v2445, %v2493
    %v2495 = vpop.f32.mrb[0].mxu0
    %2496 = vmatprep.mubr.bf16.mxu0 %v2143
    %2497 = vmatmul.mubr.bf16.gmra.mrb[0].mxu0 %v2142
    %v2498 = vpop.f32.mrb[0].mxu0
    %v2499 = vadd.f32 %v2450, %v2498
    %v2500 = vpop.f32.mrb[0].mxu0
    %v2501 = vpop.f32.mrb[0].mxu0
    %v2502 = vadd.f32 %v2453, %v2501
    %v2503 = vpop.f32.mrb[0].mxu0
    %2504 = vdwg.mxu0
    %v2505 = vadd.f32 %v1666, %v2491
    %v2506 = vadd.f32 %v1667, %v2494
    %v2507 = vadd.f32 %v1668, %v2499
    %v2508 = vadd.f32 %v1669, %v2502
    %v2509 = vld [vmem:[%s11] sm:$0x1]
    %v2510 = vld [vmem:[%s12] sm:$0x1]
    %2511 = vadd.xlane.f32.xlu0 %v2505
    %v2512 = vpop.xlane.xlu0 %2511
    %2513 = vadd.xlane.f32.xlu0 %v2506
    %v2514 = vpop.xlane.xlu0 %2513
    %2515 = vadd.xlane.f32.xlu0 %v2507
    %v2516 = vpop.xlane.xlu0 %2515
    %2517 = vadd.xlane.f32.xlu0 %v2508
    %v2518 = vpop.xlane.xlu0 %2517
    %v2519 = vmul.f32 %v2512, %v1613
    %v2520 = vmul.f32 %v2514, %v1613
    %v2521 = vmul.f32 %v2516, %v1613
    %v2522 = vmul.f32 %v2518, %v1613
    %v2523 = vsub.f32 %v2505, %v2519
    %v2524 = vsub.f32 %v2506, %v2520
    %v2525 = vsub.f32 %v2507, %v2521
    %v2526 = vsub.f32 %v2508, %v2522
    %v2527 = vmul.f32 %v2523, %v2523
    %v2528 = vmul.f32 %v2524, %v2524
    %v2529 = vmul.f32 %v2525, %v2525
    %v2530 = vmul.f32 %v2526, %v2526
    %2531 = vadd.xlane.f32.xlu0 %v2527
    %v2532 = vpop.xlane.xlu0 %2531
    %2533 = vadd.xlane.f32.xlu0 %v2528
    %v2534 = vpop.xlane.xlu0 %2533
    %2535 = vadd.xlane.f32.xlu0 %v2529
    %v2536 = vpop.xlane.xlu0 %2535
    %2537 = vadd.xlane.f32.xlu0 %v2530
    %v2538 = vpop.xlane.xlu0 %2537
    %v2539 = vmul.f32 %v2532, %v1613
    %v2540 = vmul.f32 %v2534, %v1613
    %v2541 = vmul.f32 %v2536, %v1613
    %v2542 = vmul.f32 %v2538, %v1613
    %v2543 = vadd.f32 %v2539, 1e-05
    %v2544 = vadd.f32 %v2540, 1e-05
    %v2545 = vadd.f32 %v2541, 1e-05
    %v2546 = vadd.f32 %v2542, 1e-05
    %v2547 = vrsqrt.pop %v2543
    %v2548 = vrsqrt.pop %v2544
    %v2549 = vrsqrt.pop %v2545
    %v2550 = vrsqrt.pop %v2546
    %v2551 = vmul.f32 %v2523, %v2547
    %v2552 = vmul.f32 %v2524, %v2548
    %v2553 = vmul.f32 %v2525, %v2549
    %v2554 = vmul.f32 %v2526, %v2550
    %v2556 = vlaneseq
    %v2557 = vshrl.u32 %v2556, 7
    %v2558 = vsub.s32 0, %v2557
    %v2559 = vrot.slane %v2509, %v2558
    %v2561 = vmul.f32 %v2551, %v2559
    %v2562 = vmul.f32 %v2552, %v2559
    %v2563 = vmul.f32 %v2553, %v2559
    %v2564 = vmul.f32 %v2554, %v2559
    %v2566 = vlaneseq
    %v2567 = vshrl.u32 %v2566, 7
    %v2568 = vsub.s32 0, %v2567
    %v2569 = vrot.slane %v2510, %v2568
    %v2571 = vadd.f32 %v2561, %v2569
    %v2572 = vadd.f32 %v2562, %v2569
    %v2573 = vadd.f32 %v2563, %v2569
    %v2574 = vadd.f32 %v2564, %v2569
    %2575 = vst [vmem:[#allocation12] sm:$0xff] %v2571
    %2576 = vst [vmem:[#allocation12 + $0x8] sm:$0xff] %v2572
    %2577 = vst [vmem:[#allocation12 + $0x10] sm:$0xff] %v2573
    %2578 = vst [vmem:[#allocation12 + $0x18] sm:$0xff] %v2574
    // Predicated region
    $region74: #{tpu_custom_call.1} parent=1 // pred_check
      _
    $region75: #{tpu_custom_call.1} parent=1 // pred_check_branch
      %2580 = sbr.rel (0) target = $region77
    $region76: #{tpu_custom_call.1} parent=1 // pred_region
      %s2582 = ssub.s32 512, 512
      %2583 = vsyncadd [#allocation5], %s2582
      %s2584 = sshll.u32 [#allocation12], 4
      %s2585 = int_to_ptr.vmem [resolvable:$true] %s2584
      %2590 = dma.vmem_to_hbm [thread:$0]  %s2585, 512, %s13, [#allocation5], 128, 128, 8
    $region77: #{tpu_custom_call.1} parent=1 // pred_fallthru
      _
    // Predicated region
    $region78: #{tpu_custom_call.1} parent=1 // pred_check
      _
    $region79: #{tpu_custom_call.1} parent=1 // pred_check_branch
      %2592 = sbr.rel (0) target = $region81
    $region80: #{tpu_custom_call.1} parent=1 // pred_region
      %2593 = dma.done [#allocation5], 512
    $region81: #{tpu_custom_call.1} parent=1 // pred_fallthru
      _
    %2594 = vsyncpa [#allocation4], 1
    %2595 = vsyncpa [#allocation7], 1
    %2596 = vsyncpa [#allocation10], 1
    %2597 = vsyncpa [#allocation5], 1

</llo_original>
